<compile_context>
chip_gen: v5e
topology: v5e:2x2
jax: 0.10.0
libtpu: 0.0.40
codegen_flags: <defaults>
</compile_context>

<pallas_src>
from functools import partial

import jax
import jax.numpy as jnp
from jax.experimental import pallas as pl
from jax.experimental.pallas import tpu as pltpu

LANE = 128  # vreg lane width; channel-padding target


def _normal_block_kernel(x_ref, w_ref, gamma_ref, beta_ref, o_ref,
                         xbuf_ref, acc_ref, *,
                         KH, KW, pad, eps, relu):
    """One grid step = one BasicBlock of the fused NormalBlock.

    x_ref:     (N, H, W, CP)              channel-padded input (read at block 0)
    w_ref:     (1, KH*KW, CP, CP)         this block's per-tap conv weights
    gamma_ref: (1, 1, CP)                 BN weight
    beta_ref:  (1, 1, CP)                 BN bias
    o_ref:     (N, H, W, CP)              output (written at last block)
    xbuf_ref:  (N, H+2p, Wp8, CP)         spatially padded activation (scratch,
                                          bf16 when mxu_bf16 else f32)
    acc_ref:   (N*H*W, CP) f32            conv-output accumulator (scratch)
    """
    blk = pl.program_id(0)
    last = pl.num_programs(0) - 1
    N, H, W, CP = o_ref.shape
    rows = N * H * W
    cdtype = xbuf_ref.dtype

    # First block: zero the padded buffer once and place the input in its
    # interior.  The untouched zero border (and the extra sublane padding at
    # the right edge, which is never read) provides the conv's spatial
    # zero-padding for every block.
    @pl.when(blk == 0)
    def _():
        xbuf_ref[...] = jnp.zeros_like(xbuf_ref)
        xbuf_ref[:, pad:pad + H, pad:pad + W, :] = x_ref[...].astype(cdtype)

    # 3x3 conv as 9 accumulating K=128 MXU matmuls (no im2col buffer).
    # TODO(synk): the dx=1/2 slices cross the 8-sublane boundary; a pltpu.roll
    # on the W axis could move that shift to the (idle) XLU slot.
    for dy in range(KH):
        for dx in range(KW):
            t = dy * KW + dx
            lhs = xbuf_ref[:, dy:dy + H, dx:dx + W, :].reshape(rows, CP)
            contrib = jnp.dot(lhs, w_ref[0, t],
                              preferred_element_type=jnp.float32)
            if t == 0:
                acc_ref[...] = contrib
            else:
                acc_ref[...] += contrib

    # BatchNorm2d (training mode) over (N, H, W): two-pass stats (mean, then
    # centered sum-of-squares) for numerical safety; gamma/beta folded into a
    # single per-channel scale/shift FMA; rsqrt lands on the EUP.
    y = acc_ref[...]                                    # (rows, CP) f32
    inv_rows = jnp.float32(1.0 / rows)
    mean = jnp.sum(y, axis=0, keepdims=True) * inv_rows
    yc = y - mean
    var = jnp.sum(yc * yc, axis=0, keepdims=True) * inv_rows
    inv = jax.lax.rsqrt(var + eps)                      # EUP slot
    scale = gamma_ref[0] * inv                          # (1, CP)
    y = yc * scale + beta_ref[0]
    if relu:  # BasicBlock nonlinearity (activation='relu'); default '' -> skip
        y = jnp.maximum(y, 0.0)

    y4 = y.reshape(N, H, W, CP)

    # Feed the next block (border of xbuf stays zero) or emit the output.
    @pl.when(blk < last)
    def _():
        xbuf_ref[:, pad:pad + H, pad:pad + W, :] = y4.astype(cdtype)

    @pl.when(blk == last)
    def _():
        o_ref[...] = y4.astype(o_ref.dtype)


def _pick_vmem_limit(needed_bytes):
    """Per-generation VMEM limit: footprint + headroom, capped below physical."""
    try:
        phys = pltpu.get_tpu_info().vmem_capacity_bytes
    except Exception:
        phys = 64 * 1024 * 1024  # conservative (v7x-sized) fallback
    want = max(int(needed_bytes * 1.5) + (8 << 20), 32 << 20)
    return min(want, int(phys * 0.85))


def normal_block_forward(x_nhwc, params, *, pad=1, activation='', eps=1e-5,
                         mxu_bf16=True):
    """NormalBlock.forward (defaults: bn=True, activation='', binary=False).

    BinaryActivation(binary=False) is the identity, so it is a no-op before
    each conv.
    """
    # TODO(synk): binary=True paths of BinaryActivation / HardBinaryConv (sign
    # approximation + scaled-sign weights), the 'prelu' activation, and BN
    # running_mean/running_var updates are not implemented; only the
    # non-binary ''-or-'relu' forward output is reproduced.
    relu = activation.lower() == 'relu'
    N, H, W, Cin = x_nhwc.shape
    KH, KW, _, Cout = params[0][0].shape
    n = len(params)

    # Fused kernel keeps a single activation buffer across blocks: require a
    # "same"-size conv (module defaults ks=3, stride=1, pad=1).
    assert KH == 2 * pad + 1 and KW == 2 * pad + 1, "fused kernel assumes 'same' conv"
    CP = LANE
    assert Cin <= CP and Cout <= CP

    cdtype = jnp.bfloat16 if mxu_bf16 else jnp.float32

    # Lane-dense channel padding of the input (padded channels stay zero
    # throughout: padded weight rows/cols are zero and padded beta is zero).
    x_p = jnp.pad(x_nhwc, ((0, 0), (0, 0), (0, 0), (0, CP - Cin)))

    # Stack per-block parameters, channel-padded; weights pre-cast on the host
    # to the MXU operand dtype (halves weight DMA when bf16).
    w_list, g_list, b_list = [], [], []
    for (w, gamma, beta) in params:
        kh, kw, ci, co = w.shape
        w_pad = jnp.zeros((KH, KW, CP, CP), jnp.float32)
        w_pad = w_pad.at[:, :, :ci, :co].set(w.astype(jnp.float32))
        w_list.append(w_pad.reshape(KH * KW, CP, CP).astype(cdtype))
        g_list.append(jnp.pad(gamma.astype(jnp.float32), (0, CP - co),
                              constant_values=1.0).reshape(1, CP))
        b_list.append(jnp.pad(beta.astype(jnp.float32),
                              (0, CP - co)).reshape(1, CP))
    w_all = jnp.stack(w_list)   # (n, KH*KW, CP, CP) in cdtype
    g_all = jnp.stack(g_list)   # (n, 1, CP) f32
    b_all = jnp.stack(b_list)   # (n, 1, CP) f32

    Hp = H + 2 * pad
    Wp = W + 2 * pad
    Wp8 = (Wp + 7) // 8 * 8     # sublane-align the padded width
    rows = N * H * W

    # VMEM budget: scratches + double-buffered input/weight/output blocks.
    cbytes = jnp.dtype(cdtype).itemsize
    scratch_bytes = N * Hp * Wp8 * CP * cbytes + rows * CP * 4
    block_bytes = 2 * (N * H * W * CP * x_p.dtype.itemsize          # input
                       + KH * KW * CP * CP * cbytes                 # weights
                       + 2 * CP * 4                                 # gamma/beta
                       + N * H * W * CP * x_nhwc.dtype.itemsize)    # output
    vmem_limit = _pick_vmem_limit(scratch_bytes + block_bytes)

    kernel = partial(_normal_block_kernel, KH=KH, KW=KW, pad=pad, eps=eps,
                     relu=relu)

    # TODO(synk): on v7x the single "arbitrary" block axis uses one TensorCore;
    # a core-parallel row split with a cross-core BN-stat reduction could give
    # up to ~2x there.
    out_padded = pl.pallas_call(
        kernel,
        out_shape=jax.ShapeDtypeStruct((N, H, W, CP), x_nhwc.dtype),
        grid=(n,),
        in_specs=[
            pl.BlockSpec((N, H, W, CP), lambda b: (0, 0, 0, 0)),       # input
            pl.BlockSpec((1, KH * KW, CP, CP), lambda b: (b, 0, 0, 0)),  # weights
            pl.BlockSpec((1, 1, CP), lambda b: (b, 0, 0)),             # gamma
            pl.BlockSpec((1, 1, CP), lambda b: (b, 0, 0)),             # beta
        ],
        out_specs=pl.BlockSpec((N, H, W, CP), lambda b: (0, 0, 0, 0)),
        scratch_shapes=[
            pltpu.VMEM((N, Hp, Wp8, CP), cdtype),    # padded activation
            pltpu.VMEM((rows, CP), jnp.float32),     # conv accumulator
        ],
        compiler_params=pltpu.CompilerParams(
            dimension_semantics=("arbitrary",),      # blocks are sequential
            vmem_limit_bytes=vmem_limit,
        ),
    )(x_p, w_all, g_all, b_all)

    # Slice the lane padding back off on the host.
    return out_padded[..., :Cout]


def init_normal_block_params(key, in_channels, out_channels, ks=3, n=1):
    """Deterministic parameter init mirroring NormalBlock.__init__ shapes.

    Conv weight: (ks, ks, Cin, Cout) in HWIO (PyTorch would be OIHW).
    BatchNorm: gamma=1, beta=0 (PyTorch defaults). Conv has no bias.
    """
    params = []
    cin = in_channels
    for _ in range(n):
        key, wk = jax.random.split(key)
        fan_in = cin * ks * ks
        w = jax.random.normal(wk, (ks, ks, cin, out_channels), jnp.float32)
        w = w * (2.0 / fan_in) ** 0.5
        gamma = jnp.ones((out_channels,), jnp.float32)
        beta = jnp.zeros((out_channels,), jnp.float32)
        params.append((w, gamma, beta))
        cin = out_channels
    return params


def _reference_forward(x_nhwc, params, *, pad=1, activation='', eps=1e-5):
    """Pure-JAX reference (conv_general_dilated + training-mode BN)."""
    relu = activation.lower() == 'relu'
    y = x_nhwc
    for (w, gamma, beta) in params:
        y = jax.lax.conv_general_dilated(
            y, w, window_strides=(1, 1), padding=[(pad, pad), (pad, pad)],
            dimension_numbers=('NHWC', 'HWIO', 'NHWC'))
        mean = jnp.mean(y, axis=(0, 1, 2), keepdims=True)
        var = jnp.mean((y - mean) ** 2, axis=(0, 1, 2), keepdims=True)
        y = (y - mean) * jax.lax.rsqrt(var + eps) * gamma + beta
        if relu:
            y = jnp.maximum(y, 0.0)
    return y


if __name__ == "__main__":
    key = jax.random.PRNGKey(0)
    key, xk = jax.random.split(key)

    # Small shapes consistent with the module: NCHW input like PyTorch.
    N, Cin, H, W = 2, 4, 16, 16
    Cout, n_blocks = 8, 2

    x_nchw = jax.random.normal(xk, (N, Cin, H, W), jnp.float32)
    x_nhwc = jnp.transpose(x_nchw, (0, 2, 3, 1))

    params = init_normal_block_params(key, Cin, Cout, ks=3, n=n_blocks)
    ref = _reference_forward(x_nhwc, params)

    # f32-MXU path: tight tolerance against the f32 reference.
    out_f32 = jax.block_until_ready(
        normal_block_forward(x_nhwc, params, mxu_bf16=False))
    assert out_f32.shape == (N, H, W, Cout), out_f32.shape
    err_f32 = float(jnp.max(jnp.abs(out_f32 - ref)))
    assert jnp.allclose(out_f32, ref, atol=2e-3, rtol=2e-3), err_f32

    # bf16-MXU path (default): bf16 operands perturb conv/BN stats slightly.
    out_bf16 = jax.block_until_ready(normal_block_forward(x_nhwc, params))
    assert out_bf16.shape == (N, H, W, Cout), out_bf16.shape
    err_bf16 = float(jnp.max(jnp.abs(out_bf16 - ref)))
    assert jnp.allclose(out_bf16, ref, atol=6e-2, rtol=6e-2), err_bf16

    print("KERNEL_OK")
</pallas_src>

<mosaic_0001>
module attributes {stable_mosaic.version = 11 : i64} {
  func.func @_normal_block_kernel(%arg0: i32, %arg1: memref<2x16x16x128xf32, #tpu.memory_space<vmem>>, %arg2: memref<1x9x128x128xf32, #tpu.memory_space<vmem>>, %arg3: memref<1x1x128xf32, #tpu.memory_space<vmem>>, %arg4: memref<1x1x128xf32, #tpu.memory_space<vmem>>, %arg5: memref<2x16x16x128xf32, #tpu.memory_space<vmem>>, %arg6: memref<2x18x24x128xf32, #tpu.memory_space<vmem>>, %arg7: memref<512x128xf32, #tpu.memory_space<vmem>>) attributes {dimension_semantics = [#tpu.dimension_semantics<arbitrary>], iteration_bounds = array<i64: 2>, scalar_prefetch = 0 : i64, scratch_operands = 2 : i64, tpu.core_type = #tpu.core_type<tc>, window_params = [{pipeline_mode = #tpu.pipeline_mode<synchronous>, transform_indices = @transform_0, window_bounds = array<i64: 2, 16, 16, 128>}, {transform_indices = @transform_1, window_bounds = array<i64: 1, 9, 128, 128>}, {transform_indices = @transform_2, window_bounds = array<i64: 1, 1, 128>}, {transform_indices = @transform_3, window_bounds = array<i64: 1, 1, 128>}, {pipeline_mode = #tpu.pipeline_mode<synchronous>, transform_indices = @transform_4, window_bounds = array<i64: 2, 16, 16, 128>}]} {
    %c0_i32 = arith.constant 0 : i32
    %0 = arith.cmpi eq, %arg0, %c0_i32 : i32
    %1 = arith.extui %0 : i1 to i32
    %c0_i32_0 = arith.constant 0 : i32
    %2 = arith.cmpi ne, %1, %c0_i32_0 : i32
    scf.if %2 {
      %cst_122 = arith.constant 0.000000e+00 : f32
      %104 = vector.broadcast %cst_122 : f32 to vector<2x18x24x128xf32>
      %c0_123 = arith.constant 0 : index
      %c0_124 = arith.constant 0 : index
      %c0_125 = arith.constant 0 : index
      %c0_126 = arith.constant 0 : index
      %105 = vector.load %arg6[%c0_123, %c0_124, %c0_125, %c0_126] : memref<2x18x24x128xf32, #tpu.memory_space<vmem>>, vector<2x18x24x128xf32>
      tpu.vector_store %arg6[%c0_123, %c0_124, %c0_125, %c0_126], %104 {strides = array<i32>} : memref<2x18x24x128xf32, #tpu.memory_space<vmem>>, vector<2x18x24x128xf32>,
      %c0_127 = arith.constant 0 : index
      %c0_128 = arith.constant 0 : index
      %c0_129 = arith.constant 0 : index
      %c0_130 = arith.constant 0 : index
      %106 = vector.load %arg1[%c0_127, %c0_128, %c0_129, %c0_130] : memref<2x16x16x128xf32, #tpu.memory_space<vmem>>, vector<2x16x16x128xf32>
      %c0_131 = arith.constant 0 : index
      %c1_132 = arith.constant 1 : index
      %c1_133 = arith.constant 1 : index
      %c0_134 = arith.constant 0 : index
      %107 = vector.load %arg6[%c0_131, %c1_132, %c1_133, %c0_134] : memref<2x18x24x128xf32, #tpu.memory_space<vmem>>, vector<2x16x16x128xf32>
      tpu.vector_store %arg6[%c0_131, %c1_132, %c1_133, %c0_134], %106 {strides = array<i32>} : memref<2x18x24x128xf32, #tpu.memory_space<vmem>>, vector<2x16x16x128xf32>,
    } else {
    }
    %c0 = arith.constant 0 : index
    %c0_1 = arith.constant 0 : index
    %c0_2 = arith.constant 0 : index
    %c0_3 = arith.constant 0 : index
    %3 = vector.load %arg6[%c0, %c0_1, %c0_2, %c0_3] : memref<2x18x24x128xf32, #tpu.memory_space<vmem>>, vector<2x16x16x128xf32>
    %4 = vector.shape_cast %3 : vector<2x16x16x128xf32> to vector<512x128xf32>
    %c0_4 = arith.constant 0 : index
    %c0_5 = arith.constant 0 : index
    %c0_6 = arith.constant 0 : index
    %c0_7 = arith.constant 0 : index
    %5 = vector.load %arg2[%c0_4, %c0_5, %c0_6, %c0_7] : memref<1x9x128x128xf32, #tpu.memory_space<vmem>>, vector<1x1x128x128xf32>
    %6 = vector.shape_cast %5 : vector<1x1x128x128xf32> to vector<128x128xf32>
    %cst = arith.constant dense<0.000000e+00> : vector<512x128xf32>
    %7 = tpu.matmul %4, %6, %cst {dimension_numbers = #tpu.dot_dimension_numbers<[1], [0], [0], [1], [0, 0, 1, 1], [], []>} : vector<512x128xf32>, vector<128x128xf32>, vector<512x128xf32> -> vector<512x128xf32>
    %c0_8 = arith.constant 0 : index
    %c0_9 = arith.constant 0 : index
    %8 = vector.load %arg7[%c0_8, %c0_9] : memref<512x128xf32, #tpu.memory_space<vmem>>, vector<512x128xf32>
    tpu.vector_store %arg7[%c0_8, %c0_9], %7 {strides = array<i32>} : memref<512x128xf32, #tpu.memory_space<vmem>>, vector<512x128xf32>,
    %c0_10 = arith.constant 0 : index
    %c0_11 = arith.constant 0 : index
    %c1 = arith.constant 1 : index
    %c0_12 = arith.constant 0 : index
    %9 = vector.load %arg6[%c0_10, %c0_11, %c1, %c0_12] : memref<2x18x24x128xf32, #tpu.memory_space<vmem>>, vector<2x16x16x128xf32>
    %10 = vector.shape_cast %9 : vector<2x16x16x128xf32> to vector<512x128xf32>
    %c0_13 = arith.constant 0 : index
    %c1_14 = arith.constant 1 : index
    %c0_15 = arith.constant 0 : index
    %c0_16 = arith.constant 0 : index
    %11 = vector.load %arg2[%c0_13, %c1_14, %c0_15, %c0_16] : memref<1x9x128x128xf32, #tpu.memory_space<vmem>>, vector<1x1x128x128xf32>
    %12 = vector.shape_cast %11 : vector<1x1x128x128xf32> to vector<128x128xf32>
    %cst_17 = arith.constant dense<0.000000e+00> : vector<512x128xf32>
    %13 = tpu.matmul %10, %12, %cst_17 {dimension_numbers = #tpu.dot_dimension_numbers<[1], [0], [0], [1], [0, 0, 1, 1], [], []>} : vector<512x128xf32>, vector<128x128xf32>, vector<512x128xf32> -> vector<512x128xf32>
    %c0_18 = arith.constant 0 : index
    %c0_19 = arith.constant 0 : index
    %14 = vector.load %arg7[%c0_18, %c0_19] : memref<512x128xf32, #tpu.memory_space<vmem>>, vector<512x128xf32>
    %15 = arith.addf %14, %13 : vector<512x128xf32>
    %c0_20 = arith.constant 0 : index
    %c0_21 = arith.constant 0 : index
    %16 = vector.load %arg7[%c0_20, %c0_21] : memref<512x128xf32, #tpu.memory_space<vmem>>, vector<512x128xf32>
    tpu.vector_store %arg7[%c0_20, %c0_21], %15 {strides = array<i32>} : memref<512x128xf32, #tpu.memory_space<vmem>>, vector<512x128xf32>,
    %c0_22 = arith.constant 0 : index
    %c0_23 = arith.constant 0 : index
    %c2 = arith.constant 2 : index
    %c0_24 = arith.constant 0 : index
    %17 = vector.load %arg6[%c0_22, %c0_23, %c2, %c0_24] : memref<2x18x24x128xf32, #tpu.memory_space<vmem>>, vector<2x16x16x128xf32>
    %18 = vector.shape_cast %17 : vector<2x16x16x128xf32> to vector<512x128xf32>
    %c0_25 = arith.constant 0 : index
    %c2_26 = arith.constant 2 : index
    %c0_27 = arith.constant 0 : index
    %c0_28 = arith.constant 0 : index
    %19 = vector.load %arg2[%c0_25, %c2_26, %c0_27, %c0_28] : memref<1x9x128x128xf32, #tpu.memory_space<vmem>>, vector<1x1x128x128xf32>
    %20 = vector.shape_cast %19 : vector<1x1x128x128xf32> to vector<128x128xf32>
    %cst_29 = arith.constant dense<0.000000e+00> : vector<512x128xf32>
    %21 = tpu.matmul %18, %20, %cst_29 {dimension_numbers = #tpu.dot_dimension_numbers<[1], [0], [0], [1], [0, 0, 1, 1], [], []>} : vector<512x128xf32>, vector<128x128xf32>, vector<512x128xf32> -> vector<512x128xf32>
    %c0_30 = arith.constant 0 : index
    %c0_31 = arith.constant 0 : index
    %22 = vector.load %arg7[%c0_30, %c0_31] : memref<512x128xf32, #tpu.memory_space<vmem>>, vector<512x128xf32>
    %23 = arith.addf %22, %21 : vector<512x128xf32>
    %c0_32 = arith.constant 0 : index
    %c0_33 = arith.constant 0 : index
    %24 = vector.load %arg7[%c0_32, %c0_33] : memref<512x128xf32, #tpu.memory_space<vmem>>, vector<512x128xf32>
    tpu.vector_store %arg7[%c0_32, %c0_33], %23 {strides = array<i32>} : memref<512x128xf32, #tpu.memory_space<vmem>>, vector<512x128xf32>,
    %c0_34 = arith.constant 0 : index
    %c1_35 = arith.constant 1 : index
    %c0_36 = arith.constant 0 : index
    %c0_37 = arith.constant 0 : index
    %25 = vector.load %arg6[%c0_34, %c1_35, %c0_36, %c0_37] : memref<2x18x24x128xf32, #tpu.memory_space<vmem>>, vector<2x16x16x128xf32>
    %26 = vector.shape_cast %25 : vector<2x16x16x128xf32> to vector<512x128xf32>
    %c0_38 = arith.constant 0 : index
    %c3 = arith.constant 3 : index
    %c0_39 = arith.constant 0 : index
    %c0_40 = arith.constant 0 : index
    %27 = vector.load %arg2[%c0_38, %c3, %c0_39, %c0_40] : memref<1x9x128x128xf32, #tpu.memory_space<vmem>>, vector<1x1x128x128xf32>
    %28 = vector.shape_cast %27 : vector<1x1x128x128xf32> to vector<128x128xf32>
    %cst_41 = arith.constant dense<0.000000e+00> : vector<512x128xf32>
    %29 = tpu.matmul %26, %28, %cst_41 {dimension_numbers = #tpu.dot_dimension_numbers<[1], [0], [0], [1], [0, 0, 1, 1], [], []>} : vector<512x128xf32>, vector<128x128xf32>, vector<512x128xf32> -> vector<512x128xf32>
    %c0_42 = arith.constant 0 : index
    %c0_43 = arith.constant 0 : index
    %30 = vector.load %arg7[%c0_42, %c0_43] : memref<512x128xf32, #tpu.memory_space<vmem>>, vector<512x128xf32>
    %31 = arith.addf %30, %29 : vector<512x128xf32>
    %c0_44 = arith.constant 0 : index
    %c0_45 = arith.constant 0 : index
    %32 = vector.load %arg7[%c0_44, %c0_45] : memref<512x128xf32, #tpu.memory_space<vmem>>, vector<512x128xf32>
    tpu.vector_store %arg7[%c0_44, %c0_45], %31 {strides = array<i32>} : memref<512x128xf32, #tpu.memory_space<vmem>>, vector<512x128xf32>,
    %c0_46 = arith.constant 0 : index
    %c1_47 = arith.constant 1 : index
    %c1_48 = arith.constant 1 : index
    %c0_49 = arith.constant 0 : index
    %33 = vector.load %arg6[%c0_46, %c1_47, %c1_48, %c0_49] : memref<2x18x24x128xf32, #tpu.memory_space<vmem>>, vector<2x16x16x128xf32>
    %34 = vector.shape_cast %33 : vector<2x16x16x128xf32> to vector<512x128xf32>
    %c0_50 = arith.constant 0 : index
    %c4 = arith.constant 4 : index
    %c0_51 = arith.constant 0 : index
    %c0_52 = arith.constant 0 : index
    %35 = vector.load %arg2[%c0_50, %c4, %c0_51, %c0_52] : memref<1x9x128x128xf32, #tpu.memory_space<vmem>>, vector<1x1x128x128xf32>
    %36 = vector.shape_cast %35 : vector<1x1x128x128xf32> to vector<128x128xf32>
    %cst_53 = arith.constant dense<0.000000e+00> : vector<512x128xf32>
    %37 = tpu.matmul %34, %36, %cst_53 {dimension_numbers = #tpu.dot_dimension_numbers<[1], [0], [0], [1], [0, 0, 1, 1], [], []>} : vector<512x128xf32>, vector<128x128xf32>, vector<512x128xf32> -> vector<512x128xf32>
    %c0_54 = arith.constant 0 : index
    %c0_55 = arith.constant 0 : index
    %38 = vector.load %arg7[%c0_54, %c0_55] : memref<512x128xf32, #tpu.memory_space<vmem>>, vector<512x128xf32>
    %39 = arith.addf %38, %37 : vector<512x128xf32>
    %c0_56 = arith.constant 0 : index
    %c0_57 = arith.constant 0 : index
    %40 = vector.load %arg7[%c0_56, %c0_57] : memref<512x128xf32, #tpu.memory_space<vmem>>, vector<512x128xf32>
    tpu.vector_store %arg7[%c0_56, %c0_57], %39 {strides = array<i32>} : memref<512x128xf32, #tpu.memory_space<vmem>>, vector<512x128xf32>,
    %c0_58 = arith.constant 0 : index
    %c1_59 = arith.constant 1 : index
    %c2_60 = arith.constant 2 : index
    %c0_61 = arith.constant 0 : index
    %41 = vector.load %arg6[%c0_58, %c1_59, %c2_60, %c0_61] : memref<2x18x24x128xf32, #tpu.memory_space<vmem>>, vector<2x16x16x128xf32>
    %42 = vector.shape_cast %41 : vector<2x16x16x128xf32> to vector<512x128xf32>
    %c0_62 = arith.constant 0 : index
    %c5 = arith.constant 5 : index
    %c0_63 = arith.constant 0 : index
    %c0_64 = arith.constant 0 : index
    %43 = vector.load %arg2[%c0_62, %c5, %c0_63, %c0_64] : memref<1x9x128x128xf32, #tpu.memory_space<vmem>>, vector<1x1x128x128xf32>
    %44 = vector.shape_cast %43 : vector<1x1x128x128xf32> to vector<128x128xf32>
    %cst_65 = arith.constant dense<0.000000e+00> : vector<512x128xf32>
    %45 = tpu.matmul %42, %44, %cst_65 {dimension_numbers = #tpu.dot_dimension_numbers<[1], [0], [0], [1], [0, 0, 1, 1], [], []>} : vector<512x128xf32>, vector<128x128xf32>, vector<512x128xf32> -> vector<512x128xf32>
    %c0_66 = arith.constant 0 : index
    %c0_67 = arith.constant 0 : index
    %46 = vector.load %arg7[%c0_66, %c0_67] : memref<512x128xf32, #tpu.memory_space<vmem>>, vector<512x128xf32>
    %47 = arith.addf %46, %45 : vector<512x128xf32>
    %c0_68 = arith.constant 0 : index
    %c0_69 = arith.constant 0 : index
    %48 = vector.load %arg7[%c0_68, %c0_69] : memref<512x128xf32, #tpu.memory_space<vmem>>, vector<512x128xf32>
    tpu.vector_store %arg7[%c0_68, %c0_69], %47 {strides = array<i32>} : memref<512x128xf32, #tpu.memory_space<vmem>>, vector<512x128xf32>,
    %c0_70 = arith.constant 0 : index
    %c2_71 = arith.constant 2 : index
    %c0_72 = arith.constant 0 : index
    %c0_73 = arith.constant 0 : index
    %49 = vector.load %arg6[%c0_70, %c2_71, %c0_72, %c0_73] : memref<2x18x24x128xf32, #tpu.memory_space<vmem>>, vector<2x16x16x128xf32>
    %50 = vector.shape_cast %49 : vector<2x16x16x128xf32> to vector<512x128xf32>
    %c0_74 = arith.constant 0 : index
    %c6 = arith.constant 6 : index
    %c0_75 = arith.constant 0 : index
    %c0_76 = arith.constant 0 : index
    %51 = vector.load %arg2[%c0_74, %c6, %c0_75, %c0_76] : memref<1x9x128x128xf32, #tpu.memory_space<vmem>>, vector<1x1x128x128xf32>
    %52 = vector.shape_cast %51 : vector<1x1x128x128xf32> to vector<128x128xf32>
    %cst_77 = arith.constant dense<0.000000e+00> : vector<512x128xf32>
    %53 = tpu.matmul %50, %52, %cst_77 {dimension_numbers = #tpu.dot_dimension_numbers<[1], [0], [0], [1], [0, 0, 1, 1], [], []>} : vector<512x128xf32>, vector<128x128xf32>, vector<512x128xf32> -> vector<512x128xf32>
    %c0_78 = arith.constant 0 : index
    %c0_79 = arith.constant 0 : index
    %54 = vector.load %arg7[%c0_78, %c0_79] : memref<512x128xf32, #tpu.memory_space<vmem>>, vector<512x128xf32>
    %55 = arith.addf %54, %53 : vector<512x128xf32>
    %c0_80 = arith.constant 0 : index
    %c0_81 = arith.constant 0 : index
    %56 = vector.load %arg7[%c0_80, %c0_81] : memref<512x128xf32, #tpu.memory_space<vmem>>, vector<512x128xf32>
    tpu.vector_store %arg7[%c0_80, %c0_81], %55 {strides = array<i32>} : memref<512x128xf32, #tpu.memory_space<vmem>>, vector<512x128xf32>,
    %c0_82 = arith.constant 0 : index
    %c2_83 = arith.constant 2 : index
    %c1_84 = arith.constant 1 : index
    %c0_85 = arith.constant 0 : index
    %57 = vector.load %arg6[%c0_82, %c2_83, %c1_84, %c0_85] : memref<2x18x24x128xf32, #tpu.memory_space<vmem>>, vector<2x16x16x128xf32>
    %58 = vector.shape_cast %57 : vector<2x16x16x128xf32> to vector<512x128xf32>
    %c0_86 = arith.constant 0 : index
    %c7 = arith.constant 7 : index
    %c0_87 = arith.constant 0 : index
    %c0_88 = arith.constant 0 : index
    %59 = vector.load %arg2[%c0_86, %c7, %c0_87, %c0_88] : memref<1x9x128x128xf32, #tpu.memory_space<vmem>>, vector<1x1x128x128xf32>
    %60 = vector.shape_cast %59 : vector<1x1x128x128xf32> to vector<128x128xf32>
    %cst_89 = arith.constant dense<0.000000e+00> : vector<512x128xf32>
    %61 = tpu.matmul %58, %60, %cst_89 {dimension_numbers = #tpu.dot_dimension_numbers<[1], [0], [0], [1], [0, 0, 1, 1], [], []>} : vector<512x128xf32>, vector<128x128xf32>, vector<512x128xf32> -> vector<512x128xf32>
    %c0_90 = arith.constant 0 : index
    %c0_91 = arith.constant 0 : index
    %62 = vector.load %arg7[%c0_90, %c0_91] : memref<512x128xf32, #tpu.memory_space<vmem>>, vector<512x128xf32>
    %63 = arith.addf %62, %61 : vector<512x128xf32>
    %c0_92 = arith.constant 0 : index
    %c0_93 = arith.constant 0 : index
    %64 = vector.load %arg7[%c0_92, %c0_93] : memref<512x128xf32, #tpu.memory_space<vmem>>, vector<512x128xf32>
    tpu.vector_store %arg7[%c0_92, %c0_93], %63 {strides = array<i32>} : memref<512x128xf32, #tpu.memory_space<vmem>>, vector<512x128xf32>,
    %c0_94 = arith.constant 0 : index
    %c2_95 = arith.constant 2 : index
    %c2_96 = arith.constant 2 : index
    %c0_97 = arith.constant 0 : index
    %65 = vector.load %arg6[%c0_94, %c2_95, %c2_96, %c0_97] : memref<2x18x24x128xf32, #tpu.memory_space<vmem>>, vector<2x16x16x128xf32>
    %66 = vector.shape_cast %65 : vector<2x16x16x128xf32> to vector<512x128xf32>
    %c0_98 = arith.constant 0 : index
    %c8 = arith.constant 8 : index
    %c0_99 = arith.constant 0 : index
    %c0_100 = arith.constant 0 : index
    %67 = vector.load %arg2[%c0_98, %c8, %c0_99, %c0_100] : memref<1x9x128x128xf32, #tpu.memory_space<vmem>>, vector<1x1x128x128xf32>
    %68 = vector.shape_cast %67 : vector<1x1x128x128xf32> to vector<128x128xf32>
    %cst_101 = arith.constant dense<0.000000e+00> : vector<512x128xf32>
    %69 = tpu.matmul %66, %68, %cst_101 {dimension_numbers = #tpu.dot_dimension_numbers<[1], [0], [0], [1], [0, 0, 1, 1], [], []>} : vector<512x128xf32>, vector<128x128xf32>, vector<512x128xf32> -> vector<512x128xf32>
    %c0_102 = arith.constant 0 : index
    %c0_103 = arith.constant 0 : index
    %70 = vector.load %arg7[%c0_102, %c0_103] : memref<512x128xf32, #tpu.memory_space<vmem>>, vector<512x128xf32>
    %71 = arith.addf %70, %69 : vector<512x128xf32>
    %c0_104 = arith.constant 0 : index
    %c0_105 = arith.constant 0 : index
    %72 = vector.load %arg7[%c0_104, %c0_105] : memref<512x128xf32, #tpu.memory_space<vmem>>, vector<512x128xf32>
    tpu.vector_store %arg7[%c0_104, %c0_105], %71 {strides = array<i32>} : memref<512x128xf32, #tpu.memory_space<vmem>>, vector<512x128xf32>,
    %c0_106 = arith.constant 0 : index
    %c0_107 = arith.constant 0 : index
    %73 = vector.load %arg7[%c0_106, %c0_107] : memref<512x128xf32, #tpu.memory_space<vmem>>, vector<512x128xf32>
    %cst_108 = arith.constant dense<0.000000e+00> : vector<128xf32>
    %74 = vector.multi_reduction <add>, %73, %cst_108 [0] : vector<512x128xf32> to vector<128xf32>
    %75 = vector.shape_cast %74 : vector<128xf32> to vector<1x128xf32>
    %cst_109 = arith.constant 0.001953125 : f32
    %76 = vector.broadcast %cst_109 : f32 to vector<1x128xf32>
    %77 = arith.mulf %75, %76 : vector<1x128xf32>
    %78 = vector.broadcast %77 : vector<1x128xf32> to vector<512x128xf32>
    %79 = arith.subf %73, %78 : vector<512x128xf32>
    %80 = arith.mulf %79, %79 : vector<512x128xf32>
    %cst_110 = arith.constant dense<0.000000e+00> : vector<128xf32>
    %81 = vector.multi_reduction <add>, %80, %cst_110 [0] : vector<512x128xf32> to vector<128xf32>
    %82 = vector.shape_cast %81 : vector<128xf32> to vector<1x128xf32>
    %cst_111 = arith.constant 0.001953125 : f32
    %83 = vector.broadcast %cst_111 : f32 to vector<1x128xf32>
    %84 = arith.mulf %82, %83 : vector<1x128xf32>
    %cst_112 = arith.constant 9.99999974E-6 : f32
    %85 = vector.broadcast %cst_112 : f32 to vector<1x128xf32>
    %86 = arith.addf %84, %85 : vector<1x128xf32>
    %87 = math.rsqrt %86 : vector<1x128xf32>
    %c0_113 = arith.constant 0 : index
    %c0_114 = arith.constant 0 : index
    %c0_115 = arith.constant 0 : index
    %88 = vector.load %arg3[%c0_113, %c0_114, %c0_115] : memref<1x1x128xf32, #tpu.memory_space<vmem>>, vector<1x1x128xf32>
    %89 = vector.shape_cast %88 : vector<1x1x128xf32> to vector<1x128xf32>
    %90 = arith.mulf %89, %87 : vector<1x128xf32>
    %91 = vector.broadcast %90 : vector<1x128xf32> to vector<512x128xf32>
    %92 = arith.mulf %79, %91 : vector<512x128xf32>
    %c0_116 = arith.constant 0 : index
    %c0_117 = arith.constant 0 : index
    %c0_118 = arith.constant 0 : index
    %93 = vector.load %arg4[%c0_116, %c0_117, %c0_118] : memref<1x1x128xf32, #tpu.memory_space<vmem>>, vector<1x1x128xf32>
    %94 = vector.shape_cast %93 : vector<1x1x128xf32> to vector<1x128xf32>
    %95 = vector.broadcast %94 : vector<1x128xf32> to vector<512x128xf32>
    %96 = arith.addf %92, %95 : vector<512x128xf32>
    %97 = vector.shape_cast %96 : vector<512x128xf32> to vector<2x16x16x128xf32>
    %c1_i32 = arith.constant 1 : i32
    %98 = arith.cmpi slt, %arg0, %c1_i32 : i32
    %99 = arith.extui %98 : i1 to i32
    %c0_i32_119 = arith.constant 0 : i32
    %100 = arith.cmpi ne, %99, %c0_i32_119 : i32
    scf.if %100 {
      %c0_122 = arith.constant 0 : index
      %c1_123 = arith.constant 1 : index
      %c1_124 = arith.constant 1 : index
      %c0_125 = arith.constant 0 : index
      %104 = vector.load %arg6[%c0_122, %c1_123, %c1_124, %c0_125] : memref<2x18x24x128xf32, #tpu.memory_space<vmem>>, vector<2x16x16x128xf32>
      tpu.vector_store %arg6[%c0_122, %c1_123, %c1_124, %c0_125], %97 {strides = array<i32>} : memref<2x18x24x128xf32, #tpu.memory_space<vmem>>, vector<2x16x16x128xf32>,
    } else {
    }
    %c1_i32_120 = arith.constant 1 : i32
    %101 = arith.cmpi eq, %arg0, %c1_i32_120 : i32
    %102 = arith.extui %101 : i1 to i32
    %c0_i32_121 = arith.constant 0 : i32
    %103 = arith.cmpi ne, %102, %c0_i32_121 : i32
    scf.if %103 {
      %c0_122 = arith.constant 0 : index
      %c0_123 = arith.constant 0 : index
      %c0_124 = arith.constant 0 : index
      %c0_125 = arith.constant 0 : index
      %104 = vector.load %arg5[%c0_122, %c0_123, %c0_124, %c0_125] : memref<2x16x16x128xf32, #tpu.memory_space<vmem>>, vector<2x16x16x128xf32>
      tpu.vector_store %arg5[%c0_122, %c0_123, %c0_124, %c0_125], %97 {strides = array<i32>} : memref<2x16x16x128xf32, #tpu.memory_space<vmem>>, vector<2x16x16x128xf32>,
    } else {
    }
    return
  }
  func.func @transform_0(%arg0: i32) -> (i32, i32, i32, i32) {
    %c0_i32 = arith.constant 0 : i32
    %c0_i32_0 = arith.constant 0 : i32
    %c0_i32_1 = arith.constant 0 : i32
    %c0_i32_2 = arith.constant 0 : i32
    %c0_i32_3 = arith.constant 0 : i32
    return %c0_i32, %c0_i32_0, %c0_i32_1, %c0_i32_2 : i32, i32, i32, i32
  }
  func.func @transform_1(%arg0: i32) -> (i32, i32, i32, i32) {
    %c0_i32 = arith.constant 0 : i32
    %c0_i32_0 = arith.constant 0 : i32
    %c0_i32_1 = arith.constant 0 : i32
    %c0_i32_2 = arith.constant 0 : i32
    return %arg0, %c0_i32, %c0_i32_0, %c0_i32_1 : i32, i32, i32, i32
  }
  func.func @transform_2(%arg0: i32) -> (i32, i32, i32) {
    %c0_i32 = arith.constant 0 : i32
    %c0_i32_0 = arith.constant 0 : i32
    %c0_i32_1 = arith.constant 0 : i32
    return %arg0, %c0_i32, %c0_i32_0 : i32, i32, i32
  }
  func.func @transform_3(%arg0: i32) -> (i32, i32, i32) {
    %c0_i32 = arith.constant 0 : i32
    %c0_i32_0 = arith.constant 0 : i32
    %c0_i32_1 = arith.constant 0 : i32
    return %arg0, %c0_i32, %c0_i32_0 : i32, i32, i32
  }
  func.func @transform_4(%arg0: i32) -> (i32, i32, i32, i32) {
    %c0_i32 = arith.constant 0 : i32
    %c0_i32_0 = arith.constant 0 : i32
    %c0_i32_1 = arith.constant 0 : i32
    %c0_i32_2 = arith.constant 0 : i32
    %c0_i32_3 = arith.constant 0 : i32
    return %c0_i32, %c0_i32_0, %c0_i32_1, %c0_i32_2 : i32, i32, i32, i32
  }
}

</mosaic_0001>

<llo_original>
// kernel: tpu_custom_call.1
$region0: #{tpu_custom_call.1}
  #allocation0 [shape = 'u32[]', space=smem, size = 0x4, offset = 0x4, fixed_abs, tag = 'smem constant byte address 0x4 - core index']
  #allocation1 [shape = 'u32[72,128]{1,0:T(1,128)}', space=vmem, size = 0x9000, scoped, tag = 'internal scratch']
  #allocation2 [shape = 'f32[2,18,24,128]{3,2,1,0:T(8,128)}', space=vmem, size = 0x6c000, scoped, tag = 'scratch operand']
  #allocation3 [shape = 'f32[512,128]{1,0:T(8,128)}', space=vmem, size = 0x40000, scoped, tag = 'scratch operand']
  %s0 = inlined_call_operand.hbm [shape: f32[2,16,16,128], index: 0, kind: input, shape index: {}]
  %s1 = inlined_call_operand.hbm [shape: f32[2,9,128,128], index: 1, kind: input, shape index: {}]
  %s2 = inlined_call_operand.hbm [shape: f32[2,1,128], index: 2, kind: input, shape index: {}]
  %s3 = inlined_call_operand.hbm [shape: f32[2,1,128], index: 3, kind: input, shape index: {}]
  %s4 = inlined_call_operand.hbm [shape: f32[2,16,16,128], index: 4, kind: output, shape index: {}]
  %s5 = sld [smem:[#allocation0]]
  $region77: #{tpu_custom_call.1} parent=0
    _
  %s7 = ssub.s32 1, %s5
  %s8 = scalar_select 0, %s7, %s5
  $region1: #{tpu_custom_call.1} parent=0
    #allocation4 [shape = 'u8[262144]{0}', space=vmem, size = 0x40000, scoped, tag = 'input window, operand 0, single buffered']
    #allocation5 [shape = 's32[2]{0}', space=sflag, size = 0x8, scoped, tag = 'scoped memory for tpu_custom_call.1']
    #allocation6 [shape = 's32[2]{0}', space=sflag, size = 0x8, scoped, tag = 'scoped memory for tpu_custom_call.1']
    #allocation7 [shape = 'u8[1179648]{0}', space=vmem, size = 0x120000, scoped, tag = 'input window, operand 1']
    #allocation8 [shape = 's32[2]{0}', space=sflag, size = 0x8, scoped, tag = 'scoped memory for tpu_custom_call.1']
    #allocation9 [shape = 'u8[1024]{0}', space=vmem, size = 0x400, scoped, tag = 'input window, operand 2']
    #allocation10 [shape = 'u8[1024]{0}', space=vmem, size = 0x400, scoped, tag = 'input window, operand 3']
    #allocation11 [shape = 's32[2]{0}', space=sflag, size = 0x8, scoped, tag = 'scoped memory for tpu_custom_call.1']
    #allocation12 [shape = 'u8[262144]{0}', space=vmem, size = 0x40000, scoped, tag = 'output window, operand 0, single buffered']
    %9 = vsyncpa [#allocation5], 0
    %10 = vsyncpa [#allocation8], 0
    %s11 = scalar_lea.sflag [#allocation8], 1
    %12 = vsyncpa %s11, 0
    %13 = vsyncpa [#allocation11], 0
    %s14 = scalar_lea.sflag [#allocation11], 1
    %15 = vsyncpa %s14, 0
    %16 = vsyncpa [#allocation6], 0
    loop: start=0, step=1, limit=4
    $region2: #{tpu_custom_call.1} parent=1 // loop_pre_header
      _
    $region3: #{tpu_custom_call.1} parent=1 // loop_header
      %s18 = sphi 0, %s22
      %p19 = scmp.ge.s32.totalorder %s18, 4
      %s26 = sphi 0, %s26
      %s28 = sphi 0, %s26
      %s29 = sphi 0, %s28
      %s43 = sphi 0, %s29
      %s49 = sphi 0, %s51
      %s52 = sphi 0, %s49
      %s53 = sphi 0, %s52
      %s69 = sphi 0, %s53
      %s75 = sphi 0, %s77
      %s78 = sphi 0, %s75
      %s79 = sphi 0, %s78
      %s95 = sphi 0, %s79
      %s101 = sphi 0, %s103
      %s104 = sphi 0, %s101
      %s105 = sphi 0, %s104
      %s121 = sphi 0, %s105
      %s125 = sphi 0, %s125
      %s127 = sphi 0, %s125
      %s128 = sphi 0, %s127
      %s142 = sphi 0, %s128
    $region4: #{tpu_custom_call.1} parent=1 // loop_header_branch
      %21 = sbr.rel (%p19) target = $region8
    $region5: #{tpu_custom_call.1} parent=1 // loop_body
      %s23 = ssub.s32 %s18, 1
      %s24 = ssub.s32 %s18, 2
      %s25 = sadd.s32 %s18, 1
      %s27 = sadd.s32 %s26, 1
      %p30 = scmp.eq.s32.totalorder %s18, 1
      %p31 = scmp.ne.s32.totalorder %s26, %s28
      %p32 = scmp.eq.s32.totalorder %s18, 0
      %p33 = por %p31, %p32
      %p34 = scmp.ne.s32.totalorder %s26, %s28
      %p35 = scmp.eq.s32.totalorder %s23, 1
      %p36 = por %p34, %p35
      %p37 = scmp.ne.s32.totalorder %s28, %s29
      %p38 = scmp.eq.s32.totalorder %s23, 0
      %p39 = por %p37, %p38
      %p40 = scmp.ne.s32.totalorder %s28, %s29
      %p41 = scmp.eq.s32.totalorder %s24, 1
      %p42 = por %p40, %p41
      %p44 = scmp.ne.s32.totalorder %s29, %s43
      %p45 = scmp.eq.s32.totalorder %s24, 0
      %p46 = por %p44, %p45
      %s47 = ssub.s32 %s18, %s25
      %p48 = scmp.eq.s32.totalorder %s47, 0
      %s50 = sadd.s32 %s49, 1
      %s51 = scalar_select %p48, %s49, %s50
      %p54 = pneg %p48
      %p55 = scmp.eq.s32.totalorder %s18, 1
      %p56 = por %p54, %p55
      %p57 = scmp.ne.s32.totalorder %s49, %s52
      %p58 = scmp.eq.s32.totalorder %s18, 0
      %p59 = por %p57, %p58
      %p60 = scmp.ne.s32.totalorder %s49, %s52
      %p61 = scmp.eq.s32.totalorder %s23, 1
      %p62 = por %p60, %p61
      %p63 = scmp.ne.s32.totalorder %s52, %s53
      %p64 = scmp.eq.s32.totalorder %s23, 0
      %p65 = por %p63, %p64
      %p66 = scmp.ne.s32.totalorder %s52, %s53
      %p67 = scmp.eq.s32.totalorder %s24, 1
      %p68 = por %p66, %p67
      %p70 = scmp.ne.s32.totalorder %s53, %s69
      %p71 = scmp.eq.s32.totalorder %s24, 0
      %p72 = por %p70, %p71
      %s73 = ssub.s32 %s18, %s25
      %p74 = scmp.eq.s32.totalorder %s73, 0
      %s76 = sadd.s32 %s75, 1
      %s77 = scalar_select %p74, %s75, %s76
      %p80 = pneg %p74
      %p81 = scmp.eq.s32.totalorder %s18, 1
      %p82 = por %p80, %p81
      %p83 = scmp.ne.s32.totalorder %s75, %s78
      %p84 = scmp.eq.s32.totalorder %s18, 0
      %p85 = por %p83, %p84
      %p86 = scmp.ne.s32.totalorder %s75, %s78
      %p87 = scmp.eq.s32.totalorder %s23, 1
      %p88 = por %p86, %p87
      %p89 = scmp.ne.s32.totalorder %s78, %s79
      %p90 = scmp.eq.s32.totalorder %s23, 0
      %p91 = por %p89, %p90
      %p92 = scmp.ne.s32.totalorder %s78, %s79
      %p93 = scmp.eq.s32.totalorder %s24, 1
      %p94 = por %p92, %p93
      %p96 = scmp.ne.s32.totalorder %s79, %s95
      %p97 = scmp.eq.s32.totalorder %s24, 0
      %p98 = por %p96, %p97
      %s99 = ssub.s32 %s18, %s25
      %p100 = scmp.eq.s32.totalorder %s99, 0
      %s102 = sadd.s32 %s101, 1
      %s103 = scalar_select %p100, %s101, %s102
      %p106 = pneg %p100
      %p107 = scmp.eq.s32.totalorder %s18, 1
      %p108 = por %p106, %p107
      %p109 = scmp.ne.s32.totalorder %s101, %s104
      %p110 = scmp.eq.s32.totalorder %s18, 0
      %p111 = por %p109, %p110
      %p112 = scmp.ne.s32.totalorder %s101, %s104
      %p113 = scmp.eq.s32.totalorder %s23, 1
      %p114 = por %p112, %p113
      %p115 = scmp.ne.s32.totalorder %s104, %s105
      %p116 = scmp.eq.s32.totalorder %s23, 0
      %p117 = por %p115, %p116
      %p118 = scmp.ne.s32.totalorder %s104, %s105
      %p119 = scmp.eq.s32.totalorder %s24, 1
      %p120 = por %p118, %p119
      %p122 = scmp.ne.s32.totalorder %s105, %s121
      %p123 = scmp.eq.s32.totalorder %s24, 0
      %p124 = por %p122, %p123
      %s126 = sadd.s32 %s125, 1
      %p129 = scmp.eq.s32.totalorder %s18, 1
      %p130 = scmp.ne.s32.totalorder %s125, %s127
      %p131 = scmp.eq.s32.totalorder %s18, 0
      %p132 = por %p130, %p131
      %p133 = scmp.ne.s32.totalorder %s125, %s127
      %p134 = scmp.eq.s32.totalorder %s23, 1
      %p135 = por %p133, %p134
      %p136 = scmp.ne.s32.totalorder %s127, %s128
      %p137 = scmp.eq.s32.totalorder %s23, 0
      %p138 = por %p136, %p137
      %p139 = scmp.ne.s32.totalorder %s127, %s128
      %p140 = scmp.eq.s32.totalorder %s24, 1
      %p141 = por %p139, %p140
      %p143 = scmp.ne.s32.totalorder %s128, %s142
      %p144 = scmp.eq.s32.totalorder %s24, 0
      %p145 = por %p143, %p144
      %p146 = scmp.le.s32.totalorder 1, %s18
      %p147 = scmp.lt.s32.totalorder %s18, 3
      %p148 = pnand %p146, %p147
      %p149 = pneg %p148
      // Predicated region
      $region9: #{tpu_custom_call.1} parent=5 // pred_check
        _
      $region10: #{tpu_custom_call.1} parent=5 // pred_check_branch
        %151 = sbr.rel (%p148) target = $region12
      $region11: #{tpu_custom_call.1} parent=5 // pred_region
        %s152 = ssub.s32 %s18, 1
        // Predicated region
        $region13: #{tpu_custom_call.1} parent=11 // pred_check
          %p153 = pneg %p39
        $region14: #{tpu_custom_call.1} parent=11 // pred_check_branch
          %155 = sbr.rel (%p153) target = $region16
        $region15: #{tpu_custom_call.1} parent=11 // pred_region
          %157 = vsyncadd [#allocation5], 0
          %s158 = sshll.u32 %s0, 4
          %s159 = int_to_ptr.hbm [resolvable:$true] %s158
          %s160 = sshll.u32 [#allocation4], 4
          %s161 = int_to_ptr.vmem [resolvable:$true] %s160
          %166 = dma.hbm_to_vmem [thread:$0]  %s159, 8192, %s161, [#allocation5], 128, 128, 8
        $region16: #{tpu_custom_call.1} parent=11 // pred_fallthru
          _
      $region12: #{tpu_custom_call.1} parent=5 // pred_fallthru
        _
      %p167 = scmp.lt.s32.totalorder %s18, 2
      // Predicated region
      $region17: #{tpu_custom_call.1} parent=5 // pred_check
        %p168 = pneg %p167
      $region18: #{tpu_custom_call.1} parent=5 // pred_check_branch
        %170 = sbr.rel (%p168) target = $region20
      $region19: #{tpu_custom_call.1} parent=5 // pred_region
        // Predicated region
        $region21: #{tpu_custom_call.1} parent=19 // pred_check
          %p171 = pneg %p59
        $region22: #{tpu_custom_call.1} parent=19 // pred_check_branch
          %173 = sbr.rel (%p171) target = $region24
        $region23: #{tpu_custom_call.1} parent=19 // pred_region
          %s174 = sand.u32 %s18, 1
          %s175 = scalar_lea.sflag [#allocation8], %s174
          %s176 = sand.u32 %s49, 1
          %s177 = smul.addr %s176, 1152
          %s178 = scalar_lea.vmem [#allocation7], %s177
          %180 = vsyncadd %s175, 0
          %s181 = smul.addr %s18, 144
          %s182 = smul.addr %s181, 8
          %s183 = scalar_lea.hbm %s1, %s182
          %s184 = sshll.u32 %s183, 4
          %s185 = int_to_ptr.hbm [resolvable:$true] %s184
          %s186 = sshll.u32 %s178, 4
          %s187 = int_to_ptr.vmem [resolvable:$true] %s186
          %192 = dma.hbm_to_vmem [thread:$0]  %s185, 18432, %s187, %s175, 128, 128, 8
        $region24: #{tpu_custom_call.1} parent=19 // pred_fallthru
          _
        // Predicated region
        $region25: #{tpu_custom_call.1} parent=19 // pred_check
          %p193 = pneg %p85
        $region26: #{tpu_custom_call.1} parent=19 // pred_check_branch
          %195 = sbr.rel (%p193) target = $region28
        $region27: #{tpu_custom_call.1} parent=19 // pred_region
          %s196 = sand.u32 %s18, 1
          %s197 = scalar_lea.sflag [#allocation8], %s196
          %s198 = sand.u32 %s75, 1
          %s199 = scalar_lea.vmem [#allocation9], %s198
          %201 = vsyncadd %s197, 0
          %s202 = scalar_lea.hbm %s2, %s18
          %s204 = sshll.u32 %s202, 4
          %s205 = int_to_ptr.hbm [resolvable:$true] %s204
          %s206 = sshll.u32 %s199, 4
          %s207 = int_to_ptr.vmem [resolvable:$true] %s206
          %209 = dma.hbm_to_vmem [thread:$0]  %s205, 16, %s207, %s197
        $region28: #{tpu_custom_call.1} parent=19 // pred_fallthru
          _
        // Predicated region
        $region29: #{tpu_custom_call.1} parent=19 // pred_check
          %p210 = pneg %p111
        $region30: #{tpu_custom_call.1} parent=19 // pred_check_branch
          %212 = sbr.rel (%p210) target = $region32
        $region31: #{tpu_custom_call.1} parent=19 // pred_region
          %s213 = sand.u32 %s101, 1
          %s214 = scalar_lea.sflag [#allocation11], %s213
          %s215 = sand.u32 %s101, 1
          %s216 = scalar_lea.vmem [#allocation10], %s215
          %218 = vsyncadd %s214, 0
          %s219 = scalar_lea.hbm %s3, %s18
          %s221 = sshll.u32 %s219, 4
          %s222 = int_to_ptr.hbm [resolvable:$true] %s221
          %s223 = sshll.u32 %s216, 4
          %s224 = int_to_ptr.vmem [resolvable:$true] %s223
          %226 = dma.hbm_to_vmem [thread:$0]  %s222, 16, %s224, %s214
        $region32: #{tpu_custom_call.1} parent=19 // pred_fallthru
          _
      $region20: #{tpu_custom_call.1} parent=5 // pred_fallthru
        _
      %p227 = scmp.le.s32.totalorder 1, %s18
      %p228 = scmp.lt.s32.totalorder %s18, 3
      %p229 = pnand %p227, %p228
      %p230 = pneg %p229
      // Predicated region
      $region33: #{tpu_custom_call.1} parent=5 // pred_check
        _
      $region34: #{tpu_custom_call.1} parent=5 // pred_check_branch
        %232 = sbr.rel (%p229) target = $region36
      $region35: #{tpu_custom_call.1} parent=5 // pred_region
        %s233 = ssub.s32 %s18, 1
        // Predicated region
        $region37: #{tpu_custom_call.1} parent=35 // pred_check
          %p234 = pneg %p39
        $region38: #{tpu_custom_call.1} parent=35 // pred_check_branch
          %236 = sbr.rel (%p234) target = $region40
        $region39: #{tpu_custom_call.1} parent=35 // pred_region
          %238 = dma.done [#allocation5], 8192
        $region40: #{tpu_custom_call.1} parent=35 // pred_fallthru
          _
        %s239 = sand.u32 %s23, 1
        %s240 = scalar_lea.sflag [#allocation8], %s239
        %s241 = sand.u32 %s52, 1
        %s242 = smul.addr %s241, 1152
        %s243 = scalar_lea.vmem [#allocation7], %s242
        // Predicated region
        $region41: #{tpu_custom_call.1} parent=35 // pred_check
          %p244 = pneg %p65
        $region42: #{tpu_custom_call.1} parent=35 // pred_check_branch
          %246 = sbr.rel (%p244) target = $region44
        $region43: #{tpu_custom_call.1} parent=35 // pred_region
          %248 = dma.done %s240, 18432
        $region44: #{tpu_custom_call.1} parent=35 // pred_fallthru
          _
        %s249 = sand.u32 %s23, 1
        %s250 = scalar_lea.sflag [#allocation8], %s249
        %s251 = sand.u32 %s78, 1
        %s252 = scalar_lea.vmem [#allocation9], %s251
        // Predicated region
        $region45: #{tpu_custom_call.1} parent=35 // pred_check
          %p253 = pneg %p91
        $region46: #{tpu_custom_call.1} parent=35 // pred_check_branch
          %255 = sbr.rel (%p253) target = $region48
        $region47: #{tpu_custom_call.1} parent=35 // pred_region
          %257 = dma.done %s250, 16
        $region48: #{tpu_custom_call.1} parent=35 // pred_fallthru
          _
        %s258 = sand.u32 %s104, 1
        %s259 = scalar_lea.sflag [#allocation11], %s258
        %s260 = sand.u32 %s104, 1
        %s261 = scalar_lea.vmem [#allocation10], %s260
        // Predicated region
        $region49: #{tpu_custom_call.1} parent=35 // pred_check
          %p262 = pneg %p117
        $region50: #{tpu_custom_call.1} parent=35 // pred_check_branch
          %264 = sbr.rel (%p262) target = $region52
        $region51: #{tpu_custom_call.1} parent=35 // pred_region
          %266 = dma.done %s259, 16
        $region52: #{tpu_custom_call.1} parent=35 // pred_fallthru
          _
        %p267 = pneg %p39
        %p268 = pneg %p36
        %s269 = sand.u32 %s23, 1
        %s270 = scalar_lea.sflag [#allocation8], %s269
        %s271 = sand.u32 %s52, 1
        %s272 = smul.addr %s271, 1152
        %s273 = scalar_lea.vmem [#allocation7], %s272
        %p274 = pneg %p65
        %p275 = pneg %p62
        %s276 = sand.u32 %s23, 1
        %s277 = scalar_lea.sflag [#allocation8], %s276
        %s278 = sand.u32 %s78, 1
        %s279 = scalar_lea.vmem [#allocation9], %s278
        %p280 = pneg %p91
        %p281 = pneg %p88
        %s282 = sand.u32 %s104, 1
        %s283 = scalar_lea.sflag [#allocation11], %s282
        %s284 = sand.u32 %s104, 1
        %s285 = scalar_lea.vmem [#allocation10], %s284
        %p286 = pneg %p117
        %p287 = pneg %p114
        %p288 = pneg %p138
        %p289 = pneg %p135
        %p290 = scmp.eq.s32.totalorder %s23, 0
        // Predicated region
        $region53: #{tpu_custom_call.1} parent=35 // pred_check
          %p291 = pneg %p290
        $region54: #{tpu_custom_call.1} parent=35 // pred_check_branch
          %293 = sbr.rel (%p291) target = $region56
        $region55: #{tpu_custom_call.1} parent=35 // pred_region
          %294 = vst [vmem:[#allocation2] sm:$0xff] 0.0
          %295 = vst [vmem:[#allocation2 + $0x8] sm:$0xff] 0.0
          %296 = vst [vmem:[#allocation2 + $0x10] sm:$0xff] 0.0
          %297 = vst [vmem:[#allocation2 + $0x18] sm:$0xff] 0.0
          %298 = vst [vmem:[#allocation2 + $0x20] sm:$0xff] 0.0
          %299 = vst [vmem:[#allocation2 + $0x28] sm:$0xff] 0.0
          %300 = vst [vmem:[#allocation2 + $0x30] sm:$0xff] 0.0
          %301 = vst [vmem:[#allocation2 + $0x38] sm:$0xff] 0.0
          %302 = vst [vmem:[#allocation2 + $0x40] sm:$0xff] 0.0
          %303 = vst [vmem:[#allocation2 + $0x48] sm:$0xff] 0.0
          %304 = vst [vmem:[#allocation2 + $0x50] sm:$0xff] 0.0
          %305 = vst [vmem:[#allocation2 + $0x58] sm:$0xff] 0.0
          %306 = vst [vmem:[#allocation2 + $0x60] sm:$0xff] 0.0
          %307 = vst [vmem:[#allocation2 + $0x68] sm:$0xff] 0.0
          %308 = vst [vmem:[#allocation2 + $0x70] sm:$0xff] 0.0
          %309 = vst [vmem:[#allocation2 + $0x78] sm:$0xff] 0.0
          %310 = vst [vmem:[#allocation2 + $0x80] sm:$0xff] 0.0
          %311 = vst [vmem:[#allocation2 + $0x88] sm:$0xff] 0.0
          %312 = vst [vmem:[#allocation2 + $0x90] sm:$0xff] 0.0
          %313 = vst [vmem:[#allocation2 + $0x98] sm:$0xff] 0.0
          %314 = vst [vmem:[#allocation2 + $0xa0] sm:$0xff] 0.0
          %315 = vst [vmem:[#allocation2 + $0xa8] sm:$0xff] 0.0
          %316 = vst [vmem:[#allocation2 + $0xb0] sm:$0xff] 0.0
          %317 = vst [vmem:[#allocation2 + $0xb8] sm:$0xff] 0.0
          %318 = vst [vmem:[#allocation2 + $0xc0] sm:$0xff] 0.0
          %319 = vst [vmem:[#allocation2 + $0xc8] sm:$0xff] 0.0
          %320 = vst [vmem:[#allocation2 + $0xd0] sm:$0xff] 0.0
          %321 = vst [vmem:[#allocation2 + $0xd8] sm:$0xff] 0.0
          %322 = vst [vmem:[#allocation2 + $0xe0] sm:$0xff] 0.0
          %323 = vst [vmem:[#allocation2 + $0xe8] sm:$0xff] 0.0
          %324 = vst [vmem:[#allocation2 + $0xf0] sm:$0xff] 0.0
          %325 = vst [vmem:[#allocation2 + $0xf8] sm:$0xff] 0.0
          %326 = vst [vmem:[#allocation2 + $0x100] sm:$0xff] 0.0
          %327 = vst [vmem:[#allocation2 + $0x108] sm:$0xff] 0.0
          %328 = vst [vmem:[#allocation2 + $0x110] sm:$0xff] 0.0
          %329 = vst [vmem:[#allocation2 + $0x118] sm:$0xff] 0.0
          %330 = vst [vmem:[#allocation2 + $0x120] sm:$0xff] 0.0
          %331 = vst [vmem:[#allocation2 + $0x128] sm:$0xff] 0.0
          %332 = vst [vmem:[#allocation2 + $0x130] sm:$0xff] 0.0
          %333 = vst [vmem:[#allocation2 + $0x138] sm:$0xff] 0.0
          %334 = vst [vmem:[#allocation2 + $0x140] sm:$0xff] 0.0
          %335 = vst [vmem:[#allocation2 + $0x148] sm:$0xff] 0.0
          %336 = vst [vmem:[#allocation2 + $0x150] sm:$0xff] 0.0
          %337 = vst [vmem:[#allocation2 + $0x158] sm:$0xff] 0.0
          %338 = vst [vmem:[#allocation2 + $0x160] sm:$0xff] 0.0
          %339 = vst [vmem:[#allocation2 + $0x168] sm:$0xff] 0.0
          %340 = vst [vmem:[#allocation2 + $0x170] sm:$0xff] 0.0
          %341 = vst [vmem:[#allocation2 + $0x178] sm:$0xff] 0.0
          %342 = vst [vmem:[#allocation2 + $0x180] sm:$0xff] 0.0
          %343 = vst [vmem:[#allocation2 + $0x188] sm:$0xff] 0.0
          %344 = vst [vmem:[#allocation2 + $0x190] sm:$0xff] 0.0
          %345 = vst [vmem:[#allocation2 + $0x198] sm:$0xff] 0.0
          %346 = vst [vmem:[#allocation2 + $0x1a0] sm:$0xff] 0.0
          %347 = vst [vmem:[#allocation2 + $0x1a8] sm:$0xff] 0.0
          %348 = vst [vmem:[#allocation2 + $0x1b0] sm:$0xff] 0.0
          %349 = vst [vmem:[#allocation2 + $0x1b8] sm:$0xff] 0.0
          %350 = vst [vmem:[#allocation2 + $0x1c0] sm:$0xff] 0.0
          %351 = vst [vmem:[#allocation2 + $0x1c8] sm:$0xff] 0.0
          %352 = vst [vmem:[#allocation2 + $0x1d0] sm:$0xff] 0.0
          %353 = vst [vmem:[#allocation2 + $0x1d8] sm:$0xff] 0.0
          %354 = vst [vmem:[#allocation2 + $0x1e0] sm:$0xff] 0.0
          %355 = vst [vmem:[#allocation2 + $0x1e8] sm:$0xff] 0.0
          %356 = vst [vmem:[#allocation2 + $0x1f0] sm:$0xff] 0.0
          %357 = vst [vmem:[#allocation2 + $0x1f8] sm:$0xff] 0.0
          %358 = vst [vmem:[#allocation2 + $0x200] sm:$0xff] 0.0
          %359 = vst [vmem:[#allocation2 + $0x208] sm:$0xff] 0.0
          %360 = vst [vmem:[#allocation2 + $0x210] sm:$0xff] 0.0
          %361 = vst [vmem:[#allocation2 + $0x218] sm:$0xff] 0.0
          %362 = vst [vmem:[#allocation2 + $0x220] sm:$0xff] 0.0
          %363 = vst [vmem:[#allocation2 + $0x228] sm:$0xff] 0.0
          %364 = vst [vmem:[#allocation2 + $0x230] sm:$0xff] 0.0
          %365 = vst [vmem:[#allocation2 + $0x238] sm:$0xff] 0.0
          %366 = vst [vmem:[#allocation2 + $0x240] sm:$0xff] 0.0
          %367 = vst [vmem:[#allocation2 + $0x248] sm:$0xff] 0.0
          %368 = vst [vmem:[#allocation2 + $0x250] sm:$0xff] 0.0
          %369 = vst [vmem:[#allocation2 + $0x258] sm:$0xff] 0.0
          %370 = vst [vmem:[#allocation2 + $0x260] sm:$0xff] 0.0
          %371 = vst [vmem:[#allocation2 + $0x268] sm:$0xff] 0.0
          %372 = vst [vmem:[#allocation2 + $0x270] sm:$0xff] 0.0
          %373 = vst [vmem:[#allocation2 + $0x278] sm:$0xff] 0.0
          %374 = vst [vmem:[#allocation2 + $0x280] sm:$0xff] 0.0
          %375 = vst [vmem:[#allocation2 + $0x288] sm:$0xff] 0.0
          %376 = vst [vmem:[#allocation2 + $0x290] sm:$0xff] 0.0
          %377 = vst [vmem:[#allocation2 + $0x298] sm:$0xff] 0.0
          %378 = vst [vmem:[#allocation2 + $0x2a0] sm:$0xff] 0.0
          %379 = vst [vmem:[#allocation2 + $0x2a8] sm:$0xff] 0.0
          %380 = vst [vmem:[#allocation2 + $0x2b0] sm:$0xff] 0.0
          %381 = vst [vmem:[#allocation2 + $0x2b8] sm:$0xff] 0.0
          %382 = vst [vmem:[#allocation2 + $0x2c0] sm:$0xff] 0.0
          %383 = vst [vmem:[#allocation2 + $0x2c8] sm:$0xff] 0.0
          %384 = vst [vmem:[#allocation2 + $0x2d0] sm:$0xff] 0.0
          %385 = vst [vmem:[#allocation2 + $0x2d8] sm:$0xff] 0.0
          %386 = vst [vmem:[#allocation2 + $0x2e0] sm:$0xff] 0.0
          %387 = vst [vmem:[#allocation2 + $0x2e8] sm:$0xff] 0.0
          %388 = vst [vmem:[#allocation2 + $0x2f0] sm:$0xff] 0.0
          %389 = vst [vmem:[#allocation2 + $0x2f8] sm:$0xff] 0.0
          %390 = vst [vmem:[#allocation2 + $0x300] sm:$0xff] 0.0
          %391 = vst [vmem:[#allocation2 + $0x308] sm:$0xff] 0.0
          %392 = vst [vmem:[#allocation2 + $0x310] sm:$0xff] 0.0
          %393 = vst [vmem:[#allocation2 + $0x318] sm:$0xff] 0.0
          %394 = vst [vmem:[#allocation2 + $0x320] sm:$0xff] 0.0
          %395 = vst [vmem:[#allocation2 + $0x328] sm:$0xff] 0.0
          %396 = vst [vmem:[#allocation2 + $0x330] sm:$0xff] 0.0
          %397 = vst [vmem:[#allocation2 + $0x338] sm:$0xff] 0.0
          %398 = vst [vmem:[#allocation2 + $0x340] sm:$0xff] 0.0
          %399 = vst [vmem:[#allocation2 + $0x348] sm:$0xff] 0.0
          %400 = vst [vmem:[#allocation2 + $0x350] sm:$0xff] 0.0
          %401 = vst [vmem:[#allocation2 + $0x358] sm:$0xff] 0.0
          %v402 = vld [vmem:[#allocation4] sm:$0xff]
          %v403 = vld [vmem:[#allocation4 + $0x8] sm:$0xff]
          %v404 = vld [vmem:[#allocation4 + $0x10] sm:$0xff]
          %v405 = vld [vmem:[#allocation4 + $0x18] sm:$0xff]
          %v406 = vld [vmem:[#allocation4 + $0x20] sm:$0xff]
          %v407 = vld [vmem:[#allocation4 + $0x28] sm:$0xff]
          %v408 = vld [vmem:[#allocation4 + $0x30] sm:$0xff]
          %v409 = vld [vmem:[#allocation4 + $0x38] sm:$0xff]
          %v410 = vld [vmem:[#allocation4 + $0x40] sm:$0xff]
          %v411 = vld [vmem:[#allocation4 + $0x48] sm:$0xff]
          %v412 = vld [vmem:[#allocation4 + $0x50] sm:$0xff]
          %v413 = vld [vmem:[#allocation4 + $0x58] sm:$0xff]
          %v414 = vld [vmem:[#allocation4 + $0x60] sm:$0xff]
          %v415 = vld [vmem:[#allocation4 + $0x68] sm:$0xff]
          %v416 = vld [vmem:[#allocation4 + $0x70] sm:$0xff]
          %v417 = vld [vmem:[#allocation4 + $0x78] sm:$0xff]
          %v418 = vld [vmem:[#allocation4 + $0x80] sm:$0xff]
          %v419 = vld [vmem:[#allocation4 + $0x88] sm:$0xff]
          %v420 = vld [vmem:[#allocation4 + $0x90] sm:$0xff]
          %v421 = vld [vmem:[#allocation4 + $0x98] sm:$0xff]
          %v422 = vld [vmem:[#allocation4 + $0xa0] sm:$0xff]
          %v423 = vld [vmem:[#allocation4 + $0xa8] sm:$0xff]
          %v424 = vld [vmem:[#allocation4 + $0xb0] sm:$0xff]
          %v425 = vld [vmem:[#allocation4 + $0xb8] sm:$0xff]
          %v426 = vld [vmem:[#allocation4 + $0xc0] sm:$0xff]
          %v427 = vld [vmem:[#allocation4 + $0xc8] sm:$0xff]
          %v428 = vld [vmem:[#allocation4 + $0xd0] sm:$0xff]
          %v429 = vld [vmem:[#allocation4 + $0xd8] sm:$0xff]
          %v430 = vld [vmem:[#allocation4 + $0xe0] sm:$0xff]
          %v431 = vld [vmem:[#allocation4 + $0xe8] sm:$0xff]
          %v432 = vld [vmem:[#allocation4 + $0xf0] sm:$0xff]
          %v433 = vld [vmem:[#allocation4 + $0xf8] sm:$0xff]
          %v434 = vld [vmem:[#allocation4 + $0x100] sm:$0xff]
          %v435 = vld [vmem:[#allocation4 + $0x108] sm:$0xff]
          %v436 = vld [vmem:[#allocation4 + $0x110] sm:$0xff]
          %v437 = vld [vmem:[#allocation4 + $0x118] sm:$0xff]
          %v438 = vld [vmem:[#allocation4 + $0x120] sm:$0xff]
          %v439 = vld [vmem:[#allocation4 + $0x128] sm:$0xff]
          %v440 = vld [vmem:[#allocation4 + $0x130] sm:$0xff]
          %v441 = vld [vmem:[#allocation4 + $0x138] sm:$0xff]
          %v442 = vld [vmem:[#allocation4 + $0x140] sm:$0xff]
          %v443 = vld [vmem:[#allocation4 + $0x148] sm:$0xff]
          %v444 = vld [vmem:[#allocation4 + $0x150] sm:$0xff]
          %v445 = vld [vmem:[#allocation4 + $0x158] sm:$0xff]
          %v446 = vld [vmem:[#allocation4 + $0x160] sm:$0xff]
          %v447 = vld [vmem:[#allocation4 + $0x168] sm:$0xff]
          %v448 = vld [vmem:[#allocation4 + $0x170] sm:$0xff]
          %v449 = vld [vmem:[#allocation4 + $0x178] sm:$0xff]
          %v450 = vld [vmem:[#allocation4 + $0x180] sm:$0xff]
          %v451 = vld [vmem:[#allocation4 + $0x188] sm:$0xff]
          %v452 = vld [vmem:[#allocation4 + $0x190] sm:$0xff]
          %v453 = vld [vmem:[#allocation4 + $0x198] sm:$0xff]
          %v454 = vld [vmem:[#allocation4 + $0x1a0] sm:$0xff]
          %v455 = vld [vmem:[#allocation4 + $0x1a8] sm:$0xff]
          %v456 = vld [vmem:[#allocation4 + $0x1b0] sm:$0xff]
          %v457 = vld [vmem:[#allocation4 + $0x1b8] sm:$0xff]
          %v458 = vld [vmem:[#allocation4 + $0x1c0] sm:$0xff]
          %v459 = vld [vmem:[#allocation4 + $0x1c8] sm:$0xff]
          %v460 = vld [vmem:[#allocation4 + $0x1d0] sm:$0xff]
          %v461 = vld [vmem:[#allocation4 + $0x1d8] sm:$0xff]
          %v462 = vld [vmem:[#allocation4 + $0x1e0] sm:$0xff]
          %v463 = vld [vmem:[#allocation4 + $0x1e8] sm:$0xff]
          %v464 = vld [vmem:[#allocation4 + $0x1f0] sm:$0xff]
          %v465 = vld [vmem:[#allocation4 + $0x1f8] sm:$0xff]
          %s466 = scalar_lea.vmem [#allocation2], 24
          %467 = vst [vmem:[%s466 + $0x1] sm:$0xff] %v402
          %468 = vst [vmem:[%s466 + $0x9] sm:$0xff] %v403
          %469 = vst [vmem:[%s466 + $0x19] sm:$0xff] %v404
          %470 = vst [vmem:[%s466 + $0x21] sm:$0xff] %v405
          %471 = vst [vmem:[%s466 + $0x31] sm:$0xff] %v406
          %472 = vst [vmem:[%s466 + $0x39] sm:$0xff] %v407
          %473 = vst [vmem:[%s466 + $0x49] sm:$0xff] %v408
          %474 = vst [vmem:[%s466 + $0x51] sm:$0xff] %v409
          %475 = vst [vmem:[%s466 + $0x61] sm:$0xff] %v410
          %476 = vst [vmem:[%s466 + $0x69] sm:$0xff] %v411
          %477 = vst [vmem:[%s466 + $0x79] sm:$0xff] %v412
          %478 = vst [vmem:[%s466 + $0x81] sm:$0xff] %v413
          %479 = vst [vmem:[%s466 + $0x91] sm:$0xff] %v414
          %480 = vst [vmem:[%s466 + $0x99] sm:$0xff] %v415
          %481 = vst [vmem:[%s466 + $0xa9] sm:$0xff] %v416
          %482 = vst [vmem:[%s466 + $0xb1] sm:$0xff] %v417
          %483 = vst [vmem:[%s466 + $0xc1] sm:$0xff] %v418
          %484 = vst [vmem:[%s466 + $0xc9] sm:$0xff] %v419
          %485 = vst [vmem:[%s466 + $0xd9] sm:$0xff] %v420
          %486 = vst [vmem:[%s466 + $0xe1] sm:$0xff] %v421
          %487 = vst [vmem:[%s466 + $0xf1] sm:$0xff] %v422
          %488 = vst [vmem:[%s466 + $0xf9] sm:$0xff] %v423
          %489 = vst [vmem:[%s466 + $0x109] sm:$0xff] %v424
          %490 = vst [vmem:[%s466 + $0x111] sm:$0xff] %v425
          %491 = vst [vmem:[%s466 + $0x121] sm:$0xff] %v426
          %492 = vst [vmem:[%s466 + $0x129] sm:$0xff] %v427
          %493 = vst [vmem:[%s466 + $0x139] sm:$0xff] %v428
          %494 = vst [vmem:[%s466 + $0x141] sm:$0xff] %v429
          %495 = vst [vmem:[%s466 + $0x151] sm:$0xff] %v430
          %496 = vst [vmem:[%s466 + $0x159] sm:$0xff] %v431
          %497 = vst [vmem:[%s466 + $0x169] sm:$0xff] %v432
          %498 = vst [vmem:[%s466 + $0x171] sm:$0xff] %v433
          %499 = vst [vmem:[%s466 + $0x1b1] sm:$0xff] %v434
          %500 = vst [vmem:[%s466 + $0x1b9] sm:$0xff] %v435
          %501 = vst [vmem:[%s466 + $0x1c9] sm:$0xff] %v436
          %502 = vst [vmem:[%s466 + $0x1d1] sm:$0xff] %v437
          %503 = vst [vmem:[%s466 + $0x1e1] sm:$0xff] %v438
          %504 = vst [vmem:[%s466 + $0x1e9] sm:$0xff] %v439
          %505 = vst [vmem:[%s466 + $0x1f9] sm:$0xff] %v440
          %506 = vst [vmem:[%s466 + $0x201] sm:$0xff] %v441
          %507 = vst [vmem:[%s466 + $0x211] sm:$0xff] %v442
          %508 = vst [vmem:[%s466 + $0x219] sm:$0xff] %v443
          %509 = vst [vmem:[%s466 + $0x229] sm:$0xff] %v444
          %510 = vst [vmem:[%s466 + $0x231] sm:$0xff] %v445
          %511 = vst [vmem:[%s466 + $0x241] sm:$0xff] %v446
          %512 = vst [vmem:[%s466 + $0x249] sm:$0xff] %v447
          %513 = vst [vmem:[%s466 + $0x259] sm:$0xff] %v448
          %514 = vst [vmem:[%s466 + $0x261] sm:$0xff] %v449
          %515 = vst [vmem:[%s466 + $0x271] sm:$0xff] %v450
          %516 = vst [vmem:[%s466 + $0x279] sm:$0xff] %v451
          %517 = vst [vmem:[%s466 + $0x289] sm:$0xff] %v452
          %518 = vst [vmem:[%s466 + $0x291] sm:$0xff] %v453
          %519 = vst [vmem:[%s466 + $0x2a1] sm:$0xff] %v454
          %520 = vst [vmem:[%s466 + $0x2a9] sm:$0xff] %v455
          %521 = vst [vmem:[%s466 + $0x2b9] sm:$0xff] %v456
          %522 = vst [vmem:[%s466 + $0x2c1] sm:$0xff] %v457
          %523 = vst [vmem:[%s466 + $0x2d1] sm:$0xff] %v458
          %524 = vst [vmem:[%s466 + $0x2d9] sm:$0xff] %v459
          %525 = vst [vmem:[%s466 + $0x2e9] sm:$0xff] %v460
          %526 = vst [vmem:[%s466 + $0x2f1] sm:$0xff] %v461
          %527 = vst [vmem:[%s466 + $0x301] sm:$0xff] %v462
          %528 = vst [vmem:[%s466 + $0x309] sm:$0xff] %v463
          %529 = vst [vmem:[%s466 + $0x319] sm:$0xff] %v464
          %530 = vst [vmem:[%s466 + $0x321] sm:$0xff] %v465
        $region56: #{tpu_custom_call.1} parent=35 // pred_fallthru
          _
        %v531 = vld [vmem:[#allocation2] sm:$0xff]
        %v532 = vld [vmem:[#allocation2 + $0x8] sm:$0xff]
        %v533 = vld [vmem:[#allocation2 + $0x18] sm:$0xff]
        %v534 = vld [vmem:[#allocation2 + $0x20] sm:$0xff]
        %v535 = vld [vmem:[#allocation2 + $0x30] sm:$0xff]
        %v536 = vld [vmem:[#allocation2 + $0x38] sm:$0xff]
        %v537 = vld [vmem:[#allocation2 + $0x48] sm:$0xff]
        %v538 = vld [vmem:[#allocation2 + $0x50] sm:$0xff]
        %v539 = vld [vmem:[#allocation2 + $0x60] sm:$0xff]
        %v540 = vld [vmem:[#allocation2 + $0x68] sm:$0xff]
        %v541 = vld [vmem:[#allocation2 + $0x78] sm:$0xff]
        %v542 = vld [vmem:[#allocation2 + $0x80] sm:$0xff]
        %v543 = vld [vmem:[#allocation2 + $0x90] sm:$0xff]
        %v544 = vld [vmem:[#allocation2 + $0x98] sm:$0xff]
        %v545 = vld [vmem:[#allocation2 + $0xa8] sm:$0xff]
        %v546 = vld [vmem:[#allocation2 + $0xb0] sm:$0xff]
        %v547 = vld [vmem:[#allocation2 + $0xc0] sm:$0xff]
        %v548 = vld [vmem:[#allocation2 + $0xc8] sm:$0xff]
        %v549 = vld [vmem:[#allocation2 + $0xd8] sm:$0xff]
        %v550 = vld [vmem:[#allocation2 + $0xe0] sm:$0xff]
        %v551 = vld [vmem:[#allocation2 + $0xf0] sm:$0xff]
        %v552 = vld [vmem:[#allocation2 + $0xf8] sm:$0xff]
        %v553 = vld [vmem:[#allocation2 + $0x108] sm:$0xff]
        %v554 = vld [vmem:[#allocation2 + $0x110] sm:$0xff]
        %v555 = vld [vmem:[#allocation2 + $0x120] sm:$0xff]
        %v556 = vld [vmem:[#allocation2 + $0x128] sm:$0xff]
        %v557 = vld [vmem:[#allocation2 + $0x138] sm:$0xff]
        %v558 = vld [vmem:[#allocation2 + $0x140] sm:$0xff]
        %v559 = vld [vmem:[#allocation2 + $0x150] sm:$0xff]
        %v560 = vld [vmem:[#allocation2 + $0x158] sm:$0xff]
        %v561 = vld [vmem:[#allocation2 + $0x168] sm:$0xff]
        %v562 = vld [vmem:[#allocation2 + $0x170] sm:$0xff]
        %v563 = vld [vmem:[#allocation2 + $0x1b0] sm:$0xff]
        %v564 = vld [vmem:[#allocation2 + $0x1b8] sm:$0xff]
        %v565 = vld [vmem:[#allocation2 + $0x1c8] sm:$0xff]
        %v566 = vld [vmem:[#allocation2 + $0x1d0] sm:$0xff]
        %v567 = vld [vmem:[#allocation2 + $0x1e0] sm:$0xff]
        %v568 = vld [vmem:[#allocation2 + $0x1e8] sm:$0xff]
        %v569 = vld [vmem:[#allocation2 + $0x1f8] sm:$0xff]
        %v570 = vld [vmem:[#allocation2 + $0x200] sm:$0xff]
        %v571 = vld [vmem:[#allocation2 + $0x210] sm:$0xff]
        %v572 = vld [vmem:[#allocation2 + $0x218] sm:$0xff]
        %v573 = vld [vmem:[#allocation2 + $0x228] sm:$0xff]
        %v574 = vld [vmem:[#allocation2 + $0x230] sm:$0xff]
        %v575 = vld [vmem:[#allocation2 + $0x240] sm:$0xff]
        %v576 = vld [vmem:[#allocation2 + $0x248] sm:$0xff]
        %v577 = vld [vmem:[#allocation2 + $0x258] sm:$0xff]
        %v578 = vld [vmem:[#allocation2 + $0x260] sm:$0xff]
        %v579 = vld [vmem:[#allocation2 + $0x270] sm:$0xff]
        %v580 = vld [vmem:[#allocation2 + $0x278] sm:$0xff]
        %v581 = vld [vmem:[#allocation2 + $0x288] sm:$0xff]
        %v582 = vld [vmem:[#allocation2 + $0x290] sm:$0xff]
        %v583 = vld [vmem:[#allocation2 + $0x2a0] sm:$0xff]
        %v584 = vld [vmem:[#allocation2 + $0x2a8] sm:$0xff]
        %v585 = vld [vmem:[#allocation2 + $0x2b8] sm:$0xff]
        %v586 = vld [vmem:[#allocation2 + $0x2c0] sm:$0xff]
        %v587 = vld [vmem:[#allocation2 + $0x2d0] sm:$0xff]
        %v588 = vld [vmem:[#allocation2 + $0x2d8] sm:$0xff]
        %v589 = vld [vmem:[#allocation2 + $0x2e8] sm:$0xff]
        %v590 = vld [vmem:[#allocation2 + $0x2f0] sm:$0xff]
        %v591 = vld [vmem:[#allocation2 + $0x300] sm:$0xff]
        %v592 = vld [vmem:[#allocation2 + $0x308] sm:$0xff]
        %v593 = vld [vmem:[#allocation2 + $0x318] sm:$0xff]
        %v594 = vld [vmem:[#allocation2 + $0x320] sm:$0xff]
        %v595 = vld [vmem:[%s243] sm:$0xff]
        %v596 = vld [vmem:[%s243 + $0x8] sm:$0xff]
        %v597 = vld [vmem:[%s243 + $0x10] sm:$0xff]
        %v598 = vld [vmem:[%s243 + $0x18] sm:$0xff]
        %v599 = vld [vmem:[%s243 + $0x20] sm:$0xff]
        %v600 = vld [vmem:[%s243 + $0x28] sm:$0xff]
        %v601 = vld [vmem:[%s243 + $0x30] sm:$0xff]
        %v602 = vld [vmem:[%s243 + $0x38] sm:$0xff]
        %v603 = vld [vmem:[%s243 + $0x40] sm:$0xff]
        %v604 = vld [vmem:[%s243 + $0x48] sm:$0xff]
        %v605 = vld [vmem:[%s243 + $0x50] sm:$0xff]
        %v606 = vld [vmem:[%s243 + $0x58] sm:$0xff]
        %v607 = vld [vmem:[%s243 + $0x60] sm:$0xff]
        %v608 = vld [vmem:[%s243 + $0x68] sm:$0xff]
        %v609 = vld [vmem:[%s243 + $0x70] sm:$0xff]
        %v610 = vld [vmem:[%s243 + $0x78] sm:$0xff]
        %611 = vmatpush.msra.mxu0 %v610
        %612 = vmatpush.msra.mxu0 %v609
        %613 = vmatpush.msra.mxu0 %v608
        %614 = vmatpush.msra.mxu0 %v607
        %615 = vmatpush.msra.mxu0 %v606
        %616 = vmatpush.msra.mxu0 %v605
        %617 = vmatpush.msra.mxu0 %v604
        %618 = vmatpush.msra.mxu0 %v603
        %619 = vmatpush.msra.mxu0 %v602
        %620 = vmatpush.msra.mxu0 %v601
        %621 = vmatpush.msra.mxu0 %v600
        %622 = vmatpush.msra.mxu0 %v599
        %623 = vmatpush.msra.mxu0 %v598
        %624 = vmatpush.msra.mxu0 %v597
        %625 = vmatpush.msra.mxu0 %v596
        %626 = vmatpush.msra.mxu0 %v595
        %627 = vmatmul.f32.gmra.mxu0 %v531
        %v628 = vpop.f32.mrf.mxu0
        %v629 = vadd.f32 0.0, %v628
        %630 = vmatmul.f32.gmra.mxu0 %v532
        %v631 = vpop.f32.mrf.mxu0
        %v632 = vadd.f32 0.0, %v631
        %633 = vmatmul.f32.gmra.mxu0 %v533
        %v634 = vpop.f32.mrf.mxu0
        %v635 = vadd.f32 0.0, %v634
        %636 = vmatmul.f32.gmra.mxu0 %v534
        %v637 = vpop.f32.mrf.mxu0
        %v638 = vadd.f32 0.0, %v637
        %639 = vmatmul.f32.gmra.mxu0 %v535
        %v640 = vpop.f32.mrf.mxu0
        %v641 = vadd.f32 0.0, %v640
        %642 = vmatmul.f32.gmra.mxu0 %v536
        %v643 = vpop.f32.mrf.mxu0
        %v644 = vadd.f32 0.0, %v643
        %645 = vmatmul.f32.gmra.mxu0 %v537
        %v646 = vpop.f32.mrf.mxu0
        %v647 = vadd.f32 0.0, %v646
        %648 = vmatmul.f32.gmra.mxu0 %v538
        %v649 = vpop.f32.mrf.mxu0
        %v650 = vadd.f32 0.0, %v649
        %651 = vmatmul.f32.gmra.mxu0 %v539
        %v652 = vpop.f32.mrf.mxu0
        %v653 = vadd.f32 0.0, %v652
        %654 = vmatmul.f32.gmra.mxu0 %v540
        %v655 = vpop.f32.mrf.mxu0
        %v656 = vadd.f32 0.0, %v655
        %657 = vmatmul.f32.gmra.mxu0 %v541
        %v658 = vpop.f32.mrf.mxu0
        %v659 = vadd.f32 0.0, %v658
        %660 = vmatmul.f32.gmra.mxu0 %v542
        %v661 = vpop.f32.mrf.mxu0
        %v662 = vadd.f32 0.0, %v661
        %663 = vmatmul.f32.gmra.mxu0 %v543
        %v664 = vpop.f32.mrf.mxu0
        %v665 = vadd.f32 0.0, %v664
        %666 = vmatmul.f32.gmra.mxu0 %v544
        %v667 = vpop.f32.mrf.mxu0
        %v668 = vadd.f32 0.0, %v667
        %669 = vmatmul.f32.gmra.mxu0 %v545
        %v670 = vpop.f32.mrf.mxu0
        %v671 = vadd.f32 0.0, %v670
        %672 = vmatmul.f32.gmra.mxu0 %v546
        %v673 = vpop.f32.mrf.mxu0
        %v674 = vadd.f32 0.0, %v673
        %675 = vmatmul.f32.gmra.mxu0 %v547
        %v676 = vpop.f32.mrf.mxu0
        %v677 = vadd.f32 0.0, %v676
        %678 = vmatmul.f32.gmra.mxu0 %v548
        %v679 = vpop.f32.mrf.mxu0
        %v680 = vadd.f32 0.0, %v679
        %681 = vmatmul.f32.gmra.mxu0 %v549
        %v682 = vpop.f32.mrf.mxu0
        %v683 = vadd.f32 0.0, %v682
        %684 = vmatmul.f32.gmra.mxu0 %v550
        %v685 = vpop.f32.mrf.mxu0
        %v686 = vadd.f32 0.0, %v685
        %687 = vmatmul.f32.gmra.mxu0 %v551
        %v688 = vpop.f32.mrf.mxu0
        %v689 = vadd.f32 0.0, %v688
        %690 = vmatmul.f32.gmra.mxu0 %v552
        %v691 = vpop.f32.mrf.mxu0
        %v692 = vadd.f32 0.0, %v691
        %693 = vmatmul.f32.gmra.mxu0 %v553
        %v694 = vpop.f32.mrf.mxu0
        %v695 = vadd.f32 0.0, %v694
        %696 = vmatmul.f32.gmra.mxu0 %v554
        %v697 = vpop.f32.mrf.mxu0
        %v698 = vadd.f32 0.0, %v697
        %699 = vmatmul.f32.gmra.mxu0 %v555
        %v700 = vpop.f32.mrf.mxu0
        %v701 = vadd.f32 0.0, %v700
        %702 = vmatmul.f32.gmra.mxu0 %v556
        %v703 = vpop.f32.mrf.mxu0
        %v704 = vadd.f32 0.0, %v703
        %705 = vmatmul.f32.gmra.mxu0 %v557
        %v706 = vpop.f32.mrf.mxu0
        %v707 = vadd.f32 0.0, %v706
        %708 = vmatmul.f32.gmra.mxu0 %v558
        %v709 = vpop.f32.mrf.mxu0
        %v710 = vadd.f32 0.0, %v709
        %711 = vmatmul.f32.gmra.mxu0 %v559
        %v712 = vpop.f32.mrf.mxu0
        %v713 = vadd.f32 0.0, %v712
        %714 = vmatmul.f32.gmra.mxu0 %v560
        %v715 = vpop.f32.mrf.mxu0
        %v716 = vadd.f32 0.0, %v715
        %717 = vmatmul.f32.gmra.mxu0 %v561
        %v718 = vpop.f32.mrf.mxu0
        %v719 = vadd.f32 0.0, %v718
        %720 = vmatmul.f32.gmra.mxu0 %v562
        %v721 = vpop.f32.mrf.mxu0
        %v722 = vadd.f32 0.0, %v721
        %723 = vmatmul.f32.gmra.mxu0 %v563
        %v724 = vpop.f32.mrf.mxu0
        %v725 = vadd.f32 0.0, %v724
        %726 = vmatmul.f32.gmra.mxu0 %v564
        %v727 = vpop.f32.mrf.mxu0
        %v728 = vadd.f32 0.0, %v727
        %729 = vmatmul.f32.gmra.mxu0 %v565
        %v730 = vpop.f32.mrf.mxu0
        %v731 = vadd.f32 0.0, %v730
        %732 = vmatmul.f32.gmra.mxu0 %v566
        %v733 = vpop.f32.mrf.mxu0
        %v734 = vadd.f32 0.0, %v733
        %735 = vmatmul.f32.gmra.mxu0 %v567
        %v736 = vpop.f32.mrf.mxu0
        %v737 = vadd.f32 0.0, %v736
        %738 = vmatmul.f32.gmra.mxu0 %v568
        %v739 = vpop.f32.mrf.mxu0
        %v740 = vadd.f32 0.0, %v739
        %741 = vmatmul.f32.gmra.mxu0 %v569
        %v742 = vpop.f32.mrf.mxu0
        %v743 = vadd.f32 0.0, %v742
        %744 = vmatmul.f32.gmra.mxu0 %v570
        %v745 = vpop.f32.mrf.mxu0
        %v746 = vadd.f32 0.0, %v745
        %747 = vmatmul.f32.gmra.mxu0 %v571
        %v748 = vpop.f32.mrf.mxu0
        %v749 = vadd.f32 0.0, %v748
        %750 = vmatmul.f32.gmra.mxu0 %v572
        %v751 = vpop.f32.mrf.mxu0
        %v752 = vadd.f32 0.0, %v751
        %753 = vmatmul.f32.gmra.mxu0 %v573
        %v754 = vpop.f32.mrf.mxu0
        %v755 = vadd.f32 0.0, %v754
        %756 = vmatmul.f32.gmra.mxu0 %v574
        %v757 = vpop.f32.mrf.mxu0
        %v758 = vadd.f32 0.0, %v757
        %759 = vmatmul.f32.gmra.mxu0 %v575
        %v760 = vpop.f32.mrf.mxu0
        %v761 = vadd.f32 0.0, %v760
        %762 = vmatmul.f32.gmra.mxu0 %v576
        %v763 = vpop.f32.mrf.mxu0
        %v764 = vadd.f32 0.0, %v763
        %765 = vmatmul.f32.gmra.mxu0 %v577
        %v766 = vpop.f32.mrf.mxu0
        %v767 = vadd.f32 0.0, %v766
        %768 = vmatmul.f32.gmra.mxu0 %v578
        %v769 = vpop.f32.mrf.mxu0
        %v770 = vadd.f32 0.0, %v769
        %771 = vmatmul.f32.gmra.mxu0 %v579
        %v772 = vpop.f32.mrf.mxu0
        %v773 = vadd.f32 0.0, %v772
        %774 = vmatmul.f32.gmra.mxu0 %v580
        %v775 = vpop.f32.mrf.mxu0
        %v776 = vadd.f32 0.0, %v775
        %777 = vmatmul.f32.gmra.mxu0 %v581
        %v778 = vpop.f32.mrf.mxu0
        %v779 = vadd.f32 0.0, %v778
        %780 = vmatmul.f32.gmra.mxu0 %v582
        %v781 = vpop.f32.mrf.mxu0
        %v782 = vadd.f32 0.0, %v781
        %783 = vmatmul.f32.gmra.mxu0 %v583
        %v784 = vpop.f32.mrf.mxu0
        %v785 = vadd.f32 0.0, %v784
        %786 = vmatmul.f32.gmra.mxu0 %v584
        %v787 = vpop.f32.mrf.mxu0
        %v788 = vadd.f32 0.0, %v787
        %789 = vmatmul.f32.gmra.mxu0 %v585
        %v790 = vpop.f32.mrf.mxu0
        %v791 = vadd.f32 0.0, %v790
        %792 = vmatmul.f32.gmra.mxu0 %v586
        %v793 = vpop.f32.mrf.mxu0
        %v794 = vadd.f32 0.0, %v793
        %795 = vmatmul.f32.gmra.mxu0 %v587
        %v796 = vpop.f32.mrf.mxu0
        %v797 = vadd.f32 0.0, %v796
        %798 = vmatmul.f32.gmra.mxu0 %v588
        %v799 = vpop.f32.mrf.mxu0
        %v800 = vadd.f32 0.0, %v799
        %801 = vmatmul.f32.gmra.mxu0 %v589
        %v802 = vpop.f32.mrf.mxu0
        %v803 = vadd.f32 0.0, %v802
        %804 = vmatmul.f32.gmra.mxu0 %v590
        %v805 = vpop.f32.mrf.mxu0
        %v806 = vadd.f32 0.0, %v805
        %807 = vmatmul.f32.gmra.mxu0 %v591
        %v808 = vpop.f32.mrf.mxu0
        %v809 = vadd.f32 0.0, %v808
        %810 = vmatmul.f32.gmra.mxu0 %v592
        %v811 = vpop.f32.mrf.mxu0
        %v812 = vadd.f32 0.0, %v811
        %813 = vmatmul.f32.gmra.mxu0 %v593
        %v814 = vpop.f32.mrf.mxu0
        %v815 = vadd.f32 0.0, %v814
        %816 = vmatmul.f32.gmra.mxu0 %v594
        %v817 = vpop.f32.mrf.mxu0
        %v818 = vadd.f32 0.0, %v817
        %819 = vdwg.mxu0
        %820 = vst [vmem:[#allocation3] sm:$0xff] %v629
        %821 = vst [vmem:[#allocation3 + $0x8] sm:$0xff] %v632
        %822 = vst [vmem:[#allocation3 + $0x10] sm:$0xff] %v635
        %823 = vst [vmem:[#allocation3 + $0x18] sm:$0xff] %v638
        %824 = vst [vmem:[#allocation3 + $0x20] sm:$0xff] %v641
        %825 = vst [vmem:[#allocation3 + $0x28] sm:$0xff] %v644
        %826 = vst [vmem:[#allocation3 + $0x30] sm:$0xff] %v647
        %827 = vst [vmem:[#allocation3 + $0x38] sm:$0xff] %v650
        %828 = vst [vmem:[#allocation3 + $0x40] sm:$0xff] %v653
        %829 = vst [vmem:[#allocation3 + $0x48] sm:$0xff] %v656
        %830 = vst [vmem:[#allocation3 + $0x50] sm:$0xff] %v659
        %831 = vst [vmem:[#allocation3 + $0x58] sm:$0xff] %v662
        %832 = vst [vmem:[#allocation3 + $0x60] sm:$0xff] %v665
        %833 = vst [vmem:[#allocation3 + $0x68] sm:$0xff] %v668
        %834 = vst [vmem:[#allocation3 + $0x70] sm:$0xff] %v671
        %835 = vst [vmem:[#allocation3 + $0x78] sm:$0xff] %v674
        %836 = vst [vmem:[#allocation3 + $0x80] sm:$0xff] %v677
        %837 = vst [vmem:[#allocation3 + $0x88] sm:$0xff] %v680
        %838 = vst [vmem:[#allocation3 + $0x90] sm:$0xff] %v683
        %839 = vst [vmem:[#allocation3 + $0x98] sm:$0xff] %v686
        %840 = vst [vmem:[#allocation3 + $0xa0] sm:$0xff] %v689
        %841 = vst [vmem:[#allocation3 + $0xa8] sm:$0xff] %v692
        %842 = vst [vmem:[#allocation3 + $0xb0] sm:$0xff] %v695
        %843 = vst [vmem:[#allocation3 + $0xb8] sm:$0xff] %v698
        %844 = vst [vmem:[#allocation3 + $0xc0] sm:$0xff] %v701
        %845 = vst [vmem:[#allocation3 + $0xc8] sm:$0xff] %v704
        %846 = vst [vmem:[#allocation3 + $0xd0] sm:$0xff] %v707
        %847 = vst [vmem:[#allocation3 + $0xd8] sm:$0xff] %v710
        %848 = vst [vmem:[#allocation3 + $0xe0] sm:$0xff] %v713
        %849 = vst [vmem:[#allocation3 + $0xe8] sm:$0xff] %v716
        %850 = vst [vmem:[#allocation3 + $0xf0] sm:$0xff] %v719
        %851 = vst [vmem:[#allocation3 + $0xf8] sm:$0xff] %v722
        %852 = vst [vmem:[#allocation3 + $0x100] sm:$0xff] %v725
        %853 = vst [vmem:[#allocation3 + $0x108] sm:$0xff] %v728
        %854 = vst [vmem:[#allocation3 + $0x110] sm:$0xff] %v731
        %855 = vst [vmem:[#allocation3 + $0x118] sm:$0xff] %v734
        %856 = vst [vmem:[#allocation3 + $0x120] sm:$0xff] %v737
        %857 = vst [vmem:[#allocation3 + $0x128] sm:$0xff] %v740
        %858 = vst [vmem:[#allocation3 + $0x130] sm:$0xff] %v743
        %859 = vst [vmem:[#allocation3 + $0x138] sm:$0xff] %v746
        %860 = vst [vmem:[#allocation3 + $0x140] sm:$0xff] %v749
        %861 = vst [vmem:[#allocation3 + $0x148] sm:$0xff] %v752
        %862 = vst [vmem:[#allocation3 + $0x150] sm:$0xff] %v755
        %863 = vst [vmem:[#allocation3 + $0x158] sm:$0xff] %v758
        %864 = vst [vmem:[#allocation3 + $0x160] sm:$0xff] %v761
        %865 = vst [vmem:[#allocation3 + $0x168] sm:$0xff] %v764
        %866 = vst [vmem:[#allocation3 + $0x170] sm:$0xff] %v767
        %867 = vst [vmem:[#allocation3 + $0x178] sm:$0xff] %v770
        %868 = vst [vmem:[#allocation3 + $0x180] sm:$0xff] %v773
        %869 = vst [vmem:[#allocation3 + $0x188] sm:$0xff] %v776
        %870 = vst [vmem:[#allocation3 + $0x190] sm:$0xff] %v779
        %871 = vst [vmem:[#allocation3 + $0x198] sm:$0xff] %v782
        %872 = vst [vmem:[#allocation3 + $0x1a0] sm:$0xff] %v785
        %873 = vst [vmem:[#allocation3 + $0x1a8] sm:$0xff] %v788
        %874 = vst [vmem:[#allocation3 + $0x1b0] sm:$0xff] %v791
        %875 = vst [vmem:[#allocation3 + $0x1b8] sm:$0xff] %v794
        %876 = vst [vmem:[#allocation3 + $0x1c0] sm:$0xff] %v797
        %877 = vst [vmem:[#allocation3 + $0x1c8] sm:$0xff] %v800
        %878 = vst [vmem:[#allocation3 + $0x1d0] sm:$0xff] %v803
        %879 = vst [vmem:[#allocation3 + $0x1d8] sm:$0xff] %v806
        %880 = vst [vmem:[#allocation3 + $0x1e0] sm:$0xff] %v809
        %881 = vst [vmem:[#allocation3 + $0x1e8] sm:$0xff] %v812
        %882 = vst [vmem:[#allocation3 + $0x1f0] sm:$0xff] %v815
        %883 = vst [vmem:[#allocation3 + $0x1f8] sm:$0xff] %v818
        %v884 = vld [vmem:[#allocation2 + $0x1] sm:$0xff]
        %v885 = vld [vmem:[#allocation2 + $0x9] sm:$0xff]
        %v886 = vld [vmem:[#allocation2 + $0x19] sm:$0xff]
        %v887 = vld [vmem:[#allocation2 + $0x21] sm:$0xff]
        %v888 = vld [vmem:[#allocation2 + $0x31] sm:$0xff]
        %v889 = vld [vmem:[#allocation2 + $0x39] sm:$0xff]
        %v890 = vld [vmem:[#allocation2 + $0x49] sm:$0xff]
        %v891 = vld [vmem:[#allocation2 + $0x51] sm:$0xff]
        %v892 = vld [vmem:[#allocation2 + $0x61] sm:$0xff]
        %v893 = vld [vmem:[#allocation2 + $0x69] sm:$0xff]
        %v894 = vld [vmem:[#allocation2 + $0x79] sm:$0xff]
        %v895 = vld [vmem:[#allocation2 + $0x81] sm:$0xff]
        %v896 = vld [vmem:[#allocation2 + $0x91] sm:$0xff]
        %v897 = vld [vmem:[#allocation2 + $0x99] sm:$0xff]
        %v898 = vld [vmem:[#allocation2 + $0xa9] sm:$0xff]
        %v899 = vld [vmem:[#allocation2 + $0xb1] sm:$0xff]
        %v900 = vld [vmem:[#allocation2 + $0xc1] sm:$0xff]
        %v901 = vld [vmem:[#allocation2 + $0xc9] sm:$0xff]
        %v902 = vld [vmem:[#allocation2 + $0xd9] sm:$0xff]
        %v903 = vld [vmem:[#allocation2 + $0xe1] sm:$0xff]
        %v904 = vld [vmem:[#allocation2 + $0xf1] sm:$0xff]
        %v905 = vld [vmem:[#allocation2 + $0xf9] sm:$0xff]
        %v906 = vld [vmem:[#allocation2 + $0x109] sm:$0xff]
        %v907 = vld [vmem:[#allocation2 + $0x111] sm:$0xff]
        %v908 = vld [vmem:[#allocation2 + $0x121] sm:$0xff]
        %v909 = vld [vmem:[#allocation2 + $0x129] sm:$0xff]
        %v910 = vld [vmem:[#allocation2 + $0x139] sm:$0xff]
        %v911 = vld [vmem:[#allocation2 + $0x141] sm:$0xff]
        %v912 = vld [vmem:[#allocation2 + $0x151] sm:$0xff]
        %v913 = vld [vmem:[#allocation2 + $0x159] sm:$0xff]
        %v914 = vld [vmem:[#allocation2 + $0x169] sm:$0xff]
        %v915 = vld [vmem:[#allocation2 + $0x171] sm:$0xff]
        %v916 = vld [vmem:[#allocation2 + $0x1b1] sm:$0xff]
        %v917 = vld [vmem:[#allocation2 + $0x1b9] sm:$0xff]
        %v918 = vld [vmem:[#allocation2 + $0x1c9] sm:$0xff]
        %v919 = vld [vmem:[#allocation2 + $0x1d1] sm:$0xff]
        %v920 = vld [vmem:[#allocation2 + $0x1e1] sm:$0xff]
        %v921 = vld [vmem:[#allocation2 + $0x1e9] sm:$0xff]
        %v922 = vld [vmem:[#allocation2 + $0x1f9] sm:$0xff]
        %v923 = vld [vmem:[#allocation2 + $0x201] sm:$0xff]
        %v924 = vld [vmem:[#allocation2 + $0x211] sm:$0xff]
        %v925 = vld [vmem:[#allocation2 + $0x219] sm:$0xff]
        %v926 = vld [vmem:[#allocation2 + $0x229] sm:$0xff]
        %v927 = vld [vmem:[#allocation2 + $0x231] sm:$0xff]
        %v928 = vld [vmem:[#allocation2 + $0x241] sm:$0xff]
        %v929 = vld [vmem:[#allocation2 + $0x249] sm:$0xff]
        %v930 = vld [vmem:[#allocation2 + $0x259] sm:$0xff]
        %v931 = vld [vmem:[#allocation2 + $0x261] sm:$0xff]
        %v932 = vld [vmem:[#allocation2 + $0x271] sm:$0xff]
        %v933 = vld [vmem:[#allocation2 + $0x279] sm:$0xff]
        %v934 = vld [vmem:[#allocation2 + $0x289] sm:$0xff]
        %v935 = vld [vmem:[#allocation2 + $0x291] sm:$0xff]
        %v936 = vld [vmem:[#allocation2 + $0x2a1] sm:$0xff]
        %v937 = vld [vmem:[#allocation2 + $0x2a9] sm:$0xff]
        %v938 = vld [vmem:[#allocation2 + $0x2b9] sm:$0xff]
        %v939 = vld [vmem:[#allocation2 + $0x2c1] sm:$0xff]
        %v940 = vld [vmem:[#allocation2 + $0x2d1] sm:$0xff]
        %v941 = vld [vmem:[#allocation2 + $0x2d9] sm:$0xff]
        %v942 = vld [vmem:[#allocation2 + $0x2e9] sm:$0xff]
        %v943 = vld [vmem:[#allocation2 + $0x2f1] sm:$0xff]
        %v944 = vld [vmem:[#allocation2 + $0x301] sm:$0xff]
        %v945 = vld [vmem:[#allocation2 + $0x309] sm:$0xff]
        %v946 = vld [vmem:[#allocation2 + $0x319] sm:$0xff]
        %v947 = vld [vmem:[#allocation2 + $0x321] sm:$0xff]
        %s948 = scalar_lea.vmem %s243, 128 [#allocation7]
        %v949 = vld [vmem:[%s948] sm:$0xff]
        %v950 = vld [vmem:[%s948 + $0x8] sm:$0xff]
        %v951 = vld [vmem:[%s948 + $0x10] sm:$0xff]
        %v952 = vld [vmem:[%s948 + $0x18] sm:$0xff]
        %v953 = vld [vmem:[%s948 + $0x20] sm:$0xff]
        %v954 = vld [vmem:[%s948 + $0x28] sm:$0xff]
        %v955 = vld [vmem:[%s948 + $0x30] sm:$0xff]
        %v956 = vld [vmem:[%s948 + $0x38] sm:$0xff]
        %v957 = vld [vmem:[%s948 + $0x40] sm:$0xff]
        %v958 = vld [vmem:[%s948 + $0x48] sm:$0xff]
        %v959 = vld [vmem:[%s948 + $0x50] sm:$0xff]
        %v960 = vld [vmem:[%s948 + $0x58] sm:$0xff]
        %v961 = vld [vmem:[%s948 + $0x60] sm:$0xff]
        %v962 = vld [vmem:[%s948 + $0x68] sm:$0xff]
        %v963 = vld [vmem:[%s948 + $0x70] sm:$0xff]
        %v964 = vld [vmem:[%s948 + $0x78] sm:$0xff]
        %965 = vmatpush.msra.mxu0 %v964
        %966 = vmatpush.msra.mxu0 %v963
        %967 = vmatpush.msra.mxu0 %v962
        %968 = vmatpush.msra.mxu0 %v961
        %969 = vmatpush.msra.mxu0 %v960
        %970 = vmatpush.msra.mxu0 %v959
        %971 = vmatpush.msra.mxu0 %v958
        %972 = vmatpush.msra.mxu0 %v957
        %973 = vmatpush.msra.mxu0 %v956
        %974 = vmatpush.msra.mxu0 %v955
        %975 = vmatpush.msra.mxu0 %v954
        %976 = vmatpush.msra.mxu0 %v953
        %977 = vmatpush.msra.mxu0 %v952
        %978 = vmatpush.msra.mxu0 %v951
        %979 = vmatpush.msra.mxu0 %v950
        %980 = vmatpush.msra.mxu0 %v949
        %981 = vmatmul.f32.gmra.mxu0 %v884
        %v982 = vpop.f32.mrf.mxu0
        %v983 = vadd.f32 0.0, %v982
        %984 = vmatmul.f32.gmra.mxu0 %v885
        %v985 = vpop.f32.mrf.mxu0
        %v986 = vadd.f32 0.0, %v985
        %987 = vmatmul.f32.gmra.mxu0 %v886
        %v988 = vpop.f32.mrf.mxu0
        %v989 = vadd.f32 0.0, %v988
        %990 = vmatmul.f32.gmra.mxu0 %v887
        %v991 = vpop.f32.mrf.mxu0
        %v992 = vadd.f32 0.0, %v991
        %993 = vmatmul.f32.gmra.mxu0 %v888
        %v994 = vpop.f32.mrf.mxu0
        %v995 = vadd.f32 0.0, %v994
        %996 = vmatmul.f32.gmra.mxu0 %v889
        %v997 = vpop.f32.mrf.mxu0
        %v998 = vadd.f32 0.0, %v997
        %999 = vmatmul.f32.gmra.mxu0 %v890
        %v1000 = vpop.f32.mrf.mxu0
        %v1001 = vadd.f32 0.0, %v1000
        %1002 = vmatmul.f32.gmra.mxu0 %v891
        %v1003 = vpop.f32.mrf.mxu0
        %v1004 = vadd.f32 0.0, %v1003
        %1005 = vmatmul.f32.gmra.mxu0 %v892
        %v1006 = vpop.f32.mrf.mxu0
        %v1007 = vadd.f32 0.0, %v1006
        %1008 = vmatmul.f32.gmra.mxu0 %v893
        %v1009 = vpop.f32.mrf.mxu0
        %v1010 = vadd.f32 0.0, %v1009
        %1011 = vmatmul.f32.gmra.mxu0 %v894
        %v1012 = vpop.f32.mrf.mxu0
        %v1013 = vadd.f32 0.0, %v1012
        %1014 = vmatmul.f32.gmra.mxu0 %v895
        %v1015 = vpop.f32.mrf.mxu0
        %v1016 = vadd.f32 0.0, %v1015
        %1017 = vmatmul.f32.gmra.mxu0 %v896
        %v1018 = vpop.f32.mrf.mxu0
        %v1019 = vadd.f32 0.0, %v1018
        %1020 = vmatmul.f32.gmra.mxu0 %v897
        %v1021 = vpop.f32.mrf.mxu0
        %v1022 = vadd.f32 0.0, %v1021
        %1023 = vmatmul.f32.gmra.mxu0 %v898
        %v1024 = vpop.f32.mrf.mxu0
        %v1025 = vadd.f32 0.0, %v1024
        %1026 = vmatmul.f32.gmra.mxu0 %v899
        %v1027 = vpop.f32.mrf.mxu0
        %v1028 = vadd.f32 0.0, %v1027
        %1029 = vmatmul.f32.gmra.mxu0 %v900
        %v1030 = vpop.f32.mrf.mxu0
        %v1031 = vadd.f32 0.0, %v1030
        %1032 = vmatmul.f32.gmra.mxu0 %v901
        %v1033 = vpop.f32.mrf.mxu0
        %v1034 = vadd.f32 0.0, %v1033
        %1035 = vmatmul.f32.gmra.mxu0 %v902
        %v1036 = vpop.f32.mrf.mxu0
        %v1037 = vadd.f32 0.0, %v1036
        %1038 = vmatmul.f32.gmra.mxu0 %v903
        %v1039 = vpop.f32.mrf.mxu0
        %v1040 = vadd.f32 0.0, %v1039
        %1041 = vmatmul.f32.gmra.mxu0 %v904
        %v1042 = vpop.f32.mrf.mxu0
        %v1043 = vadd.f32 0.0, %v1042
        %1044 = vmatmul.f32.gmra.mxu0 %v905
        %v1045 = vpop.f32.mrf.mxu0
        %v1046 = vadd.f32 0.0, %v1045
        %1047 = vmatmul.f32.gmra.mxu0 %v906
        %v1048 = vpop.f32.mrf.mxu0
        %v1049 = vadd.f32 0.0, %v1048
        %1050 = vmatmul.f32.gmra.mxu0 %v907
        %v1051 = vpop.f32.mrf.mxu0
        %v1052 = vadd.f32 0.0, %v1051
        %1053 = vmatmul.f32.gmra.mxu0 %v908
        %v1054 = vpop.f32.mrf.mxu0
        %v1055 = vadd.f32 0.0, %v1054
        %1056 = vmatmul.f32.gmra.mxu0 %v909
        %v1057 = vpop.f32.mrf.mxu0
        %v1058 = vadd.f32 0.0, %v1057
        %1059 = vmatmul.f32.gmra.mxu0 %v910
        %v1060 = vpop.f32.mrf.mxu0
        %v1061 = vadd.f32 0.0, %v1060
        %1062 = vmatmul.f32.gmra.mxu0 %v911
        %v1063 = vpop.f32.mrf.mxu0
        %v1064 = vadd.f32 0.0, %v1063
        %1065 = vmatmul.f32.gmra.mxu0 %v912
        %v1066 = vpop.f32.mrf.mxu0
        %v1067 = vadd.f32 0.0, %v1066
        %1068 = vmatmul.f32.gmra.mxu0 %v913
        %v1069 = vpop.f32.mrf.mxu0
        %v1070 = vadd.f32 0.0, %v1069
        %1071 = vmatmul.f32.gmra.mxu0 %v914
        %v1072 = vpop.f32.mrf.mxu0
        %v1073 = vadd.f32 0.0, %v1072
        %1074 = vmatmul.f32.gmra.mxu0 %v915
        %v1075 = vpop.f32.mrf.mxu0
        %v1076 = vadd.f32 0.0, %v1075
        %1077 = vmatmul.f32.gmra.mxu0 %v916
        %v1078 = vpop.f32.mrf.mxu0
        %v1079 = vadd.f32 0.0, %v1078
        %1080 = vmatmul.f32.gmra.mxu0 %v917
        %v1081 = vpop.f32.mrf.mxu0
        %v1082 = vadd.f32 0.0, %v1081
        %1083 = vmatmul.f32.gmra.mxu0 %v918
        %v1084 = vpop.f32.mrf.mxu0
        %v1085 = vadd.f32 0.0, %v1084
        %1086 = vmatmul.f32.gmra.mxu0 %v919
        %v1087 = vpop.f32.mrf.mxu0
        %v1088 = vadd.f32 0.0, %v1087
        %1089 = vmatmul.f32.gmra.mxu0 %v920
        %v1090 = vpop.f32.mrf.mxu0
        %v1091 = vadd.f32 0.0, %v1090
        %1092 = vmatmul.f32.gmra.mxu0 %v921
        %v1093 = vpop.f32.mrf.mxu0
        %v1094 = vadd.f32 0.0, %v1093
        %1095 = vmatmul.f32.gmra.mxu0 %v922
        %v1096 = vpop.f32.mrf.mxu0
        %v1097 = vadd.f32 0.0, %v1096
        %1098 = vmatmul.f32.gmra.mxu0 %v923
        %v1099 = vpop.f32.mrf.mxu0
        %v1100 = vadd.f32 0.0, %v1099
        %1101 = vmatmul.f32.gmra.mxu0 %v924
        %v1102 = vpop.f32.mrf.mxu0
        %v1103 = vadd.f32 0.0, %v1102
        %1104 = vmatmul.f32.gmra.mxu0 %v925
        %v1105 = vpop.f32.mrf.mxu0
        %v1106 = vadd.f32 0.0, %v1105
        %1107 = vmatmul.f32.gmra.mxu0 %v926
        %v1108 = vpop.f32.mrf.mxu0
        %v1109 = vadd.f32 0.0, %v1108
        %1110 = vmatmul.f32.gmra.mxu0 %v927
        %v1111 = vpop.f32.mrf.mxu0
        %v1112 = vadd.f32 0.0, %v1111
        %1113 = vmatmul.f32.gmra.mxu0 %v928
        %v1114 = vpop.f32.mrf.mxu0
        %v1115 = vadd.f32 0.0, %v1114
        %1116 = vmatmul.f32.gmra.mxu0 %v929
        %v1117 = vpop.f32.mrf.mxu0
        %v1118 = vadd.f32 0.0, %v1117
        %1119 = vmatmul.f32.gmra.mxu0 %v930
        %v1120 = vpop.f32.mrf.mxu0
        %v1121 = vadd.f32 0.0, %v1120
        %1122 = vmatmul.f32.gmra.mxu0 %v931
        %v1123 = vpop.f32.mrf.mxu0
        %v1124 = vadd.f32 0.0, %v1123
        %1125 = vmatmul.f32.gmra.mxu0 %v932
        %v1126 = vpop.f32.mrf.mxu0
        %v1127 = vadd.f32 0.0, %v1126
        %1128 = vmatmul.f32.gmra.mxu0 %v933
        %v1129 = vpop.f32.mrf.mxu0
        %v1130 = vadd.f32 0.0, %v1129
        %1131 = vmatmul.f32.gmra.mxu0 %v934
        %v1132 = vpop.f32.mrf.mxu0
        %v1133 = vadd.f32 0.0, %v1132
        %1134 = vmatmul.f32.gmra.mxu0 %v935
        %v1135 = vpop.f32.mrf.mxu0
        %v1136 = vadd.f32 0.0, %v1135
        %1137 = vmatmul.f32.gmra.mxu0 %v936
        %v1138 = vpop.f32.mrf.mxu0
        %v1139 = vadd.f32 0.0, %v1138
        %1140 = vmatmul.f32.gmra.mxu0 %v937
        %v1141 = vpop.f32.mrf.mxu0
        %v1142 = vadd.f32 0.0, %v1141
        %1143 = vmatmul.f32.gmra.mxu0 %v938
        %v1144 = vpop.f32.mrf.mxu0
        %v1145 = vadd.f32 0.0, %v1144
        %1146 = vmatmul.f32.gmra.mxu0 %v939
        %v1147 = vpop.f32.mrf.mxu0
        %v1148 = vadd.f32 0.0, %v1147
        %1149 = vmatmul.f32.gmra.mxu0 %v940
        %v1150 = vpop.f32.mrf.mxu0
        %v1151 = vadd.f32 0.0, %v1150
        %1152 = vmatmul.f32.gmra.mxu0 %v941
        %v1153 = vpop.f32.mrf.mxu0
        %v1154 = vadd.f32 0.0, %v1153
        %1155 = vmatmul.f32.gmra.mxu0 %v942
        %v1156 = vpop.f32.mrf.mxu0
        %v1157 = vadd.f32 0.0, %v1156
        %1158 = vmatmul.f32.gmra.mxu0 %v943
        %v1159 = vpop.f32.mrf.mxu0
        %v1160 = vadd.f32 0.0, %v1159
        %1161 = vmatmul.f32.gmra.mxu0 %v944
        %v1162 = vpop.f32.mrf.mxu0
        %v1163 = vadd.f32 0.0, %v1162
        %1164 = vmatmul.f32.gmra.mxu0 %v945
        %v1165 = vpop.f32.mrf.mxu0
        %v1166 = vadd.f32 0.0, %v1165
        %1167 = vmatmul.f32.gmra.mxu0 %v946
        %v1168 = vpop.f32.mrf.mxu0
        %v1169 = vadd.f32 0.0, %v1168
        %1170 = vmatmul.f32.gmra.mxu0 %v947
        %v1171 = vpop.f32.mrf.mxu0
        %v1172 = vadd.f32 0.0, %v1171
        %1173 = vdwg.mxu0
        %v1174 = vld [vmem:[#allocation3] sm:$0xff]
        %v1175 = vld [vmem:[#allocation3 + $0x8] sm:$0xff]
        %v1176 = vld [vmem:[#allocation3 + $0x10] sm:$0xff]
        %v1177 = vld [vmem:[#allocation3 + $0x18] sm:$0xff]
        %v1178 = vld [vmem:[#allocation3 + $0x20] sm:$0xff]
        %v1179 = vld [vmem:[#allocation3 + $0x28] sm:$0xff]
        %v1180 = vld [vmem:[#allocation3 + $0x30] sm:$0xff]
        %v1181 = vld [vmem:[#allocation3 + $0x38] sm:$0xff]
        %v1182 = vld [vmem:[#allocation3 + $0x40] sm:$0xff]
        %v1183 = vld [vmem:[#allocation3 + $0x48] sm:$0xff]
        %v1184 = vld [vmem:[#allocation3 + $0x50] sm:$0xff]
        %v1185 = vld [vmem:[#allocation3 + $0x58] sm:$0xff]
        %v1186 = vld [vmem:[#allocation3 + $0x60] sm:$0xff]
        %v1187 = vld [vmem:[#allocation3 + $0x68] sm:$0xff]
        %v1188 = vld [vmem:[#allocation3 + $0x70] sm:$0xff]
        %v1189 = vld [vmem:[#allocation3 + $0x78] sm:$0xff]
        %v1190 = vld [vmem:[#allocation3 + $0x80] sm:$0xff]
        %v1191 = vld [vmem:[#allocation3 + $0x88] sm:$0xff]
        %v1192 = vld [vmem:[#allocation3 + $0x90] sm:$0xff]
        %v1193 = vld [vmem:[#allocation3 + $0x98] sm:$0xff]
        %v1194 = vld [vmem:[#allocation3 + $0xa0] sm:$0xff]
        %v1195 = vld [vmem:[#allocation3 + $0xa8] sm:$0xff]
        %v1196 = vld [vmem:[#allocation3 + $0xb0] sm:$0xff]
        %v1197 = vld [vmem:[#allocation3 + $0xb8] sm:$0xff]
        %v1198 = vld [vmem:[#allocation3 + $0xc0] sm:$0xff]
        %v1199 = vld [vmem:[#allocation3 + $0xc8] sm:$0xff]
        %v1200 = vld [vmem:[#allocation3 + $0xd0] sm:$0xff]
        %v1201 = vld [vmem:[#allocation3 + $0xd8] sm:$0xff]
        %v1202 = vld [vmem:[#allocation3 + $0xe0] sm:$0xff]
        %v1203 = vld [vmem:[#allocation3 + $0xe8] sm:$0xff]
        %v1204 = vld [vmem:[#allocation3 + $0xf0] sm:$0xff]
        %v1205 = vld [vmem:[#allocation3 + $0xf8] sm:$0xff]
        %v1206 = vld [vmem:[#allocation3 + $0x100] sm:$0xff]
        %v1207 = vld [vmem:[#allocation3 + $0x108] sm:$0xff]
        %v1208 = vld [vmem:[#allocation3 + $0x110] sm:$0xff]
        %v1209 = vld [vmem:[#allocation3 + $0x118] sm:$0xff]
        %v1210 = vld [vmem:[#allocation3 + $0x120] sm:$0xff]
        %v1211 = vld [vmem:[#allocation3 + $0x128] sm:$0xff]
        %v1212 = vld [vmem:[#allocation3 + $0x130] sm:$0xff]
        %v1213 = vld [vmem:[#allocation3 + $0x138] sm:$0xff]
        %v1214 = vld [vmem:[#allocation3 + $0x140] sm:$0xff]
        %v1215 = vld [vmem:[#allocation3 + $0x148] sm:$0xff]
        %v1216 = vld [vmem:[#allocation3 + $0x150] sm:$0xff]
        %v1217 = vld [vmem:[#allocation3 + $0x158] sm:$0xff]
        %v1218 = vld [vmem:[#allocation3 + $0x160] sm:$0xff]
        %v1219 = vld [vmem:[#allocation3 + $0x168] sm:$0xff]
        %v1220 = vld [vmem:[#allocation3 + $0x170] sm:$0xff]
        %v1221 = vld [vmem:[#allocation3 + $0x178] sm:$0xff]
        %v1222 = vld [vmem:[#allocation3 + $0x180] sm:$0xff]
        %v1223 = vld [vmem:[#allocation3 + $0x188] sm:$0xff]
        %v1224 = vld [vmem:[#allocation3 + $0x190] sm:$0xff]
        %v1225 = vld [vmem:[#allocation3 + $0x198] sm:$0xff]
        %v1226 = vld [vmem:[#allocation3 + $0x1a0] sm:$0xff]
        %v1227 = vld [vmem:[#allocation3 + $0x1a8] sm:$0xff]
        %v1228 = vld [vmem:[#allocation3 + $0x1b0] sm:$0xff]
        %v1229 = vld [vmem:[#allocation3 + $0x1b8] sm:$0xff]
        %v1230 = vld [vmem:[#allocation3 + $0x1c0] sm:$0xff]
        %v1231 = vld [vmem:[#allocation3 + $0x1c8] sm:$0xff]
        %v1232 = vld [vmem:[#allocation3 + $0x1d0] sm:$0xff]
        %v1233 = vld [vmem:[#allocation3 + $0x1d8] sm:$0xff]
        %v1234 = vld [vmem:[#allocation3 + $0x1e0] sm:$0xff]
        %v1235 = vld [vmem:[#allocation3 + $0x1e8] sm:$0xff]
        %v1236 = vld [vmem:[#allocation3 + $0x1f0] sm:$0xff]
        %v1237 = vld [vmem:[#allocation3 + $0x1f8] sm:$0xff]
        %v1238 = vadd.f32 %v1174, %v983
        %v1239 = vadd.f32 %v1175, %v986
        %v1240 = vadd.f32 %v1176, %v989
        %v1241 = vadd.f32 %v1177, %v992
        %v1242 = vadd.f32 %v1178, %v995
        %v1243 = vadd.f32 %v1179, %v998
        %v1244 = vadd.f32 %v1180, %v1001
        %v1245 = vadd.f32 %v1181, %v1004
        %v1246 = vadd.f32 %v1182, %v1007
        %v1247 = vadd.f32 %v1183, %v1010
        %v1248 = vadd.f32 %v1184, %v1013
        %v1249 = vadd.f32 %v1185, %v1016
        %v1250 = vadd.f32 %v1186, %v1019
        %v1251 = vadd.f32 %v1187, %v1022
        %v1252 = vadd.f32 %v1188, %v1025
        %v1253 = vadd.f32 %v1189, %v1028
        %v1254 = vadd.f32 %v1190, %v1031
        %v1255 = vadd.f32 %v1191, %v1034
        %v1256 = vadd.f32 %v1192, %v1037
        %v1257 = vadd.f32 %v1193, %v1040
        %v1258 = vadd.f32 %v1194, %v1043
        %v1259 = vadd.f32 %v1195, %v1046
        %v1260 = vadd.f32 %v1196, %v1049
        %v1261 = vadd.f32 %v1197, %v1052
        %v1262 = vadd.f32 %v1198, %v1055
        %v1263 = vadd.f32 %v1199, %v1058
        %v1264 = vadd.f32 %v1200, %v1061
        %v1265 = vadd.f32 %v1201, %v1064
        %v1266 = vadd.f32 %v1202, %v1067
        %v1267 = vadd.f32 %v1203, %v1070
        %v1268 = vadd.f32 %v1204, %v1073
        %v1269 = vadd.f32 %v1205, %v1076
        %v1270 = vadd.f32 %v1206, %v1079
        %v1271 = vadd.f32 %v1207, %v1082
        %v1272 = vadd.f32 %v1208, %v1085
        %v1273 = vadd.f32 %v1209, %v1088
        %v1274 = vadd.f32 %v1210, %v1091
        %v1275 = vadd.f32 %v1211, %v1094
        %v1276 = vadd.f32 %v1212, %v1097
        %v1277 = vadd.f32 %v1213, %v1100
        %v1278 = vadd.f32 %v1214, %v1103
        %v1279 = vadd.f32 %v1215, %v1106
        %v1280 = vadd.f32 %v1216, %v1109
        %v1281 = vadd.f32 %v1217, %v1112
        %v1282 = vadd.f32 %v1218, %v1115
        %v1283 = vadd.f32 %v1219, %v1118
        %v1284 = vadd.f32 %v1220, %v1121
        %v1285 = vadd.f32 %v1221, %v1124
        %v1286 = vadd.f32 %v1222, %v1127
        %v1287 = vadd.f32 %v1223, %v1130
        %v1288 = vadd.f32 %v1224, %v1133
        %v1289 = vadd.f32 %v1225, %v1136
        %v1290 = vadd.f32 %v1226, %v1139
        %v1291 = vadd.f32 %v1227, %v1142
        %v1292 = vadd.f32 %v1228, %v1145
        %v1293 = vadd.f32 %v1229, %v1148
        %v1294 = vadd.f32 %v1230, %v1151
        %v1295 = vadd.f32 %v1231, %v1154
        %v1296 = vadd.f32 %v1232, %v1157
        %v1297 = vadd.f32 %v1233, %v1160
        %v1298 = vadd.f32 %v1234, %v1163
        %v1299 = vadd.f32 %v1235, %v1166
        %v1300 = vadd.f32 %v1236, %v1169
        %v1301 = vadd.f32 %v1237, %v1172
        %1302 = vst [vmem:[#allocation3] sm:$0xff] %v1238
        %1303 = vst [vmem:[#allocation3 + $0x8] sm:$0xff] %v1239
        %1304 = vst [vmem:[#allocation3 + $0x10] sm:$0xff] %v1240
        %1305 = vst [vmem:[#allocation3 + $0x18] sm:$0xff] %v1241
        %1306 = vst [vmem:[#allocation3 + $0x20] sm:$0xff] %v1242
        %1307 = vst [vmem:[#allocation3 + $0x28] sm:$0xff] %v1243
        %1308 = vst [vmem:[#allocation3 + $0x30] sm:$0xff] %v1244
        %1309 = vst [vmem:[#allocation3 + $0x38] sm:$0xff] %v1245
        %1310 = vst [vmem:[#allocation3 + $0x40] sm:$0xff] %v1246
        %1311 = vst [vmem:[#allocation3 + $0x48] sm:$0xff] %v1247
        %1312 = vst [vmem:[#allocation3 + $0x50] sm:$0xff] %v1248
        %1313 = vst [vmem:[#allocation3 + $0x58] sm:$0xff] %v1249
        %1314 = vst [vmem:[#allocation3 + $0x60] sm:$0xff] %v1250
        %1315 = vst [vmem:[#allocation3 + $0x68] sm:$0xff] %v1251
        %1316 = vst [vmem:[#allocation3 + $0x70] sm:$0xff] %v1252
        %1317 = vst [vmem:[#allocation3 + $0x78] sm:$0xff] %v1253
        %1318 = vst [vmem:[#allocation3 + $0x80] sm:$0xff] %v1254
        %1319 = vst [vmem:[#allocation3 + $0x88] sm:$0xff] %v1255
        %1320 = vst [vmem:[#allocation3 + $0x90] sm:$0xff] %v1256
        %1321 = vst [vmem:[#allocation3 + $0x98] sm:$0xff] %v1257
        %1322 = vst [vmem:[#allocation3 + $0xa0] sm:$0xff] %v1258
        %1323 = vst [vmem:[#allocation3 + $0xa8] sm:$0xff] %v1259
        %1324 = vst [vmem:[#allocation3 + $0xb0] sm:$0xff] %v1260
        %1325 = vst [vmem:[#allocation3 + $0xb8] sm:$0xff] %v1261
        %1326 = vst [vmem:[#allocation3 + $0xc0] sm:$0xff] %v1262
        %1327 = vst [vmem:[#allocation3 + $0xc8] sm:$0xff] %v1263
        %1328 = vst [vmem:[#allocation3 + $0xd0] sm:$0xff] %v1264
        %1329 = vst [vmem:[#allocation3 + $0xd8] sm:$0xff] %v1265
        %1330 = vst [vmem:[#allocation3 + $0xe0] sm:$0xff] %v1266
        %1331 = vst [vmem:[#allocation3 + $0xe8] sm:$0xff] %v1267
        %1332 = vst [vmem:[#allocation3 + $0xf0] sm:$0xff] %v1268
        %1333 = vst [vmem:[#allocation3 + $0xf8] sm:$0xff] %v1269
        %1334 = vst [vmem:[#allocation3 + $0x100] sm:$0xff] %v1270
        %1335 = vst [vmem:[#allocation3 + $0x108] sm:$0xff] %v1271
        %1336 = vst [vmem:[#allocation3 + $0x110] sm:$0xff] %v1272
        %1337 = vst [vmem:[#allocation3 + $0x118] sm:$0xff] %v1273
        %1338 = vst [vmem:[#allocation3 + $0x120] sm:$0xff] %v1274
        %1339 = vst [vmem:[#allocation3 + $0x128] sm:$0xff] %v1275
        %1340 = vst [vmem:[#allocation3 + $0x130] sm:$0xff] %v1276
        %1341 = vst [vmem:[#allocation3 + $0x138] sm:$0xff] %v1277
        %1342 = vst [vmem:[#allocation3 + $0x140] sm:$0xff] %v1278
        %1343 = vst [vmem:[#allocation3 + $0x148] sm:$0xff] %v1279
        %1344 = vst [vmem:[#allocation3 + $0x150] sm:$0xff] %v1280
        %1345 = vst [vmem:[#allocation3 + $0x158] sm:$0xff] %v1281
        %1346 = vst [vmem:[#allocation3 + $0x160] sm:$0xff] %v1282
        %1347 = vst [vmem:[#allocation3 + $0x168] sm:$0xff] %v1283
        %1348 = vst [vmem:[#allocation3 + $0x170] sm:$0xff] %v1284
        %1349 = vst [vmem:[#allocation3 + $0x178] sm:$0xff] %v1285
        %1350 = vst [vmem:[#allocation3 + $0x180] sm:$0xff] %v1286
        %1351 = vst [vmem:[#allocation3 + $0x188] sm:$0xff] %v1287
        %1352 = vst [vmem:[#allocation3 + $0x190] sm:$0xff] %v1288
        %1353 = vst [vmem:[#allocation3 + $0x198] sm:$0xff] %v1289
        %1354 = vst [vmem:[#allocation3 + $0x1a0] sm:$0xff] %v1290
        %1355 = vst [vmem:[#allocation3 + $0x1a8] sm:$0xff] %v1291
        %1356 = vst [vmem:[#allocation3 + $0x1b0] sm:$0xff] %v1292
        %1357 = vst [vmem:[#allocation3 + $0x1b8] sm:$0xff] %v1293
        %1358 = vst [vmem:[#allocation3 + $0x1c0] sm:$0xff] %v1294
        %1359 = vst [vmem:[#allocation3 + $0x1c8] sm:$0xff] %v1295
        %1360 = vst [vmem:[#allocation3 + $0x1d0] sm:$0xff] %v1296
        %1361 = vst [vmem:[#allocation3 + $0x1d8] sm:$0xff] %v1297
        %1362 = vst [vmem:[#allocation3 + $0x1e0] sm:$0xff] %v1298
        %1363 = vst [vmem:[#allocation3 + $0x1e8] sm:$0xff] %v1299
        %1364 = vst [vmem:[#allocation3 + $0x1f0] sm:$0xff] %v1300
        %1365 = vst [vmem:[#allocation3 + $0x1f8] sm:$0xff] %v1301
        %v1366 = vld [vmem:[#allocation2 + $0x2] sm:$0xff]
        %v1367 = vld [vmem:[#allocation2 + $0xa] sm:$0xff]
        %v1368 = vld [vmem:[#allocation2 + $0x1a] sm:$0xff]
        %v1369 = vld [vmem:[#allocation2 + $0x22] sm:$0xff]
        %v1370 = vld [vmem:[#allocation2 + $0x32] sm:$0xff]
        %v1371 = vld [vmem:[#allocation2 + $0x3a] sm:$0xff]
        %v1372 = vld [vmem:[#allocation2 + $0x4a] sm:$0xff]
        %v1373 = vld [vmem:[#allocation2 + $0x52] sm:$0xff]
        %v1374 = vld [vmem:[#allocation2 + $0x62] sm:$0xff]
        %v1375 = vld [vmem:[#allocation2 + $0x6a] sm:$0xff]
        %v1376 = vld [vmem:[#allocation2 + $0x7a] sm:$0xff]
        %v1377 = vld [vmem:[#allocation2 + $0x82] sm:$0xff]
        %v1378 = vld [vmem:[#allocation2 + $0x92] sm:$0xff]
        %v1379 = vld [vmem:[#allocation2 + $0x9a] sm:$0xff]
        %v1380 = vld [vmem:[#allocation2 + $0xaa] sm:$0xff]
        %v1381 = vld [vmem:[#allocation2 + $0xb2] sm:$0xff]
        %v1382 = vld [vmem:[#allocation2 + $0xc2] sm:$0xff]
        %v1383 = vld [vmem:[#allocation2 + $0xca] sm:$0xff]
        %v1384 = vld [vmem:[#allocation2 + $0xda] sm:$0xff]
        %v1385 = vld [vmem:[#allocation2 + $0xe2] sm:$0xff]
        %v1386 = vld [vmem:[#allocation2 + $0xf2] sm:$0xff]
        %v1387 = vld [vmem:[#allocation2 + $0xfa] sm:$0xff]
        %v1388 = vld [vmem:[#allocation2 + $0x10a] sm:$0xff]
        %v1389 = vld [vmem:[#allocation2 + $0x112] sm:$0xff]
        %v1390 = vld [vmem:[#allocation2 + $0x122] sm:$0xff]
        %v1391 = vld [vmem:[#allocation2 + $0x12a] sm:$0xff]
        %v1392 = vld [vmem:[#allocation2 + $0x13a] sm:$0xff]
        %v1393 = vld [vmem:[#allocation2 + $0x142] sm:$0xff]
        %v1394 = vld [vmem:[#allocation2 + $0x152] sm:$0xff]
        %v1395 = vld [vmem:[#allocation2 + $0x15a] sm:$0xff]
        %v1396 = vld [vmem:[#allocation2 + $0x16a] sm:$0xff]
        %v1397 = vld [vmem:[#allocation2 + $0x172] sm:$0xff]
        %v1398 = vld [vmem:[#allocation2 + $0x1b2] sm:$0xff]
        %v1399 = vld [vmem:[#allocation2 + $0x1ba] sm:$0xff]
        %v1400 = vld [vmem:[#allocation2 + $0x1ca] sm:$0xff]
        %v1401 = vld [vmem:[#allocation2 + $0x1d2] sm:$0xff]
        %v1402 = vld [vmem:[#allocation2 + $0x1e2] sm:$0xff]
        %v1403 = vld [vmem:[#allocation2 + $0x1ea] sm:$0xff]
        %v1404 = vld [vmem:[#allocation2 + $0x1fa] sm:$0xff]
        %v1405 = vld [vmem:[#allocation2 + $0x202] sm:$0xff]
        %v1406 = vld [vmem:[#allocation2 + $0x212] sm:$0xff]
        %v1407 = vld [vmem:[#allocation2 + $0x21a] sm:$0xff]
        %v1408 = vld [vmem:[#allocation2 + $0x22a] sm:$0xff]
        %v1409 = vld [vmem:[#allocation2 + $0x232] sm:$0xff]
        %v1410 = vld [vmem:[#allocation2 + $0x242] sm:$0xff]
        %v1411 = vld [vmem:[#allocation2 + $0x24a] sm:$0xff]
        %v1412 = vld [vmem:[#allocation2 + $0x25a] sm:$0xff]
        %v1413 = vld [vmem:[#allocation2 + $0x262] sm:$0xff]
        %v1414 = vld [vmem:[#allocation2 + $0x272] sm:$0xff]
        %v1415 = vld [vmem:[#allocation2 + $0x27a] sm:$0xff]
        %v1416 = vld [vmem:[#allocation2 + $0x28a] sm:$0xff]
        %v1417 = vld [vmem:[#allocation2 + $0x292] sm:$0xff]
        %v1418 = vld [vmem:[#allocation2 + $0x2a2] sm:$0xff]
        %v1419 = vld [vmem:[#allocation2 + $0x2aa] sm:$0xff]
        %v1420 = vld [vmem:[#allocation2 + $0x2ba] sm:$0xff]
        %v1421 = vld [vmem:[#allocation2 + $0x2c2] sm:$0xff]
        %v1422 = vld [vmem:[#allocation2 + $0x2d2] sm:$0xff]
        %v1423 = vld [vmem:[#allocation2 + $0x2da] sm:$0xff]
        %v1424 = vld [vmem:[#allocation2 + $0x2ea] sm:$0xff]
        %v1425 = vld [vmem:[#allocation2 + $0x2f2] sm:$0xff]
        %v1426 = vld [vmem:[#allocation2 + $0x302] sm:$0xff]
        %v1427 = vld [vmem:[#allocation2 + $0x30a] sm:$0xff]
        %v1428 = vld [vmem:[#allocation2 + $0x31a] sm:$0xff]
        %v1429 = vld [vmem:[#allocation2 + $0x322] sm:$0xff]
        %s1430 = scalar_lea.vmem %s243, 256 [#allocation7]
        %v1431 = vld [vmem:[%s1430] sm:$0xff]
        %v1432 = vld [vmem:[%s1430 + $0x8] sm:$0xff]
        %v1433 = vld [vmem:[%s1430 + $0x10] sm:$0xff]
        %v1434 = vld [vmem:[%s1430 + $0x18] sm:$0xff]
        %v1435 = vld [vmem:[%s1430 + $0x20] sm:$0xff]
        %v1436 = vld [vmem:[%s1430 + $0x28] sm:$0xff]
        %v1437 = vld [vmem:[%s1430 + $0x30] sm:$0xff]
        %v1438 = vld [vmem:[%s1430 + $0x38] sm:$0xff]
        %v1439 = vld [vmem:[%s1430 + $0x40] sm:$0xff]
        %v1440 = vld [vmem:[%s1430 + $0x48] sm:$0xff]
        %v1441 = vld [vmem:[%s1430 + $0x50] sm:$0xff]
        %v1442 = vld [vmem:[%s1430 + $0x58] sm:$0xff]
        %v1443 = vld [vmem:[%s1430 + $0x60] sm:$0xff]
        %v1444 = vld [vmem:[%s1430 + $0x68] sm:$0xff]
        %v1445 = vld [vmem:[%s1430 + $0x70] sm:$0xff]
        %v1446 = vld [vmem:[%s1430 + $0x78] sm:$0xff]
        %1447 = vmatpush.msra.mxu0 %v1446
        %1448 = vmatpush.msra.mxu0 %v1445
        %1449 = vmatpush.msra.mxu0 %v1444
        %1450 = vmatpush.msra.mxu0 %v1443
        %1451 = vmatpush.msra.mxu0 %v1442
        %1452 = vmatpush.msra.mxu0 %v1441
        %1453 = vmatpush.msra.mxu0 %v1440
        %1454 = vmatpush.msra.mxu0 %v1439
        %1455 = vmatpush.msra.mxu0 %v1438
        %1456 = vmatpush.msra.mxu0 %v1437
        %1457 = vmatpush.msra.mxu0 %v1436
        %1458 = vmatpush.msra.mxu0 %v1435
        %1459 = vmatpush.msra.mxu0 %v1434
        %1460 = vmatpush.msra.mxu0 %v1433
        %1461 = vmatpush.msra.mxu0 %v1432
        %1462 = vmatpush.msra.mxu0 %v1431
        %1463 = vmatmul.f32.gmra.mxu0 %v1366
        %v1464 = vpop.f32.mrf.mxu0
        %v1465 = vadd.f32 0.0, %v1464
        %1466 = vmatmul.f32.gmra.mxu0 %v1367
        %v1467 = vpop.f32.mrf.mxu0
        %v1468 = vadd.f32 0.0, %v1467
        %1469 = vmatmul.f32.gmra.mxu0 %v1368
        %v1470 = vpop.f32.mrf.mxu0
        %v1471 = vadd.f32 0.0, %v1470
        %1472 = vmatmul.f32.gmra.mxu0 %v1369
        %v1473 = vpop.f32.mrf.mxu0
        %v1474 = vadd.f32 0.0, %v1473
        %1475 = vmatmul.f32.gmra.mxu0 %v1370
        %v1476 = vpop.f32.mrf.mxu0
        %v1477 = vadd.f32 0.0, %v1476
        %1478 = vmatmul.f32.gmra.mxu0 %v1371
        %v1479 = vpop.f32.mrf.mxu0
        %v1480 = vadd.f32 0.0, %v1479
        %1481 = vmatmul.f32.gmra.mxu0 %v1372
        %v1482 = vpop.f32.mrf.mxu0
        %v1483 = vadd.f32 0.0, %v1482
        %1484 = vmatmul.f32.gmra.mxu0 %v1373
        %v1485 = vpop.f32.mrf.mxu0
        %v1486 = vadd.f32 0.0, %v1485
        %1487 = vmatmul.f32.gmra.mxu0 %v1374
        %v1488 = vpop.f32.mrf.mxu0
        %v1489 = vadd.f32 0.0, %v1488
        %1490 = vmatmul.f32.gmra.mxu0 %v1375
        %v1491 = vpop.f32.mrf.mxu0
        %v1492 = vadd.f32 0.0, %v1491
        %1493 = vmatmul.f32.gmra.mxu0 %v1376
        %v1494 = vpop.f32.mrf.mxu0
        %v1495 = vadd.f32 0.0, %v1494
        %1496 = vmatmul.f32.gmra.mxu0 %v1377
        %v1497 = vpop.f32.mrf.mxu0
        %v1498 = vadd.f32 0.0, %v1497
        %1499 = vmatmul.f32.gmra.mxu0 %v1378
        %v1500 = vpop.f32.mrf.mxu0
        %v1501 = vadd.f32 0.0, %v1500
        %1502 = vmatmul.f32.gmra.mxu0 %v1379
        %v1503 = vpop.f32.mrf.mxu0
        %v1504 = vadd.f32 0.0, %v1503
        %1505 = vmatmul.f32.gmra.mxu0 %v1380
        %v1506 = vpop.f32.mrf.mxu0
        %v1507 = vadd.f32 0.0, %v1506
        %1508 = vmatmul.f32.gmra.mxu0 %v1381
        %v1509 = vpop.f32.mrf.mxu0
        %v1510 = vadd.f32 0.0, %v1509
        %1511 = vmatmul.f32.gmra.mxu0 %v1382
        %v1512 = vpop.f32.mrf.mxu0
        %v1513 = vadd.f32 0.0, %v1512
        %1514 = vmatmul.f32.gmra.mxu0 %v1383
        %v1515 = vpop.f32.mrf.mxu0
        %v1516 = vadd.f32 0.0, %v1515
        %1517 = vmatmul.f32.gmra.mxu0 %v1384
        %v1518 = vpop.f32.mrf.mxu0
        %v1519 = vadd.f32 0.0, %v1518
        %1520 = vmatmul.f32.gmra.mxu0 %v1385
        %v1521 = vpop.f32.mrf.mxu0
        %v1522 = vadd.f32 0.0, %v1521
        %1523 = vmatmul.f32.gmra.mxu0 %v1386
        %v1524 = vpop.f32.mrf.mxu0
        %v1525 = vadd.f32 0.0, %v1524
        %1526 = vmatmul.f32.gmra.mxu0 %v1387
        %v1527 = vpop.f32.mrf.mxu0
        %v1528 = vadd.f32 0.0, %v1527
        %1529 = vmatmul.f32.gmra.mxu0 %v1388
        %v1530 = vpop.f32.mrf.mxu0
        %v1531 = vadd.f32 0.0, %v1530
        %1532 = vmatmul.f32.gmra.mxu0 %v1389
        %v1533 = vpop.f32.mrf.mxu0
        %v1534 = vadd.f32 0.0, %v1533
        %1535 = vmatmul.f32.gmra.mxu0 %v1390
        %v1536 = vpop.f32.mrf.mxu0
        %v1537 = vadd.f32 0.0, %v1536
        %1538 = vmatmul.f32.gmra.mxu0 %v1391
        %v1539 = vpop.f32.mrf.mxu0
        %v1540 = vadd.f32 0.0, %v1539
        %1541 = vmatmul.f32.gmra.mxu0 %v1392
        %v1542 = vpop.f32.mrf.mxu0
        %v1543 = vadd.f32 0.0, %v1542
        %1544 = vmatmul.f32.gmra.mxu0 %v1393
        %v1545 = vpop.f32.mrf.mxu0
        %v1546 = vadd.f32 0.0, %v1545
        %1547 = vmatmul.f32.gmra.mxu0 %v1394
        %v1548 = vpop.f32.mrf.mxu0
        %v1549 = vadd.f32 0.0, %v1548
        %1550 = vmatmul.f32.gmra.mxu0 %v1395
        %v1551 = vpop.f32.mrf.mxu0
        %v1552 = vadd.f32 0.0, %v1551
        %1553 = vmatmul.f32.gmra.mxu0 %v1396
        %v1554 = vpop.f32.mrf.mxu0
        %v1555 = vadd.f32 0.0, %v1554
        %1556 = vmatmul.f32.gmra.mxu0 %v1397
        %v1557 = vpop.f32.mrf.mxu0
        %v1558 = vadd.f32 0.0, %v1557
        %1559 = vmatmul.f32.gmra.mxu0 %v1398
        %v1560 = vpop.f32.mrf.mxu0
        %v1561 = vadd.f32 0.0, %v1560
        %1562 = vmatmul.f32.gmra.mxu0 %v1399
        %v1563 = vpop.f32.mrf.mxu0
        %v1564 = vadd.f32 0.0, %v1563
        %1565 = vmatmul.f32.gmra.mxu0 %v1400
        %v1566 = vpop.f32.mrf.mxu0
        %v1567 = vadd.f32 0.0, %v1566
        %1568 = vmatmul.f32.gmra.mxu0 %v1401
        %v1569 = vpop.f32.mrf.mxu0
        %v1570 = vadd.f32 0.0, %v1569
        %1571 = vmatmul.f32.gmra.mxu0 %v1402
        %v1572 = vpop.f32.mrf.mxu0
        %v1573 = vadd.f32 0.0, %v1572
        %1574 = vmatmul.f32.gmra.mxu0 %v1403
        %v1575 = vpop.f32.mrf.mxu0
        %v1576 = vadd.f32 0.0, %v1575
        %1577 = vmatmul.f32.gmra.mxu0 %v1404
        %v1578 = vpop.f32.mrf.mxu0
        %v1579 = vadd.f32 0.0, %v1578
        %1580 = vmatmul.f32.gmra.mxu0 %v1405
        %v1581 = vpop.f32.mrf.mxu0
        %v1582 = vadd.f32 0.0, %v1581
        %1583 = vmatmul.f32.gmra.mxu0 %v1406
        %v1584 = vpop.f32.mrf.mxu0
        %v1585 = vadd.f32 0.0, %v1584
        %1586 = vmatmul.f32.gmra.mxu0 %v1407
        %v1587 = vpop.f32.mrf.mxu0
        %v1588 = vadd.f32 0.0, %v1587
        %1589 = vmatmul.f32.gmra.mxu0 %v1408
        %v1590 = vpop.f32.mrf.mxu0
        %v1591 = vadd.f32 0.0, %v1590
        %1592 = vmatmul.f32.gmra.mxu0 %v1409
        %v1593 = vpop.f32.mrf.mxu0
        %v1594 = vadd.f32 0.0, %v1593
        %1595 = vmatmul.f32.gmra.mxu0 %v1410
        %v1596 = vpop.f32.mrf.mxu0
        %v1597 = vadd.f32 0.0, %v1596
        %1598 = vmatmul.f32.gmra.mxu0 %v1411
        %v1599 = vpop.f32.mrf.mxu0
        %v1600 = vadd.f32 0.0, %v1599
        %1601 = vmatmul.f32.gmra.mxu0 %v1412
        %v1602 = vpop.f32.mrf.mxu0
        %v1603 = vadd.f32 0.0, %v1602
        %1604 = vmatmul.f32.gmra.mxu0 %v1413
        %v1605 = vpop.f32.mrf.mxu0
        %v1606 = vadd.f32 0.0, %v1605
        %1607 = vmatmul.f32.gmra.mxu0 %v1414
        %v1608 = vpop.f32.mrf.mxu0
        %v1609 = vadd.f32 0.0, %v1608
        %1610 = vmatmul.f32.gmra.mxu0 %v1415
        %v1611 = vpop.f32.mrf.mxu0
        %v1612 = vadd.f32 0.0, %v1611
        %1613 = vmatmul.f32.gmra.mxu0 %v1416
        %v1614 = vpop.f32.mrf.mxu0
        %v1615 = vadd.f32 0.0, %v1614
        %1616 = vmatmul.f32.gmra.mxu0 %v1417
        %v1617 = vpop.f32.mrf.mxu0
        %v1618 = vadd.f32 0.0, %v1617
        %1619 = vmatmul.f32.gmra.mxu0 %v1418
        %v1620 = vpop.f32.mrf.mxu0
        %v1621 = vadd.f32 0.0, %v1620
        %1622 = vmatmul.f32.gmra.mxu0 %v1419
        %v1623 = vpop.f32.mrf.mxu0
        %v1624 = vadd.f32 0.0, %v1623
        %1625 = vmatmul.f32.gmra.mxu0 %v1420
        %v1626 = vpop.f32.mrf.mxu0
        %v1627 = vadd.f32 0.0, %v1626
        %1628 = vmatmul.f32.gmra.mxu0 %v1421
        %v1629 = vpop.f32.mrf.mxu0
        %v1630 = vadd.f32 0.0, %v1629
        %1631 = vmatmul.f32.gmra.mxu0 %v1422
        %v1632 = vpop.f32.mrf.mxu0
        %v1633 = vadd.f32 0.0, %v1632
        %1634 = vmatmul.f32.gmra.mxu0 %v1423
        %v1635 = vpop.f32.mrf.mxu0
        %v1636 = vadd.f32 0.0, %v1635
        %1637 = vmatmul.f32.gmra.mxu0 %v1424
        %v1638 = vpop.f32.mrf.mxu0
        %v1639 = vadd.f32 0.0, %v1638
        %1640 = vmatmul.f32.gmra.mxu0 %v1425
        %v1641 = vpop.f32.mrf.mxu0
        %v1642 = vadd.f32 0.0, %v1641
        %1643 = vmatmul.f32.gmra.mxu0 %v1426
        %v1644 = vpop.f32.mrf.mxu0
        %v1645 = vadd.f32 0.0, %v1644
        %1646 = vmatmul.f32.gmra.mxu0 %v1427
        %v1647 = vpop.f32.mrf.mxu0
        %v1648 = vadd.f32 0.0, %v1647
        %1649 = vmatmul.f32.gmra.mxu0 %v1428
        %v1650 = vpop.f32.mrf.mxu0
        %v1651 = vadd.f32 0.0, %v1650
        %1652 = vmatmul.f32.gmra.mxu0 %v1429
        %v1653 = vpop.f32.mrf.mxu0
        %v1654 = vadd.f32 0.0, %v1653
        %1655 = vdwg.mxu0
        %v1656 = vld [vmem:[#allocation3] sm:$0xff]
        %v1657 = vld [vmem:[#allocation3 + $0x8] sm:$0xff]
        %v1658 = vld [vmem:[#allocation3 + $0x10] sm:$0xff]
        %v1659 = vld [vmem:[#allocation3 + $0x18] sm:$0xff]
        %v1660 = vld [vmem:[#allocation3 + $0x20] sm:$0xff]
        %v1661 = vld [vmem:[#allocation3 + $0x28] sm:$0xff]
        %v1662 = vld [vmem:[#allocation3 + $0x30] sm:$0xff]
        %v1663 = vld [vmem:[#allocation3 + $0x38] sm:$0xff]
        %v1664 = vld [vmem:[#allocation3 + $0x40] sm:$0xff]
        %v1665 = vld [vmem:[#allocation3 + $0x48] sm:$0xff]
        %v1666 = vld [vmem:[#allocation3 + $0x50] sm:$0xff]
        %v1667 = vld [vmem:[#allocation3 + $0x58] sm:$0xff]
        %v1668 = vld [vmem:[#allocation3 + $0x60] sm:$0xff]
        %v1669 = vld [vmem:[#allocation3 + $0x68] sm:$0xff]
        %v1670 = vld [vmem:[#allocation3 + $0x70] sm:$0xff]
        %v1671 = vld [vmem:[#allocation3 + $0x78] sm:$0xff]
        %v1672 = vld [vmem:[#allocation3 + $0x80] sm:$0xff]
        %v1673 = vld [vmem:[#allocation3 + $0x88] sm:$0xff]
        %v1674 = vld [vmem:[#allocation3 + $0x90] sm:$0xff]
        %v1675 = vld [vmem:[#allocation3 + $0x98] sm:$0xff]
        %v1676 = vld [vmem:[#allocation3 + $0xa0] sm:$0xff]
        %v1677 = vld [vmem:[#allocation3 + $0xa8] sm:$0xff]
        %v1678 = vld [vmem:[#allocation3 + $0xb0] sm:$0xff]
        %v1679 = vld [vmem:[#allocation3 + $0xb8] sm:$0xff]
        %v1680 = vld [vmem:[#allocation3 + $0xc0] sm:$0xff]
        %v1681 = vld [vmem:[#allocation3 + $0xc8] sm:$0xff]
        %v1682 = vld [vmem:[#allocation3 + $0xd0] sm:$0xff]
        %v1683 = vld [vmem:[#allocation3 + $0xd8] sm:$0xff]
        %v1684 = vld [vmem:[#allocation3 + $0xe0] sm:$0xff]
        %v1685 = vld [vmem:[#allocation3 + $0xe8] sm:$0xff]
        %v1686 = vld [vmem:[#allocation3 + $0xf0] sm:$0xff]
        %v1687 = vld [vmem:[#allocation3 + $0xf8] sm:$0xff]
        %v1688 = vld [vmem:[#allocation3 + $0x100] sm:$0xff]
        %v1689 = vld [vmem:[#allocation3 + $0x108] sm:$0xff]
        %v1690 = vld [vmem:[#allocation3 + $0x110] sm:$0xff]
        %v1691 = vld [vmem:[#allocation3 + $0x118] sm:$0xff]
        %v1692 = vld [vmem:[#allocation3 + $0x120] sm:$0xff]
        %v1693 = vld [vmem:[#allocation3 + $0x128] sm:$0xff]
        %v1694 = vld [vmem:[#allocation3 + $0x130] sm:$0xff]
        %v1695 = vld [vmem:[#allocation3 + $0x138] sm:$0xff]
        %v1696 = vld [vmem:[#allocation3 + $0x140] sm:$0xff]
        %v1697 = vld [vmem:[#allocation3 + $0x148] sm:$0xff]
        %v1698 = vld [vmem:[#allocation3 + $0x150] sm:$0xff]
        %v1699 = vld [vmem:[#allocation3 + $0x158] sm:$0xff]
        %v1700 = vld [vmem:[#allocation3 + $0x160] sm:$0xff]
        %v1701 = vld [vmem:[#allocation3 + $0x168] sm:$0xff]
        %v1702 = vld [vmem:[#allocation3 + $0x170] sm:$0xff]
        %v1703 = vld [vmem:[#allocation3 + $0x178] sm:$0xff]
        %v1704 = vld [vmem:[#allocation3 + $0x180] sm:$0xff]
        %v1705 = vld [vmem:[#allocation3 + $0x188] sm:$0xff]
        %v1706 = vld [vmem:[#allocation3 + $0x190] sm:$0xff]
        %v1707 = vld [vmem:[#allocation3 + $0x198] sm:$0xff]
        %v1708 = vld [vmem:[#allocation3 + $0x1a0] sm:$0xff]
        %v1709 = vld [vmem:[#allocation3 + $0x1a8] sm:$0xff]
        %v1710 = vld [vmem:[#allocation3 + $0x1b0] sm:$0xff]
        %v1711 = vld [vmem:[#allocation3 + $0x1b8] sm:$0xff]
        %v1712 = vld [vmem:[#allocation3 + $0x1c0] sm:$0xff]
        %v1713 = vld [vmem:[#allocation3 + $0x1c8] sm:$0xff]
        %v1714 = vld [vmem:[#allocation3 + $0x1d0] sm:$0xff]
        %v1715 = vld [vmem:[#allocation3 + $0x1d8] sm:$0xff]
        %v1716 = vld [vmem:[#allocation3 + $0x1e0] sm:$0xff]
        %v1717 = vld [vmem:[#allocation3 + $0x1e8] sm:$0xff]
        %v1718 = vld [vmem:[#allocation3 + $0x1f0] sm:$0xff]
        %v1719 = vld [vmem:[#allocation3 + $0x1f8] sm:$0xff]
        %v1720 = vadd.f32 %v1656, %v1465
        %v1721 = vadd.f32 %v1657, %v1468
        %v1722 = vadd.f32 %v1658, %v1471
        %v1723 = vadd.f32 %v1659, %v1474
        %v1724 = vadd.f32 %v1660, %v1477
        %v1725 = vadd.f32 %v1661, %v1480
        %v1726 = vadd.f32 %v1662, %v1483
        %v1727 = vadd.f32 %v1663, %v1486
        %v1728 = vadd.f32 %v1664, %v1489
        %v1729 = vadd.f32 %v1665, %v1492
        %v1730 = vadd.f32 %v1666, %v1495
        %v1731 = vadd.f32 %v1667, %v1498
        %v1732 = vadd.f32 %v1668, %v1501
        %v1733 = vadd.f32 %v1669, %v1504
        %v1734 = vadd.f32 %v1670, %v1507
        %v1735 = vadd.f32 %v1671, %v1510
        %v1736 = vadd.f32 %v1672, %v1513
        %v1737 = vadd.f32 %v1673, %v1516
        %v1738 = vadd.f32 %v1674, %v1519
        %v1739 = vadd.f32 %v1675, %v1522
        %v1740 = vadd.f32 %v1676, %v1525
        %v1741 = vadd.f32 %v1677, %v1528
        %v1742 = vadd.f32 %v1678, %v1531
        %v1743 = vadd.f32 %v1679, %v1534
        %v1744 = vadd.f32 %v1680, %v1537
        %v1745 = vadd.f32 %v1681, %v1540
        %v1746 = vadd.f32 %v1682, %v1543
        %v1747 = vadd.f32 %v1683, %v1546
        %v1748 = vadd.f32 %v1684, %v1549
        %v1749 = vadd.f32 %v1685, %v1552
        %v1750 = vadd.f32 %v1686, %v1555
        %v1751 = vadd.f32 %v1687, %v1558
        %v1752 = vadd.f32 %v1688, %v1561
        %v1753 = vadd.f32 %v1689, %v1564
        %v1754 = vadd.f32 %v1690, %v1567
        %v1755 = vadd.f32 %v1691, %v1570
        %v1756 = vadd.f32 %v1692, %v1573
        %v1757 = vadd.f32 %v1693, %v1576
        %v1758 = vadd.f32 %v1694, %v1579
        %v1759 = vadd.f32 %v1695, %v1582
        %v1760 = vadd.f32 %v1696, %v1585
        %v1761 = vadd.f32 %v1697, %v1588
        %v1762 = vadd.f32 %v1698, %v1591
        %v1763 = vadd.f32 %v1699, %v1594
        %v1764 = vadd.f32 %v1700, %v1597
        %v1765 = vadd.f32 %v1701, %v1600
        %v1766 = vadd.f32 %v1702, %v1603
        %v1767 = vadd.f32 %v1703, %v1606
        %v1768 = vadd.f32 %v1704, %v1609
        %v1769 = vadd.f32 %v1705, %v1612
        %v1770 = vadd.f32 %v1706, %v1615
        %v1771 = vadd.f32 %v1707, %v1618
        %v1772 = vadd.f32 %v1708, %v1621
        %v1773 = vadd.f32 %v1709, %v1624
        %v1774 = vadd.f32 %v1710, %v1627
        %v1775 = vadd.f32 %v1711, %v1630
        %v1776 = vadd.f32 %v1712, %v1633
        %v1777 = vadd.f32 %v1713, %v1636
        %v1778 = vadd.f32 %v1714, %v1639
        %v1779 = vadd.f32 %v1715, %v1642
        %v1780 = vadd.f32 %v1716, %v1645
        %v1781 = vadd.f32 %v1717, %v1648
        %v1782 = vadd.f32 %v1718, %v1651
        %v1783 = vadd.f32 %v1719, %v1654
        %1784 = vst [vmem:[#allocation3] sm:$0xff] %v1720
        %1785 = vst [vmem:[#allocation3 + $0x8] sm:$0xff] %v1721
        %1786 = vst [vmem:[#allocation3 + $0x10] sm:$0xff] %v1722
        %1787 = vst [vmem:[#allocation3 + $0x18] sm:$0xff] %v1723
        %1788 = vst [vmem:[#allocation3 + $0x20] sm:$0xff] %v1724
        %1789 = vst [vmem:[#allocation3 + $0x28] sm:$0xff] %v1725
        %1790 = vst [vmem:[#allocation3 + $0x30] sm:$0xff] %v1726
        %1791 = vst [vmem:[#allocation3 + $0x38] sm:$0xff] %v1727
        %1792 = vst [vmem:[#allocation3 + $0x40] sm:$0xff] %v1728
        %1793 = vst [vmem:[#allocation3 + $0x48] sm:$0xff] %v1729
        %1794 = vst [vmem:[#allocation3 + $0x50] sm:$0xff] %v1730
        %1795 = vst [vmem:[#allocation3 + $0x58] sm:$0xff] %v1731
        %1796 = vst [vmem:[#allocation3 + $0x60] sm:$0xff] %v1732
        %1797 = vst [vmem:[#allocation3 + $0x68] sm:$0xff] %v1733
        %1798 = vst [vmem:[#allocation3 + $0x70] sm:$0xff] %v1734
        %1799 = vst [vmem:[#allocation3 + $0x78] sm:$0xff] %v1735
        %1800 = vst [vmem:[#allocation3 + $0x80] sm:$0xff] %v1736
        %1801 = vst [vmem:[#allocation3 + $0x88] sm:$0xff] %v1737
        %1802 = vst [vmem:[#allocation3 + $0x90] sm:$0xff] %v1738
        %1803 = vst [vmem:[#allocation3 + $0x98] sm:$0xff] %v1739
        %1804 = vst [vmem:[#allocation3 + $0xa0] sm:$0xff] %v1740
        %1805 = vst [vmem:[#allocation3 + $0xa8] sm:$0xff] %v1741
        %1806 = vst [vmem:[#allocation3 + $0xb0] sm:$0xff] %v1742
        %1807 = vst [vmem:[#allocation3 + $0xb8] sm:$0xff] %v1743
        %1808 = vst [vmem:[#allocation3 + $0xc0] sm:$0xff] %v1744
        %1809 = vst [vmem:[#allocation3 + $0xc8] sm:$0xff] %v1745
        %1810 = vst [vmem:[#allocation3 + $0xd0] sm:$0xff] %v1746
        %1811 = vst [vmem:[#allocation3 + $0xd8] sm:$0xff] %v1747
        %1812 = vst [vmem:[#allocation3 + $0xe0] sm:$0xff] %v1748
        %1813 = vst [vmem:[#allocation3 + $0xe8] sm:$0xff] %v1749
        %1814 = vst [vmem:[#allocation3 + $0xf0] sm:$0xff] %v1750
        %1815 = vst [vmem:[#allocation3 + $0xf8] sm:$0xff] %v1751
        %1816 = vst [vmem:[#allocation3 + $0x100] sm:$0xff] %v1752
        %1817 = vst [vmem:[#allocation3 + $0x108] sm:$0xff] %v1753
        %1818 = vst [vmem:[#allocation3 + $0x110] sm:$0xff] %v1754
        %1819 = vst [vmem:[#allocation3 + $0x118] sm:$0xff] %v1755
        %1820 = vst [vmem:[#allocation3 + $0x120] sm:$0xff] %v1756
        %1821 = vst [vmem:[#allocation3 + $0x128] sm:$0xff] %v1757
        %1822 = vst [vmem:[#allocation3 + $0x130] sm:$0xff] %v1758
        %1823 = vst [vmem:[#allocation3 + $0x138] sm:$0xff] %v1759
        %1824 = vst [vmem:[#allocation3 + $0x140] sm:$0xff] %v1760
        %1825 = vst [vmem:[#allocation3 + $0x148] sm:$0xff] %v1761
        %1826 = vst [vmem:[#allocation3 + $0x150] sm:$0xff] %v1762
        %1827 = vst [vmem:[#allocation3 + $0x158] sm:$0xff] %v1763
        %1828 = vst [vmem:[#allocation3 + $0x160] sm:$0xff] %v1764
        %1829 = vst [vmem:[#allocation3 + $0x168] sm:$0xff] %v1765
        %1830 = vst [vmem:[#allocation3 + $0x170] sm:$0xff] %v1766
        %1831 = vst [vmem:[#allocation3 + $0x178] sm:$0xff] %v1767
        %1832 = vst [vmem:[#allocation3 + $0x180] sm:$0xff] %v1768
        %1833 = vst [vmem:[#allocation3 + $0x188] sm:$0xff] %v1769
        %1834 = vst [vmem:[#allocation3 + $0x190] sm:$0xff] %v1770
        %1835 = vst [vmem:[#allocation3 + $0x198] sm:$0xff] %v1771
        %1836 = vst [vmem:[#allocation3 + $0x1a0] sm:$0xff] %v1772
        %1837 = vst [vmem:[#allocation3 + $0x1a8] sm:$0xff] %v1773
        %1838 = vst [vmem:[#allocation3 + $0x1b0] sm:$0xff] %v1774
        %1839 = vst [vmem:[#allocation3 + $0x1b8] sm:$0xff] %v1775
        %1840 = vst [vmem:[#allocation3 + $0x1c0] sm:$0xff] %v1776
        %1841 = vst [vmem:[#allocation3 + $0x1c8] sm:$0xff] %v1777
        %1842 = vst [vmem:[#allocation3 + $0x1d0] sm:$0xff] %v1778
        %1843 = vst [vmem:[#allocation3 + $0x1d8] sm:$0xff] %v1779
        %1844 = vst [vmem:[#allocation3 + $0x1e0] sm:$0xff] %v1780
        %1845 = vst [vmem:[#allocation3 + $0x1e8] sm:$0xff] %v1781
        %1846 = vst [vmem:[#allocation3 + $0x1f0] sm:$0xff] %v1782
        %1847 = vst [vmem:[#allocation3 + $0x1f8] sm:$0xff] %v1783
        %s1848 = scalar_lea.vmem [#allocation2], 24
        %v1849 = vld [vmem:[%s1848] sm:$0xff]
        %v1850 = vld [vmem:[%s1848 + $0x8] sm:$0xff]
        %v1851 = vld [vmem:[%s1848 + $0x18] sm:$0xff]
        %v1852 = vld [vmem:[%s1848 + $0x20] sm:$0xff]
        %v1853 = vld [vmem:[%s1848 + $0x30] sm:$0xff]
        %v1854 = vld [vmem:[%s1848 + $0x38] sm:$0xff]
        %v1855 = vld [vmem:[%s1848 + $0x48] sm:$0xff]
        %v1856 = vld [vmem:[%s1848 + $0x50] sm:$0xff]
        %v1857 = vld [vmem:[%s1848 + $0x60] sm:$0xff]
        %v1858 = vld [vmem:[%s1848 + $0x68] sm:$0xff]
        %v1859 = vld [vmem:[%s1848 + $0x78] sm:$0xff]
        %v1860 = vld [vmem:[%s1848 + $0x80] sm:$0xff]
        %v1861 = vld [vmem:[%s1848 + $0x90] sm:$0xff]
        %v1862 = vld [vmem:[%s1848 + $0x98] sm:$0xff]
        %v1863 = vld [vmem:[%s1848 + $0xa8] sm:$0xff]
        %v1864 = vld [vmem:[%s1848 + $0xb0] sm:$0xff]
        %v1865 = vld [vmem:[%s1848 + $0xc0] sm:$0xff]
        %v1866 = vld [vmem:[%s1848 + $0xc8] sm:$0xff]
        %v1867 = vld [vmem:[%s1848 + $0xd8] sm:$0xff]
        %v1868 = vld [vmem:[%s1848 + $0xe0] sm:$0xff]
        %v1869 = vld [vmem:[%s1848 + $0xf0] sm:$0xff]
        %v1870 = vld [vmem:[%s1848 + $0xf8] sm:$0xff]
        %v1871 = vld [vmem:[%s1848 + $0x108] sm:$0xff]
        %v1872 = vld [vmem:[%s1848 + $0x110] sm:$0xff]
        %v1873 = vld [vmem:[%s1848 + $0x120] sm:$0xff]
        %v1874 = vld [vmem:[%s1848 + $0x128] sm:$0xff]
        %v1875 = vld [vmem:[%s1848 + $0x138] sm:$0xff]
        %v1876 = vld [vmem:[%s1848 + $0x140] sm:$0xff]
        %v1877 = vld [vmem:[%s1848 + $0x150] sm:$0xff]
        %v1878 = vld [vmem:[%s1848 + $0x158] sm:$0xff]
        %v1879 = vld [vmem:[%s1848 + $0x168] sm:$0xff]
        %v1880 = vld [vmem:[%s1848 + $0x170] sm:$0xff]
        %v1881 = vld [vmem:[%s1848 + $0x1b0] sm:$0xff]
        %v1882 = vld [vmem:[%s1848 + $0x1b8] sm:$0xff]
        %v1883 = vld [vmem:[%s1848 + $0x1c8] sm:$0xff]
        %v1884 = vld [vmem:[%s1848 + $0x1d0] sm:$0xff]
        %v1885 = vld [vmem:[%s1848 + $0x1e0] sm:$0xff]
        %v1886 = vld [vmem:[%s1848 + $0x1e8] sm:$0xff]
        %v1887 = vld [vmem:[%s1848 + $0x1f8] sm:$0xff]
        %v1888 = vld [vmem:[%s1848 + $0x200] sm:$0xff]
        %v1889 = vld [vmem:[%s1848 + $0x210] sm:$0xff]
        %v1890 = vld [vmem:[%s1848 + $0x218] sm:$0xff]
        %v1891 = vld [vmem:[%s1848 + $0x228] sm:$0xff]
        %v1892 = vld [vmem:[%s1848 + $0x230] sm:$0xff]
        %v1893 = vld [vmem:[%s1848 + $0x240] sm:$0xff]
        %v1894 = vld [vmem:[%s1848 + $0x248] sm:$0xff]
        %v1895 = vld [vmem:[%s1848 + $0x258] sm:$0xff]
        %v1896 = vld [vmem:[%s1848 + $0x260] sm:$0xff]
        %v1897 = vld [vmem:[%s1848 + $0x270] sm:$0xff]
        %v1898 = vld [vmem:[%s1848 + $0x278] sm:$0xff]
        %v1899 = vld [vmem:[%s1848 + $0x288] sm:$0xff]
        %v1900 = vld [vmem:[%s1848 + $0x290] sm:$0xff]
        %v1901 = vld [vmem:[%s1848 + $0x2a0] sm:$0xff]
        %v1902 = vld [vmem:[%s1848 + $0x2a8] sm:$0xff]
        %v1903 = vld [vmem:[%s1848 + $0x2b8] sm:$0xff]
        %v1904 = vld [vmem:[%s1848 + $0x2c0] sm:$0xff]
        %v1905 = vld [vmem:[%s1848 + $0x2d0] sm:$0xff]
        %v1906 = vld [vmem:[%s1848 + $0x2d8] sm:$0xff]
        %v1907 = vld [vmem:[%s1848 + $0x2e8] sm:$0xff]
        %v1908 = vld [vmem:[%s1848 + $0x2f0] sm:$0xff]
        %v1909 = vld [vmem:[%s1848 + $0x300] sm:$0xff]
        %v1910 = vld [vmem:[%s1848 + $0x308] sm:$0xff]
        %v1911 = vld [vmem:[%s1848 + $0x318] sm:$0xff]
        %v1912 = vld [vmem:[%s1848 + $0x320] sm:$0xff]
        %s1913 = scalar_lea.vmem %s243, 384 [#allocation7]
        %v1914 = vld [vmem:[%s1913] sm:$0xff]
        %v1915 = vld [vmem:[%s1913 + $0x8] sm:$0xff]
        %v1916 = vld [vmem:[%s1913 + $0x10] sm:$0xff]
        %v1917 = vld [vmem:[%s1913 + $0x18] sm:$0xff]
        %v1918 = vld [vmem:[%s1913 + $0x20] sm:$0xff]
        %v1919 = vld [vmem:[%s1913 + $0x28] sm:$0xff]
        %v1920 = vld [vmem:[%s1913 + $0x30] sm:$0xff]
        %v1921 = vld [vmem:[%s1913 + $0x38] sm:$0xff]
        %v1922 = vld [vmem:[%s1913 + $0x40] sm:$0xff]
        %v1923 = vld [vmem:[%s1913 + $0x48] sm:$0xff]
        %v1924 = vld [vmem:[%s1913 + $0x50] sm:$0xff]
        %v1925 = vld [vmem:[%s1913 + $0x58] sm:$0xff]
        %v1926 = vld [vmem:[%s1913 + $0x60] sm:$0xff]
        %v1927 = vld [vmem:[%s1913 + $0x68] sm:$0xff]
        %v1928 = vld [vmem:[%s1913 + $0x70] sm:$0xff]
        %v1929 = vld [vmem:[%s1913 + $0x78] sm:$0xff]
        %1930 = vmatpush.msra.mxu0 %v1929
        %1931 = vmatpush.msra.mxu0 %v1928
        %1932 = vmatpush.msra.mxu0 %v1927
        %1933 = vmatpush.msra.mxu0 %v1926
        %1934 = vmatpush.msra.mxu0 %v1925
        %1935 = vmatpush.msra.mxu0 %v1924
        %1936 = vmatpush.msra.mxu0 %v1923
        %1937 = vmatpush.msra.mxu0 %v1922
        %1938 = vmatpush.msra.mxu0 %v1921
        %1939 = vmatpush.msra.mxu0 %v1920
        %1940 = vmatpush.msra.mxu0 %v1919
        %1941 = vmatpush.msra.mxu0 %v1918
        %1942 = vmatpush.msra.mxu0 %v1917
        %1943 = vmatpush.msra.mxu0 %v1916
        %1944 = vmatpush.msra.mxu0 %v1915
        %1945 = vmatpush.msra.mxu0 %v1914
        %1946 = vmatmul.f32.gmra.mxu0 %v1849
        %v1947 = vpop.f32.mrf.mxu0
        %v1948 = vadd.f32 0.0, %v1947
        %1949 = vmatmul.f32.gmra.mxu0 %v1850
        %v1950 = vpop.f32.mrf.mxu0
        %v1951 = vadd.f32 0.0, %v1950
        %1952 = vmatmul.f32.gmra.mxu0 %v1851
        %v1953 = vpop.f32.mrf.mxu0
        %v1954 = vadd.f32 0.0, %v1953
        %1955 = vmatmul.f32.gmra.mxu0 %v1852
        %v1956 = vpop.f32.mrf.mxu0
        %v1957 = vadd.f32 0.0, %v1956
        %1958 = vmatmul.f32.gmra.mxu0 %v1853
        %v1959 = vpop.f32.mrf.mxu0
        %v1960 = vadd.f32 0.0, %v1959
        %1961 = vmatmul.f32.gmra.mxu0 %v1854
        %v1962 = vpop.f32.mrf.mxu0
        %v1963 = vadd.f32 0.0, %v1962
        %1964 = vmatmul.f32.gmra.mxu0 %v1855
        %v1965 = vpop.f32.mrf.mxu0
        %v1966 = vadd.f32 0.0, %v1965
        %1967 = vmatmul.f32.gmra.mxu0 %v1856
        %v1968 = vpop.f32.mrf.mxu0
        %v1969 = vadd.f32 0.0, %v1968
        %1970 = vmatmul.f32.gmra.mxu0 %v1857
        %v1971 = vpop.f32.mrf.mxu0
        %v1972 = vadd.f32 0.0, %v1971
        %1973 = vmatmul.f32.gmra.mxu0 %v1858
        %v1974 = vpop.f32.mrf.mxu0
        %v1975 = vadd.f32 0.0, %v1974
        %1976 = vmatmul.f32.gmra.mxu0 %v1859
        %v1977 = vpop.f32.mrf.mxu0
        %v1978 = vadd.f32 0.0, %v1977
        %1979 = vmatmul.f32.gmra.mxu0 %v1860
        %v1980 = vpop.f32.mrf.mxu0
        %v1981 = vadd.f32 0.0, %v1980
        %1982 = vmatmul.f32.gmra.mxu0 %v1861
        %v1983 = vpop.f32.mrf.mxu0
        %v1984 = vadd.f32 0.0, %v1983
        %1985 = vmatmul.f32.gmra.mxu0 %v1862
        %v1986 = vpop.f32.mrf.mxu0
        %v1987 = vadd.f32 0.0, %v1986
        %1988 = vmatmul.f32.gmra.mxu0 %v1863
        %v1989 = vpop.f32.mrf.mxu0
        %v1990 = vadd.f32 0.0, %v1989
        %1991 = vmatmul.f32.gmra.mxu0 %v1864
        %v1992 = vpop.f32.mrf.mxu0
        %v1993 = vadd.f32 0.0, %v1992
        %1994 = vmatmul.f32.gmra.mxu0 %v1865
        %v1995 = vpop.f32.mrf.mxu0
        %v1996 = vadd.f32 0.0, %v1995
        %1997 = vmatmul.f32.gmra.mxu0 %v1866
        %v1998 = vpop.f32.mrf.mxu0
        %v1999 = vadd.f32 0.0, %v1998
        %2000 = vmatmul.f32.gmra.mxu0 %v1867
        %v2001 = vpop.f32.mrf.mxu0
        %v2002 = vadd.f32 0.0, %v2001
        %2003 = vmatmul.f32.gmra.mxu0 %v1868
        %v2004 = vpop.f32.mrf.mxu0
        %v2005 = vadd.f32 0.0, %v2004
        %2006 = vmatmul.f32.gmra.mxu0 %v1869
        %v2007 = vpop.f32.mrf.mxu0
        %v2008 = vadd.f32 0.0, %v2007
        %2009 = vmatmul.f32.gmra.mxu0 %v1870
        %v2010 = vpop.f32.mrf.mxu0
        %v2011 = vadd.f32 0.0, %v2010
        %2012 = vmatmul.f32.gmra.mxu0 %v1871
        %v2013 = vpop.f32.mrf.mxu0
        %v2014 = vadd.f32 0.0, %v2013
        %2015 = vmatmul.f32.gmra.mxu0 %v1872
        %v2016 = vpop.f32.mrf.mxu0
        %v2017 = vadd.f32 0.0, %v2016
        %2018 = vmatmul.f32.gmra.mxu0 %v1873
        %v2019 = vpop.f32.mrf.mxu0
        %v2020 = vadd.f32 0.0, %v2019
        %2021 = vmatmul.f32.gmra.mxu0 %v1874
        %v2022 = vpop.f32.mrf.mxu0
        %v2023 = vadd.f32 0.0, %v2022
        %2024 = vmatmul.f32.gmra.mxu0 %v1875
        %v2025 = vpop.f32.mrf.mxu0
        %v2026 = vadd.f32 0.0, %v2025
        %2027 = vmatmul.f32.gmra.mxu0 %v1876
        %v2028 = vpop.f32.mrf.mxu0
        %v2029 = vadd.f32 0.0, %v2028
        %2030 = vmatmul.f32.gmra.mxu0 %v1877
        %v2031 = vpop.f32.mrf.mxu0
        %v2032 = vadd.f32 0.0, %v2031
        %2033 = vmatmul.f32.gmra.mxu0 %v1878
        %v2034 = vpop.f32.mrf.mxu0
        %v2035 = vadd.f32 0.0, %v2034
        %2036 = vmatmul.f32.gmra.mxu0 %v1879
        %v2037 = vpop.f32.mrf.mxu0
        %v2038 = vadd.f32 0.0, %v2037
        %2039 = vmatmul.f32.gmra.mxu0 %v1880
        %v2040 = vpop.f32.mrf.mxu0
        %v2041 = vadd.f32 0.0, %v2040
        %2042 = vmatmul.f32.gmra.mxu0 %v1881
        %v2043 = vpop.f32.mrf.mxu0
        %v2044 = vadd.f32 0.0, %v2043
        %2045 = vmatmul.f32.gmra.mxu0 %v1882
        %v2046 = vpop.f32.mrf.mxu0
        %v2047 = vadd.f32 0.0, %v2046
        %2048 = vmatmul.f32.gmra.mxu0 %v1883
        %v2049 = vpop.f32.mrf.mxu0
        %v2050 = vadd.f32 0.0, %v2049
        %2051 = vmatmul.f32.gmra.mxu0 %v1884
        %v2052 = vpop.f32.mrf.mxu0
        %v2053 = vadd.f32 0.0, %v2052
        %2054 = vmatmul.f32.gmra.mxu0 %v1885
        %v2055 = vpop.f32.mrf.mxu0
        %v2056 = vadd.f32 0.0, %v2055
        %2057 = vmatmul.f32.gmra.mxu0 %v1886
        %v2058 = vpop.f32.mrf.mxu0
        %v2059 = vadd.f32 0.0, %v2058
        %2060 = vmatmul.f32.gmra.mxu0 %v1887
        %v2061 = vpop.f32.mrf.mxu0
        %v2062 = vadd.f32 0.0, %v2061
        %2063 = vmatmul.f32.gmra.mxu0 %v1888
        %v2064 = vpop.f32.mrf.mxu0
        %v2065 = vadd.f32 0.0, %v2064
        %2066 = vmatmul.f32.gmra.mxu0 %v1889
        %v2067 = vpop.f32.mrf.mxu0
        %v2068 = vadd.f32 0.0, %v2067
        %2069 = vmatmul.f32.gmra.mxu0 %v1890
        %v2070 = vpop.f32.mrf.mxu0
        %v2071 = vadd.f32 0.0, %v2070
        %2072 = vmatmul.f32.gmra.mxu0 %v1891
        %v2073 = vpop.f32.mrf.mxu0
        %v2074 = vadd.f32 0.0, %v2073
        %2075 = vmatmul.f32.gmra.mxu0 %v1892
        %v2076 = vpop.f32.mrf.mxu0
        %v2077 = vadd.f32 0.0, %v2076
        %2078 = vmatmul.f32.gmra.mxu0 %v1893
        %v2079 = vpop.f32.mrf.mxu0
        %v2080 = vadd.f32 0.0, %v2079
        %2081 = vmatmul.f32.gmra.mxu0 %v1894
        %v2082 = vpop.f32.mrf.mxu0
        %v2083 = vadd.f32 0.0, %v2082
        %2084 = vmatmul.f32.gmra.mxu0 %v1895
        %v2085 = vpop.f32.mrf.mxu0
        %v2086 = vadd.f32 0.0, %v2085
        %2087 = vmatmul.f32.gmra.mxu0 %v1896
        %v2088 = vpop.f32.mrf.mxu0
        %v2089 = vadd.f32 0.0, %v2088
        %2090 = vmatmul.f32.gmra.mxu0 %v1897
        %v2091 = vpop.f32.mrf.mxu0
        %v2092 = vadd.f32 0.0, %v2091
        %2093 = vmatmul.f32.gmra.mxu0 %v1898
        %v2094 = vpop.f32.mrf.mxu0
        %v2095 = vadd.f32 0.0, %v2094
        %2096 = vmatmul.f32.gmra.mxu0 %v1899
        %v2097 = vpop.f32.mrf.mxu0
        %v2098 = vadd.f32 0.0, %v2097
        %2099 = vmatmul.f32.gmra.mxu0 %v1900
        %v2100 = vpop.f32.mrf.mxu0
        %v2101 = vadd.f32 0.0, %v2100
        %2102 = vmatmul.f32.gmra.mxu0 %v1901
        %v2103 = vpop.f32.mrf.mxu0
        %v2104 = vadd.f32 0.0, %v2103
        %2105 = vmatmul.f32.gmra.mxu0 %v1902
        %v2106 = vpop.f32.mrf.mxu0
        %v2107 = vadd.f32 0.0, %v2106
        %2108 = vmatmul.f32.gmra.mxu0 %v1903
        %v2109 = vpop.f32.mrf.mxu0
        %v2110 = vadd.f32 0.0, %v2109
        %2111 = vmatmul.f32.gmra.mxu0 %v1904
        %v2112 = vpop.f32.mrf.mxu0
        %v2113 = vadd.f32 0.0, %v2112
        %2114 = vmatmul.f32.gmra.mxu0 %v1905
        %v2115 = vpop.f32.mrf.mxu0
        %v2116 = vadd.f32 0.0, %v2115
        %2117 = vmatmul.f32.gmra.mxu0 %v1906
        %v2118 = vpop.f32.mrf.mxu0
        %v2119 = vadd.f32 0.0, %v2118
        %2120 = vmatmul.f32.gmra.mxu0 %v1907
        %v2121 = vpop.f32.mrf.mxu0
        %v2122 = vadd.f32 0.0, %v2121
        %2123 = vmatmul.f32.gmra.mxu0 %v1908
        %v2124 = vpop.f32.mrf.mxu0
        %v2125 = vadd.f32 0.0, %v2124
        %2126 = vmatmul.f32.gmra.mxu0 %v1909
        %v2127 = vpop.f32.mrf.mxu0
        %v2128 = vadd.f32 0.0, %v2127
        %2129 = vmatmul.f32.gmra.mxu0 %v1910
        %v2130 = vpop.f32.mrf.mxu0
        %v2131 = vadd.f32 0.0, %v2130
        %2132 = vmatmul.f32.gmra.mxu0 %v1911
        %v2133 = vpop.f32.mrf.mxu0
        %v2134 = vadd.f32 0.0, %v2133
        %2135 = vmatmul.f32.gmra.mxu0 %v1912
        %v2136 = vpop.f32.mrf.mxu0
        %v2137 = vadd.f32 0.0, %v2136
        %2138 = vdwg.mxu0
        %v2139 = vld [vmem:[#allocation3] sm:$0xff]
        %v2140 = vld [vmem:[#allocation3 + $0x8] sm:$0xff]
        %v2141 = vld [vmem:[#allocation3 + $0x10] sm:$0xff]
        %v2142 = vld [vmem:[#allocation3 + $0x18] sm:$0xff]
        %v2143 = vld [vmem:[#allocation3 + $0x20] sm:$0xff]
        %v2144 = vld [vmem:[#allocation3 + $0x28] sm:$0xff]
        %v2145 = vld [vmem:[#allocation3 + $0x30] sm:$0xff]
        %v2146 = vld [vmem:[#allocation3 + $0x38] sm:$0xff]
        %v2147 = vld [vmem:[#allocation3 + $0x40] sm:$0xff]
        %v2148 = vld [vmem:[#allocation3 + $0x48] sm:$0xff]
        %v2149 = vld [vmem:[#allocation3 + $0x50] sm:$0xff]
        %v2150 = vld [vmem:[#allocation3 + $0x58] sm:$0xff]
        %v2151 = vld [vmem:[#allocation3 + $0x60] sm:$0xff]
        %v2152 = vld [vmem:[#allocation3 + $0x68] sm:$0xff]
        %v2153 = vld [vmem:[#allocation3 + $0x70] sm:$0xff]
        %v2154 = vld [vmem:[#allocation3 + $0x78] sm:$0xff]
        %v2155 = vld [vmem:[#allocation3 + $0x80] sm:$0xff]
        %v2156 = vld [vmem:[#allocation3 + $0x88] sm:$0xff]
        %v2157 = vld [vmem:[#allocation3 + $0x90] sm:$0xff]
        %v2158 = vld [vmem:[#allocation3 + $0x98] sm:$0xff]
        %v2159 = vld [vmem:[#allocation3 + $0xa0] sm:$0xff]
        %v2160 = vld [vmem:[#allocation3 + $0xa8] sm:$0xff]
        %v2161 = vld [vmem:[#allocation3 + $0xb0] sm:$0xff]
        %v2162 = vld [vmem:[#allocation3 + $0xb8] sm:$0xff]
        %v2163 = vld [vmem:[#allocation3 + $0xc0] sm:$0xff]
        %v2164 = vld [vmem:[#allocation3 + $0xc8] sm:$0xff]
        %v2165 = vld [vmem:[#allocation3 + $0xd0] sm:$0xff]
        %v2166 = vld [vmem:[#allocation3 + $0xd8] sm:$0xff]
        %v2167 = vld [vmem:[#allocation3 + $0xe0] sm:$0xff]
        %v2168 = vld [vmem:[#allocation3 + $0xe8] sm:$0xff]
        %v2169 = vld [vmem:[#allocation3 + $0xf0] sm:$0xff]
        %v2170 = vld [vmem:[#allocation3 + $0xf8] sm:$0xff]
        %v2171 = vld [vmem:[#allocation3 + $0x100] sm:$0xff]
        %v2172 = vld [vmem:[#allocation3 + $0x108] sm:$0xff]
        %v2173 = vld [vmem:[#allocation3 + $0x110] sm:$0xff]
        %v2174 = vld [vmem:[#allocation3 + $0x118] sm:$0xff]
        %v2175 = vld [vmem:[#allocation3 + $0x120] sm:$0xff]
        %v2176 = vld [vmem:[#allocation3 + $0x128] sm:$0xff]
        %v2177 = vld [vmem:[#allocation3 + $0x130] sm:$0xff]
        %v2178 = vld [vmem:[#allocation3 + $0x138] sm:$0xff]
        %v2179 = vld [vmem:[#allocation3 + $0x140] sm:$0xff]
        %v2180 = vld [vmem:[#allocation3 + $0x148] sm:$0xff]
        %v2181 = vld [vmem:[#allocation3 + $0x150] sm:$0xff]
        %v2182 = vld [vmem:[#allocation3 + $0x158] sm:$0xff]
        %v2183 = vld [vmem:[#allocation3 + $0x160] sm:$0xff]
        %v2184 = vld [vmem:[#allocation3 + $0x168] sm:$0xff]
        %v2185 = vld [vmem:[#allocation3 + $0x170] sm:$0xff]
        %v2186 = vld [vmem:[#allocation3 + $0x178] sm:$0xff]
        %v2187 = vld [vmem:[#allocation3 + $0x180] sm:$0xff]
        %v2188 = vld [vmem:[#allocation3 + $0x188] sm:$0xff]
        %v2189 = vld [vmem:[#allocation3 + $0x190] sm:$0xff]
        %v2190 = vld [vmem:[#allocation3 + $0x198] sm:$0xff]
        %v2191 = vld [vmem:[#allocation3 + $0x1a0] sm:$0xff]
        %v2192 = vld [vmem:[#allocation3 + $0x1a8] sm:$0xff]
        %v2193 = vld [vmem:[#allocation3 + $0x1b0] sm:$0xff]
        %v2194 = vld [vmem:[#allocation3 + $0x1b8] sm:$0xff]
        %v2195 = vld [vmem:[#allocation3 + $0x1c0] sm:$0xff]
        %v2196 = vld [vmem:[#allocation3 + $0x1c8] sm:$0xff]
        %v2197 = vld [vmem:[#allocation3 + $0x1d0] sm:$0xff]
        %v2198 = vld [vmem:[#allocation3 + $0x1d8] sm:$0xff]
        %v2199 = vld [vmem:[#allocation3 + $0x1e0] sm:$0xff]
        %v2200 = vld [vmem:[#allocation3 + $0x1e8] sm:$0xff]
        %v2201 = vld [vmem:[#allocation3 + $0x1f0] sm:$0xff]
        %v2202 = vld [vmem:[#allocation3 + $0x1f8] sm:$0xff]
        %v2203 = vadd.f32 %v2139, %v1948
        %v2204 = vadd.f32 %v2140, %v1951
        %v2205 = vadd.f32 %v2141, %v1954
        %v2206 = vadd.f32 %v2142, %v1957
        %v2207 = vadd.f32 %v2143, %v1960
        %v2208 = vadd.f32 %v2144, %v1963
        %v2209 = vadd.f32 %v2145, %v1966
        %v2210 = vadd.f32 %v2146, %v1969
        %v2211 = vadd.f32 %v2147, %v1972
        %v2212 = vadd.f32 %v2148, %v1975
        %v2213 = vadd.f32 %v2149, %v1978
        %v2214 = vadd.f32 %v2150, %v1981
        %v2215 = vadd.f32 %v2151, %v1984
        %v2216 = vadd.f32 %v2152, %v1987
        %v2217 = vadd.f32 %v2153, %v1990
        %v2218 = vadd.f32 %v2154, %v1993
        %v2219 = vadd.f32 %v2155, %v1996
        %v2220 = vadd.f32 %v2156, %v1999
        %v2221 = vadd.f32 %v2157, %v2002
        %v2222 = vadd.f32 %v2158, %v2005
        %v2223 = vadd.f32 %v2159, %v2008
        %v2224 = vadd.f32 %v2160, %v2011
        %v2225 = vadd.f32 %v2161, %v2014
        %v2226 = vadd.f32 %v2162, %v2017
        %v2227 = vadd.f32 %v2163, %v2020
        %v2228 = vadd.f32 %v2164, %v2023
        %v2229 = vadd.f32 %v2165, %v2026
        %v2230 = vadd.f32 %v2166, %v2029
        %v2231 = vadd.f32 %v2167, %v2032
        %v2232 = vadd.f32 %v2168, %v2035
        %v2233 = vadd.f32 %v2169, %v2038
        %v2234 = vadd.f32 %v2170, %v2041
        %v2235 = vadd.f32 %v2171, %v2044
        %v2236 = vadd.f32 %v2172, %v2047
        %v2237 = vadd.f32 %v2173, %v2050
        %v2238 = vadd.f32 %v2174, %v2053
        %v2239 = vadd.f32 %v2175, %v2056
        %v2240 = vadd.f32 %v2176, %v2059
        %v2241 = vadd.f32 %v2177, %v2062
        %v2242 = vadd.f32 %v2178, %v2065
        %v2243 = vadd.f32 %v2179, %v2068
        %v2244 = vadd.f32 %v2180, %v2071
        %v2245 = vadd.f32 %v2181, %v2074
        %v2246 = vadd.f32 %v2182, %v2077
        %v2247 = vadd.f32 %v2183, %v2080
        %v2248 = vadd.f32 %v2184, %v2083
        %v2249 = vadd.f32 %v2185, %v2086
        %v2250 = vadd.f32 %v2186, %v2089
        %v2251 = vadd.f32 %v2187, %v2092
        %v2252 = vadd.f32 %v2188, %v2095
        %v2253 = vadd.f32 %v2189, %v2098
        %v2254 = vadd.f32 %v2190, %v2101
        %v2255 = vadd.f32 %v2191, %v2104
        %v2256 = vadd.f32 %v2192, %v2107
        %v2257 = vadd.f32 %v2193, %v2110
        %v2258 = vadd.f32 %v2194, %v2113
        %v2259 = vadd.f32 %v2195, %v2116
        %v2260 = vadd.f32 %v2196, %v2119
        %v2261 = vadd.f32 %v2197, %v2122
        %v2262 = vadd.f32 %v2198, %v2125
        %v2263 = vadd.f32 %v2199, %v2128
        %v2264 = vadd.f32 %v2200, %v2131
        %v2265 = vadd.f32 %v2201, %v2134
        %v2266 = vadd.f32 %v2202, %v2137
        %2267 = vst [vmem:[#allocation3] sm:$0xff] %v2203
        %2268 = vst [vmem:[#allocation3 + $0x8] sm:$0xff] %v2204
        %2269 = vst [vmem:[#allocation3 + $0x10] sm:$0xff] %v2205
        %2270 = vst [vmem:[#allocation3 + $0x18] sm:$0xff] %v2206
        %2271 = vst [vmem:[#allocation3 + $0x20] sm:$0xff] %v2207
        %2272 = vst [vmem:[#allocation3 + $0x28] sm:$0xff] %v2208
        %2273 = vst [vmem:[#allocation3 + $0x30] sm:$0xff] %v2209
        %2274 = vst [vmem:[#allocation3 + $0x38] sm:$0xff] %v2210
        %2275 = vst [vmem:[#allocation3 + $0x40] sm:$0xff] %v2211
        %2276 = vst [vmem:[#allocation3 + $0x48] sm:$0xff] %v2212
        %2277 = vst [vmem:[#allocation3 + $0x50] sm:$0xff] %v2213
        %2278 = vst [vmem:[#allocation3 + $0x58] sm:$0xff] %v2214
        %2279 = vst [vmem:[#allocation3 + $0x60] sm:$0xff] %v2215
        %2280 = vst [vmem:[#allocation3 + $0x68] sm:$0xff] %v2216
        %2281 = vst [vmem:[#allocation3 + $0x70] sm:$0xff] %v2217
        %2282 = vst [vmem:[#allocation3 + $0x78] sm:$0xff] %v2218
        %2283 = vst [vmem:[#allocation3 + $0x80] sm:$0xff] %v2219
        %2284 = vst [vmem:[#allocation3 + $0x88] sm:$0xff] %v2220
        %2285 = vst [vmem:[#allocation3 + $0x90] sm:$0xff] %v2221
        %2286 = vst [vmem:[#allocation3 + $0x98] sm:$0xff] %v2222
        %2287 = vst [vmem:[#allocation3 + $0xa0] sm:$0xff] %v2223
        %2288 = vst [vmem:[#allocation3 + $0xa8] sm:$0xff] %v2224
        %2289 = vst [vmem:[#allocation3 + $0xb0] sm:$0xff] %v2225
        %2290 = vst [vmem:[#allocation3 + $0xb8] sm:$0xff] %v2226
        %2291 = vst [vmem:[#allocation3 + $0xc0] sm:$0xff] %v2227
        %2292 = vst [vmem:[#allocation3 + $0xc8] sm:$0xff] %v2228
        %2293 = vst [vmem:[#allocation3 + $0xd0] sm:$0xff] %v2229
        %2294 = vst [vmem:[#allocation3 + $0xd8] sm:$0xff] %v2230
        %2295 = vst [vmem:[#allocation3 + $0xe0] sm:$0xff] %v2231
        %2296 = vst [vmem:[#allocation3 + $0xe8] sm:$0xff] %v2232
        %2297 = vst [vmem:[#allocation3 + $0xf0] sm:$0xff] %v2233
        %2298 = vst [vmem:[#allocation3 + $0xf8] sm:$0xff] %v2234
        %2299 = vst [vmem:[#allocation3 + $0x100] sm:$0xff] %v2235
        %2300 = vst [vmem:[#allocation3 + $0x108] sm:$0xff] %v2236
        %2301 = vst [vmem:[#allocation3 + $0x110] sm:$0xff] %v2237
        %2302 = vst [vmem:[#allocation3 + $0x118] sm:$0xff] %v2238
        %2303 = vst [vmem:[#allocation3 + $0x120] sm:$0xff] %v2239
        %2304 = vst [vmem:[#allocation3 + $0x128] sm:$0xff] %v2240
        %2305 = vst [vmem:[#allocation3 + $0x130] sm:$0xff] %v2241
        %2306 = vst [vmem:[#allocation3 + $0x138] sm:$0xff] %v2242
        %2307 = vst [vmem:[#allocation3 + $0x140] sm:$0xff] %v2243
        %2308 = vst [vmem:[#allocation3 + $0x148] sm:$0xff] %v2244
        %2309 = vst [vmem:[#allocation3 + $0x150] sm:$0xff] %v2245
        %2310 = vst [vmem:[#allocation3 + $0x158] sm:$0xff] %v2246
        %2311 = vst [vmem:[#allocation3 + $0x160] sm:$0xff] %v2247
        %2312 = vst [vmem:[#allocation3 + $0x168] sm:$0xff] %v2248
        %2313 = vst [vmem:[#allocation3 + $0x170] sm:$0xff] %v2249
        %2314 = vst [vmem:[#allocation3 + $0x178] sm:$0xff] %v2250
        %2315 = vst [vmem:[#allocation3 + $0x180] sm:$0xff] %v2251
        %2316 = vst [vmem:[#allocation3 + $0x188] sm:$0xff] %v2252
        %2317 = vst [vmem:[#allocation3 + $0x190] sm:$0xff] %v2253
        %2318 = vst [vmem:[#allocation3 + $0x198] sm:$0xff] %v2254
        %2319 = vst [vmem:[#allocation3 + $0x1a0] sm:$0xff] %v2255
        %2320 = vst [vmem:[#allocation3 + $0x1a8] sm:$0xff] %v2256
        %2321 = vst [vmem:[#allocation3 + $0x1b0] sm:$0xff] %v2257
        %2322 = vst [vmem:[#allocation3 + $0x1b8] sm:$0xff] %v2258
        %2323 = vst [vmem:[#allocation3 + $0x1c0] sm:$0xff] %v2259
        %2324 = vst [vmem:[#allocation3 + $0x1c8] sm:$0xff] %v2260
        %2325 = vst [vmem:[#allocation3 + $0x1d0] sm:$0xff] %v2261
        %2326 = vst [vmem:[#allocation3 + $0x1d8] sm:$0xff] %v2262
        %2327 = vst [vmem:[#allocation3 + $0x1e0] sm:$0xff] %v2263
        %2328 = vst [vmem:[#allocation3 + $0x1e8] sm:$0xff] %v2264
        %2329 = vst [vmem:[#allocation3 + $0x1f0] sm:$0xff] %v2265
        %2330 = vst [vmem:[#allocation3 + $0x1f8] sm:$0xff] %v2266
        %v2331 = vld [vmem:[%s1848 + $0x1] sm:$0xff]
        %v2332 = vld [vmem:[%s1848 + $0x9] sm:$0xff]
        %v2333 = vld [vmem:[%s1848 + $0x19] sm:$0xff]
        %v2334 = vld [vmem:[%s1848 + $0x21] sm:$0xff]
        %v2335 = vld [vmem:[%s1848 + $0x31] sm:$0xff]
        %v2336 = vld [vmem:[%s1848 + $0x39] sm:$0xff]
        %v2337 = vld [vmem:[%s1848 + $0x49] sm:$0xff]
        %v2338 = vld [vmem:[%s1848 + $0x51] sm:$0xff]
        %v2339 = vld [vmem:[%s1848 + $0x61] sm:$0xff]
        %v2340 = vld [vmem:[%s1848 + $0x69] sm:$0xff]
        %v2341 = vld [vmem:[%s1848 + $0x79] sm:$0xff]
        %v2342 = vld [vmem:[%s1848 + $0x81] sm:$0xff]
        %v2343 = vld [vmem:[%s1848 + $0x91] sm:$0xff]
        %v2344 = vld [vmem:[%s1848 + $0x99] sm:$0xff]
        %v2345 = vld [vmem:[%s1848 + $0xa9] sm:$0xff]
        %v2346 = vld [vmem:[%s1848 + $0xb1] sm:$0xff]
        %v2347 = vld [vmem:[%s1848 + $0xc1] sm:$0xff]
        %v2348 = vld [vmem:[%s1848 + $0xc9] sm:$0xff]
        %v2349 = vld [vmem:[%s1848 + $0xd9] sm:$0xff]
        %v2350 = vld [vmem:[%s1848 + $0xe1] sm:$0xff]
        %v2351 = vld [vmem:[%s1848 + $0xf1] sm:$0xff]
        %v2352 = vld [vmem:[%s1848 + $0xf9] sm:$0xff]
        %v2353 = vld [vmem:[%s1848 + $0x109] sm:$0xff]
        %v2354 = vld [vmem:[%s1848 + $0x111] sm:$0xff]
        %v2355 = vld [vmem:[%s1848 + $0x121] sm:$0xff]
        %v2356 = vld [vmem:[%s1848 + $0x129] sm:$0xff]
        %v2357 = vld [vmem:[%s1848 + $0x139] sm:$0xff]
        %v2358 = vld [vmem:[%s1848 + $0x141] sm:$0xff]
        %v2359 = vld [vmem:[%s1848 + $0x151] sm:$0xff]
        %v2360 = vld [vmem:[%s1848 + $0x159] sm:$0xff]
        %v2361 = vld [vmem:[%s1848 + $0x169] sm:$0xff]
        %v2362 = vld [vmem:[%s1848 + $0x171] sm:$0xff]
        %v2363 = vld [vmem:[%s1848 + $0x1b1] sm:$0xff]
        %v2364 = vld [vmem:[%s1848 + $0x1b9] sm:$0xff]
        %v2365 = vld [vmem:[%s1848 + $0x1c9] sm:$0xff]
        %v2366 = vld [vmem:[%s1848 + $0x1d1] sm:$0xff]
        %v2367 = vld [vmem:[%s1848 + $0x1e1] sm:$0xff]
        %v2368 = vld [vmem:[%s1848 + $0x1e9] sm:$0xff]
        %v2369 = vld [vmem:[%s1848 + $0x1f9] sm:$0xff]
        %v2370 = vld [vmem:[%s1848 + $0x201] sm:$0xff]
        %v2371 = vld [vmem:[%s1848 + $0x211] sm:$0xff]
        %v2372 = vld [vmem:[%s1848 + $0x219] sm:$0xff]
        %v2373 = vld [vmem:[%s1848 + $0x229] sm:$0xff]
        %v2374 = vld [vmem:[%s1848 + $0x231] sm:$0xff]
        %v2375 = vld [vmem:[%s1848 + $0x241] sm:$0xff]
        %v2376 = vld [vmem:[%s1848 + $0x249] sm:$0xff]
        %v2377 = vld [vmem:[%s1848 + $0x259] sm:$0xff]
        %v2378 = vld [vmem:[%s1848 + $0x261] sm:$0xff]
        %v2379 = vld [vmem:[%s1848 + $0x271] sm:$0xff]
        %v2380 = vld [vmem:[%s1848 + $0x279] sm:$0xff]
        %v2381 = vld [vmem:[%s1848 + $0x289] sm:$0xff]
        %v2382 = vld [vmem:[%s1848 + $0x291] sm:$0xff]
        %v2383 = vld [vmem:[%s1848 + $0x2a1] sm:$0xff]
        %v2384 = vld [vmem:[%s1848 + $0x2a9] sm:$0xff]
        %v2385 = vld [vmem:[%s1848 + $0x2b9] sm:$0xff]
        %v2386 = vld [vmem:[%s1848 + $0x2c1] sm:$0xff]
        %v2387 = vld [vmem:[%s1848 + $0x2d1] sm:$0xff]
        %v2388 = vld [vmem:[%s1848 + $0x2d9] sm:$0xff]
        %v2389 = vld [vmem:[%s1848 + $0x2e9] sm:$0xff]
        %v2390 = vld [vmem:[%s1848 + $0x2f1] sm:$0xff]
        %v2391 = vld [vmem:[%s1848 + $0x301] sm:$0xff]
        %v2392 = vld [vmem:[%s1848 + $0x309] sm:$0xff]
        %v2393 = vld [vmem:[%s1848 + $0x319] sm:$0xff]
        %v2394 = vld [vmem:[%s1848 + $0x321] sm:$0xff]
        %s2395 = scalar_lea.vmem %s243, 512 [#allocation7]
        %v2396 = vld [vmem:[%s2395] sm:$0xff]
        %v2397 = vld [vmem:[%s2395 + $0x8] sm:$0xff]
        %v2398 = vld [vmem:[%s2395 + $0x10] sm:$0xff]
        %v2399 = vld [vmem:[%s2395 + $0x18] sm:$0xff]
        %v2400 = vld [vmem:[%s2395 + $0x20] sm:$0xff]
        %v2401 = vld [vmem:[%s2395 + $0x28] sm:$0xff]
        %v2402 = vld [vmem:[%s2395 + $0x30] sm:$0xff]
        %v2403 = vld [vmem:[%s2395 + $0x38] sm:$0xff]
        %v2404 = vld [vmem:[%s2395 + $0x40] sm:$0xff]
        %v2405 = vld [vmem:[%s2395 + $0x48] sm:$0xff]
        %v2406 = vld [vmem:[%s2395 + $0x50] sm:$0xff]
        %v2407 = vld [vmem:[%s2395 + $0x58] sm:$0xff]
        %v2408 = vld [vmem:[%s2395 + $0x60] sm:$0xff]
        %v2409 = vld [vmem:[%s2395 + $0x68] sm:$0xff]
        %v2410 = vld [vmem:[%s2395 + $0x70] sm:$0xff]
        %v2411 = vld [vmem:[%s2395 + $0x78] sm:$0xff]
        %2412 = vmatpush.msra.mxu0 %v2411
        %2413 = vmatpush.msra.mxu0 %v2410
        %2414 = vmatpush.msra.mxu0 %v2409
        %2415 = vmatpush.msra.mxu0 %v2408
        %2416 = vmatpush.msra.mxu0 %v2407
        %2417 = vmatpush.msra.mxu0 %v2406
        %2418 = vmatpush.msra.mxu0 %v2405
        %2419 = vmatpush.msra.mxu0 %v2404
        %2420 = vmatpush.msra.mxu0 %v2403
        %2421 = vmatpush.msra.mxu0 %v2402
        %2422 = vmatpush.msra.mxu0 %v2401
        %2423 = vmatpush.msra.mxu0 %v2400
        %2424 = vmatpush.msra.mxu0 %v2399
        %2425 = vmatpush.msra.mxu0 %v2398
        %2426 = vmatpush.msra.mxu0 %v2397
        %2427 = vmatpush.msra.mxu0 %v2396
        %2428 = vmatmul.f32.gmra.mxu0 %v2331
        %v2429 = vpop.f32.mrf.mxu0
        %v2430 = vadd.f32 0.0, %v2429
        %2431 = vmatmul.f32.gmra.mxu0 %v2332
        %v2432 = vpop.f32.mrf.mxu0
        %v2433 = vadd.f32 0.0, %v2432
        %2434 = vmatmul.f32.gmra.mxu0 %v2333
        %v2435 = vpop.f32.mrf.mxu0
        %v2436 = vadd.f32 0.0, %v2435
        %2437 = vmatmul.f32.gmra.mxu0 %v2334
        %v2438 = vpop.f32.mrf.mxu0
        %v2439 = vadd.f32 0.0, %v2438
        %2440 = vmatmul.f32.gmra.mxu0 %v2335
        %v2441 = vpop.f32.mrf.mxu0
        %v2442 = vadd.f32 0.0, %v2441
        %2443 = vmatmul.f32.gmra.mxu0 %v2336
        %v2444 = vpop.f32.mrf.mxu0
        %v2445 = vadd.f32 0.0, %v2444
        %2446 = vmatmul.f32.gmra.mxu0 %v2337
        %v2447 = vpop.f32.mrf.mxu0
        %v2448 = vadd.f32 0.0, %v2447
        %2449 = vmatmul.f32.gmra.mxu0 %v2338
        %v2450 = vpop.f32.mrf.mxu0
        %v2451 = vadd.f32 0.0, %v2450
        %2452 = vmatmul.f32.gmra.mxu0 %v2339
        %v2453 = vpop.f32.mrf.mxu0
        %v2454 = vadd.f32 0.0, %v2453
        %2455 = vmatmul.f32.gmra.mxu0 %v2340
        %v2456 = vpop.f32.mrf.mxu0
        %v2457 = vadd.f32 0.0, %v2456
        %2458 = vmatmul.f32.gmra.mxu0 %v2341
        %v2459 = vpop.f32.mrf.mxu0
        %v2460 = vadd.f32 0.0, %v2459
        %2461 = vmatmul.f32.gmra.mxu0 %v2342
        %v2462 = vpop.f32.mrf.mxu0
        %v2463 = vadd.f32 0.0, %v2462
        %2464 = vmatmul.f32.gmra.mxu0 %v2343
        %v2465 = vpop.f32.mrf.mxu0
        %v2466 = vadd.f32 0.0, %v2465
        %2467 = vmatmul.f32.gmra.mxu0 %v2344
        %v2468 = vpop.f32.mrf.mxu0
        %v2469 = vadd.f32 0.0, %v2468
        %2470 = vmatmul.f32.gmra.mxu0 %v2345
        %v2471 = vpop.f32.mrf.mxu0
        %v2472 = vadd.f32 0.0, %v2471
        %2473 = vmatmul.f32.gmra.mxu0 %v2346
        %v2474 = vpop.f32.mrf.mxu0
        %v2475 = vadd.f32 0.0, %v2474
        %2476 = vmatmul.f32.gmra.mxu0 %v2347
        %v2477 = vpop.f32.mrf.mxu0
        %v2478 = vadd.f32 0.0, %v2477
        %2479 = vmatmul.f32.gmra.mxu0 %v2348
        %v2480 = vpop.f32.mrf.mxu0
        %v2481 = vadd.f32 0.0, %v2480
        %2482 = vmatmul.f32.gmra.mxu0 %v2349
        %v2483 = vpop.f32.mrf.mxu0
        %v2484 = vadd.f32 0.0, %v2483
        %2485 = vmatmul.f32.gmra.mxu0 %v2350
        %v2486 = vpop.f32.mrf.mxu0
        %v2487 = vadd.f32 0.0, %v2486
        %2488 = vmatmul.f32.gmra.mxu0 %v2351
        %v2489 = vpop.f32.mrf.mxu0
        %v2490 = vadd.f32 0.0, %v2489
        %2491 = vmatmul.f32.gmra.mxu0 %v2352
        %v2492 = vpop.f32.mrf.mxu0
        %v2493 = vadd.f32 0.0, %v2492
        %2494 = vmatmul.f32.gmra.mxu0 %v2353
        %v2495 = vpop.f32.mrf.mxu0
        %v2496 = vadd.f32 0.0, %v2495
        %2497 = vmatmul.f32.gmra.mxu0 %v2354
        %v2498 = vpop.f32.mrf.mxu0
        %v2499 = vadd.f32 0.0, %v2498
        %2500 = vmatmul.f32.gmra.mxu0 %v2355
        %v2501 = vpop.f32.mrf.mxu0
        %v2502 = vadd.f32 0.0, %v2501
        %2503 = vmatmul.f32.gmra.mxu0 %v2356
        %v2504 = vpop.f32.mrf.mxu0
        %v2505 = vadd.f32 0.0, %v2504
        %2506 = vmatmul.f32.gmra.mxu0 %v2357
        %v2507 = vpop.f32.mrf.mxu0
        %v2508 = vadd.f32 0.0, %v2507
        %2509 = vmatmul.f32.gmra.mxu0 %v2358
        %v2510 = vpop.f32.mrf.mxu0
        %v2511 = vadd.f32 0.0, %v2510
        %2512 = vmatmul.f32.gmra.mxu0 %v2359
        %v2513 = vpop.f32.mrf.mxu0
        %v2514 = vadd.f32 0.0, %v2513
        %2515 = vmatmul.f32.gmra.mxu0 %v2360
        %v2516 = vpop.f32.mrf.mxu0
        %v2517 = vadd.f32 0.0, %v2516
        %2518 = vmatmul.f32.gmra.mxu0 %v2361
        %v2519 = vpop.f32.mrf.mxu0
        %v2520 = vadd.f32 0.0, %v2519
        %2521 = vmatmul.f32.gmra.mxu0 %v2362
        %v2522 = vpop.f32.mrf.mxu0
        %v2523 = vadd.f32 0.0, %v2522
        %2524 = vmatmul.f32.gmra.mxu0 %v2363
        %v2525 = vpop.f32.mrf.mxu0
        %v2526 = vadd.f32 0.0, %v2525
        %2527 = vmatmul.f32.gmra.mxu0 %v2364
        %v2528 = vpop.f32.mrf.mxu0
        %v2529 = vadd.f32 0.0, %v2528
        %2530 = vmatmul.f32.gmra.mxu0 %v2365
        %v2531 = vpop.f32.mrf.mxu0
        %v2532 = vadd.f32 0.0, %v2531
        %2533 = vmatmul.f32.gmra.mxu0 %v2366
        %v2534 = vpop.f32.mrf.mxu0
        %v2535 = vadd.f32 0.0, %v2534
        %2536 = vmatmul.f32.gmra.mxu0 %v2367
        %v2537 = vpop.f32.mrf.mxu0
        %v2538 = vadd.f32 0.0, %v2537
        %2539 = vmatmul.f32.gmra.mxu0 %v2368
        %v2540 = vpop.f32.mrf.mxu0
        %v2541 = vadd.f32 0.0, %v2540
        %2542 = vmatmul.f32.gmra.mxu0 %v2369
        %v2543 = vpop.f32.mrf.mxu0
        %v2544 = vadd.f32 0.0, %v2543
        %2545 = vmatmul.f32.gmra.mxu0 %v2370
        %v2546 = vpop.f32.mrf.mxu0
        %v2547 = vadd.f32 0.0, %v2546
        %2548 = vmatmul.f32.gmra.mxu0 %v2371
        %v2549 = vpop.f32.mrf.mxu0
        %v2550 = vadd.f32 0.0, %v2549
        %2551 = vmatmul.f32.gmra.mxu0 %v2372
        %v2552 = vpop.f32.mrf.mxu0
        %v2553 = vadd.f32 0.0, %v2552
        %2554 = vmatmul.f32.gmra.mxu0 %v2373
        %v2555 = vpop.f32.mrf.mxu0
        %v2556 = vadd.f32 0.0, %v2555
        %2557 = vmatmul.f32.gmra.mxu0 %v2374
        %v2558 = vpop.f32.mrf.mxu0
        %v2559 = vadd.f32 0.0, %v2558
        %2560 = vmatmul.f32.gmra.mxu0 %v2375
        %v2561 = vpop.f32.mrf.mxu0
        %v2562 = vadd.f32 0.0, %v2561
        %2563 = vmatmul.f32.gmra.mxu0 %v2376
        %v2564 = vpop.f32.mrf.mxu0
        %v2565 = vadd.f32 0.0, %v2564
        %2566 = vmatmul.f32.gmra.mxu0 %v2377
        %v2567 = vpop.f32.mrf.mxu0
        %v2568 = vadd.f32 0.0, %v2567
        %2569 = vmatmul.f32.gmra.mxu0 %v2378
        %v2570 = vpop.f32.mrf.mxu0
        %v2571 = vadd.f32 0.0, %v2570
        %2572 = vmatmul.f32.gmra.mxu0 %v2379
        %v2573 = vpop.f32.mrf.mxu0
        %v2574 = vadd.f32 0.0, %v2573
        %2575 = vmatmul.f32.gmra.mxu0 %v2380
        %v2576 = vpop.f32.mrf.mxu0
        %v2577 = vadd.f32 0.0, %v2576
        %2578 = vmatmul.f32.gmra.mxu0 %v2381
        %v2579 = vpop.f32.mrf.mxu0
        %v2580 = vadd.f32 0.0, %v2579
        %2581 = vmatmul.f32.gmra.mxu0 %v2382
        %v2582 = vpop.f32.mrf.mxu0
        %v2583 = vadd.f32 0.0, %v2582
        %2584 = vmatmul.f32.gmra.mxu0 %v2383
        %v2585 = vpop.f32.mrf.mxu0
        %v2586 = vadd.f32 0.0, %v2585
        %2587 = vmatmul.f32.gmra.mxu0 %v2384
        %v2588 = vpop.f32.mrf.mxu0
        %v2589 = vadd.f32 0.0, %v2588
        %2590 = vmatmul.f32.gmra.mxu0 %v2385
        %v2591 = vpop.f32.mrf.mxu0
        %v2592 = vadd.f32 0.0, %v2591
        %2593 = vmatmul.f32.gmra.mxu0 %v2386
        %v2594 = vpop.f32.mrf.mxu0
        %v2595 = vadd.f32 0.0, %v2594
        %2596 = vmatmul.f32.gmra.mxu0 %v2387
        %v2597 = vpop.f32.mrf.mxu0
        %v2598 = vadd.f32 0.0, %v2597
        %2599 = vmatmul.f32.gmra.mxu0 %v2388
        %v2600 = vpop.f32.mrf.mxu0
        %v2601 = vadd.f32 0.0, %v2600
        %2602 = vmatmul.f32.gmra.mxu0 %v2389
        %v2603 = vpop.f32.mrf.mxu0
        %v2604 = vadd.f32 0.0, %v2603
        %2605 = vmatmul.f32.gmra.mxu0 %v2390
        %v2606 = vpop.f32.mrf.mxu0
        %v2607 = vadd.f32 0.0, %v2606
        %2608 = vmatmul.f32.gmra.mxu0 %v2391
        %v2609 = vpop.f32.mrf.mxu0
        %v2610 = vadd.f32 0.0, %v2609
        %2611 = vmatmul.f32.gmra.mxu0 %v2392
        %v2612 = vpop.f32.mrf.mxu0
        %v2613 = vadd.f32 0.0, %v2612
        %2614 = vmatmul.f32.gmra.mxu0 %v2393
        %v2615 = vpop.f32.mrf.mxu0
        %v2616 = vadd.f32 0.0, %v2615
        %2617 = vmatmul.f32.gmra.mxu0 %v2394
        %v2618 = vpop.f32.mrf.mxu0
        %v2619 = vadd.f32 0.0, %v2618
        %2620 = vdwg.mxu0
        %v2621 = vld [vmem:[#allocation3] sm:$0xff]
        %v2622 = vld [vmem:[#allocation3 + $0x8] sm:$0xff]
        %v2623 = vld [vmem:[#allocation3 + $0x10] sm:$0xff]
        %v2624 = vld [vmem:[#allocation3 + $0x18] sm:$0xff]
        %v2625 = vld [vmem:[#allocation3 + $0x20] sm:$0xff]
        %v2626 = vld [vmem:[#allocation3 + $0x28] sm:$0xff]
        %v2627 = vld [vmem:[#allocation3 + $0x30] sm:$0xff]
        %v2628 = vld [vmem:[#allocation3 + $0x38] sm:$0xff]
        %v2629 = vld [vmem:[#allocation3 + $0x40] sm:$0xff]
        %v2630 = vld [vmem:[#allocation3 + $0x48] sm:$0xff]
        %v2631 = vld [vmem:[#allocation3 + $0x50] sm:$0xff]
        %v2632 = vld [vmem:[#allocation3 + $0x58] sm:$0xff]
        %v2633 = vld [vmem:[#allocation3 + $0x60] sm:$0xff]
        %v2634 = vld [vmem:[#allocation3 + $0x68] sm:$0xff]
        %v2635 = vld [vmem:[#allocation3 + $0x70] sm:$0xff]
        %v2636 = vld [vmem:[#allocation3 + $0x78] sm:$0xff]
        %v2637 = vld [vmem:[#allocation3 + $0x80] sm:$0xff]
        %v2638 = vld [vmem:[#allocation3 + $0x88] sm:$0xff]
        %v2639 = vld [vmem:[#allocation3 + $0x90] sm:$0xff]
        %v2640 = vld [vmem:[#allocation3 + $0x98] sm:$0xff]
        %v2641 = vld [vmem:[#allocation3 + $0xa0] sm:$0xff]
        %v2642 = vld [vmem:[#allocation3 + $0xa8] sm:$0xff]
        %v2643 = vld [vmem:[#allocation3 + $0xb0] sm:$0xff]
        %v2644 = vld [vmem:[#allocation3 + $0xb8] sm:$0xff]
        %v2645 = vld [vmem:[#allocation3 + $0xc0] sm:$0xff]
        %v2646 = vld [vmem:[#allocation3 + $0xc8] sm:$0xff]
        %v2647 = vld [vmem:[#allocation3 + $0xd0] sm:$0xff]
        %v2648 = vld [vmem:[#allocation3 + $0xd8] sm:$0xff]
        %v2649 = vld [vmem:[#allocation3 + $0xe0] sm:$0xff]
        %v2650 = vld [vmem:[#allocation3 + $0xe8] sm:$0xff]
        %v2651 = vld [vmem:[#allocation3 + $0xf0] sm:$0xff]
        %v2652 = vld [vmem:[#allocation3 + $0xf8] sm:$0xff]
        %v2653 = vld [vmem:[#allocation3 + $0x100] sm:$0xff]
        %v2654 = vld [vmem:[#allocation3 + $0x108] sm:$0xff]
        %v2655 = vld [vmem:[#allocation3 + $0x110] sm:$0xff]
        %v2656 = vld [vmem:[#allocation3 + $0x118] sm:$0xff]
        %v2657 = vld [vmem:[#allocation3 + $0x120] sm:$0xff]
        %v2658 = vld [vmem:[#allocation3 + $0x128] sm:$0xff]
        %v2659 = vld [vmem:[#allocation3 + $0x130] sm:$0xff]
        %v2660 = vld [vmem:[#allocation3 + $0x138] sm:$0xff]
        %v2661 = vld [vmem:[#allocation3 + $0x140] sm:$0xff]
        %v2662 = vld [vmem:[#allocation3 + $0x148] sm:$0xff]
        %v2663 = vld [vmem:[#allocation3 + $0x150] sm:$0xff]
        %v2664 = vld [vmem:[#allocation3 + $0x158] sm:$0xff]
        %v2665 = vld [vmem:[#allocation3 + $0x160] sm:$0xff]
        %v2666 = vld [vmem:[#allocation3 + $0x168] sm:$0xff]
        %v2667 = vld [vmem:[#allocation3 + $0x170] sm:$0xff]
        %v2668 = vld [vmem:[#allocation3 + $0x178] sm:$0xff]
        %v2669 = vld [vmem:[#allocation3 + $0x180] sm:$0xff]
        %v2670 = vld [vmem:[#allocation3 + $0x188] sm:$0xff]
        %v2671 = vld [vmem:[#allocation3 + $0x190] sm:$0xff]
        %v2672 = vld [vmem:[#allocation3 + $0x198] sm:$0xff]
        %v2673 = vld [vmem:[#allocation3 + $0x1a0] sm:$0xff]
        %v2674 = vld [vmem:[#allocation3 + $0x1a8] sm:$0xff]
        %v2675 = vld [vmem:[#allocation3 + $0x1b0] sm:$0xff]
        %v2676 = vld [vmem:[#allocation3 + $0x1b8] sm:$0xff]
        %v2677 = vld [vmem:[#allocation3 + $0x1c0] sm:$0xff]
        %v2678 = vld [vmem:[#allocation3 + $0x1c8] sm:$0xff]
        %v2679 = vld [vmem:[#allocation3 + $0x1d0] sm:$0xff]
        %v2680 = vld [vmem:[#allocation3 + $0x1d8] sm:$0xff]
        %v2681 = vld [vmem:[#allocation3 + $0x1e0] sm:$0xff]
        %v2682 = vld [vmem:[#allocation3 + $0x1e8] sm:$0xff]
        %v2683 = vld [vmem:[#allocation3 + $0x1f0] sm:$0xff]
        %v2684 = vld [vmem:[#allocation3 + $0x1f8] sm:$0xff]
        %v2685 = vadd.f32 %v2621, %v2430
        %v2686 = vadd.f32 %v2622, %v2433
        %v2687 = vadd.f32 %v2623, %v2436
        %v2688 = vadd.f32 %v2624, %v2439
        %v2689 = vadd.f32 %v2625, %v2442
        %v2690 = vadd.f32 %v2626, %v2445
        %v2691 = vadd.f32 %v2627, %v2448
        %v2692 = vadd.f32 %v2628, %v2451
        %v2693 = vadd.f32 %v2629, %v2454
        %v2694 = vadd.f32 %v2630, %v2457
        %v2695 = vadd.f32 %v2631, %v2460
        %v2696 = vadd.f32 %v2632, %v2463
        %v2697 = vadd.f32 %v2633, %v2466
        %v2698 = vadd.f32 %v2634, %v2469
        %v2699 = vadd.f32 %v2635, %v2472
        %v2700 = vadd.f32 %v2636, %v2475
        %v2701 = vadd.f32 %v2637, %v2478
        %v2702 = vadd.f32 %v2638, %v2481
        %v2703 = vadd.f32 %v2639, %v2484
        %v2704 = vadd.f32 %v2640, %v2487
        %v2705 = vadd.f32 %v2641, %v2490
        %v2706 = vadd.f32 %v2642, %v2493
        %v2707 = vadd.f32 %v2643, %v2496
        %v2708 = vadd.f32 %v2644, %v2499
        %v2709 = vadd.f32 %v2645, %v2502
        %v2710 = vadd.f32 %v2646, %v2505
        %v2711 = vadd.f32 %v2647, %v2508
        %v2712 = vadd.f32 %v2648, %v2511
        %v2713 = vadd.f32 %v2649, %v2514
        %v2714 = vadd.f32 %v2650, %v2517
        %v2715 = vadd.f32 %v2651, %v2520
        %v2716 = vadd.f32 %v2652, %v2523
        %v2717 = vadd.f32 %v2653, %v2526
        %v2718 = vadd.f32 %v2654, %v2529
        %v2719 = vadd.f32 %v2655, %v2532
        %v2720 = vadd.f32 %v2656, %v2535
        %v2721 = vadd.f32 %v2657, %v2538
        %v2722 = vadd.f32 %v2658, %v2541
        %v2723 = vadd.f32 %v2659, %v2544
        %v2724 = vadd.f32 %v2660, %v2547
        %v2725 = vadd.f32 %v2661, %v2550
        %v2726 = vadd.f32 %v2662, %v2553
        %v2727 = vadd.f32 %v2663, %v2556
        %v2728 = vadd.f32 %v2664, %v2559
        %v2729 = vadd.f32 %v2665, %v2562
        %v2730 = vadd.f32 %v2666, %v2565
        %v2731 = vadd.f32 %v2667, %v2568
        %v2732 = vadd.f32 %v2668, %v2571
        %v2733 = vadd.f32 %v2669, %v2574
        %v2734 = vadd.f32 %v2670, %v2577
        %v2735 = vadd.f32 %v2671, %v2580
        %v2736 = vadd.f32 %v2672, %v2583
        %v2737 = vadd.f32 %v2673, %v2586
        %v2738 = vadd.f32 %v2674, %v2589
        %v2739 = vadd.f32 %v2675, %v2592
        %v2740 = vadd.f32 %v2676, %v2595
        %v2741 = vadd.f32 %v2677, %v2598
        %v2742 = vadd.f32 %v2678, %v2601
        %v2743 = vadd.f32 %v2679, %v2604
        %v2744 = vadd.f32 %v2680, %v2607
        %v2745 = vadd.f32 %v2681, %v2610
        %v2746 = vadd.f32 %v2682, %v2613
        %v2747 = vadd.f32 %v2683, %v2616
        %v2748 = vadd.f32 %v2684, %v2619
        %2749 = vst [vmem:[#allocation3] sm:$0xff] %v2685
        %2750 = vst [vmem:[#allocation3 + $0x8] sm:$0xff] %v2686
        %2751 = vst [vmem:[#allocation3 + $0x10] sm:$0xff] %v2687
        %2752 = vst [vmem:[#allocation3 + $0x18] sm:$0xff] %v2688
        %2753 = vst [vmem:[#allocation3 + $0x20] sm:$0xff] %v2689
        %2754 = vst [vmem:[#allocation3 + $0x28] sm:$0xff] %v2690
        %2755 = vst [vmem:[#allocation3 + $0x30] sm:$0xff] %v2691
        %2756 = vst [vmem:[#allocation3 + $0x38] sm:$0xff] %v2692
        %2757 = vst [vmem:[#allocation3 + $0x40] sm:$0xff] %v2693
        %2758 = vst [vmem:[#allocation3 + $0x48] sm:$0xff] %v2694
        %2759 = vst [vmem:[#allocation3 + $0x50] sm:$0xff] %v2695
        %2760 = vst [vmem:[#allocation3 + $0x58] sm:$0xff] %v2696
        %2761 = vst [vmem:[#allocation3 + $0x60] sm:$0xff] %v2697
        %2762 = vst [vmem:[#allocation3 + $0x68] sm:$0xff] %v2698
        %2763 = vst [vmem:[#allocation3 + $0x70] sm:$0xff] %v2699
        %2764 = vst [vmem:[#allocation3 + $0x78] sm:$0xff] %v2700
        %2765 = vst [vmem:[#allocation3 + $0x80] sm:$0xff] %v2701
        %2766 = vst [vmem:[#allocation3 + $0x88] sm:$0xff] %v2702
        %2767 = vst [vmem:[#allocation3 + $0x90] sm:$0xff] %v2703
        %2768 = vst [vmem:[#allocation3 + $0x98] sm:$0xff] %v2704
        %2769 = vst [vmem:[#allocation3 + $0xa0] sm:$0xff] %v2705
        %2770 = vst [vmem:[#allocation3 + $0xa8] sm:$0xff] %v2706
        %2771 = vst [vmem:[#allocation3 + $0xb0] sm:$0xff] %v2707
        %2772 = vst [vmem:[#allocation3 + $0xb8] sm:$0xff] %v2708
        %2773 = vst [vmem:[#allocation3 + $0xc0] sm:$0xff] %v2709
        %2774 = vst [vmem:[#allocation3 + $0xc8] sm:$0xff] %v2710
        %2775 = vst [vmem:[#allocation3 + $0xd0] sm:$0xff] %v2711
        %2776 = vst [vmem:[#allocation3 + $0xd8] sm:$0xff] %v2712
        %2777 = vst [vmem:[#allocation3 + $0xe0] sm:$0xff] %v2713
        %2778 = vst [vmem:[#allocation3 + $0xe8] sm:$0xff] %v2714
        %2779 = vst [vmem:[#allocation3 + $0xf0] sm:$0xff] %v2715
        %2780 = vst [vmem:[#allocation3 + $0xf8] sm:$0xff] %v2716
        %2781 = vst [vmem:[#allocation3 + $0x100] sm:$0xff] %v2717
        %2782 = vst [vmem:[#allocation3 + $0x108] sm:$0xff] %v2718
        %2783 = vst [vmem:[#allocation3 + $0x110] sm:$0xff] %v2719
        %2784 = vst [vmem:[#allocation3 + $0x118] sm:$0xff] %v2720
        %2785 = vst [vmem:[#allocation3 + $0x120] sm:$0xff] %v2721
        %2786 = vst [vmem:[#allocation3 + $0x128] sm:$0xff] %v2722
        %2787 = vst [vmem:[#allocation3 + $0x130] sm:$0xff] %v2723
        %2788 = vst [vmem:[#allocation3 + $0x138] sm:$0xff] %v2724
        %2789 = vst [vmem:[#allocation3 + $0x140] sm:$0xff] %v2725
        %2790 = vst [vmem:[#allocation3 + $0x148] sm:$0xff] %v2726
        %2791 = vst [vmem:[#allocation3 + $0x150] sm:$0xff] %v2727
        %2792 = vst [vmem:[#allocation3 + $0x158] sm:$0xff] %v2728
        %2793 = vst [vmem:[#allocation3 + $0x160] sm:$0xff] %v2729
        %2794 = vst [vmem:[#allocation3 + $0x168] sm:$0xff] %v2730
        %2795 = vst [vmem:[#allocation3 + $0x170] sm:$0xff] %v2731
        %2796 = vst [vmem:[#allocation3 + $0x178] sm:$0xff] %v2732
        %2797 = vst [vmem:[#allocation3 + $0x180] sm:$0xff] %v2733
        %2798 = vst [vmem:[#allocation3 + $0x188] sm:$0xff] %v2734
        %2799 = vst [vmem:[#allocation3 + $0x190] sm:$0xff] %v2735
        %2800 = vst [vmem:[#allocation3 + $0x198] sm:$0xff] %v2736
        %2801 = vst [vmem:[#allocation3 + $0x1a0] sm:$0xff] %v2737
        %2802 = vst [vmem:[#allocation3 + $0x1a8] sm:$0xff] %v2738
        %2803 = vst [vmem:[#allocation3 + $0x1b0] sm:$0xff] %v2739
        %2804 = vst [vmem:[#allocation3 + $0x1b8] sm:$0xff] %v2740
        %2805 = vst [vmem:[#allocation3 + $0x1c0] sm:$0xff] %v2741
        %2806 = vst [vmem:[#allocation3 + $0x1c8] sm:$0xff] %v2742
        %2807 = vst [vmem:[#allocation3 + $0x1d0] sm:$0xff] %v2743
        %2808 = vst [vmem:[#allocation3 + $0x1d8] sm:$0xff] %v2744
        %2809 = vst [vmem:[#allocation3 + $0x1e0] sm:$0xff] %v2745
        %2810 = vst [vmem:[#allocation3 + $0x1e8] sm:$0xff] %v2746
        %2811 = vst [vmem:[#allocation3 + $0x1f0] sm:$0xff] %v2747
        %2812 = vst [vmem:[#allocation3 + $0x1f8] sm:$0xff] %v2748
        %v2813 = vld [vmem:[%s1848 + $0x2] sm:$0xff]
        %v2814 = vld [vmem:[%s1848 + $0xa] sm:$0xff]
        %v2815 = vld [vmem:[%s1848 + $0x1a] sm:$0xff]
        %v2816 = vld [vmem:[%s1848 + $0x22] sm:$0xff]
        %v2817 = vld [vmem:[%s1848 + $0x32] sm:$0xff]
        %v2818 = vld [vmem:[%s1848 + $0x3a] sm:$0xff]
        %v2819 = vld [vmem:[%s1848 + $0x4a] sm:$0xff]
        %v2820 = vld [vmem:[%s1848 + $0x52] sm:$0xff]
        %v2821 = vld [vmem:[%s1848 + $0x62] sm:$0xff]
        %v2822 = vld [vmem:[%s1848 + $0x6a] sm:$0xff]
        %v2823 = vld [vmem:[%s1848 + $0x7a] sm:$0xff]
        %v2824 = vld [vmem:[%s1848 + $0x82] sm:$0xff]
        %v2825 = vld [vmem:[%s1848 + $0x92] sm:$0xff]
        %v2826 = vld [vmem:[%s1848 + $0x9a] sm:$0xff]
        %v2827 = vld [vmem:[%s1848 + $0xaa] sm:$0xff]
        %v2828 = vld [vmem:[%s1848 + $0xb2] sm:$0xff]
        %v2829 = vld [vmem:[%s1848 + $0xc2] sm:$0xff]
        %v2830 = vld [vmem:[%s1848 + $0xca] sm:$0xff]
        %v2831 = vld [vmem:[%s1848 + $0xda] sm:$0xff]
        %v2832 = vld [vmem:[%s1848 + $0xe2] sm:$0xff]
        %v2833 = vld [vmem:[%s1848 + $0xf2] sm:$0xff]
        %v2834 = vld [vmem:[%s1848 + $0xfa] sm:$0xff]
        %v2835 = vld [vmem:[%s1848 + $0x10a] sm:$0xff]
        %v2836 = vld [vmem:[%s1848 + $0x112] sm:$0xff]
        %v2837 = vld [vmem:[%s1848 + $0x122] sm:$0xff]
        %v2838 = vld [vmem:[%s1848 + $0x12a] sm:$0xff]
        %v2839 = vld [vmem:[%s1848 + $0x13a] sm:$0xff]
        %v2840 = vld [vmem:[%s1848 + $0x142] sm:$0xff]
        %v2841 = vld [vmem:[%s1848 + $0x152] sm:$0xff]
        %v2842 = vld [vmem:[%s1848 + $0x15a] sm:$0xff]
        %v2843 = vld [vmem:[%s1848 + $0x16a] sm:$0xff]
        %v2844 = vld [vmem:[%s1848 + $0x172] sm:$0xff]
        %v2845 = vld [vmem:[%s1848 + $0x1b2] sm:$0xff]
        %v2846 = vld [vmem:[%s1848 + $0x1ba] sm:$0xff]
        %v2847 = vld [vmem:[%s1848 + $0x1ca] sm:$0xff]
        %v2848 = vld [vmem:[%s1848 + $0x1d2] sm:$0xff]
        %v2849 = vld [vmem:[%s1848 + $0x1e2] sm:$0xff]
        %v2850 = vld [vmem:[%s1848 + $0x1ea] sm:$0xff]
        %v2851 = vld [vmem:[%s1848 + $0x1fa] sm:$0xff]
        %v2852 = vld [vmem:[%s1848 + $0x202] sm:$0xff]
        %v2853 = vld [vmem:[%s1848 + $0x212] sm:$0xff]
        %v2854 = vld [vmem:[%s1848 + $0x21a] sm:$0xff]
        %v2855 = vld [vmem:[%s1848 + $0x22a] sm:$0xff]
        %v2856 = vld [vmem:[%s1848 + $0x232] sm:$0xff]
        %v2857 = vld [vmem:[%s1848 + $0x242] sm:$0xff]
        %v2858 = vld [vmem:[%s1848 + $0x24a] sm:$0xff]
        %v2859 = vld [vmem:[%s1848 + $0x25a] sm:$0xff]
        %v2860 = vld [vmem:[%s1848 + $0x262] sm:$0xff]
        %v2861 = vld [vmem:[%s1848 + $0x272] sm:$0xff]
        %v2862 = vld [vmem:[%s1848 + $0x27a] sm:$0xff]
        %v2863 = vld [vmem:[%s1848 + $0x28a] sm:$0xff]
        %v2864 = vld [vmem:[%s1848 + $0x292] sm:$0xff]
        %v2865 = vld [vmem:[%s1848 + $0x2a2] sm:$0xff]
        %v2866 = vld [vmem:[%s1848 + $0x2aa] sm:$0xff]
        %v2867 = vld [vmem:[%s1848 + $0x2ba] sm:$0xff]
        %v2868 = vld [vmem:[%s1848 + $0x2c2] sm:$0xff]
        %v2869 = vld [vmem:[%s1848 + $0x2d2] sm:$0xff]
        %v2870 = vld [vmem:[%s1848 + $0x2da] sm:$0xff]
        %v2871 = vld [vmem:[%s1848 + $0x2ea] sm:$0xff]
        %v2872 = vld [vmem:[%s1848 + $0x2f2] sm:$0xff]
        %v2873 = vld [vmem:[%s1848 + $0x302] sm:$0xff]
        %v2874 = vld [vmem:[%s1848 + $0x30a] sm:$0xff]
        %v2875 = vld [vmem:[%s1848 + $0x31a] sm:$0xff]
        %v2876 = vld [vmem:[%s1848 + $0x322] sm:$0xff]
        %s2877 = scalar_lea.vmem %s243, 640 [#allocation7]
        %v2878 = vld [vmem:[%s2877] sm:$0xff]
        %v2879 = vld [vmem:[%s2877 + $0x8] sm:$0xff]
        %v2880 = vld [vmem:[%s2877 + $0x10] sm:$0xff]
        %v2881 = vld [vmem:[%s2877 + $0x18] sm:$0xff]
        %v2882 = vld [vmem:[%s2877 + $0x20] sm:$0xff]
        %v2883 = vld [vmem:[%s2877 + $0x28] sm:$0xff]
        %v2884 = vld [vmem:[%s2877 + $0x30] sm:$0xff]
        %v2885 = vld [vmem:[%s2877 + $0x38] sm:$0xff]
        %v2886 = vld [vmem:[%s2877 + $0x40] sm:$0xff]
        %v2887 = vld [vmem:[%s2877 + $0x48] sm:$0xff]
        %v2888 = vld [vmem:[%s2877 + $0x50] sm:$0xff]
        %v2889 = vld [vmem:[%s2877 + $0x58] sm:$0xff]
        %v2890 = vld [vmem:[%s2877 + $0x60] sm:$0xff]
        %v2891 = vld [vmem:[%s2877 + $0x68] sm:$0xff]
        %v2892 = vld [vmem:[%s2877 + $0x70] sm:$0xff]
        %v2893 = vld [vmem:[%s2877 + $0x78] sm:$0xff]
        %2894 = vmatpush.msra.mxu0 %v2893
        %2895 = vmatpush.msra.mxu0 %v2892
        %2896 = vmatpush.msra.mxu0 %v2891
        %2897 = vmatpush.msra.mxu0 %v2890
        %2898 = vmatpush.msra.mxu0 %v2889
        %2899 = vmatpush.msra.mxu0 %v2888
        %2900 = vmatpush.msra.mxu0 %v2887
        %2901 = vmatpush.msra.mxu0 %v2886
        %2902 = vmatpush.msra.mxu0 %v2885
        %2903 = vmatpush.msra.mxu0 %v2884
        %2904 = vmatpush.msra.mxu0 %v2883
        %2905 = vmatpush.msra.mxu0 %v2882
        %2906 = vmatpush.msra.mxu0 %v2881
        %2907 = vmatpush.msra.mxu0 %v2880
        %2908 = vmatpush.msra.mxu0 %v2879
        %2909 = vmatpush.msra.mxu0 %v2878
        %2910 = vmatmul.f32.gmra.mxu0 %v2813
        %v2911 = vpop.f32.mrf.mxu0
        %v2912 = vadd.f32 0.0, %v2911
        %2913 = vmatmul.f32.gmra.mxu0 %v2814
        %v2914 = vpop.f32.mrf.mxu0
        %v2915 = vadd.f32 0.0, %v2914
        %2916 = vmatmul.f32.gmra.mxu0 %v2815
        %v2917 = vpop.f32.mrf.mxu0
        %v2918 = vadd.f32 0.0, %v2917
        %2919 = vmatmul.f32.gmra.mxu0 %v2816
        %v2920 = vpop.f32.mrf.mxu0
        %v2921 = vadd.f32 0.0, %v2920
        %2922 = vmatmul.f32.gmra.mxu0 %v2817
        %v2923 = vpop.f32.mrf.mxu0
        %v2924 = vadd.f32 0.0, %v2923
        %2925 = vmatmul.f32.gmra.mxu0 %v2818
        %v2926 = vpop.f32.mrf.mxu0
        %v2927 = vadd.f32 0.0, %v2926
        %2928 = vmatmul.f32.gmra.mxu0 %v2819
        %v2929 = vpop.f32.mrf.mxu0
        %v2930 = vadd.f32 0.0, %v2929
        %2931 = vmatmul.f32.gmra.mxu0 %v2820
        %v2932 = vpop.f32.mrf.mxu0
        %v2933 = vadd.f32 0.0, %v2932
        %2934 = vmatmul.f32.gmra.mxu0 %v2821
        %v2935 = vpop.f32.mrf.mxu0
        %v2936 = vadd.f32 0.0, %v2935
        %2937 = vmatmul.f32.gmra.mxu0 %v2822
        %v2938 = vpop.f32.mrf.mxu0
        %v2939 = vadd.f32 0.0, %v2938
        %2940 = vmatmul.f32.gmra.mxu0 %v2823
        %v2941 = vpop.f32.mrf.mxu0
        %v2942 = vadd.f32 0.0, %v2941
        %2943 = vmatmul.f32.gmra.mxu0 %v2824
        %v2944 = vpop.f32.mrf.mxu0
        %v2945 = vadd.f32 0.0, %v2944
        %2946 = vmatmul.f32.gmra.mxu0 %v2825
        %v2947 = vpop.f32.mrf.mxu0
        %v2948 = vadd.f32 0.0, %v2947
        %2949 = vmatmul.f32.gmra.mxu0 %v2826
        %v2950 = vpop.f32.mrf.mxu0
        %v2951 = vadd.f32 0.0, %v2950
        %2952 = vmatmul.f32.gmra.mxu0 %v2827
        %v2953 = vpop.f32.mrf.mxu0
        %v2954 = vadd.f32 0.0, %v2953
        %2955 = vmatmul.f32.gmra.mxu0 %v2828
        %v2956 = vpop.f32.mrf.mxu0
        %v2957 = vadd.f32 0.0, %v2956
        %2958 = vmatmul.f32.gmra.mxu0 %v2829
        %v2959 = vpop.f32.mrf.mxu0
        %v2960 = vadd.f32 0.0, %v2959
        %2961 = vmatmul.f32.gmra.mxu0 %v2830
        %v2962 = vpop.f32.mrf.mxu0
        %v2963 = vadd.f32 0.0, %v2962
        %2964 = vmatmul.f32.gmra.mxu0 %v2831
        %v2965 = vpop.f32.mrf.mxu0
        %v2966 = vadd.f32 0.0, %v2965
        %2967 = vmatmul.f32.gmra.mxu0 %v2832
        %v2968 = vpop.f32.mrf.mxu0
        %v2969 = vadd.f32 0.0, %v2968
        %2970 = vmatmul.f32.gmra.mxu0 %v2833
        %v2971 = vpop.f32.mrf.mxu0
        %v2972 = vadd.f32 0.0, %v2971
        %2973 = vmatmul.f32.gmra.mxu0 %v2834
        %v2974 = vpop.f32.mrf.mxu0
        %v2975 = vadd.f32 0.0, %v2974
        %2976 = vmatmul.f32.gmra.mxu0 %v2835
        %v2977 = vpop.f32.mrf.mxu0
        %v2978 = vadd.f32 0.0, %v2977
        %2979 = vmatmul.f32.gmra.mxu0 %v2836
        %v2980 = vpop.f32.mrf.mxu0
        %v2981 = vadd.f32 0.0, %v2980
        %2982 = vmatmul.f32.gmra.mxu0 %v2837
        %v2983 = vpop.f32.mrf.mxu0
        %v2984 = vadd.f32 0.0, %v2983
        %2985 = vmatmul.f32.gmra.mxu0 %v2838
        %v2986 = vpop.f32.mrf.mxu0
        %v2987 = vadd.f32 0.0, %v2986
        %2988 = vmatmul.f32.gmra.mxu0 %v2839
        %v2989 = vpop.f32.mrf.mxu0
        %v2990 = vadd.f32 0.0, %v2989
        %2991 = vmatmul.f32.gmra.mxu0 %v2840
        %v2992 = vpop.f32.mrf.mxu0
        %v2993 = vadd.f32 0.0, %v2992
        %2994 = vmatmul.f32.gmra.mxu0 %v2841
        %v2995 = vpop.f32.mrf.mxu0
        %v2996 = vadd.f32 0.0, %v2995
        %2997 = vmatmul.f32.gmra.mxu0 %v2842
        %v2998 = vpop.f32.mrf.mxu0
        %v2999 = vadd.f32 0.0, %v2998
        %3000 = vmatmul.f32.gmra.mxu0 %v2843
        %v3001 = vpop.f32.mrf.mxu0
        %v3002 = vadd.f32 0.0, %v3001
        %3003 = vmatmul.f32.gmra.mxu0 %v2844
        %v3004 = vpop.f32.mrf.mxu0
        %v3005 = vadd.f32 0.0, %v3004
        %3006 = vmatmul.f32.gmra.mxu0 %v2845
        %v3007 = vpop.f32.mrf.mxu0
        %v3008 = vadd.f32 0.0, %v3007
        %3009 = vmatmul.f32.gmra.mxu0 %v2846
        %v3010 = vpop.f32.mrf.mxu0
        %v3011 = vadd.f32 0.0, %v3010
        %3012 = vmatmul.f32.gmra.mxu0 %v2847
        %v3013 = vpop.f32.mrf.mxu0
        %v3014 = vadd.f32 0.0, %v3013
        %3015 = vmatmul.f32.gmra.mxu0 %v2848
        %v3016 = vpop.f32.mrf.mxu0
        %v3017 = vadd.f32 0.0, %v3016
        %3018 = vmatmul.f32.gmra.mxu0 %v2849
        %v3019 = vpop.f32.mrf.mxu0
        %v3020 = vadd.f32 0.0, %v3019
        %3021 = vmatmul.f32.gmra.mxu0 %v2850
        %v3022 = vpop.f32.mrf.mxu0
        %v3023 = vadd.f32 0.0, %v3022
        %3024 = vmatmul.f32.gmra.mxu0 %v2851
        %v3025 = vpop.f32.mrf.mxu0
        %v3026 = vadd.f32 0.0, %v3025
        %3027 = vmatmul.f32.gmra.mxu0 %v2852
        %v3028 = vpop.f32.mrf.mxu0
        %v3029 = vadd.f32 0.0, %v3028
        %3030 = vmatmul.f32.gmra.mxu0 %v2853
        %v3031 = vpop.f32.mrf.mxu0
        %v3032 = vadd.f32 0.0, %v3031
        %3033 = vmatmul.f32.gmra.mxu0 %v2854
        %v3034 = vpop.f32.mrf.mxu0
        %v3035 = vadd.f32 0.0, %v3034
        %3036 = vmatmul.f32.gmra.mxu0 %v2855
        %v3037 = vpop.f32.mrf.mxu0
        %v3038 = vadd.f32 0.0, %v3037
        %3039 = vmatmul.f32.gmra.mxu0 %v2856
        %v3040 = vpop.f32.mrf.mxu0
        %v3041 = vadd.f32 0.0, %v3040
        %3042 = vmatmul.f32.gmra.mxu0 %v2857
        %v3043 = vpop.f32.mrf.mxu0
        %v3044 = vadd.f32 0.0, %v3043
        %3045 = vmatmul.f32.gmra.mxu0 %v2858
        %v3046 = vpop.f32.mrf.mxu0
        %v3047 = vadd.f32 0.0, %v3046
        %3048 = vmatmul.f32.gmra.mxu0 %v2859
        %v3049 = vpop.f32.mrf.mxu0
        %v3050 = vadd.f32 0.0, %v3049
        %3051 = vmatmul.f32.gmra.mxu0 %v2860
        %v3052 = vpop.f32.mrf.mxu0
        %v3053 = vadd.f32 0.0, %v3052
        %3054 = vmatmul.f32.gmra.mxu0 %v2861
        %v3055 = vpop.f32.mrf.mxu0
        %v3056 = vadd.f32 0.0, %v3055
        %3057 = vmatmul.f32.gmra.mxu0 %v2862
        %v3058 = vpop.f32.mrf.mxu0
        %v3059 = vadd.f32 0.0, %v3058
        %3060 = vmatmul.f32.gmra.mxu0 %v2863
        %v3061 = vpop.f32.mrf.mxu0
        %v3062 = vadd.f32 0.0, %v3061
        %3063 = vmatmul.f32.gmra.mxu0 %v2864
        %v3064 = vpop.f32.mrf.mxu0
        %v3065 = vadd.f32 0.0, %v3064
        %3066 = vmatmul.f32.gmra.mxu0 %v2865
        %v3067 = vpop.f32.mrf.mxu0
        %v3068 = vadd.f32 0.0, %v3067
        %3069 = vmatmul.f32.gmra.mxu0 %v2866
        %v3070 = vpop.f32.mrf.mxu0
        %v3071 = vadd.f32 0.0, %v3070
        %3072 = vmatmul.f32.gmra.mxu0 %v2867
        %v3073 = vpop.f32.mrf.mxu0
        %v3074 = vadd.f32 0.0, %v3073
        %3075 = vmatmul.f32.gmra.mxu0 %v2868
        %v3076 = vpop.f32.mrf.mxu0
        %v3077 = vadd.f32 0.0, %v3076
        %3078 = vmatmul.f32.gmra.mxu0 %v2869
        %v3079 = vpop.f32.mrf.mxu0
        %v3080 = vadd.f32 0.0, %v3079
        %3081 = vmatmul.f32.gmra.mxu0 %v2870
        %v3082 = vpop.f32.mrf.mxu0
        %v3083 = vadd.f32 0.0, %v3082
        %3084 = vmatmul.f32.gmra.mxu0 %v2871
        %v3085 = vpop.f32.mrf.mxu0
        %v3086 = vadd.f32 0.0, %v3085
        %3087 = vmatmul.f32.gmra.mxu0 %v2872
        %v3088 = vpop.f32.mrf.mxu0
        %v3089 = vadd.f32 0.0, %v3088
        %3090 = vmatmul.f32.gmra.mxu0 %v2873
        %v3091 = vpop.f32.mrf.mxu0
        %v3092 = vadd.f32 0.0, %v3091
        %3093 = vmatmul.f32.gmra.mxu0 %v2874
        %v3094 = vpop.f32.mrf.mxu0
        %v3095 = vadd.f32 0.0, %v3094
        %3096 = vmatmul.f32.gmra.mxu0 %v2875
        %v3097 = vpop.f32.mrf.mxu0
        %v3098 = vadd.f32 0.0, %v3097
        %3099 = vmatmul.f32.gmra.mxu0 %v2876
        %v3100 = vpop.f32.mrf.mxu0
        %v3101 = vadd.f32 0.0, %v3100
        %3102 = vdwg.mxu0
        %v3103 = vld [vmem:[#allocation3] sm:$0xff]
        %v3104 = vld [vmem:[#allocation3 + $0x8] sm:$0xff]
        %v3105 = vld [vmem:[#allocation3 + $0x10] sm:$0xff]
        %v3106 = vld [vmem:[#allocation3 + $0x18] sm:$0xff]
        %v3107 = vld [vmem:[#allocation3 + $0x20] sm:$0xff]
        %v3108 = vld [vmem:[#allocation3 + $0x28] sm:$0xff]
        %v3109 = vld [vmem:[#allocation3 + $0x30] sm:$0xff]
        %v3110 = vld [vmem:[#allocation3 + $0x38] sm:$0xff]
        %v3111 = vld [vmem:[#allocation3 + $0x40] sm:$0xff]
        %v3112 = vld [vmem:[#allocation3 + $0x48] sm:$0xff]
        %v3113 = vld [vmem:[#allocation3 + $0x50] sm:$0xff]
        %v3114 = vld [vmem:[#allocation3 + $0x58] sm:$0xff]
        %v3115 = vld [vmem:[#allocation3 + $0x60] sm:$0xff]
        %v3116 = vld [vmem:[#allocation3 + $0x68] sm:$0xff]
        %v3117 = vld [vmem:[#allocation3 + $0x70] sm:$0xff]
        %v3118 = vld [vmem:[#allocation3 + $0x78] sm:$0xff]
        %v3119 = vld [vmem:[#allocation3 + $0x80] sm:$0xff]
        %v3120 = vld [vmem:[#allocation3 + $0x88] sm:$0xff]
        %v3121 = vld [vmem:[#allocation3 + $0x90] sm:$0xff]
        %v3122 = vld [vmem:[#allocation3 + $0x98] sm:$0xff]
        %v3123 = vld [vmem:[#allocation3 + $0xa0] sm:$0xff]
        %v3124 = vld [vmem:[#allocation3 + $0xa8] sm:$0xff]
        %v3125 = vld [vmem:[#allocation3 + $0xb0] sm:$0xff]
        %v3126 = vld [vmem:[#allocation3 + $0xb8] sm:$0xff]
        %v3127 = vld [vmem:[#allocation3 + $0xc0] sm:$0xff]
        %v3128 = vld [vmem:[#allocation3 + $0xc8] sm:$0xff]
        %v3129 = vld [vmem:[#allocation3 + $0xd0] sm:$0xff]
        %v3130 = vld [vmem:[#allocation3 + $0xd8] sm:$0xff]
        %v3131 = vld [vmem:[#allocation3 + $0xe0] sm:$0xff]
        %v3132 = vld [vmem:[#allocation3 + $0xe8] sm:$0xff]
        %v3133 = vld [vmem:[#allocation3 + $0xf0] sm:$0xff]
        %v3134 = vld [vmem:[#allocation3 + $0xf8] sm:$0xff]
        %v3135 = vld [vmem:[#allocation3 + $0x100] sm:$0xff]
        %v3136 = vld [vmem:[#allocation3 + $0x108] sm:$0xff]
        %v3137 = vld [vmem:[#allocation3 + $0x110] sm:$0xff]
        %v3138 = vld [vmem:[#allocation3 + $0x118] sm:$0xff]
        %v3139 = vld [vmem:[#allocation3 + $0x120] sm:$0xff]
        %v3140 = vld [vmem:[#allocation3 + $0x128] sm:$0xff]
        %v3141 = vld [vmem:[#allocation3 + $0x130] sm:$0xff]
        %v3142 = vld [vmem:[#allocation3 + $0x138] sm:$0xff]
        %v3143 = vld [vmem:[#allocation3 + $0x140] sm:$0xff]
        %v3144 = vld [vmem:[#allocation3 + $0x148] sm:$0xff]
        %v3145 = vld [vmem:[#allocation3 + $0x150] sm:$0xff]
        %v3146 = vld [vmem:[#allocation3 + $0x158] sm:$0xff]
        %v3147 = vld [vmem:[#allocation3 + $0x160] sm:$0xff]
        %v3148 = vld [vmem:[#allocation3 + $0x168] sm:$0xff]
        %v3149 = vld [vmem:[#allocation3 + $0x170] sm:$0xff]
        %v3150 = vld [vmem:[#allocation3 + $0x178] sm:$0xff]
        %v3151 = vld [vmem:[#allocation3 + $0x180] sm:$0xff]
        %v3152 = vld [vmem:[#allocation3 + $0x188] sm:$0xff]
        %v3153 = vld [vmem:[#allocation3 + $0x190] sm:$0xff]
        %v3154 = vld [vmem:[#allocation3 + $0x198] sm:$0xff]
        %v3155 = vld [vmem:[#allocation3 + $0x1a0] sm:$0xff]
        %v3156 = vld [vmem:[#allocation3 + $0x1a8] sm:$0xff]
        %v3157 = vld [vmem:[#allocation3 + $0x1b0] sm:$0xff]
        %v3158 = vld [vmem:[#allocation3 + $0x1b8] sm:$0xff]
        %v3159 = vld [vmem:[#allocation3 + $0x1c0] sm:$0xff]
        %v3160 = vld [vmem:[#allocation3 + $0x1c8] sm:$0xff]
        %v3161 = vld [vmem:[#allocation3 + $0x1d0] sm:$0xff]
        %v3162 = vld [vmem:[#allocation3 + $0x1d8] sm:$0xff]
        %v3163 = vld [vmem:[#allocation3 + $0x1e0] sm:$0xff]
        %v3164 = vld [vmem:[#allocation3 + $0x1e8] sm:$0xff]
        %v3165 = vld [vmem:[#allocation3 + $0x1f0] sm:$0xff]
        %v3166 = vld [vmem:[#allocation3 + $0x1f8] sm:$0xff]
        %v3167 = vadd.f32 %v3103, %v2912
        %v3168 = vadd.f32 %v3104, %v2915
        %v3169 = vadd.f32 %v3105, %v2918
        %v3170 = vadd.f32 %v3106, %v2921
        %v3171 = vadd.f32 %v3107, %v2924
        %v3172 = vadd.f32 %v3108, %v2927
        %v3173 = vadd.f32 %v3109, %v2930
        %v3174 = vadd.f32 %v3110, %v2933
        %v3175 = vadd.f32 %v3111, %v2936
        %v3176 = vadd.f32 %v3112, %v2939
        %v3177 = vadd.f32 %v3113, %v2942
        %v3178 = vadd.f32 %v3114, %v2945
        %v3179 = vadd.f32 %v3115, %v2948
        %v3180 = vadd.f32 %v3116, %v2951
        %v3181 = vadd.f32 %v3117, %v2954
        %v3182 = vadd.f32 %v3118, %v2957
        %v3183 = vadd.f32 %v3119, %v2960
        %v3184 = vadd.f32 %v3120, %v2963
        %v3185 = vadd.f32 %v3121, %v2966
        %v3186 = vadd.f32 %v3122, %v2969
        %v3187 = vadd.f32 %v3123, %v2972
        %v3188 = vadd.f32 %v3124, %v2975
        %v3189 = vadd.f32 %v3125, %v2978
        %v3190 = vadd.f32 %v3126, %v2981
        %v3191 = vadd.f32 %v3127, %v2984
        %v3192 = vadd.f32 %v3128, %v2987
        %v3193 = vadd.f32 %v3129, %v2990
        %v3194 = vadd.f32 %v3130, %v2993
        %v3195 = vadd.f32 %v3131, %v2996
        %v3196 = vadd.f32 %v3132, %v2999
        %v3197 = vadd.f32 %v3133, %v3002
        %v3198 = vadd.f32 %v3134, %v3005
        %v3199 = vadd.f32 %v3135, %v3008
        %v3200 = vadd.f32 %v3136, %v3011
        %v3201 = vadd.f32 %v3137, %v3014
        %v3202 = vadd.f32 %v3138, %v3017
        %v3203 = vadd.f32 %v3139, %v3020
        %v3204 = vadd.f32 %v3140, %v3023
        %v3205 = vadd.f32 %v3141, %v3026
        %v3206 = vadd.f32 %v3142, %v3029
        %v3207 = vadd.f32 %v3143, %v3032
        %v3208 = vadd.f32 %v3144, %v3035
        %v3209 = vadd.f32 %v3145, %v3038
        %v3210 = vadd.f32 %v3146, %v3041
        %v3211 = vadd.f32 %v3147, %v3044
        %v3212 = vadd.f32 %v3148, %v3047
        %v3213 = vadd.f32 %v3149, %v3050
        %v3214 = vadd.f32 %v3150, %v3053
        %v3215 = vadd.f32 %v3151, %v3056
        %v3216 = vadd.f32 %v3152, %v3059
        %v3217 = vadd.f32 %v3153, %v3062
        %v3218 = vadd.f32 %v3154, %v3065
        %v3219 = vadd.f32 %v3155, %v3068
        %v3220 = vadd.f32 %v3156, %v3071
        %v3221 = vadd.f32 %v3157, %v3074
        %v3222 = vadd.f32 %v3158, %v3077
        %v3223 = vadd.f32 %v3159, %v3080
        %v3224 = vadd.f32 %v3160, %v3083
        %v3225 = vadd.f32 %v3161, %v3086
        %v3226 = vadd.f32 %v3162, %v3089
        %v3227 = vadd.f32 %v3163, %v3092
        %v3228 = vadd.f32 %v3164, %v3095
        %v3229 = vadd.f32 %v3165, %v3098
        %v3230 = vadd.f32 %v3166, %v3101
        %3231 = vst [vmem:[#allocation3] sm:$0xff] %v3167
        %3232 = vst [vmem:[#allocation3 + $0x8] sm:$0xff] %v3168
        %3233 = vst [vmem:[#allocation3 + $0x10] sm:$0xff] %v3169
        %3234 = vst [vmem:[#allocation3 + $0x18] sm:$0xff] %v3170
        %3235 = vst [vmem:[#allocation3 + $0x20] sm:$0xff] %v3171
        %3236 = vst [vmem:[#allocation3 + $0x28] sm:$0xff] %v3172
        %3237 = vst [vmem:[#allocation3 + $0x30] sm:$0xff] %v3173
        %3238 = vst [vmem:[#allocation3 + $0x38] sm:$0xff] %v3174
        %3239 = vst [vmem:[#allocation3 + $0x40] sm:$0xff] %v3175
        %3240 = vst [vmem:[#allocation3 + $0x48] sm:$0xff] %v3176
        %3241 = vst [vmem:[#allocation3 + $0x50] sm:$0xff] %v3177
        %3242 = vst [vmem:[#allocation3 + $0x58] sm:$0xff] %v3178
        %3243 = vst [vmem:[#allocation3 + $0x60] sm:$0xff] %v3179
        %3244 = vst [vmem:[#allocation3 + $0x68] sm:$0xff] %v3180
        %3245 = vst [vmem:[#allocation3 + $0x70] sm:$0xff] %v3181
        %3246 = vst [vmem:[#allocation3 + $0x78] sm:$0xff] %v3182
        %3247 = vst [vmem:[#allocation3 + $0x80] sm:$0xff] %v3183
        %3248 = vst [vmem:[#allocation3 + $0x88] sm:$0xff] %v3184
        %3249 = vst [vmem:[#allocation3 + $0x90] sm:$0xff] %v3185
        %3250 = vst [vmem:[#allocation3 + $0x98] sm:$0xff] %v3186
        %3251 = vst [vmem:[#allocation3 + $0xa0] sm:$0xff] %v3187
        %3252 = vst [vmem:[#allocation3 + $0xa8] sm:$0xff] %v3188
        %3253 = vst [vmem:[#allocation3 + $0xb0] sm:$0xff] %v3189
        %3254 = vst [vmem:[#allocation3 + $0xb8] sm:$0xff] %v3190
        %3255 = vst [vmem:[#allocation3 + $0xc0] sm:$0xff] %v3191
        %3256 = vst [vmem:[#allocation3 + $0xc8] sm:$0xff] %v3192
        %3257 = vst [vmem:[#allocation3 + $0xd0] sm:$0xff] %v3193
        %3258 = vst [vmem:[#allocation3 + $0xd8] sm:$0xff] %v3194
        %3259 = vst [vmem:[#allocation3 + $0xe0] sm:$0xff] %v3195
        %3260 = vst [vmem:[#allocation3 + $0xe8] sm:$0xff] %v3196
        %3261 = vst [vmem:[#allocation3 + $0xf0] sm:$0xff] %v3197
        %3262 = vst [vmem:[#allocation3 + $0xf8] sm:$0xff] %v3198
        %3263 = vst [vmem:[#allocation3 + $0x100] sm:$0xff] %v3199
        %3264 = vst [vmem:[#allocation3 + $0x108] sm:$0xff] %v3200
        %3265 = vst [vmem:[#allocation3 + $0x110] sm:$0xff] %v3201
        %3266 = vst [vmem:[#allocation3 + $0x118] sm:$0xff] %v3202
        %3267 = vst [vmem:[#allocation3 + $0x120] sm:$0xff] %v3203
        %3268 = vst [vmem:[#allocation3 + $0x128] sm:$0xff] %v3204
        %3269 = vst [vmem:[#allocation3 + $0x130] sm:$0xff] %v3205
        %3270 = vst [vmem:[#allocation3 + $0x138] sm:$0xff] %v3206
        %3271 = vst [vmem:[#allocation3 + $0x140] sm:$0xff] %v3207
        %3272 = vst [vmem:[#allocation3 + $0x148] sm:$0xff] %v3208
        %3273 = vst [vmem:[#allocation3 + $0x150] sm:$0xff] %v3209
        %3274 = vst [vmem:[#allocation3 + $0x158] sm:$0xff] %v3210
        %3275 = vst [vmem:[#allocation3 + $0x160] sm:$0xff] %v3211
        %3276 = vst [vmem:[#allocation3 + $0x168] sm:$0xff] %v3212
        %3277 = vst [vmem:[#allocation3 + $0x170] sm:$0xff] %v3213
        %3278 = vst [vmem:[#allocation3 + $0x178] sm:$0xff] %v3214
        %3279 = vst [vmem:[#allocation3 + $0x180] sm:$0xff] %v3215
        %3280 = vst [vmem:[#allocation3 + $0x188] sm:$0xff] %v3216
        %3281 = vst [vmem:[#allocation3 + $0x190] sm:$0xff] %v3217
        %3282 = vst [vmem:[#allocation3 + $0x198] sm:$0xff] %v3218
        %3283 = vst [vmem:[#allocation3 + $0x1a0] sm:$0xff] %v3219
        %3284 = vst [vmem:[#allocation3 + $0x1a8] sm:$0xff] %v3220
        %3285 = vst [vmem:[#allocation3 + $0x1b0] sm:$0xff] %v3221
        %3286 = vst [vmem:[#allocation3 + $0x1b8] sm:$0xff] %v3222
        %3287 = vst [vmem:[#allocation3 + $0x1c0] sm:$0xff] %v3223
        %3288 = vst [vmem:[#allocation3 + $0x1c8] sm:$0xff] %v3224
        %3289 = vst [vmem:[#allocation3 + $0x1d0] sm:$0xff] %v3225
        %3290 = vst [vmem:[#allocation3 + $0x1d8] sm:$0xff] %v3226
        %3291 = vst [vmem:[#allocation3 + $0x1e0] sm:$0xff] %v3227
        %3292 = vst [vmem:[#allocation3 + $0x1e8] sm:$0xff] %v3228
        %3293 = vst [vmem:[#allocation3 + $0x1f0] sm:$0xff] %v3229
        %3294 = vst [vmem:[#allocation3 + $0x1f8] sm:$0xff] %v3230
        %s3295 = scalar_lea.vmem [#allocation2], 48
        %v3296 = vld [vmem:[%s3295] sm:$0xff]
        %v3297 = vld [vmem:[%s3295 + $0x8] sm:$0xff]
        %v3298 = vld [vmem:[%s3295 + $0x18] sm:$0xff]
        %v3299 = vld [vmem:[%s3295 + $0x20] sm:$0xff]
        %v3300 = vld [vmem:[%s3295 + $0x30] sm:$0xff]
        %v3301 = vld [vmem:[%s3295 + $0x38] sm:$0xff]
        %v3302 = vld [vmem:[%s3295 + $0x48] sm:$0xff]
        %v3303 = vld [vmem:[%s3295 + $0x50] sm:$0xff]
        %v3304 = vld [vmem:[%s3295 + $0x60] sm:$0xff]
        %v3305 = vld [vmem:[%s3295 + $0x68] sm:$0xff]
        %v3306 = vld [vmem:[%s3295 + $0x78] sm:$0xff]
        %v3307 = vld [vmem:[%s3295 + $0x80] sm:$0xff]
        %v3308 = vld [vmem:[%s3295 + $0x90] sm:$0xff]
        %v3309 = vld [vmem:[%s3295 + $0x98] sm:$0xff]
        %v3310 = vld [vmem:[%s3295 + $0xa8] sm:$0xff]
        %v3311 = vld [vmem:[%s3295 + $0xb0] sm:$0xff]
        %v3312 = vld [vmem:[%s3295 + $0xc0] sm:$0xff]
        %v3313 = vld [vmem:[%s3295 + $0xc8] sm:$0xff]
        %v3314 = vld [vmem:[%s3295 + $0xd8] sm:$0xff]
        %v3315 = vld [vmem:[%s3295 + $0xe0] sm:$0xff]
        %v3316 = vld [vmem:[%s3295 + $0xf0] sm:$0xff]
        %v3317 = vld [vmem:[%s3295 + $0xf8] sm:$0xff]
        %v3318 = vld [vmem:[%s3295 + $0x108] sm:$0xff]
        %v3319 = vld [vmem:[%s3295 + $0x110] sm:$0xff]
        %v3320 = vld [vmem:[%s3295 + $0x120] sm:$0xff]
        %v3321 = vld [vmem:[%s3295 + $0x128] sm:$0xff]
        %v3322 = vld [vmem:[%s3295 + $0x138] sm:$0xff]
        %v3323 = vld [vmem:[%s3295 + $0x140] sm:$0xff]
        %v3324 = vld [vmem:[%s3295 + $0x150] sm:$0xff]
        %v3325 = vld [vmem:[%s3295 + $0x158] sm:$0xff]
        %v3326 = vld [vmem:[%s3295 + $0x168] sm:$0xff]
        %v3327 = vld [vmem:[%s3295 + $0x170] sm:$0xff]
        %v3328 = vld [vmem:[%s3295 + $0x1b0] sm:$0xff]
        %v3329 = vld [vmem:[%s3295 + $0x1b8] sm:$0xff]
        %v3330 = vld [vmem:[%s3295 + $0x1c8] sm:$0xff]
        %v3331 = vld [vmem:[%s3295 + $0x1d0] sm:$0xff]
        %v3332 = vld [vmem:[%s3295 + $0x1e0] sm:$0xff]
        %v3333 = vld [vmem:[%s3295 + $0x1e8] sm:$0xff]
        %v3334 = vld [vmem:[%s3295 + $0x1f8] sm:$0xff]
        %v3335 = vld [vmem:[%s3295 + $0x200] sm:$0xff]
        %v3336 = vld [vmem:[%s3295 + $0x210] sm:$0xff]
        %v3337 = vld [vmem:[%s3295 + $0x218] sm:$0xff]
        %v3338 = vld [vmem:[%s3295 + $0x228] sm:$0xff]
        %v3339 = vld [vmem:[%s3295 + $0x230] sm:$0xff]
        %v3340 = vld [vmem:[%s3295 + $0x240] sm:$0xff]
        %v3341 = vld [vmem:[%s3295 + $0x248] sm:$0xff]
        %v3342 = vld [vmem:[%s3295 + $0x258] sm:$0xff]
        %v3343 = vld [vmem:[%s3295 + $0x260] sm:$0xff]
        %v3344 = vld [vmem:[%s3295 + $0x270] sm:$0xff]
        %v3345 = vld [vmem:[%s3295 + $0x278] sm:$0xff]
        %v3346 = vld [vmem:[%s3295 + $0x288] sm:$0xff]
        %v3347 = vld [vmem:[%s3295 + $0x290] sm:$0xff]
        %v3348 = vld [vmem:[%s3295 + $0x2a0] sm:$0xff]
        %v3349 = vld [vmem:[%s3295 + $0x2a8] sm:$0xff]
        %v3350 = vld [vmem:[%s3295 + $0x2b8] sm:$0xff]
        %v3351 = vld [vmem:[%s3295 + $0x2c0] sm:$0xff]
        %v3352 = vld [vmem:[%s3295 + $0x2d0] sm:$0xff]
        %v3353 = vld [vmem:[%s3295 + $0x2d8] sm:$0xff]
        %v3354 = vld [vmem:[%s3295 + $0x2e8] sm:$0xff]
        %v3355 = vld [vmem:[%s3295 + $0x2f0] sm:$0xff]
        %v3356 = vld [vmem:[%s3295 + $0x300] sm:$0xff]
        %v3357 = vld [vmem:[%s3295 + $0x308] sm:$0xff]
        %v3358 = vld [vmem:[%s3295 + $0x318] sm:$0xff]
        %v3359 = vld [vmem:[%s3295 + $0x320] sm:$0xff]
        %s3360 = scalar_lea.vmem %s243, 768 [#allocation7]
        %v3361 = vld [vmem:[%s3360] sm:$0xff]
        %v3362 = vld [vmem:[%s3360 + $0x8] sm:$0xff]
        %v3363 = vld [vmem:[%s3360 + $0x10] sm:$0xff]
        %v3364 = vld [vmem:[%s3360 + $0x18] sm:$0xff]
        %v3365 = vld [vmem:[%s3360 + $0x20] sm:$0xff]
        %v3366 = vld [vmem:[%s3360 + $0x28] sm:$0xff]
        %v3367 = vld [vmem:[%s3360 + $0x30] sm:$0xff]
        %v3368 = vld [vmem:[%s3360 + $0x38] sm:$0xff]
        %v3369 = vld [vmem:[%s3360 + $0x40] sm:$0xff]
        %v3370 = vld [vmem:[%s3360 + $0x48] sm:$0xff]
        %v3371 = vld [vmem:[%s3360 + $0x50] sm:$0xff]
        %v3372 = vld [vmem:[%s3360 + $0x58] sm:$0xff]
        %v3373 = vld [vmem:[%s3360 + $0x60] sm:$0xff]
        %v3374 = vld [vmem:[%s3360 + $0x68] sm:$0xff]
        %v3375 = vld [vmem:[%s3360 + $0x70] sm:$0xff]
        %v3376 = vld [vmem:[%s3360 + $0x78] sm:$0xff]
        %3377 = vmatpush.msra.mxu0 %v3376
        %3378 = vmatpush.msra.mxu0 %v3375
        %3379 = vmatpush.msra.mxu0 %v3374
        %3380 = vmatpush.msra.mxu0 %v3373
        %3381 = vmatpush.msra.mxu0 %v3372
        %3382 = vmatpush.msra.mxu0 %v3371
        %3383 = vmatpush.msra.mxu0 %v3370
        %3384 = vmatpush.msra.mxu0 %v3369
        %3385 = vmatpush.msra.mxu0 %v3368
        %3386 = vmatpush.msra.mxu0 %v3367
        %3387 = vmatpush.msra.mxu0 %v3366
        %3388 = vmatpush.msra.mxu0 %v3365
        %3389 = vmatpush.msra.mxu0 %v3364
        %3390 = vmatpush.msra.mxu0 %v3363
        %3391 = vmatpush.msra.mxu0 %v3362
        %3392 = vmatpush.msra.mxu0 %v3361
        %3393 = vmatmul.f32.gmra.mxu0 %v3296
        %v3394 = vpop.f32.mrf.mxu0
        %v3395 = vadd.f32 0.0, %v3394
        %3396 = vmatmul.f32.gmra.mxu0 %v3297
        %v3397 = vpop.f32.mrf.mxu0
        %v3398 = vadd.f32 0.0, %v3397
        %3399 = vmatmul.f32.gmra.mxu0 %v3298
        %v3400 = vpop.f32.mrf.mxu0
        %v3401 = vadd.f32 0.0, %v3400
        %3402 = vmatmul.f32.gmra.mxu0 %v3299
        %v3403 = vpop.f32.mrf.mxu0
        %v3404 = vadd.f32 0.0, %v3403
        %3405 = vmatmul.f32.gmra.mxu0 %v3300
        %v3406 = vpop.f32.mrf.mxu0
        %v3407 = vadd.f32 0.0, %v3406
        %3408 = vmatmul.f32.gmra.mxu0 %v3301
        %v3409 = vpop.f32.mrf.mxu0
        %v3410 = vadd.f32 0.0, %v3409
        %3411 = vmatmul.f32.gmra.mxu0 %v3302
        %v3412 = vpop.f32.mrf.mxu0
        %v3413 = vadd.f32 0.0, %v3412
        %3414 = vmatmul.f32.gmra.mxu0 %v3303
        %v3415 = vpop.f32.mrf.mxu0
        %v3416 = vadd.f32 0.0, %v3415
        %3417 = vmatmul.f32.gmra.mxu0 %v3304
        %v3418 = vpop.f32.mrf.mxu0
        %v3419 = vadd.f32 0.0, %v3418
        %3420 = vmatmul.f32.gmra.mxu0 %v3305
        %v3421 = vpop.f32.mrf.mxu0
        %v3422 = vadd.f32 0.0, %v3421
        %3423 = vmatmul.f32.gmra.mxu0 %v3306
        %v3424 = vpop.f32.mrf.mxu0
        %v3425 = vadd.f32 0.0, %v3424
        %3426 = vmatmul.f32.gmra.mxu0 %v3307
        %v3427 = vpop.f32.mrf.mxu0
        %v3428 = vadd.f32 0.0, %v3427
        %3429 = vmatmul.f32.gmra.mxu0 %v3308
        %v3430 = vpop.f32.mrf.mxu0
        %v3431 = vadd.f32 0.0, %v3430
        %3432 = vmatmul.f32.gmra.mxu0 %v3309
        %v3433 = vpop.f32.mrf.mxu0
        %v3434 = vadd.f32 0.0, %v3433
        %3435 = vmatmul.f32.gmra.mxu0 %v3310
        %v3436 = vpop.f32.mrf.mxu0
        %v3437 = vadd.f32 0.0, %v3436
        %3438 = vmatmul.f32.gmra.mxu0 %v3311
        %v3439 = vpop.f32.mrf.mxu0
        %v3440 = vadd.f32 0.0, %v3439
        %3441 = vmatmul.f32.gmra.mxu0 %v3312
        %v3442 = vpop.f32.mrf.mxu0
        %v3443 = vadd.f32 0.0, %v3442
        %3444 = vmatmul.f32.gmra.mxu0 %v3313
        %v3445 = vpop.f32.mrf.mxu0
        %v3446 = vadd.f32 0.0, %v3445
        %3447 = vmatmul.f32.gmra.mxu0 %v3314
        %v3448 = vpop.f32.mrf.mxu0
        %v3449 = vadd.f32 0.0, %v3448
        %3450 = vmatmul.f32.gmra.mxu0 %v3315
        %v3451 = vpop.f32.mrf.mxu0
        %v3452 = vadd.f32 0.0, %v3451
        %3453 = vmatmul.f32.gmra.mxu0 %v3316
        %v3454 = vpop.f32.mrf.mxu0
        %v3455 = vadd.f32 0.0, %v3454
        %3456 = vmatmul.f32.gmra.mxu0 %v3317
        %v3457 = vpop.f32.mrf.mxu0
        %v3458 = vadd.f32 0.0, %v3457
        %3459 = vmatmul.f32.gmra.mxu0 %v3318
        %v3460 = vpop.f32.mrf.mxu0
        %v3461 = vadd.f32 0.0, %v3460
        %3462 = vmatmul.f32.gmra.mxu0 %v3319
        %v3463 = vpop.f32.mrf.mxu0
        %v3464 = vadd.f32 0.0, %v3463
        %3465 = vmatmul.f32.gmra.mxu0 %v3320
        %v3466 = vpop.f32.mrf.mxu0
        %v3467 = vadd.f32 0.0, %v3466
        %3468 = vmatmul.f32.gmra.mxu0 %v3321
        %v3469 = vpop.f32.mrf.mxu0
        %v3470 = vadd.f32 0.0, %v3469
        %3471 = vmatmul.f32.gmra.mxu0 %v3322
        %v3472 = vpop.f32.mrf.mxu0
        %v3473 = vadd.f32 0.0, %v3472
        %3474 = vmatmul.f32.gmra.mxu0 %v3323
        %v3475 = vpop.f32.mrf.mxu0
        %v3476 = vadd.f32 0.0, %v3475
        %3477 = vmatmul.f32.gmra.mxu0 %v3324
        %v3478 = vpop.f32.mrf.mxu0
        %v3479 = vadd.f32 0.0, %v3478
        %3480 = vmatmul.f32.gmra.mxu0 %v3325
        %v3481 = vpop.f32.mrf.mxu0
        %v3482 = vadd.f32 0.0, %v3481
        %3483 = vmatmul.f32.gmra.mxu0 %v3326
        %v3484 = vpop.f32.mrf.mxu0
        %v3485 = vadd.f32 0.0, %v3484
        %3486 = vmatmul.f32.gmra.mxu0 %v3327
        %v3487 = vpop.f32.mrf.mxu0
        %v3488 = vadd.f32 0.0, %v3487
        %3489 = vmatmul.f32.gmra.mxu0 %v3328
        %v3490 = vpop.f32.mrf.mxu0
        %v3491 = vadd.f32 0.0, %v3490
        %3492 = vmatmul.f32.gmra.mxu0 %v3329
        %v3493 = vpop.f32.mrf.mxu0
        %v3494 = vadd.f32 0.0, %v3493
        %3495 = vmatmul.f32.gmra.mxu0 %v3330
        %v3496 = vpop.f32.mrf.mxu0
        %v3497 = vadd.f32 0.0, %v3496
        %3498 = vmatmul.f32.gmra.mxu0 %v3331
        %v3499 = vpop.f32.mrf.mxu0
        %v3500 = vadd.f32 0.0, %v3499
        %3501 = vmatmul.f32.gmra.mxu0 %v3332
        %v3502 = vpop.f32.mrf.mxu0
        %v3503 = vadd.f32 0.0, %v3502
        %3504 = vmatmul.f32.gmra.mxu0 %v3333
        %v3505 = vpop.f32.mrf.mxu0
        %v3506 = vadd.f32 0.0, %v3505
        %3507 = vmatmul.f32.gmra.mxu0 %v3334
        %v3508 = vpop.f32.mrf.mxu0
        %v3509 = vadd.f32 0.0, %v3508
        %3510 = vmatmul.f32.gmra.mxu0 %v3335
        %v3511 = vpop.f32.mrf.mxu0
        %v3512 = vadd.f32 0.0, %v3511
        %3513 = vmatmul.f32.gmra.mxu0 %v3336
        %v3514 = vpop.f32.mrf.mxu0
        %v3515 = vadd.f32 0.0, %v3514
        %3516 = vmatmul.f32.gmra.mxu0 %v3337
        %v3517 = vpop.f32.mrf.mxu0
        %v3518 = vadd.f32 0.0, %v3517
        %3519 = vmatmul.f32.gmra.mxu0 %v3338
        %v3520 = vpop.f32.mrf.mxu0
        %v3521 = vadd.f32 0.0, %v3520
        %3522 = vmatmul.f32.gmra.mxu0 %v3339
        %v3523 = vpop.f32.mrf.mxu0
        %v3524 = vadd.f32 0.0, %v3523
        %3525 = vmatmul.f32.gmra.mxu0 %v3340
        %v3526 = vpop.f32.mrf.mxu0
        %v3527 = vadd.f32 0.0, %v3526
        %3528 = vmatmul.f32.gmra.mxu0 %v3341
        %v3529 = vpop.f32.mrf.mxu0
        %v3530 = vadd.f32 0.0, %v3529
        %3531 = vmatmul.f32.gmra.mxu0 %v3342
        %v3532 = vpop.f32.mrf.mxu0
        %v3533 = vadd.f32 0.0, %v3532
        %3534 = vmatmul.f32.gmra.mxu0 %v3343
        %v3535 = vpop.f32.mrf.mxu0
        %v3536 = vadd.f32 0.0, %v3535
        %3537 = vmatmul.f32.gmra.mxu0 %v3344
        %v3538 = vpop.f32.mrf.mxu0
        %v3539 = vadd.f32 0.0, %v3538
        %3540 = vmatmul.f32.gmra.mxu0 %v3345
        %v3541 = vpop.f32.mrf.mxu0
        %v3542 = vadd.f32 0.0, %v3541
        %3543 = vmatmul.f32.gmra.mxu0 %v3346
        %v3544 = vpop.f32.mrf.mxu0
        %v3545 = vadd.f32 0.0, %v3544
        %3546 = vmatmul.f32.gmra.mxu0 %v3347
        %v3547 = vpop.f32.mrf.mxu0
        %v3548 = vadd.f32 0.0, %v3547
        %3549 = vmatmul.f32.gmra.mxu0 %v3348
        %v3550 = vpop.f32.mrf.mxu0
        %v3551 = vadd.f32 0.0, %v3550
        %3552 = vmatmul.f32.gmra.mxu0 %v3349
        %v3553 = vpop.f32.mrf.mxu0
        %v3554 = vadd.f32 0.0, %v3553
        %3555 = vmatmul.f32.gmra.mxu0 %v3350
        %v3556 = vpop.f32.mrf.mxu0
        %v3557 = vadd.f32 0.0, %v3556
        %3558 = vmatmul.f32.gmra.mxu0 %v3351
        %v3559 = vpop.f32.mrf.mxu0
        %v3560 = vadd.f32 0.0, %v3559
        %3561 = vmatmul.f32.gmra.mxu0 %v3352
        %v3562 = vpop.f32.mrf.mxu0
        %v3563 = vadd.f32 0.0, %v3562
        %3564 = vmatmul.f32.gmra.mxu0 %v3353
        %v3565 = vpop.f32.mrf.mxu0
        %v3566 = vadd.f32 0.0, %v3565
        %3567 = vmatmul.f32.gmra.mxu0 %v3354
        %v3568 = vpop.f32.mrf.mxu0
        %v3569 = vadd.f32 0.0, %v3568
        %3570 = vmatmul.f32.gmra.mxu0 %v3355
        %v3571 = vpop.f32.mrf.mxu0
        %v3572 = vadd.f32 0.0, %v3571
        %3573 = vmatmul.f32.gmra.mxu0 %v3356
        %v3574 = vpop.f32.mrf.mxu0
        %v3575 = vadd.f32 0.0, %v3574
        %3576 = vmatmul.f32.gmra.mxu0 %v3357
        %v3577 = vpop.f32.mrf.mxu0
        %v3578 = vadd.f32 0.0, %v3577
        %3579 = vmatmul.f32.gmra.mxu0 %v3358
        %v3580 = vpop.f32.mrf.mxu0
        %v3581 = vadd.f32 0.0, %v3580
        %3582 = vmatmul.f32.gmra.mxu0 %v3359
        %v3583 = vpop.f32.mrf.mxu0
        %v3584 = vadd.f32 0.0, %v3583
        %3585 = vdwg.mxu0
        %v3586 = vld [vmem:[#allocation3] sm:$0xff]
        %v3587 = vld [vmem:[#allocation3 + $0x8] sm:$0xff]
        %v3588 = vld [vmem:[#allocation3 + $0x10] sm:$0xff]
        %v3589 = vld [vmem:[#allocation3 + $0x18] sm:$0xff]
        %v3590 = vld [vmem:[#allocation3 + $0x20] sm:$0xff]
        %v3591 = vld [vmem:[#allocation3 + $0x28] sm:$0xff]
        %v3592 = vld [vmem:[#allocation3 + $0x30] sm:$0xff]
        %v3593 = vld [vmem:[#allocation3 + $0x38] sm:$0xff]
        %v3594 = vld [vmem:[#allocation3 + $0x40] sm:$0xff]
        %v3595 = vld [vmem:[#allocation3 + $0x48] sm:$0xff]
        %v3596 = vld [vmem:[#allocation3 + $0x50] sm:$0xff]
        %v3597 = vld [vmem:[#allocation3 + $0x58] sm:$0xff]
        %v3598 = vld [vmem:[#allocation3 + $0x60] sm:$0xff]
        %v3599 = vld [vmem:[#allocation3 + $0x68] sm:$0xff]
        %v3600 = vld [vmem:[#allocation3 + $0x70] sm:$0xff]
        %v3601 = vld [vmem:[#allocation3 + $0x78] sm:$0xff]
        %v3602 = vld [vmem:[#allocation3 + $0x80] sm:$0xff]
        %v3603 = vld [vmem:[#allocation3 + $0x88] sm:$0xff]
        %v3604 = vld [vmem:[#allocation3 + $0x90] sm:$0xff]
        %v3605 = vld [vmem:[#allocation3 + $0x98] sm:$0xff]
        %v3606 = vld [vmem:[#allocation3 + $0xa0] sm:$0xff]
        %v3607 = vld [vmem:[#allocation3 + $0xa8] sm:$0xff]
        %v3608 = vld [vmem:[#allocation3 + $0xb0] sm:$0xff]
        %v3609 = vld [vmem:[#allocation3 + $0xb8] sm:$0xff]
        %v3610 = vld [vmem:[#allocation3 + $0xc0] sm:$0xff]
        %v3611 = vld [vmem:[#allocation3 + $0xc8] sm:$0xff]
        %v3612 = vld [vmem:[#allocation3 + $0xd0] sm:$0xff]
        %v3613 = vld [vmem:[#allocation3 + $0xd8] sm:$0xff]
        %v3614 = vld [vmem:[#allocation3 + $0xe0] sm:$0xff]
        %v3615 = vld [vmem:[#allocation3 + $0xe8] sm:$0xff]
        %v3616 = vld [vmem:[#allocation3 + $0xf0] sm:$0xff]
        %v3617 = vld [vmem:[#allocation3 + $0xf8] sm:$0xff]
        %v3618 = vld [vmem:[#allocation3 + $0x100] sm:$0xff]
        %v3619 = vld [vmem:[#allocation3 + $0x108] sm:$0xff]
        %v3620 = vld [vmem:[#allocation3 + $0x110] sm:$0xff]
        %v3621 = vld [vmem:[#allocation3 + $0x118] sm:$0xff]
        %v3622 = vld [vmem:[#allocation3 + $0x120] sm:$0xff]
        %v3623 = vld [vmem:[#allocation3 + $0x128] sm:$0xff]
        %v3624 = vld [vmem:[#allocation3 + $0x130] sm:$0xff]
        %v3625 = vld [vmem:[#allocation3 + $0x138] sm:$0xff]
        %v3626 = vld [vmem:[#allocation3 + $0x140] sm:$0xff]
        %v3627 = vld [vmem:[#allocation3 + $0x148] sm:$0xff]
        %v3628 = vld [vmem:[#allocation3 + $0x150] sm:$0xff]
        %v3629 = vld [vmem:[#allocation3 + $0x158] sm:$0xff]
        %v3630 = vld [vmem:[#allocation3 + $0x160] sm:$0xff]
        %v3631 = vld [vmem:[#allocation3 + $0x168] sm:$0xff]
        %v3632 = vld [vmem:[#allocation3 + $0x170] sm:$0xff]
        %v3633 = vld [vmem:[#allocation3 + $0x178] sm:$0xff]
        %v3634 = vld [vmem:[#allocation3 + $0x180] sm:$0xff]
        %v3635 = vld [vmem:[#allocation3 + $0x188] sm:$0xff]
        %v3636 = vld [vmem:[#allocation3 + $0x190] sm:$0xff]
        %v3637 = vld [vmem:[#allocation3 + $0x198] sm:$0xff]
        %v3638 = vld [vmem:[#allocation3 + $0x1a0] sm:$0xff]
        %v3639 = vld [vmem:[#allocation3 + $0x1a8] sm:$0xff]
        %v3640 = vld [vmem:[#allocation3 + $0x1b0] sm:$0xff]
        %v3641 = vld [vmem:[#allocation3 + $0x1b8] sm:$0xff]
        %v3642 = vld [vmem:[#allocation3 + $0x1c0] sm:$0xff]
        %v3643 = vld [vmem:[#allocation3 + $0x1c8] sm:$0xff]
        %v3644 = vld [vmem:[#allocation3 + $0x1d0] sm:$0xff]
        %v3645 = vld [vmem:[#allocation3 + $0x1d8] sm:$0xff]
        %v3646 = vld [vmem:[#allocation3 + $0x1e0] sm:$0xff]
        %v3647 = vld [vmem:[#allocation3 + $0x1e8] sm:$0xff]
        %v3648 = vld [vmem:[#allocation3 + $0x1f0] sm:$0xff]
        %v3649 = vld [vmem:[#allocation3 + $0x1f8] sm:$0xff]
        %v3650 = vadd.f32 %v3586, %v3395
        %v3651 = vadd.f32 %v3587, %v3398
        %v3652 = vadd.f32 %v3588, %v3401
        %v3653 = vadd.f32 %v3589, %v3404
        %v3654 = vadd.f32 %v3590, %v3407
        %v3655 = vadd.f32 %v3591, %v3410
        %v3656 = vadd.f32 %v3592, %v3413
        %v3657 = vadd.f32 %v3593, %v3416
        %v3658 = vadd.f32 %v3594, %v3419
        %v3659 = vadd.f32 %v3595, %v3422
        %v3660 = vadd.f32 %v3596, %v3425
        %v3661 = vadd.f32 %v3597, %v3428
        %v3662 = vadd.f32 %v3598, %v3431
        %v3663 = vadd.f32 %v3599, %v3434
        %v3664 = vadd.f32 %v3600, %v3437
        %v3665 = vadd.f32 %v3601, %v3440
        %v3666 = vadd.f32 %v3602, %v3443
        %v3667 = vadd.f32 %v3603, %v3446
        %v3668 = vadd.f32 %v3604, %v3449
        %v3669 = vadd.f32 %v3605, %v3452
        %v3670 = vadd.f32 %v3606, %v3455
        %v3671 = vadd.f32 %v3607, %v3458
        %v3672 = vadd.f32 %v3608, %v3461
        %v3673 = vadd.f32 %v3609, %v3464
        %v3674 = vadd.f32 %v3610, %v3467
        %v3675 = vadd.f32 %v3611, %v3470
        %v3676 = vadd.f32 %v3612, %v3473
        %v3677 = vadd.f32 %v3613, %v3476
        %v3678 = vadd.f32 %v3614, %v3479
        %v3679 = vadd.f32 %v3615, %v3482
        %v3680 = vadd.f32 %v3616, %v3485
        %v3681 = vadd.f32 %v3617, %v3488
        %v3682 = vadd.f32 %v3618, %v3491
        %v3683 = vadd.f32 %v3619, %v3494
        %v3684 = vadd.f32 %v3620, %v3497
        %v3685 = vadd.f32 %v3621, %v3500
        %v3686 = vadd.f32 %v3622, %v3503
        %v3687 = vadd.f32 %v3623, %v3506
        %v3688 = vadd.f32 %v3624, %v3509
        %v3689 = vadd.f32 %v3625, %v3512
        %v3690 = vadd.f32 %v3626, %v3515
        %v3691 = vadd.f32 %v3627, %v3518
        %v3692 = vadd.f32 %v3628, %v3521
        %v3693 = vadd.f32 %v3629, %v3524
        %v3694 = vadd.f32 %v3630, %v3527
        %v3695 = vadd.f32 %v3631, %v3530
        %v3696 = vadd.f32 %v3632, %v3533
        %v3697 = vadd.f32 %v3633, %v3536
        %v3698 = vadd.f32 %v3634, %v3539
        %v3699 = vadd.f32 %v3635, %v3542
        %v3700 = vadd.f32 %v3636, %v3545
        %v3701 = vadd.f32 %v3637, %v3548
        %v3702 = vadd.f32 %v3638, %v3551
        %v3703 = vadd.f32 %v3639, %v3554
        %v3704 = vadd.f32 %v3640, %v3557
        %v3705 = vadd.f32 %v3641, %v3560
        %v3706 = vadd.f32 %v3642, %v3563
        %v3707 = vadd.f32 %v3643, %v3566
        %v3708 = vadd.f32 %v3644, %v3569
        %v3709 = vadd.f32 %v3645, %v3572
        %v3710 = vadd.f32 %v3646, %v3575
        %v3711 = vadd.f32 %v3647, %v3578
        %v3712 = vadd.f32 %v3648, %v3581
        %v3713 = vadd.f32 %v3649, %v3584
        %3714 = vst [vmem:[#allocation3] sm:$0xff] %v3650
        %3715 = vst [vmem:[#allocation3 + $0x8] sm:$0xff] %v3651
        %3716 = vst [vmem:[#allocation3 + $0x10] sm:$0xff] %v3652
        %3717 = vst [vmem:[#allocation3 + $0x18] sm:$0xff] %v3653
        %3718 = vst [vmem:[#allocation3 + $0x20] sm:$0xff] %v3654
        %3719 = vst [vmem:[#allocation3 + $0x28] sm:$0xff] %v3655
        %3720 = vst [vmem:[#allocation3 + $0x30] sm:$0xff] %v3656
        %3721 = vst [vmem:[#allocation3 + $0x38] sm:$0xff] %v3657
        %3722 = vst [vmem:[#allocation3 + $0x40] sm:$0xff] %v3658
        %3723 = vst [vmem:[#allocation3 + $0x48] sm:$0xff] %v3659
        %3724 = vst [vmem:[#allocation3 + $0x50] sm:$0xff] %v3660
        %3725 = vst [vmem:[#allocation3 + $0x58] sm:$0xff] %v3661
        %3726 = vst [vmem:[#allocation3 + $0x60] sm:$0xff] %v3662
        %3727 = vst [vmem:[#allocation3 + $0x68] sm:$0xff] %v3663
        %3728 = vst [vmem:[#allocation3 + $0x70] sm:$0xff] %v3664
        %3729 = vst [vmem:[#allocation3 + $0x78] sm:$0xff] %v3665
        %3730 = vst [vmem:[#allocation3 + $0x80] sm:$0xff] %v3666
        %3731 = vst [vmem:[#allocation3 + $0x88] sm:$0xff] %v3667
        %3732 = vst [vmem:[#allocation3 + $0x90] sm:$0xff] %v3668
        %3733 = vst [vmem:[#allocation3 + $0x98] sm:$0xff] %v3669
        %3734 = vst [vmem:[#allocation3 + $0xa0] sm:$0xff] %v3670
        %3735 = vst [vmem:[#allocation3 + $0xa8] sm:$0xff] %v3671
        %3736 = vst [vmem:[#allocation3 + $0xb0] sm:$0xff] %v3672
        %3737 = vst [vmem:[#allocation3 + $0xb8] sm:$0xff] %v3673
        %3738 = vst [vmem:[#allocation3 + $0xc0] sm:$0xff] %v3674
        %3739 = vst [vmem:[#allocation3 + $0xc8] sm:$0xff] %v3675
        %3740 = vst [vmem:[#allocation3 + $0xd0] sm:$0xff] %v3676
        %3741 = vst [vmem:[#allocation3 + $0xd8] sm:$0xff] %v3677
        %3742 = vst [vmem:[#allocation3 + $0xe0] sm:$0xff] %v3678
        %3743 = vst [vmem:[#allocation3 + $0xe8] sm:$0xff] %v3679
        %3744 = vst [vmem:[#allocation3 + $0xf0] sm:$0xff] %v3680
        %3745 = vst [vmem:[#allocation3 + $0xf8] sm:$0xff] %v3681
        %3746 = vst [vmem:[#allocation3 + $0x100] sm:$0xff] %v3682
        %3747 = vst [vmem:[#allocation3 + $0x108] sm:$0xff] %v3683
        %3748 = vst [vmem:[#allocation3 + $0x110] sm:$0xff] %v3684
        %3749 = vst [vmem:[#allocation3 + $0x118] sm:$0xff] %v3685
        %3750 = vst [vmem:[#allocation3 + $0x120] sm:$0xff] %v3686
        %3751 = vst [vmem:[#allocation3 + $0x128] sm:$0xff] %v3687
        %3752 = vst [vmem:[#allocation3 + $0x130] sm:$0xff] %v3688
        %3753 = vst [vmem:[#allocation3 + $0x138] sm:$0xff] %v3689
        %3754 = vst [vmem:[#allocation3 + $0x140] sm:$0xff] %v3690
        %3755 = vst [vmem:[#allocation3 + $0x148] sm:$0xff] %v3691
        %3756 = vst [vmem:[#allocation3 + $0x150] sm:$0xff] %v3692
        %3757 = vst [vmem:[#allocation3 + $0x158] sm:$0xff] %v3693
        %3758 = vst [vmem:[#allocation3 + $0x160] sm:$0xff] %v3694
        %3759 = vst [vmem:[#allocation3 + $0x168] sm:$0xff] %v3695
        %3760 = vst [vmem:[#allocation3 + $0x170] sm:$0xff] %v3696
        %3761 = vst [vmem:[#allocation3 + $0x178] sm:$0xff] %v3697
        %3762 = vst [vmem:[#allocation3 + $0x180] sm:$0xff] %v3698
        %3763 = vst [vmem:[#allocation3 + $0x188] sm:$0xff] %v3699
        %3764 = vst [vmem:[#allocation3 + $0x190] sm:$0xff] %v3700
        %3765 = vst [vmem:[#allocation3 + $0x198] sm:$0xff] %v3701
        %3766 = vst [vmem:[#allocation3 + $0x1a0] sm:$0xff] %v3702
        %3767 = vst [vmem:[#allocation3 + $0x1a8] sm:$0xff] %v3703
        %3768 = vst [vmem:[#allocation3 + $0x1b0] sm:$0xff] %v3704
        %3769 = vst [vmem:[#allocation3 + $0x1b8] sm:$0xff] %v3705
        %3770 = vst [vmem:[#allocation3 + $0x1c0] sm:$0xff] %v3706
        %3771 = vst [vmem:[#allocation3 + $0x1c8] sm:$0xff] %v3707
        %3772 = vst [vmem:[#allocation3 + $0x1d0] sm:$0xff] %v3708
        %3773 = vst [vmem:[#allocation3 + $0x1d8] sm:$0xff] %v3709
        %3774 = vst [vmem:[#allocation3 + $0x1e0] sm:$0xff] %v3710
        %3775 = vst [vmem:[#allocation3 + $0x1e8] sm:$0xff] %v3711
        %3776 = vst [vmem:[#allocation3 + $0x1f0] sm:$0xff] %v3712
        %3777 = vst [vmem:[#allocation3 + $0x1f8] sm:$0xff] %v3713
        %v3778 = vld [vmem:[%s3295 + $0x1] sm:$0xff]
        %v3779 = vld [vmem:[%s3295 + $0x9] sm:$0xff]
        %v3780 = vld [vmem:[%s3295 + $0x19] sm:$0xff]
        %v3781 = vld [vmem:[%s3295 + $0x21] sm:$0xff]
        %v3782 = vld [vmem:[%s3295 + $0x31] sm:$0xff]
        %v3783 = vld [vmem:[%s3295 + $0x39] sm:$0xff]
        %v3784 = vld [vmem:[%s3295 + $0x49] sm:$0xff]
        %v3785 = vld [vmem:[%s3295 + $0x51] sm:$0xff]
        %v3786 = vld [vmem:[%s3295 + $0x61] sm:$0xff]
        %v3787 = vld [vmem:[%s3295 + $0x69] sm:$0xff]
        %v3788 = vld [vmem:[%s3295 + $0x79] sm:$0xff]
        %v3789 = vld [vmem:[%s3295 + $0x81] sm:$0xff]
        %v3790 = vld [vmem:[%s3295 + $0x91] sm:$0xff]
        %v3791 = vld [vmem:[%s3295 + $0x99] sm:$0xff]
        %v3792 = vld [vmem:[%s3295 + $0xa9] sm:$0xff]
        %v3793 = vld [vmem:[%s3295 + $0xb1] sm:$0xff]
        %v3794 = vld [vmem:[%s3295 + $0xc1] sm:$0xff]
        %v3795 = vld [vmem:[%s3295 + $0xc9] sm:$0xff]
        %v3796 = vld [vmem:[%s3295 + $0xd9] sm:$0xff]
        %v3797 = vld [vmem:[%s3295 + $0xe1] sm:$0xff]
        %v3798 = vld [vmem:[%s3295 + $0xf1] sm:$0xff]
        %v3799 = vld [vmem:[%s3295 + $0xf9] sm:$0xff]
        %v3800 = vld [vmem:[%s3295 + $0x109] sm:$0xff]
        %v3801 = vld [vmem:[%s3295 + $0x111] sm:$0xff]
        %v3802 = vld [vmem:[%s3295 + $0x121] sm:$0xff]
        %v3803 = vld [vmem:[%s3295 + $0x129] sm:$0xff]
        %v3804 = vld [vmem:[%s3295 + $0x139] sm:$0xff]
        %v3805 = vld [vmem:[%s3295 + $0x141] sm:$0xff]
        %v3806 = vld [vmem:[%s3295 + $0x151] sm:$0xff]
        %v3807 = vld [vmem:[%s3295 + $0x159] sm:$0xff]
        %v3808 = vld [vmem:[%s3295 + $0x169] sm:$0xff]
        %v3809 = vld [vmem:[%s3295 + $0x171] sm:$0xff]
        %v3810 = vld [vmem:[%s3295 + $0x1b1] sm:$0xff]
        %v3811 = vld [vmem:[%s3295 + $0x1b9] sm:$0xff]
        %v3812 = vld [vmem:[%s3295 + $0x1c9] sm:$0xff]
        %v3813 = vld [vmem:[%s3295 + $0x1d1] sm:$0xff]
        %v3814 = vld [vmem:[%s3295 + $0x1e1] sm:$0xff]
        %v3815 = vld [vmem:[%s3295 + $0x1e9] sm:$0xff]
        %v3816 = vld [vmem:[%s3295 + $0x1f9] sm:$0xff]
        %v3817 = vld [vmem:[%s3295 + $0x201] sm:$0xff]
        %v3818 = vld [vmem:[%s3295 + $0x211] sm:$0xff]
        %v3819 = vld [vmem:[%s3295 + $0x219] sm:$0xff]
        %v3820 = vld [vmem:[%s3295 + $0x229] sm:$0xff]
        %v3821 = vld [vmem:[%s3295 + $0x231] sm:$0xff]
        %v3822 = vld [vmem:[%s3295 + $0x241] sm:$0xff]
        %v3823 = vld [vmem:[%s3295 + $0x249] sm:$0xff]
        %v3824 = vld [vmem:[%s3295 + $0x259] sm:$0xff]
        %v3825 = vld [vmem:[%s3295 + $0x261] sm:$0xff]
        %v3826 = vld [vmem:[%s3295 + $0x271] sm:$0xff]
        %v3827 = vld [vmem:[%s3295 + $0x279] sm:$0xff]
        %v3828 = vld [vmem:[%s3295 + $0x289] sm:$0xff]
        %v3829 = vld [vmem:[%s3295 + $0x291] sm:$0xff]
        %v3830 = vld [vmem:[%s3295 + $0x2a1] sm:$0xff]
        %v3831 = vld [vmem:[%s3295 + $0x2a9] sm:$0xff]
        %v3832 = vld [vmem:[%s3295 + $0x2b9] sm:$0xff]
        %v3833 = vld [vmem:[%s3295 + $0x2c1] sm:$0xff]
        %v3834 = vld [vmem:[%s3295 + $0x2d1] sm:$0xff]
        %v3835 = vld [vmem:[%s3295 + $0x2d9] sm:$0xff]
        %v3836 = vld [vmem:[%s3295 + $0x2e9] sm:$0xff]
        %v3837 = vld [vmem:[%s3295 + $0x2f1] sm:$0xff]
        %v3838 = vld [vmem:[%s3295 + $0x301] sm:$0xff]
        %v3839 = vld [vmem:[%s3295 + $0x309] sm:$0xff]
        %v3840 = vld [vmem:[%s3295 + $0x319] sm:$0xff]
        %v3841 = vld [vmem:[%s3295 + $0x321] sm:$0xff]
        %s3842 = scalar_lea.vmem %s243, 896 [#allocation7]
        %v3843 = vld [vmem:[%s3842] sm:$0xff]
        %v3844 = vld [vmem:[%s3842 + $0x8] sm:$0xff]
        %v3845 = vld [vmem:[%s3842 + $0x10] sm:$0xff]
        %v3846 = vld [vmem:[%s3842 + $0x18] sm:$0xff]
        %v3847 = vld [vmem:[%s3842 + $0x20] sm:$0xff]
        %v3848 = vld [vmem:[%s3842 + $0x28] sm:$0xff]
        %v3849 = vld [vmem:[%s3842 + $0x30] sm:$0xff]
        %v3850 = vld [vmem:[%s3842 + $0x38] sm:$0xff]
        %v3851 = vld [vmem:[%s3842 + $0x40] sm:$0xff]
        %v3852 = vld [vmem:[%s3842 + $0x48] sm:$0xff]
        %v3853 = vld [vmem:[%s3842 + $0x50] sm:$0xff]
        %v3854 = vld [vmem:[%s3842 + $0x58] sm:$0xff]
        %v3855 = vld [vmem:[%s3842 + $0x60] sm:$0xff]
        %v3856 = vld [vmem:[%s3842 + $0x68] sm:$0xff]
        %v3857 = vld [vmem:[%s3842 + $0x70] sm:$0xff]
        %v3858 = vld [vmem:[%s3842 + $0x78] sm:$0xff]
        %3859 = vmatpush.msra.mxu0 %v3858
        %3860 = vmatpush.msra.mxu0 %v3857
        %3861 = vmatpush.msra.mxu0 %v3856
        %3862 = vmatpush.msra.mxu0 %v3855
        %3863 = vmatpush.msra.mxu0 %v3854
        %3864 = vmatpush.msra.mxu0 %v3853
        %3865 = vmatpush.msra.mxu0 %v3852
        %3866 = vmatpush.msra.mxu0 %v3851
        %3867 = vmatpush.msra.mxu0 %v3850
        %3868 = vmatpush.msra.mxu0 %v3849
        %3869 = vmatpush.msra.mxu0 %v3848
        %3870 = vmatpush.msra.mxu0 %v3847
        %3871 = vmatpush.msra.mxu0 %v3846
        %3872 = vmatpush.msra.mxu0 %v3845
        %3873 = vmatpush.msra.mxu0 %v3844
        %3874 = vmatpush.msra.mxu0 %v3843
        %3875 = vmatmul.f32.gmra.mxu0 %v3778
        %v3876 = vpop.f32.mrf.mxu0
        %v3877 = vadd.f32 0.0, %v3876
        %3878 = vmatmul.f32.gmra.mxu0 %v3779
        %v3879 = vpop.f32.mrf.mxu0
        %v3880 = vadd.f32 0.0, %v3879
        %3881 = vmatmul.f32.gmra.mxu0 %v3780
        %v3882 = vpop.f32.mrf.mxu0
        %v3883 = vadd.f32 0.0, %v3882
        %3884 = vmatmul.f32.gmra.mxu0 %v3781
        %v3885 = vpop.f32.mrf.mxu0
        %v3886 = vadd.f32 0.0, %v3885
        %3887 = vmatmul.f32.gmra.mxu0 %v3782
        %v3888 = vpop.f32.mrf.mxu0
        %v3889 = vadd.f32 0.0, %v3888
        %3890 = vmatmul.f32.gmra.mxu0 %v3783
        %v3891 = vpop.f32.mrf.mxu0
        %v3892 = vadd.f32 0.0, %v3891
        %3893 = vmatmul.f32.gmra.mxu0 %v3784
        %v3894 = vpop.f32.mrf.mxu0
        %v3895 = vadd.f32 0.0, %v3894
        %3896 = vmatmul.f32.gmra.mxu0 %v3785
        %v3897 = vpop.f32.mrf.mxu0
        %v3898 = vadd.f32 0.0, %v3897
        %3899 = vmatmul.f32.gmra.mxu0 %v3786
        %v3900 = vpop.f32.mrf.mxu0
        %v3901 = vadd.f32 0.0, %v3900
        %3902 = vmatmul.f32.gmra.mxu0 %v3787
        %v3903 = vpop.f32.mrf.mxu0
        %v3904 = vadd.f32 0.0, %v3903
        %3905 = vmatmul.f32.gmra.mxu0 %v3788
        %v3906 = vpop.f32.mrf.mxu0
        %v3907 = vadd.f32 0.0, %v3906
        %3908 = vmatmul.f32.gmra.mxu0 %v3789
        %v3909 = vpop.f32.mrf.mxu0
        %v3910 = vadd.f32 0.0, %v3909
        %3911 = vmatmul.f32.gmra.mxu0 %v3790
        %v3912 = vpop.f32.mrf.mxu0
        %v3913 = vadd.f32 0.0, %v3912
        %3914 = vmatmul.f32.gmra.mxu0 %v3791
        %v3915 = vpop.f32.mrf.mxu0
        %v3916 = vadd.f32 0.0, %v3915
        %3917 = vmatmul.f32.gmra.mxu0 %v3792
        %v3918 = vpop.f32.mrf.mxu0
        %v3919 = vadd.f32 0.0, %v3918
        %3920 = vmatmul.f32.gmra.mxu0 %v3793
        %v3921 = vpop.f32.mrf.mxu0
        %v3922 = vadd.f32 0.0, %v3921
        %3923 = vmatmul.f32.gmra.mxu0 %v3794
        %v3924 = vpop.f32.mrf.mxu0
        %v3925 = vadd.f32 0.0, %v3924
        %3926 = vmatmul.f32.gmra.mxu0 %v3795
        %v3927 = vpop.f32.mrf.mxu0
        %v3928 = vadd.f32 0.0, %v3927
        %3929 = vmatmul.f32.gmra.mxu0 %v3796
        %v3930 = vpop.f32.mrf.mxu0
        %v3931 = vadd.f32 0.0, %v3930
        %3932 = vmatmul.f32.gmra.mxu0 %v3797
        %v3933 = vpop.f32.mrf.mxu0
        %v3934 = vadd.f32 0.0, %v3933
        %3935 = vmatmul.f32.gmra.mxu0 %v3798
        %v3936 = vpop.f32.mrf.mxu0
        %v3937 = vadd.f32 0.0, %v3936
        %3938 = vmatmul.f32.gmra.mxu0 %v3799
        %v3939 = vpop.f32.mrf.mxu0
        %v3940 = vadd.f32 0.0, %v3939
        %3941 = vmatmul.f32.gmra.mxu0 %v3800
        %v3942 = vpop.f32.mrf.mxu0
        %v3943 = vadd.f32 0.0, %v3942
        %3944 = vmatmul.f32.gmra.mxu0 %v3801
        %v3945 = vpop.f32.mrf.mxu0
        %v3946 = vadd.f32 0.0, %v3945
        %3947 = vmatmul.f32.gmra.mxu0 %v3802
        %v3948 = vpop.f32.mrf.mxu0
        %v3949 = vadd.f32 0.0, %v3948
        %3950 = vmatmul.f32.gmra.mxu0 %v3803
        %v3951 = vpop.f32.mrf.mxu0
        %v3952 = vadd.f32 0.0, %v3951
        %3953 = vmatmul.f32.gmra.mxu0 %v3804
        %v3954 = vpop.f32.mrf.mxu0
        %v3955 = vadd.f32 0.0, %v3954
        %3956 = vmatmul.f32.gmra.mxu0 %v3805
        %v3957 = vpop.f32.mrf.mxu0
        %v3958 = vadd.f32 0.0, %v3957
        %3959 = vmatmul.f32.gmra.mxu0 %v3806
        %v3960 = vpop.f32.mrf.mxu0
        %v3961 = vadd.f32 0.0, %v3960
        %3962 = vmatmul.f32.gmra.mxu0 %v3807
        %v3963 = vpop.f32.mrf.mxu0
        %v3964 = vadd.f32 0.0, %v3963
        %3965 = vmatmul.f32.gmra.mxu0 %v3808
        %v3966 = vpop.f32.mrf.mxu0
        %v3967 = vadd.f32 0.0, %v3966
        %3968 = vmatmul.f32.gmra.mxu0 %v3809
        %v3969 = vpop.f32.mrf.mxu0
        %v3970 = vadd.f32 0.0, %v3969
        %3971 = vmatmul.f32.gmra.mxu0 %v3810
        %v3972 = vpop.f32.mrf.mxu0
        %v3973 = vadd.f32 0.0, %v3972
        %3974 = vmatmul.f32.gmra.mxu0 %v3811
        %v3975 = vpop.f32.mrf.mxu0
        %v3976 = vadd.f32 0.0, %v3975
        %3977 = vmatmul.f32.gmra.mxu0 %v3812
        %v3978 = vpop.f32.mrf.mxu0
        %v3979 = vadd.f32 0.0, %v3978
        %3980 = vmatmul.f32.gmra.mxu0 %v3813
        %v3981 = vpop.f32.mrf.mxu0
        %v3982 = vadd.f32 0.0, %v3981
        %3983 = vmatmul.f32.gmra.mxu0 %v3814
        %v3984 = vpop.f32.mrf.mxu0
        %v3985 = vadd.f32 0.0, %v3984
        %3986 = vmatmul.f32.gmra.mxu0 %v3815
        %v3987 = vpop.f32.mrf.mxu0
        %v3988 = vadd.f32 0.0, %v3987
        %3989 = vmatmul.f32.gmra.mxu0 %v3816
        %v3990 = vpop.f32.mrf.mxu0
        %v3991 = vadd.f32 0.0, %v3990
        %3992 = vmatmul.f32.gmra.mxu0 %v3817
        %v3993 = vpop.f32.mrf.mxu0
        %v3994 = vadd.f32 0.0, %v3993
        %3995 = vmatmul.f32.gmra.mxu0 %v3818
        %v3996 = vpop.f32.mrf.mxu0
        %v3997 = vadd.f32 0.0, %v3996
        %3998 = vmatmul.f32.gmra.mxu0 %v3819
        %v3999 = vpop.f32.mrf.mxu0
        %v4000 = vadd.f32 0.0, %v3999
        %4001 = vmatmul.f32.gmra.mxu0 %v3820
        %v4002 = vpop.f32.mrf.mxu0
        %v4003 = vadd.f32 0.0, %v4002
        %4004 = vmatmul.f32.gmra.mxu0 %v3821
        %v4005 = vpop.f32.mrf.mxu0
        %v4006 = vadd.f32 0.0, %v4005
        %4007 = vmatmul.f32.gmra.mxu0 %v3822
        %v4008 = vpop.f32.mrf.mxu0
        %v4009 = vadd.f32 0.0, %v4008
        %4010 = vmatmul.f32.gmra.mxu0 %v3823
        %v4011 = vpop.f32.mrf.mxu0
        %v4012 = vadd.f32 0.0, %v4011
        %4013 = vmatmul.f32.gmra.mxu0 %v3824
        %v4014 = vpop.f32.mrf.mxu0
        %v4015 = vadd.f32 0.0, %v4014
        %4016 = vmatmul.f32.gmra.mxu0 %v3825
        %v4017 = vpop.f32.mrf.mxu0
        %v4018 = vadd.f32 0.0, %v4017
        %4019 = vmatmul.f32.gmra.mxu0 %v3826
        %v4020 = vpop.f32.mrf.mxu0
        %v4021 = vadd.f32 0.0, %v4020
        %4022 = vmatmul.f32.gmra.mxu0 %v3827
        %v4023 = vpop.f32.mrf.mxu0
        %v4024 = vadd.f32 0.0, %v4023
        %4025 = vmatmul.f32.gmra.mxu0 %v3828
        %v4026 = vpop.f32.mrf.mxu0
        %v4027 = vadd.f32 0.0, %v4026
        %4028 = vmatmul.f32.gmra.mxu0 %v3829
        %v4029 = vpop.f32.mrf.mxu0
        %v4030 = vadd.f32 0.0, %v4029
        %4031 = vmatmul.f32.gmra.mxu0 %v3830
        %v4032 = vpop.f32.mrf.mxu0
        %v4033 = vadd.f32 0.0, %v4032
        %4034 = vmatmul.f32.gmra.mxu0 %v3831
        %v4035 = vpop.f32.mrf.mxu0
        %v4036 = vadd.f32 0.0, %v4035
        %4037 = vmatmul.f32.gmra.mxu0 %v3832
        %v4038 = vpop.f32.mrf.mxu0
        %v4039 = vadd.f32 0.0, %v4038
        %4040 = vmatmul.f32.gmra.mxu0 %v3833
        %v4041 = vpop.f32.mrf.mxu0
        %v4042 = vadd.f32 0.0, %v4041
        %4043 = vmatmul.f32.gmra.mxu0 %v3834
        %v4044 = vpop.f32.mrf.mxu0
        %v4045 = vadd.f32 0.0, %v4044
        %4046 = vmatmul.f32.gmra.mxu0 %v3835
        %v4047 = vpop.f32.mrf.mxu0
        %v4048 = vadd.f32 0.0, %v4047
        %4049 = vmatmul.f32.gmra.mxu0 %v3836
        %v4050 = vpop.f32.mrf.mxu0
        %v4051 = vadd.f32 0.0, %v4050
        %4052 = vmatmul.f32.gmra.mxu0 %v3837
        %v4053 = vpop.f32.mrf.mxu0
        %v4054 = vadd.f32 0.0, %v4053
        %4055 = vmatmul.f32.gmra.mxu0 %v3838
        %v4056 = vpop.f32.mrf.mxu0
        %v4057 = vadd.f32 0.0, %v4056
        %4058 = vmatmul.f32.gmra.mxu0 %v3839
        %v4059 = vpop.f32.mrf.mxu0
        %v4060 = vadd.f32 0.0, %v4059
        %4061 = vmatmul.f32.gmra.mxu0 %v3840
        %v4062 = vpop.f32.mrf.mxu0
        %v4063 = vadd.f32 0.0, %v4062
        %4064 = vmatmul.f32.gmra.mxu0 %v3841
        %v4065 = vpop.f32.mrf.mxu0
        %v4066 = vadd.f32 0.0, %v4065
        %4067 = vdwg.mxu0
        %v4068 = vld [vmem:[#allocation3] sm:$0xff]
        %v4069 = vld [vmem:[#allocation3 + $0x8] sm:$0xff]
        %v4070 = vld [vmem:[#allocation3 + $0x10] sm:$0xff]
        %v4071 = vld [vmem:[#allocation3 + $0x18] sm:$0xff]
        %v4072 = vld [vmem:[#allocation3 + $0x20] sm:$0xff]
        %v4073 = vld [vmem:[#allocation3 + $0x28] sm:$0xff]
        %v4074 = vld [vmem:[#allocation3 + $0x30] sm:$0xff]
        %v4075 = vld [vmem:[#allocation3 + $0x38] sm:$0xff]
        %v4076 = vld [vmem:[#allocation3 + $0x40] sm:$0xff]
        %v4077 = vld [vmem:[#allocation3 + $0x48] sm:$0xff]
        %v4078 = vld [vmem:[#allocation3 + $0x50] sm:$0xff]
        %v4079 = vld [vmem:[#allocation3 + $0x58] sm:$0xff]
        %v4080 = vld [vmem:[#allocation3 + $0x60] sm:$0xff]
        %v4081 = vld [vmem:[#allocation3 + $0x68] sm:$0xff]
        %v4082 = vld [vmem:[#allocation3 + $0x70] sm:$0xff]
        %v4083 = vld [vmem:[#allocation3 + $0x78] sm:$0xff]
        %v4084 = vld [vmem:[#allocation3 + $0x80] sm:$0xff]
        %v4085 = vld [vmem:[#allocation3 + $0x88] sm:$0xff]
        %v4086 = vld [vmem:[#allocation3 + $0x90] sm:$0xff]
        %v4087 = vld [vmem:[#allocation3 + $0x98] sm:$0xff]
        %v4088 = vld [vmem:[#allocation3 + $0xa0] sm:$0xff]
        %v4089 = vld [vmem:[#allocation3 + $0xa8] sm:$0xff]
        %v4090 = vld [vmem:[#allocation3 + $0xb0] sm:$0xff]
        %v4091 = vld [vmem:[#allocation3 + $0xb8] sm:$0xff]
        %v4092 = vld [vmem:[#allocation3 + $0xc0] sm:$0xff]
        %v4093 = vld [vmem:[#allocation3 + $0xc8] sm:$0xff]
        %v4094 = vld [vmem:[#allocation3 + $0xd0] sm:$0xff]
        %v4095 = vld [vmem:[#allocation3 + $0xd8] sm:$0xff]
        %v4096 = vld [vmem:[#allocation3 + $0xe0] sm:$0xff]
        %v4097 = vld [vmem:[#allocation3 + $0xe8] sm:$0xff]
        %v4098 = vld [vmem:[#allocation3 + $0xf0] sm:$0xff]
        %v4099 = vld [vmem:[#allocation3 + $0xf8] sm:$0xff]
        %v4100 = vld [vmem:[#allocation3 + $0x100] sm:$0xff]
        %v4101 = vld [vmem:[#allocation3 + $0x108] sm:$0xff]
        %v4102 = vld [vmem:[#allocation3 + $0x110] sm:$0xff]
        %v4103 = vld [vmem:[#allocation3 + $0x118] sm:$0xff]
        %v4104 = vld [vmem:[#allocation3 + $0x120] sm:$0xff]
        %v4105 = vld [vmem:[#allocation3 + $0x128] sm:$0xff]
        %v4106 = vld [vmem:[#allocation3 + $0x130] sm:$0xff]
        %v4107 = vld [vmem:[#allocation3 + $0x138] sm:$0xff]
        %v4108 = vld [vmem:[#allocation3 + $0x140] sm:$0xff]
        %v4109 = vld [vmem:[#allocation3 + $0x148] sm:$0xff]
        %v4110 = vld [vmem:[#allocation3 + $0x150] sm:$0xff]
        %v4111 = vld [vmem:[#allocation3 + $0x158] sm:$0xff]
        %v4112 = vld [vmem:[#allocation3 + $0x160] sm:$0xff]
        %v4113 = vld [vmem:[#allocation3 + $0x168] sm:$0xff]
        %v4114 = vld [vmem:[#allocation3 + $0x170] sm:$0xff]
        %v4115 = vld [vmem:[#allocation3 + $0x178] sm:$0xff]
        %v4116 = vld [vmem:[#allocation3 + $0x180] sm:$0xff]
        %v4117 = vld [vmem:[#allocation3 + $0x188] sm:$0xff]
        %v4118 = vld [vmem:[#allocation3 + $0x190] sm:$0xff]
        %v4119 = vld [vmem:[#allocation3 + $0x198] sm:$0xff]
        %v4120 = vld [vmem:[#allocation3 + $0x1a0] sm:$0xff]
        %v4121 = vld [vmem:[#allocation3 + $0x1a8] sm:$0xff]
        %v4122 = vld [vmem:[#allocation3 + $0x1b0] sm:$0xff]
        %v4123 = vld [vmem:[#allocation3 + $0x1b8] sm:$0xff]
        %v4124 = vld [vmem:[#allocation3 + $0x1c0] sm:$0xff]
        %v4125 = vld [vmem:[#allocation3 + $0x1c8] sm:$0xff]
        %v4126 = vld [vmem:[#allocation3 + $0x1d0] sm:$0xff]
        %v4127 = vld [vmem:[#allocation3 + $0x1d8] sm:$0xff]
        %v4128 = vld [vmem:[#allocation3 + $0x1e0] sm:$0xff]
        %v4129 = vld [vmem:[#allocation3 + $0x1e8] sm:$0xff]
        %v4130 = vld [vmem:[#allocation3 + $0x1f0] sm:$0xff]
        %v4131 = vld [vmem:[#allocation3 + $0x1f8] sm:$0xff]
        %v4132 = vadd.f32 %v4068, %v3877
        %v4133 = vadd.f32 %v4069, %v3880
        %v4134 = vadd.f32 %v4070, %v3883
        %v4135 = vadd.f32 %v4071, %v3886
        %v4136 = vadd.f32 %v4072, %v3889
        %v4137 = vadd.f32 %v4073, %v3892
        %v4138 = vadd.f32 %v4074, %v3895
        %v4139 = vadd.f32 %v4075, %v3898
        %v4140 = vadd.f32 %v4076, %v3901
        %v4141 = vadd.f32 %v4077, %v3904
        %v4142 = vadd.f32 %v4078, %v3907
        %v4143 = vadd.f32 %v4079, %v3910
        %v4144 = vadd.f32 %v4080, %v3913
        %v4145 = vadd.f32 %v4081, %v3916
        %v4146 = vadd.f32 %v4082, %v3919
        %v4147 = vadd.f32 %v4083, %v3922
        %v4148 = vadd.f32 %v4084, %v3925
        %v4149 = vadd.f32 %v4085, %v3928
        %v4150 = vadd.f32 %v4086, %v3931
        %v4151 = vadd.f32 %v4087, %v3934
        %v4152 = vadd.f32 %v4088, %v3937
        %v4153 = vadd.f32 %v4089, %v3940
        %v4154 = vadd.f32 %v4090, %v3943
        %v4155 = vadd.f32 %v4091, %v3946
        %v4156 = vadd.f32 %v4092, %v3949
        %v4157 = vadd.f32 %v4093, %v3952
        %v4158 = vadd.f32 %v4094, %v3955
        %v4159 = vadd.f32 %v4095, %v3958
        %v4160 = vadd.f32 %v4096, %v3961
        %v4161 = vadd.f32 %v4097, %v3964
        %v4162 = vadd.f32 %v4098, %v3967
        %v4163 = vadd.f32 %v4099, %v3970
        %v4164 = vadd.f32 %v4100, %v3973
        %v4165 = vadd.f32 %v4101, %v3976
        %v4166 = vadd.f32 %v4102, %v3979
        %v4167 = vadd.f32 %v4103, %v3982
        %v4168 = vadd.f32 %v4104, %v3985
        %v4169 = vadd.f32 %v4105, %v3988
        %v4170 = vadd.f32 %v4106, %v3991
        %v4171 = vadd.f32 %v4107, %v3994
        %v4172 = vadd.f32 %v4108, %v3997
        %v4173 = vadd.f32 %v4109, %v4000
        %v4174 = vadd.f32 %v4110, %v4003
        %v4175 = vadd.f32 %v4111, %v4006
        %v4176 = vadd.f32 %v4112, %v4009
        %v4177 = vadd.f32 %v4113, %v4012
        %v4178 = vadd.f32 %v4114, %v4015
        %v4179 = vadd.f32 %v4115, %v4018
        %v4180 = vadd.f32 %v4116, %v4021
        %v4181 = vadd.f32 %v4117, %v4024
        %v4182 = vadd.f32 %v4118, %v4027
        %v4183 = vadd.f32 %v4119, %v4030
        %v4184 = vadd.f32 %v4120, %v4033
        %v4185 = vadd.f32 %v4121, %v4036
        %v4186 = vadd.f32 %v4122, %v4039
        %v4187 = vadd.f32 %v4123, %v4042
        %v4188 = vadd.f32 %v4124, %v4045
        %v4189 = vadd.f32 %v4125, %v4048
        %v4190 = vadd.f32 %v4126, %v4051
        %v4191 = vadd.f32 %v4127, %v4054
        %v4192 = vadd.f32 %v4128, %v4057
        %v4193 = vadd.f32 %v4129, %v4060
        %v4194 = vadd.f32 %v4130, %v4063
        %v4195 = vadd.f32 %v4131, %v4066
        %4196 = vst [vmem:[#allocation3] sm:$0xff] %v4132
        %4197 = vst [vmem:[#allocation3 + $0x8] sm:$0xff] %v4133
        %4198 = vst [vmem:[#allocation3 + $0x10] sm:$0xff] %v4134
        %4199 = vst [vmem:[#allocation3 + $0x18] sm:$0xff] %v4135
        %4200 = vst [vmem:[#allocation3 + $0x20] sm:$0xff] %v4136
        %4201 = vst [vmem:[#allocation3 + $0x28] sm:$0xff] %v4137
        %4202 = vst [vmem:[#allocation3 + $0x30] sm:$0xff] %v4138
        %4203 = vst [vmem:[#allocation3 + $0x38] sm:$0xff] %v4139
        %4204 = vst [vmem:[#allocation3 + $0x40] sm:$0xff] %v4140
        %4205 = vst [vmem:[#allocation3 + $0x48] sm:$0xff] %v4141
        %4206 = vst [vmem:[#allocation3 + $0x50] sm:$0xff] %v4142
        %4207 = vst [vmem:[#allocation3 + $0x58] sm:$0xff] %v4143
        %4208 = vst [vmem:[#allocation3 + $0x60] sm:$0xff] %v4144
        %4209 = vst [vmem:[#allocation3 + $0x68] sm:$0xff] %v4145
        %4210 = vst [vmem:[#allocation3 + $0x70] sm:$0xff] %v4146
        %4211 = vst [vmem:[#allocation3 + $0x78] sm:$0xff] %v4147
        %4212 = vst [vmem:[#allocation3 + $0x80] sm:$0xff] %v4148
        %4213 = vst [vmem:[#allocation3 + $0x88] sm:$0xff] %v4149
        %4214 = vst [vmem:[#allocation3 + $0x90] sm:$0xff] %v4150
        %4215 = vst [vmem:[#allocation3 + $0x98] sm:$0xff] %v4151
        %4216 = vst [vmem:[#allocation3 + $0xa0] sm:$0xff] %v4152
        %4217 = vst [vmem:[#allocation3 + $0xa8] sm:$0xff] %v4153
        %4218 = vst [vmem:[#allocation3 + $0xb0] sm:$0xff] %v4154
        %4219 = vst [vmem:[#allocation3 + $0xb8] sm:$0xff] %v4155
        %4220 = vst [vmem:[#allocation3 + $0xc0] sm:$0xff] %v4156
        %4221 = vst [vmem:[#allocation3 + $0xc8] sm:$0xff] %v4157
        %4222 = vst [vmem:[#allocation3 + $0xd0] sm:$0xff] %v4158
        %4223 = vst [vmem:[#allocation3 + $0xd8] sm:$0xff] %v4159
        %4224 = vst [vmem:[#allocation3 + $0xe0] sm:$0xff] %v4160
        %4225 = vst [vmem:[#allocation3 + $0xe8] sm:$0xff] %v4161
        %4226 = vst [vmem:[#allocation3 + $0xf0] sm:$0xff] %v4162
        %4227 = vst [vmem:[#allocation3 + $0xf8] sm:$0xff] %v4163
        %4228 = vst [vmem:[#allocation3 + $0x100] sm:$0xff] %v4164
        %4229 = vst [vmem:[#allocation3 + $0x108] sm:$0xff] %v4165
        %4230 = vst [vmem:[#allocation3 + $0x110] sm:$0xff] %v4166
        %4231 = vst [vmem:[#allocation3 + $0x118] sm:$0xff] %v4167
        %4232 = vst [vmem:[#allocation3 + $0x120] sm:$0xff] %v4168
        %4233 = vst [vmem:[#allocation3 + $0x128] sm:$0xff] %v4169
        %4234 = vst [vmem:[#allocation3 + $0x130] sm:$0xff] %v4170
        %4235 = vst [vmem:[#allocation3 + $0x138] sm:$0xff] %v4171
        %4236 = vst [vmem:[#allocation3 + $0x140] sm:$0xff] %v4172
        %4237 = vst [vmem:[#allocation3 + $0x148] sm:$0xff] %v4173
        %4238 = vst [vmem:[#allocation3 + $0x150] sm:$0xff] %v4174
        %4239 = vst [vmem:[#allocation3 + $0x158] sm:$0xff] %v4175
        %4240 = vst [vmem:[#allocation3 + $0x160] sm:$0xff] %v4176
        %4241 = vst [vmem:[#allocation3 + $0x168] sm:$0xff] %v4177
        %4242 = vst [vmem:[#allocation3 + $0x170] sm:$0xff] %v4178
        %4243 = vst [vmem:[#allocation3 + $0x178] sm:$0xff] %v4179
        %4244 = vst [vmem:[#allocation3 + $0x180] sm:$0xff] %v4180
        %4245 = vst [vmem:[#allocation3 + $0x188] sm:$0xff] %v4181
        %4246 = vst [vmem:[#allocation3 + $0x190] sm:$0xff] %v4182
        %4247 = vst [vmem:[#allocation3 + $0x198] sm:$0xff] %v4183
        %4248 = vst [vmem:[#allocation3 + $0x1a0] sm:$0xff] %v4184
        %4249 = vst [vmem:[#allocation3 + $0x1a8] sm:$0xff] %v4185
        %4250 = vst [vmem:[#allocation3 + $0x1b0] sm:$0xff] %v4186
        %4251 = vst [vmem:[#allocation3 + $0x1b8] sm:$0xff] %v4187
        %4252 = vst [vmem:[#allocation3 + $0x1c0] sm:$0xff] %v4188
        %4253 = vst [vmem:[#allocation3 + $0x1c8] sm:$0xff] %v4189
        %4254 = vst [vmem:[#allocation3 + $0x1d0] sm:$0xff] %v4190
        %4255 = vst [vmem:[#allocation3 + $0x1d8] sm:$0xff] %v4191
        %4256 = vst [vmem:[#allocation3 + $0x1e0] sm:$0xff] %v4192
        %4257 = vst [vmem:[#allocation3 + $0x1e8] sm:$0xff] %v4193
        %4258 = vst [vmem:[#allocation3 + $0x1f0] sm:$0xff] %v4194
        %4259 = vst [vmem:[#allocation3 + $0x1f8] sm:$0xff] %v4195
        %v4260 = vld [vmem:[%s3295 + $0x2] sm:$0xff]
        %v4261 = vld [vmem:[%s3295 + $0xa] sm:$0xff]
        %v4262 = vld [vmem:[%s3295 + $0x1a] sm:$0xff]
        %v4263 = vld [vmem:[%s3295 + $0x22] sm:$0xff]
        %v4264 = vld [vmem:[%s3295 + $0x32] sm:$0xff]
        %v4265 = vld [vmem:[%s3295 + $0x3a] sm:$0xff]
        %v4266 = vld [vmem:[%s3295 + $0x4a] sm:$0xff]
        %v4267 = vld [vmem:[%s3295 + $0x52] sm:$0xff]
        %v4268 = vld [vmem:[%s3295 + $0x62] sm:$0xff]
        %v4269 = vld [vmem:[%s3295 + $0x6a] sm:$0xff]
        %v4270 = vld [vmem:[%s3295 + $0x7a] sm:$0xff]
        %v4271 = vld [vmem:[%s3295 + $0x82] sm:$0xff]
        %v4272 = vld [vmem:[%s3295 + $0x92] sm:$0xff]
        %v4273 = vld [vmem:[%s3295 + $0x9a] sm:$0xff]
        %v4274 = vld [vmem:[%s3295 + $0xaa] sm:$0xff]
        %v4275 = vld [vmem:[%s3295 + $0xb2] sm:$0xff]
        %v4276 = vld [vmem:[%s3295 + $0xc2] sm:$0xff]
        %v4277 = vld [vmem:[%s3295 + $0xca] sm:$0xff]
        %v4278 = vld [vmem:[%s3295 + $0xda] sm:$0xff]
        %v4279 = vld [vmem:[%s3295 + $0xe2] sm:$0xff]
        %v4280 = vld [vmem:[%s3295 + $0xf2] sm:$0xff]
        %v4281 = vld [vmem:[%s3295 + $0xfa] sm:$0xff]
        %v4282 = vld [vmem:[%s3295 + $0x10a] sm:$0xff]
        %v4283 = vld [vmem:[%s3295 + $0x112] sm:$0xff]
        %v4284 = vld [vmem:[%s3295 + $0x122] sm:$0xff]
        %v4285 = vld [vmem:[%s3295 + $0x12a] sm:$0xff]
        %v4286 = vld [vmem:[%s3295 + $0x13a] sm:$0xff]
        %v4287 = vld [vmem:[%s3295 + $0x142] sm:$0xff]
        %v4288 = vld [vmem:[%s3295 + $0x152] sm:$0xff]
        %v4289 = vld [vmem:[%s3295 + $0x15a] sm:$0xff]
        %v4290 = vld [vmem:[%s3295 + $0x16a] sm:$0xff]
        %v4291 = vld [vmem:[%s3295 + $0x172] sm:$0xff]
        %v4292 = vld [vmem:[%s3295 + $0x1b2] sm:$0xff]
        %v4293 = vld [vmem:[%s3295 + $0x1ba] sm:$0xff]
        %v4294 = vld [vmem:[%s3295 + $0x1ca] sm:$0xff]
        %v4295 = vld [vmem:[%s3295 + $0x1d2] sm:$0xff]
        %v4296 = vld [vmem:[%s3295 + $0x1e2] sm:$0xff]
        %v4297 = vld [vmem:[%s3295 + $0x1ea] sm:$0xff]
        %v4298 = vld [vmem:[%s3295 + $0x1fa] sm:$0xff]
        %v4299 = vld [vmem:[%s3295 + $0x202] sm:$0xff]
        %v4300 = vld [vmem:[%s3295 + $0x212] sm:$0xff]
        %v4301 = vld [vmem:[%s3295 + $0x21a] sm:$0xff]
        %v4302 = vld [vmem:[%s3295 + $0x22a] sm:$0xff]
        %v4303 = vld [vmem:[%s3295 + $0x232] sm:$0xff]
        %v4304 = vld [vmem:[%s3295 + $0x242] sm:$0xff]
        %v4305 = vld [vmem:[%s3295 + $0x24a] sm:$0xff]
        %v4306 = vld [vmem:[%s3295 + $0x25a] sm:$0xff]
        %v4307 = vld [vmem:[%s3295 + $0x262] sm:$0xff]
        %v4308 = vld [vmem:[%s3295 + $0x272] sm:$0xff]
        %v4309 = vld [vmem:[%s3295 + $0x27a] sm:$0xff]
        %v4310 = vld [vmem:[%s3295 + $0x28a] sm:$0xff]
        %v4311 = vld [vmem:[%s3295 + $0x292] sm:$0xff]
        %v4312 = vld [vmem:[%s3295 + $0x2a2] sm:$0xff]
        %v4313 = vld [vmem:[%s3295 + $0x2aa] sm:$0xff]
        %v4314 = vld [vmem:[%s3295 + $0x2ba] sm:$0xff]
        %v4315 = vld [vmem:[%s3295 + $0x2c2] sm:$0xff]
        %v4316 = vld [vmem:[%s3295 + $0x2d2] sm:$0xff]
        %v4317 = vld [vmem:[%s3295 + $0x2da] sm:$0xff]
        %v4318 = vld [vmem:[%s3295 + $0x2ea] sm:$0xff]
        %v4319 = vld [vmem:[%s3295 + $0x2f2] sm:$0xff]
        %v4320 = vld [vmem:[%s3295 + $0x302] sm:$0xff]
        %v4321 = vld [vmem:[%s3295 + $0x30a] sm:$0xff]
        %v4322 = vld [vmem:[%s3295 + $0x31a] sm:$0xff]
        %v4323 = vld [vmem:[%s3295 + $0x322] sm:$0xff]
        %s4324 = scalar_lea.vmem %s243, 1024 [#allocation7]
        %v4325 = vld [vmem:[%s4324] sm:$0xff]
        %v4326 = vld [vmem:[%s4324 + $0x8] sm:$0xff]
        %v4327 = vld [vmem:[%s4324 + $0x10] sm:$0xff]
        %v4328 = vld [vmem:[%s4324 + $0x18] sm:$0xff]
        %v4329 = vld [vmem:[%s4324 + $0x20] sm:$0xff]
        %v4330 = vld [vmem:[%s4324 + $0x28] sm:$0xff]
        %v4331 = vld [vmem:[%s4324 + $0x30] sm:$0xff]
        %v4332 = vld [vmem:[%s4324 + $0x38] sm:$0xff]
        %v4333 = vld [vmem:[%s4324 + $0x40] sm:$0xff]
        %v4334 = vld [vmem:[%s4324 + $0x48] sm:$0xff]
        %v4335 = vld [vmem:[%s4324 + $0x50] sm:$0xff]
        %v4336 = vld [vmem:[%s4324 + $0x58] sm:$0xff]
        %v4337 = vld [vmem:[%s4324 + $0x60] sm:$0xff]
        %v4338 = vld [vmem:[%s4324 + $0x68] sm:$0xff]
        %v4339 = vld [vmem:[%s4324 + $0x70] sm:$0xff]
        %v4340 = vld [vmem:[%s4324 + $0x78] sm:$0xff]
        %4341 = vmatpush.msra.mxu0 %v4340
        %4342 = vmatpush.msra.mxu0 %v4339
        %4343 = vmatpush.msra.mxu0 %v4338
        %4344 = vmatpush.msra.mxu0 %v4337
        %4345 = vmatpush.msra.mxu0 %v4336
        %4346 = vmatpush.msra.mxu0 %v4335
        %4347 = vmatpush.msra.mxu0 %v4334
        %4348 = vmatpush.msra.mxu0 %v4333
        %4349 = vmatpush.msra.mxu0 %v4332
        %4350 = vmatpush.msra.mxu0 %v4331
        %4351 = vmatpush.msra.mxu0 %v4330
        %4352 = vmatpush.msra.mxu0 %v4329
        %4353 = vmatpush.msra.mxu0 %v4328
        %4354 = vmatpush.msra.mxu0 %v4327
        %4355 = vmatpush.msra.mxu0 %v4326
        %4356 = vmatpush.msra.mxu0 %v4325
        %4357 = vmatmul.f32.gmra.mxu0 %v4260
        %v4358 = vpop.f32.mrf.mxu0
        %v4359 = vadd.f32 0.0, %v4358
        %4360 = vmatmul.f32.gmra.mxu0 %v4261
        %v4361 = vpop.f32.mrf.mxu0
        %v4362 = vadd.f32 0.0, %v4361
        %4363 = vmatmul.f32.gmra.mxu0 %v4262
        %v4364 = vpop.f32.mrf.mxu0
        %v4365 = vadd.f32 0.0, %v4364
        %4366 = vmatmul.f32.gmra.mxu0 %v4263
        %v4367 = vpop.f32.mrf.mxu0
        %v4368 = vadd.f32 0.0, %v4367
        %4369 = vmatmul.f32.gmra.mxu0 %v4264
        %v4370 = vpop.f32.mrf.mxu0
        %v4371 = vadd.f32 0.0, %v4370
        %4372 = vmatmul.f32.gmra.mxu0 %v4265
        %v4373 = vpop.f32.mrf.mxu0
        %v4374 = vadd.f32 0.0, %v4373
        %4375 = vmatmul.f32.gmra.mxu0 %v4266
        %v4376 = vpop.f32.mrf.mxu0
        %v4377 = vadd.f32 0.0, %v4376
        %4378 = vmatmul.f32.gmra.mxu0 %v4267
        %v4379 = vpop.f32.mrf.mxu0
        %v4380 = vadd.f32 0.0, %v4379
        %4381 = vmatmul.f32.gmra.mxu0 %v4268
        %v4382 = vpop.f32.mrf.mxu0
        %v4383 = vadd.f32 0.0, %v4382
        %4384 = vmatmul.f32.gmra.mxu0 %v4269
        %v4385 = vpop.f32.mrf.mxu0
        %v4386 = vadd.f32 0.0, %v4385
        %4387 = vmatmul.f32.gmra.mxu0 %v4270
        %v4388 = vpop.f32.mrf.mxu0
        %v4389 = vadd.f32 0.0, %v4388
        %4390 = vmatmul.f32.gmra.mxu0 %v4271
        %v4391 = vpop.f32.mrf.mxu0
        %v4392 = vadd.f32 0.0, %v4391
        %4393 = vmatmul.f32.gmra.mxu0 %v4272
        %v4394 = vpop.f32.mrf.mxu0
        %v4395 = vadd.f32 0.0, %v4394
        %4396 = vmatmul.f32.gmra.mxu0 %v4273
        %v4397 = vpop.f32.mrf.mxu0
        %v4398 = vadd.f32 0.0, %v4397
        %4399 = vmatmul.f32.gmra.mxu0 %v4274
        %v4400 = vpop.f32.mrf.mxu0
        %v4401 = vadd.f32 0.0, %v4400
        %4402 = vmatmul.f32.gmra.mxu0 %v4275
        %v4403 = vpop.f32.mrf.mxu0
        %v4404 = vadd.f32 0.0, %v4403
        %4405 = vmatmul.f32.gmra.mxu0 %v4276
        %v4406 = vpop.f32.mrf.mxu0
        %v4407 = vadd.f32 0.0, %v4406
        %4408 = vmatmul.f32.gmra.mxu0 %v4277
        %v4409 = vpop.f32.mrf.mxu0
        %v4410 = vadd.f32 0.0, %v4409
        %4411 = vmatmul.f32.gmra.mxu0 %v4278
        %v4412 = vpop.f32.mrf.mxu0
        %v4413 = vadd.f32 0.0, %v4412
        %4414 = vmatmul.f32.gmra.mxu0 %v4279
        %v4415 = vpop.f32.mrf.mxu0
        %v4416 = vadd.f32 0.0, %v4415
        %4417 = vmatmul.f32.gmra.mxu0 %v4280
        %v4418 = vpop.f32.mrf.mxu0
        %v4419 = vadd.f32 0.0, %v4418
        %4420 = vmatmul.f32.gmra.mxu0 %v4281
        %v4421 = vpop.f32.mrf.mxu0
        %v4422 = vadd.f32 0.0, %v4421
        %4423 = vmatmul.f32.gmra.mxu0 %v4282
        %v4424 = vpop.f32.mrf.mxu0
        %v4425 = vadd.f32 0.0, %v4424
        %4426 = vmatmul.f32.gmra.mxu0 %v4283
        %v4427 = vpop.f32.mrf.mxu0
        %v4428 = vadd.f32 0.0, %v4427
        %4429 = vmatmul.f32.gmra.mxu0 %v4284
        %v4430 = vpop.f32.mrf.mxu0
        %v4431 = vadd.f32 0.0, %v4430
        %4432 = vmatmul.f32.gmra.mxu0 %v4285
        %v4433 = vpop.f32.mrf.mxu0
        %v4434 = vadd.f32 0.0, %v4433
        %4435 = vmatmul.f32.gmra.mxu0 %v4286
        %v4436 = vpop.f32.mrf.mxu0
        %v4437 = vadd.f32 0.0, %v4436
        %4438 = vmatmul.f32.gmra.mxu0 %v4287
        %v4439 = vpop.f32.mrf.mxu0
        %v4440 = vadd.f32 0.0, %v4439
        %4441 = vmatmul.f32.gmra.mxu0 %v4288
        %v4442 = vpop.f32.mrf.mxu0
        %v4443 = vadd.f32 0.0, %v4442
        %4444 = vmatmul.f32.gmra.mxu0 %v4289
        %v4445 = vpop.f32.mrf.mxu0
        %v4446 = vadd.f32 0.0, %v4445
        %4447 = vmatmul.f32.gmra.mxu0 %v4290
        %v4448 = vpop.f32.mrf.mxu0
        %v4449 = vadd.f32 0.0, %v4448
        %4450 = vmatmul.f32.gmra.mxu0 %v4291
        %v4451 = vpop.f32.mrf.mxu0
        %v4452 = vadd.f32 0.0, %v4451
        %4453 = vmatmul.f32.gmra.mxu0 %v4292
        %v4454 = vpop.f32.mrf.mxu0
        %v4455 = vadd.f32 0.0, %v4454
        %4456 = vmatmul.f32.gmra.mxu0 %v4293
        %v4457 = vpop.f32.mrf.mxu0
        %v4458 = vadd.f32 0.0, %v4457
        %4459 = vmatmul.f32.gmra.mxu0 %v4294
        %v4460 = vpop.f32.mrf.mxu0
        %v4461 = vadd.f32 0.0, %v4460
        %4462 = vmatmul.f32.gmra.mxu0 %v4295
        %v4463 = vpop.f32.mrf.mxu0
        %v4464 = vadd.f32 0.0, %v4463
        %4465 = vmatmul.f32.gmra.mxu0 %v4296
        %v4466 = vpop.f32.mrf.mxu0
        %v4467 = vadd.f32 0.0, %v4466
        %4468 = vmatmul.f32.gmra.mxu0 %v4297
        %v4469 = vpop.f32.mrf.mxu0
        %v4470 = vadd.f32 0.0, %v4469
        %4471 = vmatmul.f32.gmra.mxu0 %v4298
        %v4472 = vpop.f32.mrf.mxu0
        %v4473 = vadd.f32 0.0, %v4472
        %4474 = vmatmul.f32.gmra.mxu0 %v4299
        %v4475 = vpop.f32.mrf.mxu0
        %v4476 = vadd.f32 0.0, %v4475
        %4477 = vmatmul.f32.gmra.mxu0 %v4300
        %v4478 = vpop.f32.mrf.mxu0
        %v4479 = vadd.f32 0.0, %v4478
        %4480 = vmatmul.f32.gmra.mxu0 %v4301
        %v4481 = vpop.f32.mrf.mxu0
        %v4482 = vadd.f32 0.0, %v4481
        %4483 = vmatmul.f32.gmra.mxu0 %v4302
        %v4484 = vpop.f32.mrf.mxu0
        %v4485 = vadd.f32 0.0, %v4484
        %4486 = vmatmul.f32.gmra.mxu0 %v4303
        %v4487 = vpop.f32.mrf.mxu0
        %v4488 = vadd.f32 0.0, %v4487
        %4489 = vmatmul.f32.gmra.mxu0 %v4304
        %v4490 = vpop.f32.mrf.mxu0
        %v4491 = vadd.f32 0.0, %v4490
        %4492 = vmatmul.f32.gmra.mxu0 %v4305
        %v4493 = vpop.f32.mrf.mxu0
        %v4494 = vadd.f32 0.0, %v4493
        %4495 = vmatmul.f32.gmra.mxu0 %v4306
        %v4496 = vpop.f32.mrf.mxu0
        %v4497 = vadd.f32 0.0, %v4496
        %4498 = vmatmul.f32.gmra.mxu0 %v4307
        %v4499 = vpop.f32.mrf.mxu0
        %v4500 = vadd.f32 0.0, %v4499
        %4501 = vmatmul.f32.gmra.mxu0 %v4308
        %v4502 = vpop.f32.mrf.mxu0
        %v4503 = vadd.f32 0.0, %v4502
        %4504 = vmatmul.f32.gmra.mxu0 %v4309
        %v4505 = vpop.f32.mrf.mxu0
        %v4506 = vadd.f32 0.0, %v4505
        %4507 = vmatmul.f32.gmra.mxu0 %v4310
        %v4508 = vpop.f32.mrf.mxu0
        %v4509 = vadd.f32 0.0, %v4508
        %4510 = vmatmul.f32.gmra.mxu0 %v4311
        %v4511 = vpop.f32.mrf.mxu0
        %v4512 = vadd.f32 0.0, %v4511
        %4513 = vmatmul.f32.gmra.mxu0 %v4312
        %v4514 = vpop.f32.mrf.mxu0
        %v4515 = vadd.f32 0.0, %v4514
        %4516 = vmatmul.f32.gmra.mxu0 %v4313
        %v4517 = vpop.f32.mrf.mxu0
        %v4518 = vadd.f32 0.0, %v4517
        %4519 = vmatmul.f32.gmra.mxu0 %v4314
        %v4520 = vpop.f32.mrf.mxu0
        %v4521 = vadd.f32 0.0, %v4520
        %4522 = vmatmul.f32.gmra.mxu0 %v4315
        %v4523 = vpop.f32.mrf.mxu0
        %v4524 = vadd.f32 0.0, %v4523
        %4525 = vmatmul.f32.gmra.mxu0 %v4316
        %v4526 = vpop.f32.mrf.mxu0
        %v4527 = vadd.f32 0.0, %v4526
        %4528 = vmatmul.f32.gmra.mxu0 %v4317
        %v4529 = vpop.f32.mrf.mxu0
        %v4530 = vadd.f32 0.0, %v4529
        %4531 = vmatmul.f32.gmra.mxu0 %v4318
        %v4532 = vpop.f32.mrf.mxu0
        %v4533 = vadd.f32 0.0, %v4532
        %4534 = vmatmul.f32.gmra.mxu0 %v4319
        %v4535 = vpop.f32.mrf.mxu0
        %v4536 = vadd.f32 0.0, %v4535
        %4537 = vmatmul.f32.gmra.mxu0 %v4320
        %v4538 = vpop.f32.mrf.mxu0
        %v4539 = vadd.f32 0.0, %v4538
        %4540 = vmatmul.f32.gmra.mxu0 %v4321
        %v4541 = vpop.f32.mrf.mxu0
        %v4542 = vadd.f32 0.0, %v4541
        %4543 = vmatmul.f32.gmra.mxu0 %v4322
        %v4544 = vpop.f32.mrf.mxu0
        %v4545 = vadd.f32 0.0, %v4544
        %4546 = vmatmul.f32.gmra.mxu0 %v4323
        %v4547 = vpop.f32.mrf.mxu0
        %v4548 = vadd.f32 0.0, %v4547
        %4549 = vdwg.mxu0
        %v4550 = vld [vmem:[#allocation3] sm:$0xff]
        %v4551 = vld [vmem:[#allocation3 + $0x8] sm:$0xff]
        %v4552 = vld [vmem:[#allocation3 + $0x10] sm:$0xff]
        %v4553 = vld [vmem:[#allocation3 + $0x18] sm:$0xff]
        %v4554 = vld [vmem:[#allocation3 + $0x20] sm:$0xff]
        %v4555 = vld [vmem:[#allocation3 + $0x28] sm:$0xff]
        %v4556 = vld [vmem:[#allocation3 + $0x30] sm:$0xff]
        %v4557 = vld [vmem:[#allocation3 + $0x38] sm:$0xff]
        %v4558 = vld [vmem:[#allocation3 + $0x40] sm:$0xff]
        %v4559 = vld [vmem:[#allocation3 + $0x48] sm:$0xff]
        %v4560 = vld [vmem:[#allocation3 + $0x50] sm:$0xff]
        %v4561 = vld [vmem:[#allocation3 + $0x58] sm:$0xff]
        %v4562 = vld [vmem:[#allocation3 + $0x60] sm:$0xff]
        %v4563 = vld [vmem:[#allocation3 + $0x68] sm:$0xff]
        %v4564 = vld [vmem:[#allocation3 + $0x70] sm:$0xff]
        %v4565 = vld [vmem:[#allocation3 + $0x78] sm:$0xff]
        %v4566 = vld [vmem:[#allocation3 + $0x80] sm:$0xff]
        %v4567 = vld [vmem:[#allocation3 + $0x88] sm:$0xff]
        %v4568 = vld [vmem:[#allocation3 + $0x90] sm:$0xff]
        %v4569 = vld [vmem:[#allocation3 + $0x98] sm:$0xff]
        %v4570 = vld [vmem:[#allocation3 + $0xa0] sm:$0xff]
        %v4571 = vld [vmem:[#allocation3 + $0xa8] sm:$0xff]
        %v4572 = vld [vmem:[#allocation3 + $0xb0] sm:$0xff]
        %v4573 = vld [vmem:[#allocation3 + $0xb8] sm:$0xff]
        %v4574 = vld [vmem:[#allocation3 + $0xc0] sm:$0xff]
        %v4575 = vld [vmem:[#allocation3 + $0xc8] sm:$0xff]
        %v4576 = vld [vmem:[#allocation3 + $0xd0] sm:$0xff]
        %v4577 = vld [vmem:[#allocation3 + $0xd8] sm:$0xff]
        %v4578 = vld [vmem:[#allocation3 + $0xe0] sm:$0xff]
        %v4579 = vld [vmem:[#allocation3 + $0xe8] sm:$0xff]
        %v4580 = vld [vmem:[#allocation3 + $0xf0] sm:$0xff]
        %v4581 = vld [vmem:[#allocation3 + $0xf8] sm:$0xff]
        %v4582 = vld [vmem:[#allocation3 + $0x100] sm:$0xff]
        %v4583 = vld [vmem:[#allocation3 + $0x108] sm:$0xff]
        %v4584 = vld [vmem:[#allocation3 + $0x110] sm:$0xff]
        %v4585 = vld [vmem:[#allocation3 + $0x118] sm:$0xff]
        %v4586 = vld [vmem:[#allocation3 + $0x120] sm:$0xff]
        %v4587 = vld [vmem:[#allocation3 + $0x128] sm:$0xff]
        %v4588 = vld [vmem:[#allocation3 + $0x130] sm:$0xff]
        %v4589 = vld [vmem:[#allocation3 + $0x138] sm:$0xff]
        %v4590 = vld [vmem:[#allocation3 + $0x140] sm:$0xff]
        %v4591 = vld [vmem:[#allocation3 + $0x148] sm:$0xff]
        %v4592 = vld [vmem:[#allocation3 + $0x150] sm:$0xff]
        %v4593 = vld [vmem:[#allocation3 + $0x158] sm:$0xff]
        %v4594 = vld [vmem:[#allocation3 + $0x160] sm:$0xff]
        %v4595 = vld [vmem:[#allocation3 + $0x168] sm:$0xff]
        %v4596 = vld [vmem:[#allocation3 + $0x170] sm:$0xff]
        %v4597 = vld [vmem:[#allocation3 + $0x178] sm:$0xff]
        %v4598 = vld [vmem:[#allocation3 + $0x180] sm:$0xff]
        %v4599 = vld [vmem:[#allocation3 + $0x188] sm:$0xff]
        %v4600 = vld [vmem:[#allocation3 + $0x190] sm:$0xff]
        %v4601 = vld [vmem:[#allocation3 + $0x198] sm:$0xff]
        %v4602 = vld [vmem:[#allocation3 + $0x1a0] sm:$0xff]
        %v4603 = vld [vmem:[#allocation3 + $0x1a8] sm:$0xff]
        %v4604 = vld [vmem:[#allocation3 + $0x1b0] sm:$0xff]
        %v4605 = vld [vmem:[#allocation3 + $0x1b8] sm:$0xff]
        %v4606 = vld [vmem:[#allocation3 + $0x1c0] sm:$0xff]
        %v4607 = vld [vmem:[#allocation3 + $0x1c8] sm:$0xff]
        %v4608 = vld [vmem:[#allocation3 + $0x1d0] sm:$0xff]
        %v4609 = vld [vmem:[#allocation3 + $0x1d8] sm:$0xff]
        %v4610 = vld [vmem:[#allocation3 + $0x1e0] sm:$0xff]
        %v4611 = vld [vmem:[#allocation3 + $0x1e8] sm:$0xff]
        %v4612 = vld [vmem:[#allocation3 + $0x1f0] sm:$0xff]
        %v4613 = vld [vmem:[#allocation3 + $0x1f8] sm:$0xff]
        %v4614 = vadd.f32 %v4550, %v4359
        %v4615 = vadd.f32 %v4551, %v4362
        %v4616 = vadd.f32 %v4552, %v4365
        %v4617 = vadd.f32 %v4553, %v4368
        %v4618 = vadd.f32 %v4554, %v4371
        %v4619 = vadd.f32 %v4555, %v4374
        %v4620 = vadd.f32 %v4556, %v4377
        %v4621 = vadd.f32 %v4557, %v4380
        %v4622 = vadd.f32 %v4558, %v4383
        %v4623 = vadd.f32 %v4559, %v4386
        %v4624 = vadd.f32 %v4560, %v4389
        %v4625 = vadd.f32 %v4561, %v4392
        %v4626 = vadd.f32 %v4562, %v4395
        %v4627 = vadd.f32 %v4563, %v4398
        %v4628 = vadd.f32 %v4564, %v4401
        %v4629 = vadd.f32 %v4565, %v4404
        %v4630 = vadd.f32 %v4566, %v4407
        %v4631 = vadd.f32 %v4567, %v4410
        %v4632 = vadd.f32 %v4568, %v4413
        %v4633 = vadd.f32 %v4569, %v4416
        %v4634 = vadd.f32 %v4570, %v4419
        %v4635 = vadd.f32 %v4571, %v4422
        %v4636 = vadd.f32 %v4572, %v4425
        %v4637 = vadd.f32 %v4573, %v4428
        %v4638 = vadd.f32 %v4574, %v4431
        %v4639 = vadd.f32 %v4575, %v4434
        %v4640 = vadd.f32 %v4576, %v4437
        %v4641 = vadd.f32 %v4577, %v4440
        %v4642 = vadd.f32 %v4578, %v4443
        %v4643 = vadd.f32 %v4579, %v4446
        %v4644 = vadd.f32 %v4580, %v4449
        %v4645 = vadd.f32 %v4581, %v4452
        %v4646 = vadd.f32 %v4582, %v4455
        %v4647 = vadd.f32 %v4583, %v4458
        %v4648 = vadd.f32 %v4584, %v4461
        %v4649 = vadd.f32 %v4585, %v4464
        %v4650 = vadd.f32 %v4586, %v4467
        %v4651 = vadd.f32 %v4587, %v4470
        %v4652 = vadd.f32 %v4588, %v4473
        %v4653 = vadd.f32 %v4589, %v4476
        %v4654 = vadd.f32 %v4590, %v4479
        %v4655 = vadd.f32 %v4591, %v4482
        %v4656 = vadd.f32 %v4592, %v4485
        %v4657 = vadd.f32 %v4593, %v4488
        %v4658 = vadd.f32 %v4594, %v4491
        %v4659 = vadd.f32 %v4595, %v4494
        %v4660 = vadd.f32 %v4596, %v4497
        %v4661 = vadd.f32 %v4597, %v4500
        %v4662 = vadd.f32 %v4598, %v4503
        %v4663 = vadd.f32 %v4599, %v4506
        %v4664 = vadd.f32 %v4600, %v4509
        %v4665 = vadd.f32 %v4601, %v4512
        %v4666 = vadd.f32 %v4602, %v4515
        %v4667 = vadd.f32 %v4603, %v4518
        %v4668 = vadd.f32 %v4604, %v4521
        %v4669 = vadd.f32 %v4605, %v4524
        %v4670 = vadd.f32 %v4606, %v4527
        %v4671 = vadd.f32 %v4607, %v4530
        %v4672 = vadd.f32 %v4608, %v4533
        %v4673 = vadd.f32 %v4609, %v4536
        %v4674 = vadd.f32 %v4610, %v4539
        %v4675 = vadd.f32 %v4611, %v4542
        %v4676 = vadd.f32 %v4612, %v4545
        %v4677 = vadd.f32 %v4613, %v4548
        %4678 = vst [vmem:[#allocation3] sm:$0xff] %v4614
        %4679 = vst [vmem:[#allocation3 + $0x8] sm:$0xff] %v4615
        %4680 = vst [vmem:[#allocation3 + $0x10] sm:$0xff] %v4616
        %4681 = vst [vmem:[#allocation3 + $0x18] sm:$0xff] %v4617
        %4682 = vst [vmem:[#allocation3 + $0x20] sm:$0xff] %v4618
        %4683 = vst [vmem:[#allocation3 + $0x28] sm:$0xff] %v4619
        %4684 = vst [vmem:[#allocation3 + $0x30] sm:$0xff] %v4620
        %4685 = vst [vmem:[#allocation3 + $0x38] sm:$0xff] %v4621
        %4686 = vst [vmem:[#allocation3 + $0x40] sm:$0xff] %v4622
        %4687 = vst [vmem:[#allocation3 + $0x48] sm:$0xff] %v4623
        %4688 = vst [vmem:[#allocation3 + $0x50] sm:$0xff] %v4624
        %4689 = vst [vmem:[#allocation3 + $0x58] sm:$0xff] %v4625
        %4690 = vst [vmem:[#allocation3 + $0x60] sm:$0xff] %v4626
        %4691 = vst [vmem:[#allocation3 + $0x68] sm:$0xff] %v4627
        %4692 = vst [vmem:[#allocation3 + $0x70] sm:$0xff] %v4628
        %4693 = vst [vmem:[#allocation3 + $0x78] sm:$0xff] %v4629
        %4694 = vst [vmem:[#allocation3 + $0x80] sm:$0xff] %v4630
        %4695 = vst [vmem:[#allocation3 + $0x88] sm:$0xff] %v4631
        %4696 = vst [vmem:[#allocation3 + $0x90] sm:$0xff] %v4632
        %4697 = vst [vmem:[#allocation3 + $0x98] sm:$0xff] %v4633
        %4698 = vst [vmem:[#allocation3 + $0xa0] sm:$0xff] %v4634
        %4699 = vst [vmem:[#allocation3 + $0xa8] sm:$0xff] %v4635
        %4700 = vst [vmem:[#allocation3 + $0xb0] sm:$0xff] %v4636
        %4701 = vst [vmem:[#allocation3 + $0xb8] sm:$0xff] %v4637
        %4702 = vst [vmem:[#allocation3 + $0xc0] sm:$0xff] %v4638
        %4703 = vst [vmem:[#allocation3 + $0xc8] sm:$0xff] %v4639
        %4704 = vst [vmem:[#allocation3 + $0xd0] sm:$0xff] %v4640
        %4705 = vst [vmem:[#allocation3 + $0xd8] sm:$0xff] %v4641
        %4706 = vst [vmem:[#allocation3 + $0xe0] sm:$0xff] %v4642
        %4707 = vst [vmem:[#allocation3 + $0xe8] sm:$0xff] %v4643
        %4708 = vst [vmem:[#allocation3 + $0xf0] sm:$0xff] %v4644
        %4709 = vst [vmem:[#allocation3 + $0xf8] sm:$0xff] %v4645
        %4710 = vst [vmem:[#allocation3 + $0x100] sm:$0xff] %v4646
        %4711 = vst [vmem:[#allocation3 + $0x108] sm:$0xff] %v4647
        %4712 = vst [vmem:[#allocation3 + $0x110] sm:$0xff] %v4648
        %4713 = vst [vmem:[#allocation3 + $0x118] sm:$0xff] %v4649
        %4714 = vst [vmem:[#allocation3 + $0x120] sm:$0xff] %v4650
        %4715 = vst [vmem:[#allocation3 + $0x128] sm:$0xff] %v4651
        %4716 = vst [vmem:[#allocation3 + $0x130] sm:$0xff] %v4652
        %4717 = vst [vmem:[#allocation3 + $0x138] sm:$0xff] %v4653
        %4718 = vst [vmem:[#allocation3 + $0x140] sm:$0xff] %v4654
        %4719 = vst [vmem:[#allocation3 + $0x148] sm:$0xff] %v4655
        %4720 = vst [vmem:[#allocation3 + $0x150] sm:$0xff] %v4656
        %4721 = vst [vmem:[#allocation3 + $0x158] sm:$0xff] %v4657
        %4722 = vst [vmem:[#allocation3 + $0x160] sm:$0xff] %v4658
        %4723 = vst [vmem:[#allocation3 + $0x168] sm:$0xff] %v4659
        %4724 = vst [vmem:[#allocation3 + $0x170] sm:$0xff] %v4660
        %4725 = vst [vmem:[#allocation3 + $0x178] sm:$0xff] %v4661
        %4726 = vst [vmem:[#allocation3 + $0x180] sm:$0xff] %v4662
        %4727 = vst [vmem:[#allocation3 + $0x188] sm:$0xff] %v4663
        %4728 = vst [vmem:[#allocation3 + $0x190] sm:$0xff] %v4664
        %4729 = vst [vmem:[#allocation3 + $0x198] sm:$0xff] %v4665
        %4730 = vst [vmem:[#allocation3 + $0x1a0] sm:$0xff] %v4666
        %4731 = vst [vmem:[#allocation3 + $0x1a8] sm:$0xff] %v4667
        %4732 = vst [vmem:[#allocation3 + $0x1b0] sm:$0xff] %v4668
        %4733 = vst [vmem:[#allocation3 + $0x1b8] sm:$0xff] %v4669
        %4734 = vst [vmem:[#allocation3 + $0x1c0] sm:$0xff] %v4670
        %4735 = vst [vmem:[#allocation3 + $0x1c8] sm:$0xff] %v4671
        %4736 = vst [vmem:[#allocation3 + $0x1d0] sm:$0xff] %v4672
        %4737 = vst [vmem:[#allocation3 + $0x1d8] sm:$0xff] %v4673
        %4738 = vst [vmem:[#allocation3 + $0x1e0] sm:$0xff] %v4674
        %4739 = vst [vmem:[#allocation3 + $0x1e8] sm:$0xff] %v4675
        %4740 = vst [vmem:[#allocation3 + $0x1f0] sm:$0xff] %v4676
        %4741 = vst [vmem:[#allocation3 + $0x1f8] sm:$0xff] %v4677
        %v4742 = vld [vmem:[#allocation3] sm:$0xff]
        %v4743 = vld [vmem:[#allocation3 + $0x8] sm:$0xff]
        %v4744 = vld [vmem:[#allocation3 + $0x10] sm:$0xff]
        %v4745 = vld [vmem:[#allocation3 + $0x18] sm:$0xff]
        %v4746 = vld [vmem:[#allocation3 + $0x20] sm:$0xff]
        %v4747 = vld [vmem:[#allocation3 + $0x28] sm:$0xff]
        %v4748 = vld [vmem:[#allocation3 + $0x30] sm:$0xff]
        %v4749 = vld [vmem:[#allocation3 + $0x38] sm:$0xff]
        %v4750 = vld [vmem:[#allocation3 + $0x40] sm:$0xff]
        %v4751 = vld [vmem:[#allocation3 + $0x48] sm:$0xff]
        %v4752 = vld [vmem:[#allocation3 + $0x50] sm:$0xff]
        %v4753 = vld [vmem:[#allocation3 + $0x58] sm:$0xff]
        %v4754 = vld [vmem:[#allocation3 + $0x60] sm:$0xff]
        %v4755 = vld [vmem:[#allocation3 + $0x68] sm:$0xff]
        %v4756 = vld [vmem:[#allocation3 + $0x70] sm:$0xff]
        %v4757 = vld [vmem:[#allocation3 + $0x78] sm:$0xff]
        %v4758 = vld [vmem:[#allocation3 + $0x80] sm:$0xff]
        %v4759 = vld [vmem:[#allocation3 + $0x88] sm:$0xff]
        %v4760 = vld [vmem:[#allocation3 + $0x90] sm:$0xff]
        %v4761 = vld [vmem:[#allocation3 + $0x98] sm:$0xff]
        %v4762 = vld [vmem:[#allocation3 + $0xa0] sm:$0xff]
        %v4763 = vld [vmem:[#allocation3 + $0xa8] sm:$0xff]
        %v4764 = vld [vmem:[#allocation3 + $0xb0] sm:$0xff]
        %v4765 = vld [vmem:[#allocation3 + $0xb8] sm:$0xff]
        %v4766 = vld [vmem:[#allocation3 + $0xc0] sm:$0xff]
        %v4767 = vld [vmem:[#allocation3 + $0xc8] sm:$0xff]
        %v4768 = vld [vmem:[#allocation3 + $0xd0] sm:$0xff]
        %v4769 = vld [vmem:[#allocation3 + $0xd8] sm:$0xff]
        %v4770 = vld [vmem:[#allocation3 + $0xe0] sm:$0xff]
        %v4771 = vld [vmem:[#allocation3 + $0xe8] sm:$0xff]
        %v4772 = vld [vmem:[#allocation3 + $0xf0] sm:$0xff]
        %v4773 = vld [vmem:[#allocation3 + $0xf8] sm:$0xff]
        %v4774 = vld [vmem:[#allocation3 + $0x100] sm:$0xff]
        %v4775 = vld [vmem:[#allocation3 + $0x108] sm:$0xff]
        %v4776 = vld [vmem:[#allocation3 + $0x110] sm:$0xff]
        %v4777 = vld [vmem:[#allocation3 + $0x118] sm:$0xff]
        %v4778 = vld [vmem:[#allocation3 + $0x120] sm:$0xff]
        %v4779 = vld [vmem:[#allocation3 + $0x128] sm:$0xff]
        %v4780 = vld [vmem:[#allocation3 + $0x130] sm:$0xff]
        %v4781 = vld [vmem:[#allocation3 + $0x138] sm:$0xff]
        %v4782 = vld [vmem:[#allocation3 + $0x140] sm:$0xff]
        %v4783 = vld [vmem:[#allocation3 + $0x148] sm:$0xff]
        %v4784 = vld [vmem:[#allocation3 + $0x150] sm:$0xff]
        %v4785 = vld [vmem:[#allocation3 + $0x158] sm:$0xff]
        %v4786 = vld [vmem:[#allocation3 + $0x160] sm:$0xff]
        %v4787 = vld [vmem:[#allocation3 + $0x168] sm:$0xff]
        %v4788 = vld [vmem:[#allocation3 + $0x170] sm:$0xff]
        %v4789 = vld [vmem:[#allocation3 + $0x178] sm:$0xff]
        %v4790 = vld [vmem:[#allocation3 + $0x180] sm:$0xff]
        %v4791 = vld [vmem:[#allocation3 + $0x188] sm:$0xff]
        %v4792 = vld [vmem:[#allocation3 + $0x190] sm:$0xff]
        %v4793 = vld [vmem:[#allocation3 + $0x198] sm:$0xff]
        %v4794 = vld [vmem:[#allocation3 + $0x1a0] sm:$0xff]
        %v4795 = vld [vmem:[#allocation3 + $0x1a8] sm:$0xff]
        %v4796 = vld [vmem:[#allocation3 + $0x1b0] sm:$0xff]
        %v4797 = vld [vmem:[#allocation3 + $0x1b8] sm:$0xff]
        %v4798 = vld [vmem:[#allocation3 + $0x1c0] sm:$0xff]
        %v4799 = vld [vmem:[#allocation3 + $0x1c8] sm:$0xff]
        %v4800 = vld [vmem:[#allocation3 + $0x1d0] sm:$0xff]
        %v4801 = vld [vmem:[#allocation3 + $0x1d8] sm:$0xff]
        %v4802 = vld [vmem:[#allocation3 + $0x1e0] sm:$0xff]
        %v4803 = vld [vmem:[#allocation3 + $0x1e8] sm:$0xff]
        %v4804 = vld [vmem:[#allocation3 + $0x1f0] sm:$0xff]
        %v4805 = vld [vmem:[#allocation3 + $0x1f8] sm:$0xff]
        %v4806 = vadd.f32 %v4742, %v4743
        %v4807 = vadd.f32 %v4806, %v4744
        %v4808 = vadd.f32 %v4807, %v4745
        %v4809 = vadd.f32 %v4808, %v4746
        %v4810 = vadd.f32 %v4809, %v4747
        %v4811 = vadd.f32 %v4810, %v4748
        %v4812 = vadd.f32 %v4811, %v4749
        %v4813 = vadd.f32 %v4812, %v4750
        %v4814 = vadd.f32 %v4813, %v4751
        %v4815 = vadd.f32 %v4814, %v4752
        %v4816 = vadd.f32 %v4815, %v4753
        %v4817 = vadd.f32 %v4816, %v4754
        %v4818 = vadd.f32 %v4817, %v4755
        %v4819 = vadd.f32 %v4818, %v4756
        %v4820 = vadd.f32 %v4819, %v4757
        %v4821 = vadd.f32 %v4820, %v4758
        %v4822 = vadd.f32 %v4821, %v4759
        %v4823 = vadd.f32 %v4822, %v4760
        %v4824 = vadd.f32 %v4823, %v4761
        %v4825 = vadd.f32 %v4824, %v4762
        %v4826 = vadd.f32 %v4825, %v4763
        %v4827 = vadd.f32 %v4826, %v4764
        %v4828 = vadd.f32 %v4827, %v4765
        %v4829 = vadd.f32 %v4828, %v4766
        %v4830 = vadd.f32 %v4829, %v4767
        %v4831 = vadd.f32 %v4830, %v4768
        %v4832 = vadd.f32 %v4831, %v4769
        %v4833 = vadd.f32 %v4832, %v4770
        %v4834 = vadd.f32 %v4833, %v4771
        %v4835 = vadd.f32 %v4834, %v4772
        %v4836 = vadd.f32 %v4835, %v4773
        %v4837 = vadd.f32 %v4836, %v4774
        %v4838 = vadd.f32 %v4837, %v4775
        %v4839 = vadd.f32 %v4838, %v4776
        %v4840 = vadd.f32 %v4839, %v4777
        %v4841 = vadd.f32 %v4840, %v4778
        %v4842 = vadd.f32 %v4841, %v4779
        %v4843 = vadd.f32 %v4842, %v4780
        %v4844 = vadd.f32 %v4843, %v4781
        %v4845 = vadd.f32 %v4844, %v4782
        %v4846 = vadd.f32 %v4845, %v4783
        %v4847 = vadd.f32 %v4846, %v4784
        %v4848 = vadd.f32 %v4847, %v4785
        %v4849 = vadd.f32 %v4848, %v4786
        %v4850 = vadd.f32 %v4849, %v4787
        %v4851 = vadd.f32 %v4850, %v4788
        %v4852 = vadd.f32 %v4851, %v4789
        %v4853 = vadd.f32 %v4852, %v4790
        %v4854 = vadd.f32 %v4853, %v4791
        %v4855 = vadd.f32 %v4854, %v4792
        %v4856 = vadd.f32 %v4855, %v4793
        %v4857 = vadd.f32 %v4856, %v4794
        %v4858 = vadd.f32 %v4857, %v4795
        %v4859 = vadd.f32 %v4858, %v4796
        %v4860 = vadd.f32 %v4859, %v4797
        %v4861 = vadd.f32 %v4860, %v4798
        %v4862 = vadd.f32 %v4861, %v4799
        %v4863 = vadd.f32 %v4862, %v4800
        %v4864 = vadd.f32 %v4863, %v4801
        %v4865 = vadd.f32 %v4864, %v4802
        %v4866 = vadd.f32 %v4865, %v4803
        %v4867 = vadd.f32 %v4866, %v4804
        %v4868 = vadd.f32 %v4867, %v4805
        %v4869 = vrot.slane %v4868, 4
        %v4870 = vadd.f32 %v4868, %v4869
        %v4871 = vrot.slane %v4870, 2
        %v4872 = vadd.f32 %v4870, %v4871
        %v4873 = vrot.slane %v4872, 1
        %v4874 = vadd.f32 %v4872, %v4873
        %v4875 = vmul.f32 %v4874, 0.001953125
        %v4876 = vsub.f32 %v4742, %v4875
        %v4877 = vsub.f32 %v4743, %v4875
        %v4878 = vsub.f32 %v4744, %v4875
        %v4879 = vsub.f32 %v4745, %v4875
        %v4880 = vsub.f32 %v4746, %v4875
        %v4881 = vsub.f32 %v4747, %v4875
        %v4882 = vsub.f32 %v4748, %v4875
        %v4883 = vsub.f32 %v4749, %v4875
        %v4884 = vsub.f32 %v4750, %v4875
        %v4885 = vsub.f32 %v4751, %v4875
        %v4886 = vsub.f32 %v4752, %v4875
        %v4887 = vsub.f32 %v4753, %v4875
        %v4888 = vsub.f32 %v4754, %v4875
        %v4889 = vsub.f32 %v4755, %v4875
        %v4890 = vsub.f32 %v4756, %v4875
        %v4891 = vsub.f32 %v4757, %v4875
        %v4892 = vsub.f32 %v4758, %v4875
        %v4893 = vsub.f32 %v4759, %v4875
        %v4894 = vsub.f32 %v4760, %v4875
        %v4895 = vsub.f32 %v4761, %v4875
        %v4896 = vsub.f32 %v4762, %v4875
        %v4897 = vsub.f32 %v4763, %v4875
        %v4898 = vsub.f32 %v4764, %v4875
        %v4899 = vsub.f32 %v4765, %v4875
        %v4900 = vsub.f32 %v4766, %v4875
        %v4901 = vsub.f32 %v4767, %v4875
        %v4902 = vsub.f32 %v4768, %v4875
        %v4903 = vsub.f32 %v4769, %v4875
        %v4904 = vsub.f32 %v4770, %v4875
        %v4905 = vsub.f32 %v4771, %v4875
        %v4906 = vsub.f32 %v4772, %v4875
        %v4907 = vsub.f32 %v4773, %v4875
        %v4908 = vsub.f32 %v4774, %v4875
        %v4909 = vsub.f32 %v4775, %v4875
        %v4910 = vsub.f32 %v4776, %v4875
        %v4911 = vsub.f32 %v4777, %v4875
        %v4912 = vsub.f32 %v4778, %v4875
        %v4913 = vsub.f32 %v4779, %v4875
        %v4914 = vsub.f32 %v4780, %v4875
        %v4915 = vsub.f32 %v4781, %v4875
        %v4916 = vsub.f32 %v4782, %v4875
        %v4917 = vsub.f32 %v4783, %v4875
        %v4918 = vsub.f32 %v4784, %v4875
        %v4919 = vsub.f32 %v4785, %v4875
        %v4920 = vsub.f32 %v4786, %v4875
        %v4921 = vsub.f32 %v4787, %v4875
        %v4922 = vsub.f32 %v4788, %v4875
        %v4923 = vsub.f32 %v4789, %v4875
        %v4924 = vsub.f32 %v4790, %v4875
        %v4925 = vsub.f32 %v4791, %v4875
        %v4926 = vsub.f32 %v4792, %v4875
        %v4927 = vsub.f32 %v4793, %v4875
        %v4928 = vsub.f32 %v4794, %v4875
        %v4929 = vsub.f32 %v4795, %v4875
        %v4930 = vsub.f32 %v4796, %v4875
        %v4931 = vsub.f32 %v4797, %v4875
        %v4932 = vsub.f32 %v4798, %v4875
        %v4933 = vsub.f32 %v4799, %v4875
        %v4934 = vsub.f32 %v4800, %v4875
        %v4935 = vsub.f32 %v4801, %v4875
        %v4936 = vsub.f32 %v4802, %v4875
        %v4937 = vsub.f32 %v4803, %v4875
        %v4938 = vsub.f32 %v4804, %v4875
        %v4939 = vsub.f32 %v4805, %v4875
        %v4940 = vmul.f32 %v4876, %v4876
        %v4941 = vmul.f32 %v4877, %v4877
        %v4942 = vmul.f32 %v4878, %v4878
        %v4943 = vmul.f32 %v4879, %v4879
        %v4944 = vmul.f32 %v4880, %v4880
        %v4945 = vmul.f32 %v4881, %v4881
        %v4946 = vmul.f32 %v4882, %v4882
        %v4947 = vmul.f32 %v4883, %v4883
        %v4948 = vmul.f32 %v4884, %v4884
        %v4949 = vmul.f32 %v4885, %v4885
        %v4950 = vmul.f32 %v4886, %v4886
        %v4951 = vmul.f32 %v4887, %v4887
        %v4952 = vmul.f32 %v4888, %v4888
        %v4953 = vmul.f32 %v4889, %v4889
        %v4954 = vmul.f32 %v4890, %v4890
        %v4955 = vmul.f32 %v4891, %v4891
        %v4956 = vmul.f32 %v4892, %v4892
        %v4957 = vmul.f32 %v4893, %v4893
        %v4958 = vmul.f32 %v4894, %v4894
        %v4959 = vmul.f32 %v4895, %v4895
        %v4960 = vmul.f32 %v4896, %v4896
        %v4961 = vmul.f32 %v4897, %v4897
        %v4962 = vmul.f32 %v4898, %v4898
        %v4963 = vmul.f32 %v4899, %v4899
        %v4964 = vmul.f32 %v4900, %v4900
        %v4965 = vmul.f32 %v4901, %v4901
        %v4966 = vmul.f32 %v4902, %v4902
        %v4967 = vmul.f32 %v4903, %v4903
        %v4968 = vmul.f32 %v4904, %v4904
        %v4969 = vmul.f32 %v4905, %v4905
        %v4970 = vmul.f32 %v4906, %v4906
        %v4971 = vmul.f32 %v4907, %v4907
        %v4972 = vmul.f32 %v4908, %v4908
        %v4973 = vmul.f32 %v4909, %v4909
        %v4974 = vmul.f32 %v4910, %v4910
        %v4975 = vmul.f32 %v4911, %v4911
        %v4976 = vmul.f32 %v4912, %v4912
        %v4977 = vmul.f32 %v4913, %v4913
        %v4978 = vmul.f32 %v4914, %v4914
        %v4979 = vmul.f32 %v4915, %v4915
        %v4980 = vmul.f32 %v4916, %v4916
        %v4981 = vmul.f32 %v4917, %v4917
        %v4982 = vmul.f32 %v4918, %v4918
        %v4983 = vmul.f32 %v4919, %v4919
        %v4984 = vmul.f32 %v4920, %v4920
        %v4985 = vmul.f32 %v4921, %v4921
        %v4986 = vmul.f32 %v4922, %v4922
        %v4987 = vmul.f32 %v4923, %v4923
        %v4988 = vmul.f32 %v4924, %v4924
        %v4989 = vmul.f32 %v4925, %v4925
        %v4990 = vmul.f32 %v4926, %v4926
        %v4991 = vmul.f32 %v4927, %v4927
        %v4992 = vmul.f32 %v4928, %v4928
        %v4993 = vmul.f32 %v4929, %v4929
        %v4994 = vmul.f32 %v4930, %v4930
        %v4995 = vmul.f32 %v4931, %v4931
        %v4996 = vmul.f32 %v4932, %v4932
        %v4997 = vmul.f32 %v4933, %v4933
        %v4998 = vmul.f32 %v4934, %v4934
        %v4999 = vmul.f32 %v4935, %v4935
        %v5000 = vmul.f32 %v4936, %v4936
        %v5001 = vmul.f32 %v4937, %v4937
        %v5002 = vmul.f32 %v4938, %v4938
        %v5003 = vmul.f32 %v4939, %v4939
        %v5004 = vadd.f32 %v4940, %v4941
        %v5005 = vadd.f32 %v5004, %v4942
        %v5006 = vadd.f32 %v5005, %v4943
        %v5007 = vadd.f32 %v5006, %v4944
        %v5008 = vadd.f32 %v5007, %v4945
        %v5009 = vadd.f32 %v5008, %v4946
        %v5010 = vadd.f32 %v5009, %v4947
        %v5011 = vadd.f32 %v5010, %v4948
        %v5012 = vadd.f32 %v5011, %v4949
        %v5013 = vadd.f32 %v5012, %v4950
        %v5014 = vadd.f32 %v5013, %v4951
        %v5015 = vadd.f32 %v5014, %v4952
        %v5016 = vadd.f32 %v5015, %v4953
        %v5017 = vadd.f32 %v5016, %v4954
        %v5018 = vadd.f32 %v5017, %v4955
        %v5019 = vadd.f32 %v5018, %v4956
        %v5020 = vadd.f32 %v5019, %v4957
        %v5021 = vadd.f32 %v5020, %v4958
        %v5022 = vadd.f32 %v5021, %v4959
        %v5023 = vadd.f32 %v5022, %v4960
        %v5024 = vadd.f32 %v5023, %v4961
        %v5025 = vadd.f32 %v5024, %v4962
        %v5026 = vadd.f32 %v5025, %v4963
        %v5027 = vadd.f32 %v5026, %v4964
        %v5028 = vadd.f32 %v5027, %v4965
        %v5029 = vadd.f32 %v5028, %v4966
        %v5030 = vadd.f32 %v5029, %v4967
        %v5031 = vadd.f32 %v5030, %v4968
        %v5032 = vadd.f32 %v5031, %v4969
        %v5033 = vadd.f32 %v5032, %v4970
        %v5034 = vadd.f32 %v5033, %v4971
        %v5035 = vadd.f32 %v5034, %v4972
        %v5036 = vadd.f32 %v5035, %v4973
        %v5037 = vadd.f32 %v5036, %v4974
        %v5038 = vadd.f32 %v5037, %v4975
        %v5039 = vadd.f32 %v5038, %v4976
        %v5040 = vadd.f32 %v5039, %v4977
        %v5041 = vadd.f32 %v5040, %v4978
        %v5042 = vadd.f32 %v5041, %v4979
        %v5043 = vadd.f32 %v5042, %v4980
        %v5044 = vadd.f32 %v5043, %v4981
        %v5045 = vadd.f32 %v5044, %v4982
        %v5046 = vadd.f32 %v5045, %v4983
        %v5047 = vadd.f32 %v5046, %v4984
        %v5048 = vadd.f32 %v5047, %v4985
        %v5049 = vadd.f32 %v5048, %v4986
        %v5050 = vadd.f32 %v5049, %v4987
        %v5051 = vadd.f32 %v5050, %v4988
        %v5052 = vadd.f32 %v5051, %v4989
        %v5053 = vadd.f32 %v5052, %v4990
        %v5054 = vadd.f32 %v5053, %v4991
        %v5055 = vadd.f32 %v5054, %v4992
        %v5056 = vadd.f32 %v5055, %v4993
        %v5057 = vadd.f32 %v5056, %v4994
        %v5058 = vadd.f32 %v5057, %v4995
        %v5059 = vadd.f32 %v5058, %v4996
        %v5060 = vadd.f32 %v5059, %v4997
        %v5061 = vadd.f32 %v5060, %v4998
        %v5062 = vadd.f32 %v5061, %v4999
        %v5063 = vadd.f32 %v5062, %v5000
        %v5064 = vadd.f32 %v5063, %v5001
        %v5065 = vadd.f32 %v5064, %v5002
        %v5066 = vadd.f32 %v5065, %v5003
        %v5067 = vrot.slane %v5066, 4
        %v5068 = vadd.f32 %v5066, %v5067
        %v5069 = vrot.slane %v5068, 2
        %v5070 = vadd.f32 %v5068, %v5069
        %v5071 = vrot.slane %v5070, 1
        %v5072 = vadd.f32 %v5070, %v5071
        %v5073 = vmul.f32 %v5072, 0.001953125
        %v5074 = vadd.f32 %v5073, 1e-05
        %v5075 = vrsqrt.pop %v5074
        %v5076 = vmul.f32 %v5075, %v5074
        %v5077 = vmul.f32 %v5076, %v5075
        %v5078 = vmul.f32 0.5, %v5077
        %v5079 = vsub.f32 1.5, %v5078
        %v5080 = vmul.f32 %v5075, %v5079
        %vm5081 = vweird.f32 %v5074
        %vm5082 = vweird.f32 %v5075
        %vm5083 = vmor %vm5081, %vm5082
        %v5084 = vsel %vm5083, %v5075, %v5080
        %v5085 = vld [vmem:[%s252] sm:$0x1]
        %v5086 = vmul.f32 %v5085, %v5084
        %v5088 = vperm.slane %v5086, 0
        %v5090 = vmul.f32 %v4876, %v5088
        %v5091 = vmul.f32 %v4877, %v5088
        %v5092 = vmul.f32 %v4878, %v5088
        %v5093 = vmul.f32 %v4879, %v5088
        %v5094 = vmul.f32 %v4880, %v5088
        %v5095 = vmul.f32 %v4881, %v5088
        %v5096 = vmul.f32 %v4882, %v5088
        %v5097 = vmul.f32 %v4883, %v5088
        %v5098 = vmul.f32 %v4884, %v5088
        %v5099 = vmul.f32 %v4885, %v5088
        %v5100 = vmul.f32 %v4886, %v5088
        %v5101 = vmul.f32 %v4887, %v5088
        %v5102 = vmul.f32 %v4888, %v5088
        %v5103 = vmul.f32 %v4889, %v5088
        %v5104 = vmul.f32 %v4890, %v5088
        %v5105 = vmul.f32 %v4891, %v5088
        %v5106 = vmul.f32 %v4892, %v5088
        %v5107 = vmul.f32 %v4893, %v5088
        %v5108 = vmul.f32 %v4894, %v5088
        %v5109 = vmul.f32 %v4895, %v5088
        %v5110 = vmul.f32 %v4896, %v5088
        %v5111 = vmul.f32 %v4897, %v5088
        %v5112 = vmul.f32 %v4898, %v5088
        %v5113 = vmul.f32 %v4899, %v5088
        %v5114 = vmul.f32 %v4900, %v5088
        %v5115 = vmul.f32 %v4901, %v5088
        %v5116 = vmul.f32 %v4902, %v5088
        %v5117 = vmul.f32 %v4903, %v5088
        %v5118 = vmul.f32 %v4904, %v5088
        %v5119 = vmul.f32 %v4905, %v5088
        %v5120 = vmul.f32 %v4906, %v5088
        %v5121 = vmul.f32 %v4907, %v5088
        %v5122 = vmul.f32 %v4908, %v5088
        %v5123 = vmul.f32 %v4909, %v5088
        %v5124 = vmul.f32 %v4910, %v5088
        %v5125 = vmul.f32 %v4911, %v5088
        %v5126 = vmul.f32 %v4912, %v5088
        %v5127 = vmul.f32 %v4913, %v5088
        %v5128 = vmul.f32 %v4914, %v5088
        %v5129 = vmul.f32 %v4915, %v5088
        %v5130 = vmul.f32 %v4916, %v5088
        %v5131 = vmul.f32 %v4917, %v5088
        %v5132 = vmul.f32 %v4918, %v5088
        %v5133 = vmul.f32 %v4919, %v5088
        %v5134 = vmul.f32 %v4920, %v5088
        %v5135 = vmul.f32 %v4921, %v5088
        %v5136 = vmul.f32 %v4922, %v5088
        %v5137 = vmul.f32 %v4923, %v5088
        %v5138 = vmul.f32 %v4924, %v5088
        %v5139 = vmul.f32 %v4925, %v5088
        %v5140 = vmul.f32 %v4926, %v5088
        %v5141 = vmul.f32 %v4927, %v5088
        %v5142 = vmul.f32 %v4928, %v5088
        %v5143 = vmul.f32 %v4929, %v5088
        %v5144 = vmul.f32 %v4930, %v5088
        %v5145 = vmul.f32 %v4931, %v5088
        %v5146 = vmul.f32 %v4932, %v5088
        %v5147 = vmul.f32 %v4933, %v5088
        %v5148 = vmul.f32 %v4934, %v5088
        %v5149 = vmul.f32 %v4935, %v5088
        %v5150 = vmul.f32 %v4936, %v5088
        %v5151 = vmul.f32 %v4937, %v5088
        %v5152 = vmul.f32 %v4938, %v5088
        %v5153 = vmul.f32 %v4939, %v5088
        %v5154 = vld [vmem:[%s261] sm:$0x1]
        %v5156 = vperm.slane %v5154, 0
        %v5158 = vadd.f32 %v5090, %v5156
        %v5159 = vadd.f32 %v5091, %v5156
        %v5160 = vadd.f32 %v5092, %v5156
        %v5161 = vadd.f32 %v5093, %v5156
        %v5162 = vadd.f32 %v5094, %v5156
        %v5163 = vadd.f32 %v5095, %v5156
        %v5164 = vadd.f32 %v5096, %v5156
        %v5165 = vadd.f32 %v5097, %v5156
        %v5166 = vadd.f32 %v5098, %v5156
        %v5167 = vadd.f32 %v5099, %v5156
        %v5168 = vadd.f32 %v5100, %v5156
        %v5169 = vadd.f32 %v5101, %v5156
        %v5170 = vadd.f32 %v5102, %v5156
        %v5171 = vadd.f32 %v5103, %v5156
        %v5172 = vadd.f32 %v5104, %v5156
        %v5173 = vadd.f32 %v5105, %v5156
        %v5174 = vadd.f32 %v5106, %v5156
        %v5175 = vadd.f32 %v5107, %v5156
        %v5176 = vadd.f32 %v5108, %v5156
        %v5177 = vadd.f32 %v5109, %v5156
        %v5178 = vadd.f32 %v5110, %v5156
        %v5179 = vadd.f32 %v5111, %v5156
        %v5180 = vadd.f32 %v5112, %v5156
        %v5181 = vadd.f32 %v5113, %v5156
        %v5182 = vadd.f32 %v5114, %v5156
        %v5183 = vadd.f32 %v5115, %v5156
        %v5184 = vadd.f32 %v5116, %v5156
        %v5185 = vadd.f32 %v5117, %v5156
        %v5186 = vadd.f32 %v5118, %v5156
        %v5187 = vadd.f32 %v5119, %v5156
        %v5188 = vadd.f32 %v5120, %v5156
        %v5189 = vadd.f32 %v5121, %v5156
        %v5190 = vadd.f32 %v5122, %v5156
        %v5191 = vadd.f32 %v5123, %v5156
        %v5192 = vadd.f32 %v5124, %v5156
        %v5193 = vadd.f32 %v5125, %v5156
        %v5194 = vadd.f32 %v5126, %v5156
        %v5195 = vadd.f32 %v5127, %v5156
        %v5196 = vadd.f32 %v5128, %v5156
        %v5197 = vadd.f32 %v5129, %v5156
        %v5198 = vadd.f32 %v5130, %v5156
        %v5199 = vadd.f32 %v5131, %v5156
        %v5200 = vadd.f32 %v5132, %v5156
        %v5201 = vadd.f32 %v5133, %v5156
        %v5202 = vadd.f32 %v5134, %v5156
        %v5203 = vadd.f32 %v5135, %v5156
        %v5204 = vadd.f32 %v5136, %v5156
        %v5205 = vadd.f32 %v5137, %v5156
        %v5206 = vadd.f32 %v5138, %v5156
        %v5207 = vadd.f32 %v5139, %v5156
        %v5208 = vadd.f32 %v5140, %v5156
        %v5209 = vadd.f32 %v5141, %v5156
        %v5210 = vadd.f32 %v5142, %v5156
        %v5211 = vadd.f32 %v5143, %v5156
        %v5212 = vadd.f32 %v5144, %v5156
        %v5213 = vadd.f32 %v5145, %v5156
        %v5214 = vadd.f32 %v5146, %v5156
        %v5215 = vadd.f32 %v5147, %v5156
        %v5216 = vadd.f32 %v5148, %v5156
        %v5217 = vadd.f32 %v5149, %v5156
        %v5218 = vadd.f32 %v5150, %v5156
        %v5219 = vadd.f32 %v5151, %v5156
        %v5220 = vadd.f32 %v5152, %v5156
        %v5221 = vadd.f32 %v5153, %v5156
        %p5222 = scmp.lt.s32.totalorder %s23, 1
        // Predicated region
        $region57: #{tpu_custom_call.1} parent=35 // pred_check
          %p5223 = pneg %p5222
        $region58: #{tpu_custom_call.1} parent=35 // pred_check_branch
          %5225 = sbr.rel (%p5223) target = $region60
        $region59: #{tpu_custom_call.1} parent=35 // pred_region
          %5226 = vst [vmem:[%s1848 + $0x1] sm:$0xff] %v5158
          %5227 = vst [vmem:[%s1848 + $0x9] sm:$0xff] %v5159
          %5228 = vst [vmem:[%s1848 + $0x19] sm:$0xff] %v5160
          %5229 = vst [vmem:[%s1848 + $0x21] sm:$0xff] %v5161
          %5230 = vst [vmem:[%s1848 + $0x31] sm:$0xff] %v5162
          %5231 = vst [vmem:[%s1848 + $0x39] sm:$0xff] %v5163
          %5232 = vst [vmem:[%s1848 + $0x49] sm:$0xff] %v5164
          %5233 = vst [vmem:[%s1848 + $0x51] sm:$0xff] %v5165
          %5234 = vst [vmem:[%s1848 + $0x61] sm:$0xff] %v5166
          %5235 = vst [vmem:[%s1848 + $0x69] sm:$0xff] %v5167
          %5236 = vst [vmem:[%s1848 + $0x79] sm:$0xff] %v5168
          %5237 = vst [vmem:[%s1848 + $0x81] sm:$0xff] %v5169
          %5238 = vst [vmem:[%s1848 + $0x91] sm:$0xff] %v5170
          %5239 = vst [vmem:[%s1848 + $0x99] sm:$0xff] %v5171
          %5240 = vst [vmem:[%s1848 + $0xa9] sm:$0xff] %v5172
          %5241 = vst [vmem:[%s1848 + $0xb1] sm:$0xff] %v5173
          %5242 = vst [vmem:[%s1848 + $0xc1] sm:$0xff] %v5174
          %5243 = vst [vmem:[%s1848 + $0xc9] sm:$0xff] %v5175
          %5244 = vst [vmem:[%s1848 + $0xd9] sm:$0xff] %v5176
          %5245 = vst [vmem:[%s1848 + $0xe1] sm:$0xff] %v5177
          %5246 = vst [vmem:[%s1848 + $0xf1] sm:$0xff] %v5178
          %5247 = vst [vmem:[%s1848 + $0xf9] sm:$0xff] %v5179
          %5248 = vst [vmem:[%s1848 + $0x109] sm:$0xff] %v5180
          %5249 = vst [vmem:[%s1848 + $0x111] sm:$0xff] %v5181
          %5250 = vst [vmem:[%s1848 + $0x121] sm:$0xff] %v5182
          %5251 = vst [vmem:[%s1848 + $0x129] sm:$0xff] %v5183
          %5252 = vst [vmem:[%s1848 + $0x139] sm:$0xff] %v5184
          %5253 = vst [vmem:[%s1848 + $0x141] sm:$0xff] %v5185
          %5254 = vst [vmem:[%s1848 + $0x151] sm:$0xff] %v5186
          %5255 = vst [vmem:[%s1848 + $0x159] sm:$0xff] %v5187
          %5256 = vst [vmem:[%s1848 + $0x169] sm:$0xff] %v5188
          %5257 = vst [vmem:[%s1848 + $0x171] sm:$0xff] %v5189
          %5258 = vst [vmem:[%s1848 + $0x1b1] sm:$0xff] %v5190
          %5259 = vst [vmem:[%s1848 + $0x1b9] sm:$0xff] %v5191
          %5260 = vst [vmem:[%s1848 + $0x1c9] sm:$0xff] %v5192
          %5261 = vst [vmem:[%s1848 + $0x1d1] sm:$0xff] %v5193
          %5262 = vst [vmem:[%s1848 + $0x1e1] sm:$0xff] %v5194
          %5263 = vst [vmem:[%s1848 + $0x1e9] sm:$0xff] %v5195
          %5264 = vst [vmem:[%s1848 + $0x1f9] sm:$0xff] %v5196
          %5265 = vst [vmem:[%s1848 + $0x201] sm:$0xff] %v5197
          %5266 = vst [vmem:[%s1848 + $0x211] sm:$0xff] %v5198
          %5267 = vst [vmem:[%s1848 + $0x219] sm:$0xff] %v5199
          %5268 = vst [vmem:[%s1848 + $0x229] sm:$0xff] %v5200
          %5269 = vst [vmem:[%s1848 + $0x231] sm:$0xff] %v5201
          %5270 = vst [vmem:[%s1848 + $0x241] sm:$0xff] %v5202
          %5271 = vst [vmem:[%s1848 + $0x249] sm:$0xff] %v5203
          %5272 = vst [vmem:[%s1848 + $0x259] sm:$0xff] %v5204
          %5273 = vst [vmem:[%s1848 + $0x261] sm:$0xff] %v5205
          %5274 = vst [vmem:[%s1848 + $0x271] sm:$0xff] %v5206
          %5275 = vst [vmem:[%s1848 + $0x279] sm:$0xff] %v5207
          %5276 = vst [vmem:[%s1848 + $0x289] sm:$0xff] %v5208
          %5277 = vst [vmem:[%s1848 + $0x291] sm:$0xff] %v5209
          %5278 = vst [vmem:[%s1848 + $0x2a1] sm:$0xff] %v5210
          %5279 = vst [vmem:[%s1848 + $0x2a9] sm:$0xff] %v5211
          %5280 = vst [vmem:[%s1848 + $0x2b9] sm:$0xff] %v5212
          %5281 = vst [vmem:[%s1848 + $0x2c1] sm:$0xff] %v5213
          %5282 = vst [vmem:[%s1848 + $0x2d1] sm:$0xff] %v5214
          %5283 = vst [vmem:[%s1848 + $0x2d9] sm:$0xff] %v5215
          %5284 = vst [vmem:[%s1848 + $0x2e9] sm:$0xff] %v5216
          %5285 = vst [vmem:[%s1848 + $0x2f1] sm:$0xff] %v5217
          %5286 = vst [vmem:[%s1848 + $0x301] sm:$0xff] %v5218
          %5287 = vst [vmem:[%s1848 + $0x309] sm:$0xff] %v5219
          %5288 = vst [vmem:[%s1848 + $0x319] sm:$0xff] %v5220
          %5289 = vst [vmem:[%s1848 + $0x321] sm:$0xff] %v5221
        $region60: #{tpu_custom_call.1} parent=35 // pred_fallthru
          _
        %p5290 = scmp.eq.s32.totalorder %s23, 1
        // Predicated region
        $region61: #{tpu_custom_call.1} parent=35 // pred_check
          %p5291 = pneg %p5290
        $region62: #{tpu_custom_call.1} parent=35 // pred_check_branch
          %5293 = sbr.rel (%p5291) target = $region64
        $region63: #{tpu_custom_call.1} parent=35 // pred_region
          %5294 = vst [vmem:[#allocation12] sm:$0xff] %v5158
          %5295 = vst [vmem:[#allocation12 + $0x8] sm:$0xff] %v5159
          %5296 = vst [vmem:[#allocation12 + $0x10] sm:$0xff] %v5160
          %5297 = vst [vmem:[#allocation12 + $0x18] sm:$0xff] %v5161
          %5298 = vst [vmem:[#allocation12 + $0x20] sm:$0xff] %v5162
          %5299 = vst [vmem:[#allocation12 + $0x28] sm:$0xff] %v5163
          %5300 = vst [vmem:[#allocation12 + $0x30] sm:$0xff] %v5164
          %5301 = vst [vmem:[#allocation12 + $0x38] sm:$0xff] %v5165
          %5302 = vst [vmem:[#allocation12 + $0x40] sm:$0xff] %v5166
          %5303 = vst [vmem:[#allocation12 + $0x48] sm:$0xff] %v5167
          %5304 = vst [vmem:[#allocation12 + $0x50] sm:$0xff] %v5168
          %5305 = vst [vmem:[#allocation12 + $0x58] sm:$0xff] %v5169
          %5306 = vst [vmem:[#allocation12 + $0x60] sm:$0xff] %v5170
          %5307 = vst [vmem:[#allocation12 + $0x68] sm:$0xff] %v5171
          %5308 = vst [vmem:[#allocation12 + $0x70] sm:$0xff] %v5172
          %5309 = vst [vmem:[#allocation12 + $0x78] sm:$0xff] %v5173
          %5310 = vst [vmem:[#allocation12 + $0x80] sm:$0xff] %v5174
          %5311 = vst [vmem:[#allocation12 + $0x88] sm:$0xff] %v5175
          %5312 = vst [vmem:[#allocation12 + $0x90] sm:$0xff] %v5176
          %5313 = vst [vmem:[#allocation12 + $0x98] sm:$0xff] %v5177
          %5314 = vst [vmem:[#allocation12 + $0xa0] sm:$0xff] %v5178
          %5315 = vst [vmem:[#allocation12 + $0xa8] sm:$0xff] %v5179
          %5316 = vst [vmem:[#allocation12 + $0xb0] sm:$0xff] %v5180
          %5317 = vst [vmem:[#allocation12 + $0xb8] sm:$0xff] %v5181
          %5318 = vst [vmem:[#allocation12 + $0xc0] sm:$0xff] %v5182
          %5319 = vst [vmem:[#allocation12 + $0xc8] sm:$0xff] %v5183
          %5320 = vst [vmem:[#allocation12 + $0xd0] sm:$0xff] %v5184
          %5321 = vst [vmem:[#allocation12 + $0xd8] sm:$0xff] %v5185
          %5322 = vst [vmem:[#allocation12 + $0xe0] sm:$0xff] %v5186
          %5323 = vst [vmem:[#allocation12 + $0xe8] sm:$0xff] %v5187
          %5324 = vst [vmem:[#allocation12 + $0xf0] sm:$0xff] %v5188
          %5325 = vst [vmem:[#allocation12 + $0xf8] sm:$0xff] %v5189
          %5326 = vst [vmem:[#allocation12 + $0x100] sm:$0xff] %v5190
          %5327 = vst [vmem:[#allocation12 + $0x108] sm:$0xff] %v5191
          %5328 = vst [vmem:[#allocation12 + $0x110] sm:$0xff] %v5192
          %5329 = vst [vmem:[#allocation12 + $0x118] sm:$0xff] %v5193
          %5330 = vst [vmem:[#allocation12 + $0x120] sm:$0xff] %v5194
          %5331 = vst [vmem:[#allocation12 + $0x128] sm:$0xff] %v5195
          %5332 = vst [vmem:[#allocation12 + $0x130] sm:$0xff] %v5196
          %5333 = vst [vmem:[#allocation12 + $0x138] sm:$0xff] %v5197
          %5334 = vst [vmem:[#allocation12 + $0x140] sm:$0xff] %v5198
          %5335 = vst [vmem:[#allocation12 + $0x148] sm:$0xff] %v5199
          %5336 = vst [vmem:[#allocation12 + $0x150] sm:$0xff] %v5200
          %5337 = vst [vmem:[#allocation12 + $0x158] sm:$0xff] %v5201
          %5338 = vst [vmem:[#allocation12 + $0x160] sm:$0xff] %v5202
          %5339 = vst [vmem:[#allocation12 + $0x168] sm:$0xff] %v5203
          %5340 = vst [vmem:[#allocation12 + $0x170] sm:$0xff] %v5204
          %5341 = vst [vmem:[#allocation12 + $0x178] sm:$0xff] %v5205
          %5342 = vst [vmem:[#allocation12 + $0x180] sm:$0xff] %v5206
          %5343 = vst [vmem:[#allocation12 + $0x188] sm:$0xff] %v5207
          %5344 = vst [vmem:[#allocation12 + $0x190] sm:$0xff] %v5208
          %5345 = vst [vmem:[#allocation12 + $0x198] sm:$0xff] %v5209
          %5346 = vst [vmem:[#allocation12 + $0x1a0] sm:$0xff] %v5210
          %5347 = vst [vmem:[#allocation12 + $0x1a8] sm:$0xff] %v5211
          %5348 = vst [vmem:[#allocation12 + $0x1b0] sm:$0xff] %v5212
          %5349 = vst [vmem:[#allocation12 + $0x1b8] sm:$0xff] %v5213
          %5350 = vst [vmem:[#allocation12 + $0x1c0] sm:$0xff] %v5214
          %5351 = vst [vmem:[#allocation12 + $0x1c8] sm:$0xff] %v5215
          %5352 = vst [vmem:[#allocation12 + $0x1d0] sm:$0xff] %v5216
          %5353 = vst [vmem:[#allocation12 + $0x1d8] sm:$0xff] %v5217
          %5354 = vst [vmem:[#allocation12 + $0x1e0] sm:$0xff] %v5218
          %5355 = vst [vmem:[#allocation12 + $0x1e8] sm:$0xff] %v5219
          %5356 = vst [vmem:[#allocation12 + $0x1f0] sm:$0xff] %v5220
          %5357 = vst [vmem:[#allocation12 + $0x1f8] sm:$0xff] %v5221
        $region64: #{tpu_custom_call.1} parent=35 // pred_fallthru
          _
        // Predicated region
        $region65: #{tpu_custom_call.1} parent=35 // pred_check
          %p5358 = pneg %p135
        $region66: #{tpu_custom_call.1} parent=35 // pred_check_branch
          %5360 = sbr.rel (%p5358) target = $region68
        $region67: #{tpu_custom_call.1} parent=35 // pred_region
          %5362 = vsyncadd [#allocation6], 0
          %s5363 = sshll.u32 [#allocation12], 4
          %s5364 = int_to_ptr.vmem [resolvable:$true] %s5363
          %s5365 = sshll.u32 %s4, 4
          %s5366 = int_to_ptr.hbm [resolvable:$true] %s5365
          %5371 = dma.vmem_to_hbm [thread:$0]  %s5364, 8192, %s5366, [#allocation6], 128, 128, 8
        $region68: #{tpu_custom_call.1} parent=35 // pred_fallthru
          _
        // Predicated region
        $region69: #{tpu_custom_call.1} parent=35 // pred_check
          %p5372 = pneg %p135
        $region70: #{tpu_custom_call.1} parent=35 // pred_check_branch
          %5374 = sbr.rel (%p5372) target = $region72
        $region71: #{tpu_custom_call.1} parent=35 // pred_region
          %5376 = dma.done [#allocation6], 8192
        $region72: #{tpu_custom_call.1} parent=35 // pred_fallthru
          _
      $region36: #{tpu_custom_call.1} parent=5 // pred_fallthru
        _
      %p5377 = scmp.le.s32.totalorder 2, %s18
      // Predicated region
      $region73: #{tpu_custom_call.1} parent=5 // pred_check
        %p5378 = pneg %p5377
      $region74: #{tpu_custom_call.1} parent=5 // pred_check_branch
        %5380 = sbr.rel (%p5378) target = $region76
      $region75: #{tpu_custom_call.1} parent=5 // pred_region
        %s5381 = ssub.s32 %s18, 2
      $region76: #{tpu_custom_call.1} parent=5 // pred_fallthru
        _
    $region6: #{tpu_custom_call.1} parent=1 // loop_footer
      %s22 = sadd.s32 1, %s18
    $region7: #{tpu_custom_call.1} parent=1 // loop_footer_branch
      %17 = sbr.rel target = $region3
    $region8: #{tpu_custom_call.1} parent=1 // loop_exit
      _
    %5382 = vsyncpa [#allocation5], 1
    %s5383 = scalar_lea.sflag [#allocation5], 1
    %5384 = vsyncpa %s5383, 1
    %5385 = vsyncpa [#allocation8], 1
    %s5386 = scalar_lea.sflag [#allocation8], 1
    %5387 = vsyncpa %s5386, 1
    %5388 = vsyncpa [#allocation11], 1
    %s5389 = scalar_lea.sflag [#allocation11], 1
    %5390 = vsyncpa %s5389, 1
    %5391 = vsyncpa [#allocation6], 1
    %s5392 = scalar_lea.sflag [#allocation6], 1
    %5393 = vsyncpa %s5392, 1

</llo_original>
